<compile_context>
chip_gen: v5e
topology: v5e:2x2
jax: 0.10.0
libtpu: 0.0.40
codegen_flags: <defaults>
</compile_context>

<pallas_src>
import jax
import jax.numpy as jnp
from jax.experimental import pallas as pl
from jax.experimental.pallas import tpu as pltpu


def _round_up(n, m):
    return (n + m - 1) // m * m


# ----------------------------- Pallas kernel --------------------------------
def ffn_precode_kernel(
    x_ref, z_ref,
    w1_ref, b1_ref,          # 3072 -> 512             (encoder layer 1)
    wmid_ref, bmid_ref,      # [4, 512, 512]/[4,1,512] (encoder layers 2..5)
    w6_ref, b6_ref,          # 512 -> HP               (encoder layer 6)
    whc_ref, bhc_ref,        # [HP, 2*HP]/[1, 2*HP]    (fused mu | log_var heads)
    wd1_ref, bd1_ref,        # HP -> 512               (decoder layer 1)
    wd2_ref, bd2_ref,        # 512 -> NC               (decoder layer 2)
    out_ref,
):
    f32 = jnp.float32
    bf16 = jnp.bfloat16
    HP = whc_ref.shape[0]

    def linear(h, w, b):
        # bf16 x bf16 MXU matmul with f32 accumulation, f32 bias add.
        return jnp.dot(h.astype(bf16), w, preferred_element_type=f32) + b

    def relu_bf16(h):
        # ReLU with the bf16 cast folded in: the live inter-layer activation
        # is bf16 (half the vreg/VMEM footprint of f32).
        return jnp.maximum(h, 0.0).astype(bf16)

    # encoder: 3072 -> 500 x5 -> hidden, ReLU after every layer.
    h = relu_bf16(linear(x_ref[...], w1_ref[...], b1_ref[...]))
    for i in range(4):
        h = relu_bf16(linear(h, wmid_ref[i], bmid_ref[i]))
    h = relu_bf16(linear(h, w6_ref[...], b6_ref[...]))

    # fused variational heads: one [TB, 2*HP] matmul, lane-aligned slice.
    mv = linear(h, whc_ref[...], bhc_ref[...])
    mu = mv[:, :HP]
    log_var = mv[:, HP:]

    # reparametrize (f32 elementwise): mu + exp(0.5 * log_var) * z
    hidden = mu + jnp.exp(0.5 * log_var) * z_ref[...].astype(f32)

    # decoder: hidden -> 500 -> ReLU -> num_classes
    d = relu_bf16(linear(hidden, wd1_ref[...], bd1_ref[...]))
    out_ref[...] = linear(d, wd2_ref[...], bd2_ref[...]).astype(out_ref.dtype)


# ------------------------------- wrapper -------------------------------------
def _choose_batch_tiling(B):
    """Pick (TB, BP): 16-aligned tiles (bf16 sublane packing), tiles <= 256,
    >= 2 tiles when B > 128 (v7x dual-TC), minimal padded-row waste."""
    if B <= 128:
        TB = _round_up(max(B, 1), 16)
        return TB, TB
    best = None
    max_tiles = max(2, -(-B // 128))          # tiles of roughly >=128 rows
    for nt in range(2, max_tiles + 1):
        tb = _round_up(-(-B // nt), 16)
        if tb > 256:
            continue
        bp = tb * nt
        cand = (bp, nt)                        # minimize padding, then #tiles
        if best is None or cand < (best[1] * best[0] // best[0], 0) or cand < best:
            best = (tb, bp) if best is None or cand < (best[1], bp // best[0]) else best
    # simpler, explicit re-selection (keep logic readable & correct):
    best = None
    for nt in range(2, max_tiles + 1):
        tb = _round_up(-(-B // nt), 16)
        if tb > 256:
            continue
        bp = tb * nt
        key = (bp, nt)
        if best is None or key < best[0]:
            best = (key, tb, bp)
    if best is None:
        TB = 256
        return TB, _round_up(B, TB)
    return best[1], best[2]


def ffn_precode_forward(x_nchw, z, params):
    """Fused FFN_PRECODE forward.

    x_nchw : [B, 3, 32, 32] float32
    z      : [B, hidden_size] float32
    params : list of (W[in, out], b[1, out]) float32 pairs in layer order.
    Returns [B, num_classes] float32.
    """
    B = x_nchw.shape[0]
    x_flat = x_nchw.reshape(B, -1)              # nn.Flatten (NCHW row-major)
    d_in = x_flat.shape[1]                      # 3072
    d_h = params[0][0].shape[1]                 # 500
    hid = params[6][0].shape[1]                 # hidden_size
    ncls = params[-1][0].shape[1]               # num_classes

    # lane-dense padded dims
    DIN = _round_up(d_in, 128)
    DH = _round_up(d_h, 128)
    HP = _round_up(hid, 128)
    NC = _round_up(ncls, 128)

    TB, BP = _choose_batch_tiling(B)

    f32, bf16 = jnp.float32, jnp.bfloat16

    def pad_w(w, rp, cp):
        return jnp.pad(w, ((0, rp - w.shape[0]), (0, cp - w.shape[1]))).astype(bf16)

    def pad_b(b, cp):
        return jnp.pad(b, ((0, 0), (0, cp - b.shape[1]))).astype(f32)

    w1, b1 = pad_w(params[0][0], DIN, DH), pad_b(params[0][1], DH)
    wmid = jnp.stack([pad_w(params[i][0], DH, DH) for i in range(1, 5)])
    bmid = jnp.stack([pad_b(params[i][1], DH) for i in range(1, 5)])
    w6, b6 = pad_w(params[5][0], DH, HP), pad_b(params[5][1], HP)
    # fused variational heads: [HP, 2*HP] weight, [1, 2*HP] bias (mu | log_var)
    whc = jnp.concatenate([pad_w(params[6][0], HP, HP),
                           pad_w(params[7][0], HP, HP)], axis=1)
    bhc = jnp.concatenate([pad_b(params[6][1], HP),
                           pad_b(params[7][1], HP)], axis=1)
    wd1, bd1 = pad_w(params[8][0], HP, DH), pad_b(params[8][1], DH)
    wd2, bd2 = pad_w(params[9][0], DH, NC), pad_b(params[9][1], NC)

    xp = jnp.pad(x_flat, ((0, BP - B), (0, DIN - d_in))).astype(bf16)
    zp = jnp.pad(z, ((0, BP - B), (0, HP - hid))).astype(f32)

    flat_args = (xp, zp, w1, b1, wmid, bmid, w6, b6, whc, bhc, wd1, bd1, wd2, bd2)

    def batch_spec(cols):
        # activations: tiled over batch, double-buffered (default).
        return pl.BlockSpec((TB, cols), lambda i: (i, 0))

    def const2(shape):
        # resident weights/biases: constant block index, single-buffered.
        return pl.BlockSpec(shape, lambda i: (0, 0),
                            pipeline_mode=pl.Buffered(1))

    def const3(shape):
        return pl.BlockSpec(shape, lambda i: (0, 0, 0),
                            pipeline_mode=pl.Buffered(1))

    in_specs = [
        batch_spec(DIN),                        # x tile
        batch_spec(HP),                         # z tile
        const2((DIN, DH)), const2((1, DH)),     # w1 / b1  (resident)
        const3((4, DH, DH)), const3((4, 1, DH)),
        const2((DH, HP)), const2((1, HP)),
        const2((HP, 2 * HP)), const2((1, 2 * HP)),
        const2((HP, DH)), const2((1, DH)),
        const2((DH, NC)), const2((1, NC)),
    ]
    out_specs = pl.BlockSpec((TB, NC), lambda i: (i, 0))

    flops = 2 * BP * (DIN * DH + 4 * DH * DH + DH * HP + HP * (2 * HP)
                      + HP * DH + DH * NC)
    bytes_accessed = int(sum(int(a.size) * a.dtype.itemsize for a in flat_args)
                         + BP * NC * 4)
    cost = pl.CostEstimate(flops=int(flops), transcendentals=int(BP * HP),
                           bytes_accessed=bytes_accessed)

    out_padded = pl.pallas_call(
        ffn_precode_kernel,
        grid=(BP // TB,),
        out_shape=jax.ShapeDtypeStruct((BP, NC), f32),
        in_specs=in_specs,
        out_specs=out_specs,
        compiler_params=pltpu.CompilerParams(
            dimension_semantics=("parallel",),
            vmem_limit_bytes=32 << 20,          # safe on v7x (64 MiB physical)
        ),
        cost_estimate=cost,
    )(*flat_args)

    return out_padded[:B, :ncls]


# ------------------------- deterministic parameters --------------------------
def init_params(key, hidden_size, num_classes):
    """PyTorch-default-style uniform(-1/sqrt(fan_in), 1/sqrt(fan_in)) init.

    Returns list of (W[in, out], b[1, out]) float32 in forward order.
    """
    layer_dims = [
        (3072, 500), (500, 500), (500, 500), (500, 500), (500, 500),
        (500, hidden_size),                       # encoder
        (hidden_size, hidden_size),               # hidden2mu
        (hidden_size, hidden_size),               # hidden2log_var
        (hidden_size, 500), (500, num_classes),   # decoder
    ]
    params = []
    for (din, dout) in layer_dims:
        key, kw, kb = jax.random.split(key, 3)
        bound = 1.0 / jnp.sqrt(jnp.float32(din))
        w = jax.random.uniform(kw, (din, dout), jnp.float32, -bound, bound)
        b = jax.random.uniform(kb, (1, dout), jnp.float32, -bound, bound)
        params.append((w, b))
    return params


# --------------------------- pure-JAX reference -------------------------------
def reference_forward(x_nchw, z, params, matmul_dtype=jnp.float32):
    """True module semantics; matmul_dtype=bfloat16 emulates the kernel's precision."""
    h = x_nchw.reshape(x_nchw.shape[0], -1)

    def lin(a, w, b):
        return jnp.dot(a.astype(matmul_dtype), w.astype(matmul_dtype),
                       preferred_element_type=jnp.float32) + b

    for w, b in params[:6]:
        h = jnp.maximum(lin(h, w, b), 0.0)
        if matmul_dtype == jnp.bfloat16:
            h = h.astype(jnp.bfloat16)
    mu = lin(h, params[6][0], params[6][1])
    log_var = lin(h, params[7][0], params[7][1])
    hidden = mu + jnp.exp(0.5 * log_var) * z
    d = jnp.maximum(lin(hidden, params[8][0], params[8][1]), 0.0)
    if matmul_dtype == jnp.bfloat16:
        d = d.astype(jnp.bfloat16)
    return lin(d, params[9][0], params[9][1])


# ---------------------------------- main --------------------------------------
if __name__ == "__main__":
    B = 2
    HIDDEN = 32
    NUM_CLASSES = 10

    key = jax.random.PRNGKey(0)
    k_x, k_z, k_p = jax.random.split(key, 3)

    x = jax.random.normal(k_x, (B, 3, 32, 32), jnp.float32)   # 3*32*32 = 3072
    z = jax.random.normal(k_z, (B, HIDDEN), jnp.float32)
    params = init_params(k_p, HIDDEN, NUM_CLASSES)

    out = jax.block_until_ready(ffn_precode_forward(x, z, params))
    assert out.shape == (B, NUM_CLASSES)

    # tight check vs precision-matched (bf16 weights/activations, f32 accum) reference
    ref_bf16 = reference_forward(x, z, params, matmul_dtype=jnp.bfloat16)
    assert jnp.allclose(out, ref_bf16, atol=2e-3, rtol=2e-3), "mismatch vs bf16 reference"

    # sanity check vs full-f32 reference (bf16 quantization error only)
    ref_f32 = reference_forward(x, z, params)
    assert jnp.allclose(out, ref_f32, atol=5e-2, rtol=5e-2), "mismatch vs f32 reference"

    print("KERNEL_OK")
</pallas_src>

<mosaic_0001>
module attributes {stable_mosaic.version = 11 : i64} {
  func.func @ffn_precode_kernel(%arg0: i32, %arg1: memref<16x3072xbf16, #tpu.memory_space<vmem>>, %arg2: memref<16x128xf32, #tpu.memory_space<vmem>>, %arg3: memref<3072x512xbf16, #tpu.memory_space<vmem>>, %arg4: memref<1x512xf32, #tpu.memory_space<vmem>>, %arg5: memref<4x512x512xbf16, #tpu.memory_space<vmem>>, %arg6: memref<4x1x512xf32, #tpu.memory_space<vmem>>, %arg7: memref<512x128xbf16, #tpu.memory_space<vmem>>, %arg8: memref<1x128xf32, #tpu.memory_space<vmem>>, %arg9: memref<128x256xbf16, #tpu.memory_space<vmem>>, %arg10: memref<1x256xf32, #tpu.memory_space<vmem>>, %arg11: memref<128x512xbf16, #tpu.memory_space<vmem>>, %arg12: memref<1x512xf32, #tpu.memory_space<vmem>>, %arg13: memref<512x128xbf16, #tpu.memory_space<vmem>>, %arg14: memref<1x128xf32, #tpu.memory_space<vmem>>, %arg15: memref<16x128xf32, #tpu.memory_space<vmem>>) attributes {dimension_semantics = [#tpu.dimension_semantics<parallel>], iteration_bounds = array<i64: 1>, scalar_prefetch = 0 : i64, scratch_operands = 0 : i64, tpu.core_type = #tpu.core_type<tc>, window_params = [{transform_indices = @transform_0, window_bounds = array<i64: 16, 3072>}, {transform_indices = @transform_1, window_bounds = array<i64: 16, 128>}, {pipeline_mode = #tpu.pipeline_mode<synchronous>, transform_indices = @transform_2, window_bounds = array<i64: 3072, 512>}, {pipeline_mode = #tpu.pipeline_mode<synchronous>, transform_indices = @transform_3, window_bounds = array<i64: 1, 512>}, {pipeline_mode = #tpu.pipeline_mode<synchronous>, transform_indices = @transform_4, window_bounds = array<i64: 4, 512, 512>}, {pipeline_mode = #tpu.pipeline_mode<synchronous>, transform_indices = @transform_5, window_bounds = array<i64: 4, 1, 512>}, {pipeline_mode = #tpu.pipeline_mode<synchronous>, transform_indices = @transform_6, window_bounds = array<i64: 512, 128>}, {pipeline_mode = #tpu.pipeline_mode<synchronous>, transform_indices = @transform_7, window_bounds = array<i64: 1, 128>}, {pipeline_mode = #tpu.pipeline_mode<synchronous>, transform_indices = @transform_8, window_bounds = array<i64: 128, 256>}, {pipeline_mode = #tpu.pipeline_mode<synchronous>, transform_indices = @transform_9, window_bounds = array<i64: 1, 256>}, {pipeline_mode = #tpu.pipeline_mode<synchronous>, transform_indices = @transform_10, window_bounds = array<i64: 128, 512>}, {pipeline_mode = #tpu.pipeline_mode<synchronous>, transform_indices = @transform_11, window_bounds = array<i64: 1, 512>}, {pipeline_mode = #tpu.pipeline_mode<synchronous>, transform_indices = @transform_12, window_bounds = array<i64: 512, 128>}, {pipeline_mode = #tpu.pipeline_mode<synchronous>, transform_indices = @transform_13, window_bounds = array<i64: 1, 128>}, {transform_indices = @transform_14, window_bounds = array<i64: 16, 128>}]} {
    %c0 = arith.constant 0 : index
    %c0_0 = arith.constant 0 : index
    %0 = vector.load %arg1[%c0, %c0_0] : memref<16x3072xbf16, #tpu.memory_space<vmem>>, vector<16x3072xbf16>
    %c0_1 = arith.constant 0 : index
    %c0_2 = arith.constant 0 : index
    %1 = vector.load %arg3[%c0_1, %c0_2] : memref<3072x512xbf16, #tpu.memory_space<vmem>>, vector<3072x512xbf16>
    %c0_3 = arith.constant 0 : index
    %c0_4 = arith.constant 0 : index
    %2 = vector.load %arg4[%c0_3, %c0_4] : memref<1x512xf32, #tpu.memory_space<vmem>>, vector<1x512xf32>
    %cst = arith.constant dense<0.000000e+00> : vector<16x512xf32>
    %3 = tpu.matmul %0, %1, %cst {dimension_numbers = #tpu.dot_dimension_numbers<[1], [0], [0], [1], [0, 0, 1, 1], [], []>} : vector<16x3072xbf16>, vector<3072x512xbf16>, vector<16x512xf32> -> vector<16x512xf32>
    %4 = vector.broadcast %2 : vector<1x512xf32> to vector<16x512xf32>
    %5 = arith.addf %3, %4 : vector<16x512xf32>
    %cst_5 = arith.constant 0.000000e+00 : f32
    %6 = vector.broadcast %cst_5 : f32 to vector<16x512xf32>
    %7 = arith.maximumf %5, %6 : vector<16x512xf32>
    %8 = arith.truncf %7 : vector<16x512xf32> to vector<16x512xbf16>
    %c0_6 = arith.constant 0 : index
    %c0_7 = arith.constant 0 : index
    %c0_8 = arith.constant 0 : index
    %9 = vector.load %arg5[%c0_6, %c0_7, %c0_8] : memref<4x512x512xbf16, #tpu.memory_space<vmem>>, vector<1x512x512xbf16>
    %10 = vector.shape_cast %9 : vector<1x512x512xbf16> to vector<512x512xbf16>
    %c0_9 = arith.constant 0 : index
    %c0_10 = arith.constant 0 : index
    %c0_11 = arith.constant 0 : index
    %11 = vector.load %arg6[%c0_9, %c0_10, %c0_11] : memref<4x1x512xf32, #tpu.memory_space<vmem>>, vector<1x1x512xf32>
    %12 = vector.shape_cast %11 : vector<1x1x512xf32> to vector<1x512xf32>
    %cst_12 = arith.constant dense<0.000000e+00> : vector<16x512xf32>
    %13 = tpu.matmul %8, %10, %cst_12 {dimension_numbers = #tpu.dot_dimension_numbers<[1], [0], [0], [1], [0, 0, 1, 1], [], []>} : vector<16x512xbf16>, vector<512x512xbf16>, vector<16x512xf32> -> vector<16x512xf32>
    %14 = vector.broadcast %12 : vector<1x512xf32> to vector<16x512xf32>
    %15 = arith.addf %13, %14 : vector<16x512xf32>
    %cst_13 = arith.constant 0.000000e+00 : f32
    %16 = vector.broadcast %cst_13 : f32 to vector<16x512xf32>
    %17 = arith.maximumf %15, %16 : vector<16x512xf32>
    %18 = arith.truncf %17 : vector<16x512xf32> to vector<16x512xbf16>
    %c1 = arith.constant 1 : index
    %c0_14 = arith.constant 0 : index
    %c0_15 = arith.constant 0 : index
    %19 = vector.load %arg5[%c1, %c0_14, %c0_15] : memref<4x512x512xbf16, #tpu.memory_space<vmem>>, vector<1x512x512xbf16>
    %20 = vector.shape_cast %19 : vector<1x512x512xbf16> to vector<512x512xbf16>
    %c1_16 = arith.constant 1 : index
    %c0_17 = arith.constant 0 : index
    %c0_18 = arith.constant 0 : index
    %21 = vector.load %arg6[%c1_16, %c0_17, %c0_18] : memref<4x1x512xf32, #tpu.memory_space<vmem>>, vector<1x1x512xf32>
    %22 = vector.shape_cast %21 : vector<1x1x512xf32> to vector<1x512xf32>
    %cst_19 = arith.constant dense<0.000000e+00> : vector<16x512xf32>
    %23 = tpu.matmul %18, %20, %cst_19 {dimension_numbers = #tpu.dot_dimension_numbers<[1], [0], [0], [1], [0, 0, 1, 1], [], []>} : vector<16x512xbf16>, vector<512x512xbf16>, vector<16x512xf32> -> vector<16x512xf32>
    %24 = vector.broadcast %22 : vector<1x512xf32> to vector<16x512xf32>
    %25 = arith.addf %23, %24 : vector<16x512xf32>
    %cst_20 = arith.constant 0.000000e+00 : f32
    %26 = vector.broadcast %cst_20 : f32 to vector<16x512xf32>
    %27 = arith.maximumf %25, %26 : vector<16x512xf32>
    %28 = arith.truncf %27 : vector<16x512xf32> to vector<16x512xbf16>
    %c2 = arith.constant 2 : index
    %c0_21 = arith.constant 0 : index
    %c0_22 = arith.constant 0 : index
    %29 = vector.load %arg5[%c2, %c0_21, %c0_22] : memref<4x512x512xbf16, #tpu.memory_space<vmem>>, vector<1x512x512xbf16>
    %30 = vector.shape_cast %29 : vector<1x512x512xbf16> to vector<512x512xbf16>
    %c2_23 = arith.constant 2 : index
    %c0_24 = arith.constant 0 : index
    %c0_25 = arith.constant 0 : index
    %31 = vector.load %arg6[%c2_23, %c0_24, %c0_25] : memref<4x1x512xf32, #tpu.memory_space<vmem>>, vector<1x1x512xf32>
    %32 = vector.shape_cast %31 : vector<1x1x512xf32> to vector<1x512xf32>
    %cst_26 = arith.constant dense<0.000000e+00> : vector<16x512xf32>
    %33 = tpu.matmul %28, %30, %cst_26 {dimension_numbers = #tpu.dot_dimension_numbers<[1], [0], [0], [1], [0, 0, 1, 1], [], []>} : vector<16x512xbf16>, vector<512x512xbf16>, vector<16x512xf32> -> vector<16x512xf32>
    %34 = vector.broadcast %32 : vector<1x512xf32> to vector<16x512xf32>
    %35 = arith.addf %33, %34 : vector<16x512xf32>
    %cst_27 = arith.constant 0.000000e+00 : f32
    %36 = vector.broadcast %cst_27 : f32 to vector<16x512xf32>
    %37 = arith.maximumf %35, %36 : vector<16x512xf32>
    %38 = arith.truncf %37 : vector<16x512xf32> to vector<16x512xbf16>
    %c3 = arith.constant 3 : index
    %c0_28 = arith.constant 0 : index
    %c0_29 = arith.constant 0 : index
    %39 = vector.load %arg5[%c3, %c0_28, %c0_29] : memref<4x512x512xbf16, #tpu.memory_space<vmem>>, vector<1x512x512xbf16>
    %40 = vector.shape_cast %39 : vector<1x512x512xbf16> to vector<512x512xbf16>
    %c3_30 = arith.constant 3 : index
    %c0_31 = arith.constant 0 : index
    %c0_32 = arith.constant 0 : index
    %41 = vector.load %arg6[%c3_30, %c0_31, %c0_32] : memref<4x1x512xf32, #tpu.memory_space<vmem>>, vector<1x1x512xf32>
    %42 = vector.shape_cast %41 : vector<1x1x512xf32> to vector<1x512xf32>
    %cst_33 = arith.constant dense<0.000000e+00> : vector<16x512xf32>
    %43 = tpu.matmul %38, %40, %cst_33 {dimension_numbers = #tpu.dot_dimension_numbers<[1], [0], [0], [1], [0, 0, 1, 1], [], []>} : vector<16x512xbf16>, vector<512x512xbf16>, vector<16x512xf32> -> vector<16x512xf32>
    %44 = vector.broadcast %42 : vector<1x512xf32> to vector<16x512xf32>
    %45 = arith.addf %43, %44 : vector<16x512xf32>
    %cst_34 = arith.constant 0.000000e+00 : f32
    %46 = vector.broadcast %cst_34 : f32 to vector<16x512xf32>
    %47 = arith.maximumf %45, %46 : vector<16x512xf32>
    %48 = arith.truncf %47 : vector<16x512xf32> to vector<16x512xbf16>
    %c0_35 = arith.constant 0 : index
    %c0_36 = arith.constant 0 : index
    %49 = vector.load %arg7[%c0_35, %c0_36] : memref<512x128xbf16, #tpu.memory_space<vmem>>, vector<512x128xbf16>
    %c0_37 = arith.constant 0 : index
    %c0_38 = arith.constant 0 : index
    %50 = vector.load %arg8[%c0_37, %c0_38] : memref<1x128xf32, #tpu.memory_space<vmem>>, vector<1x128xf32>
    %cst_39 = arith.constant dense<0.000000e+00> : vector<16x128xf32>
    %51 = tpu.matmul %48, %49, %cst_39 {dimension_numbers = #tpu.dot_dimension_numbers<[1], [0], [0], [1], [0, 0, 1, 1], [], []>} : vector<16x512xbf16>, vector<512x128xbf16>, vector<16x128xf32> -> vector<16x128xf32>
    %52 = vector.broadcast %50 : vector<1x128xf32> to vector<16x128xf32>
    %53 = arith.addf %51, %52 : vector<16x128xf32>
    %cst_40 = arith.constant 0.000000e+00 : f32
    %54 = vector.broadcast %cst_40 : f32 to vector<16x128xf32>
    %55 = arith.maximumf %53, %54 : vector<16x128xf32>
    %56 = arith.truncf %55 : vector<16x128xf32> to vector<16x128xbf16>
    %c0_41 = arith.constant 0 : index
    %c0_42 = arith.constant 0 : index
    %57 = vector.load %arg9[%c0_41, %c0_42] : memref<128x256xbf16, #tpu.memory_space<vmem>>, vector<128x256xbf16>
    %c0_43 = arith.constant 0 : index
    %c0_44 = arith.constant 0 : index
    %58 = vector.load %arg10[%c0_43, %c0_44] : memref<1x256xf32, #tpu.memory_space<vmem>>, vector<1x256xf32>
    %cst_45 = arith.constant dense<0.000000e+00> : vector<16x256xf32>
    %59 = tpu.matmul %56, %57, %cst_45 {dimension_numbers = #tpu.dot_dimension_numbers<[1], [0], [0], [1], [0, 0, 1, 1], [], []>} : vector<16x128xbf16>, vector<128x256xbf16>, vector<16x256xf32> -> vector<16x256xf32>
    %60 = vector.broadcast %58 : vector<1x256xf32> to vector<16x256xf32>
    %61 = arith.addf %59, %60 : vector<16x256xf32>
    %62 = vector.extract_strided_slice %61 {offsets = [0, 0], sizes = [16, 128], strides = [1, 1]} : vector<16x256xf32> to vector<16x128xf32>
    %63 = vector.extract_strided_slice %61 {offsets = [0, 128], sizes = [16, 128], strides = [1, 1]} : vector<16x256xf32> to vector<16x128xf32>
    %cst_46 = arith.constant 5.000000e-01 : f32
    %64 = vector.broadcast %cst_46 : f32 to vector<16x128xf32>
    %65 = arith.mulf %64, %63 : vector<16x128xf32>
    %66 = math.exp %65 : vector<16x128xf32>
    %c0_47 = arith.constant 0 : index
    %c0_48 = arith.constant 0 : index
    %67 = vector.load %arg2[%c0_47, %c0_48] : memref<16x128xf32, #tpu.memory_space<vmem>>, vector<16x128xf32>
    %68 = arith.mulf %66, %67 : vector<16x128xf32>
    %69 = arith.addf %62, %68 : vector<16x128xf32>
    %c0_49 = arith.constant 0 : index
    %c0_50 = arith.constant 0 : index
    %70 = vector.load %arg11[%c0_49, %c0_50] : memref<128x512xbf16, #tpu.memory_space<vmem>>, vector<128x512xbf16>
    %c0_51 = arith.constant 0 : index
    %c0_52 = arith.constant 0 : index
    %71 = vector.load %arg12[%c0_51, %c0_52] : memref<1x512xf32, #tpu.memory_space<vmem>>, vector<1x512xf32>
    %72 = arith.truncf %69 : vector<16x128xf32> to vector<16x128xbf16>
    %cst_53 = arith.constant dense<0.000000e+00> : vector<16x512xf32>
    %73 = tpu.matmul %72, %70, %cst_53 {dimension_numbers = #tpu.dot_dimension_numbers<[1], [0], [0], [1], [0, 0, 1, 1], [], []>} : vector<16x128xbf16>, vector<128x512xbf16>, vector<16x512xf32> -> vector<16x512xf32>
    %74 = vector.broadcast %71 : vector<1x512xf32> to vector<16x512xf32>
    %75 = arith.addf %73, %74 : vector<16x512xf32>
    %cst_54 = arith.constant 0.000000e+00 : f32
    %76 = vector.broadcast %cst_54 : f32 to vector<16x512xf32>
    %77 = arith.maximumf %75, %76 : vector<16x512xf32>
    %78 = arith.truncf %77 : vector<16x512xf32> to vector<16x512xbf16>
    %c0_55 = arith.constant 0 : index
    %c0_56 = arith.constant 0 : index
    %79 = vector.load %arg13[%c0_55, %c0_56] : memref<512x128xbf16, #tpu.memory_space<vmem>>, vector<512x128xbf16>
    %c0_57 = arith.constant 0 : index
    %c0_58 = arith.constant 0 : index
    %80 = vector.load %arg14[%c0_57, %c0_58] : memref<1x128xf32, #tpu.memory_space<vmem>>, vector<1x128xf32>
    %cst_59 = arith.constant dense<0.000000e+00> : vector<16x128xf32>
    %81 = tpu.matmul %78, %79, %cst_59 {dimension_numbers = #tpu.dot_dimension_numbers<[1], [0], [0], [1], [0, 0, 1, 1], [], []>} : vector<16x512xbf16>, vector<512x128xbf16>, vector<16x128xf32> -> vector<16x128xf32>
    %82 = vector.broadcast %80 : vector<1x128xf32> to vector<16x128xf32>
    %83 = arith.addf %81, %82 : vector<16x128xf32>
    %c0_60 = arith.constant 0 : index
    %c0_61 = arith.constant 0 : index
    %84 = vector.load %arg15[%c0_60, %c0_61] : memref<16x128xf32, #tpu.memory_space<vmem>>, vector<16x128xf32>
    tpu.vector_store %arg15[%c0_60, %c0_61], %83 {strides = array<i32>} : memref<16x128xf32, #tpu.memory_space<vmem>>, vector<16x128xf32>,
    return
  }
  func.func @transform_0(%arg0: i32) -> (i32, i32) {
    %c0_i32 = arith.constant 0 : i32
    %c0_i32_0 = arith.constant 0 : i32
    return %arg0, %c0_i32 : i32, i32
  }
  func.func @transform_1(%arg0: i32) -> (i32, i32) {
    %c0_i32 = arith.constant 0 : i32
    %c0_i32_0 = arith.constant 0 : i32
    return %arg0, %c0_i32 : i32, i32
  }
  func.func @transform_2(%arg0: i32) -> (i32, i32) {
    %c0_i32 = arith.constant 0 : i32
    %c0_i32_0 = arith.constant 0 : i32
    %c0_i32_1 = arith.constant 0 : i32
    return %c0_i32, %c0_i32_0 : i32, i32
  }
  func.func @transform_3(%arg0: i32) -> (i32, i32) {
    %c0_i32 = arith.constant 0 : i32
    %c0_i32_0 = arith.constant 0 : i32
    %c0_i32_1 = arith.constant 0 : i32
    return %c0_i32, %c0_i32_0 : i32, i32
  }
  func.func @transform_4(%arg0: i32) -> (i32, i32, i32) {
    %c0_i32 = arith.constant 0 : i32
    %c0_i32_0 = arith.constant 0 : i32
    %c0_i32_1 = arith.constant 0 : i32
    %c0_i32_2 = arith.constant 0 : i32
    return %c0_i32, %c0_i32_0, %c0_i32_1 : i32, i32, i32
  }
  func.func @transform_5(%arg0: i32) -> (i32, i32, i32) {
    %c0_i32 = arith.constant 0 : i32
    %c0_i32_0 = arith.constant 0 : i32
    %c0_i32_1 = arith.constant 0 : i32
    %c0_i32_2 = arith.constant 0 : i32
    return %c0_i32, %c0_i32_0, %c0_i32_1 : i32, i32, i32
  }
  func.func @transform_6(%arg0: i32) -> (i32, i32) {
    %c0_i32 = arith.constant 0 : i32
    %c0_i32_0 = arith.constant 0 : i32
    %c0_i32_1 = arith.constant 0 : i32
    return %c0_i32, %c0_i32_0 : i32, i32
  }
  func.func @transform_7(%arg0: i32) -> (i32, i32) {
    %c0_i32 = arith.constant 0 : i32
    %c0_i32_0 = arith.constant 0 : i32
    %c0_i32_1 = arith.constant 0 : i32
    return %c0_i32, %c0_i32_0 : i32, i32
  }
  func.func @transform_8(%arg0: i32) -> (i32, i32) {
    %c0_i32 = arith.constant 0 : i32
    %c0_i32_0 = arith.constant 0 : i32
    %c0_i32_1 = arith.constant 0 : i32
    return %c0_i32, %c0_i32_0 : i32, i32
  }
  func.func @transform_9(%arg0: i32) -> (i32, i32) {
    %c0_i32 = arith.constant 0 : i32
    %c0_i32_0 = arith.constant 0 : i32
    %c0_i32_1 = arith.constant 0 : i32
    return %c0_i32, %c0_i32_0 : i32, i32
  }
  func.func @transform_10(%arg0: i32) -> (i32, i32) {
    %c0_i32 = arith.constant 0 : i32
    %c0_i32_0 = arith.constant 0 : i32
    %c0_i32_1 = arith.constant 0 : i32
    return %c0_i32, %c0_i32_0 : i32, i32
  }
  func.func @transform_11(%arg0: i32) -> (i32, i32) {
    %c0_i32 = arith.constant 0 : i32
    %c0_i32_0 = arith.constant 0 : i32
    %c0_i32_1 = arith.constant 0 : i32
    return %c0_i32, %c0_i32_0 : i32, i32
  }
  func.func @transform_12(%arg0: i32) -> (i32, i32) {
    %c0_i32 = arith.constant 0 : i32
    %c0_i32_0 = arith.constant 0 : i32
    %c0_i32_1 = arith.constant 0 : i32
    return %c0_i32, %c0_i32_0 : i32, i32
  }
  func.func @transform_13(%arg0: i32) -> (i32, i32) {
    %c0_i32 = arith.constant 0 : i32
    %c0_i32_0 = arith.constant 0 : i32
    %c0_i32_1 = arith.constant 0 : i32
    return %c0_i32, %c0_i32_0 : i32, i32
  }
  func.func @transform_14(%arg0: i32) -> (i32, i32) {
    %c0_i32 = arith.constant 0 : i32
    %c0_i32_0 = arith.constant 0 : i32
    return %arg0, %c0_i32 : i32, i32
  }
}

</mosaic_0001>

<llo_original>
// kernel: tpu_custom_call.1
$region0: #{tpu_custom_call.1}
  #allocation0 [shape = 'u32[]', space=smem, size = 0x4, offset = 0x4, fixed_abs, tag = 'smem constant byte address 0x4 - core index']
  #allocation1 [shape = 'u32[72,128]{1,0:T(1,128)}', space=vmem, size = 0x9000, scoped, tag = 'internal scratch']
  %s0 = inlined_call_operand.hbm [shape: bf16[16,3072], index: 0, kind: input, shape index: {}]
  %s1 = inlined_call_operand.hbm [shape: f32[16,128], index: 1, kind: input, shape index: {}]
  %s2 = inlined_call_operand.hbm [shape: bf16[3072,512], index: 2, kind: input, shape index: {}]
  %s3 = inlined_call_operand.hbm [shape: f32[1,512], index: 3, kind: input, shape index: {}]
  %s4 = inlined_call_operand.hbm [shape: bf16[4,512,512], index: 4, kind: input, shape index: {}]
  %s5 = inlined_call_operand.hbm [shape: f32[4,1,512], index: 5, kind: input, shape index: {}]
  %s6 = inlined_call_operand.hbm [shape: bf16[512,128], index: 6, kind: input, shape index: {}]
  %s7 = inlined_call_operand.hbm [shape: f32[1,128], index: 7, kind: input, shape index: {}]
  %s8 = inlined_call_operand.hbm [shape: bf16[128,256], index: 8, kind: input, shape index: {}]
  %s9 = inlined_call_operand.hbm [shape: f32[1,256], index: 9, kind: input, shape index: {}]
  %s10 = inlined_call_operand.hbm [shape: bf16[128,512], index: 10, kind: input, shape index: {}]
  %s11 = inlined_call_operand.hbm [shape: f32[1,512], index: 11, kind: input, shape index: {}]
  %s12 = inlined_call_operand.hbm [shape: bf16[512,128], index: 12, kind: input, shape index: {}]
  %s13 = inlined_call_operand.hbm [shape: f32[1,128], index: 13, kind: input, shape index: {}]
  %s14 = inlined_call_operand.hbm [shape: f32[16,128], index: 14, kind: output, shape index: {}]
  %s15 = sld [smem:[#allocation0]]
  $region122: #{tpu_custom_call.1} parent=0
    _
  %s17 = ssub.s32 1, %s15
  %s18 = scalar_select 0, %s17, %s15
  $region1: #{tpu_custom_call.1} parent=0
    #allocation2 [shape = 'u8[98304]{0}', space=vmem, size = 0x18000, scoped, tag = 'input window, operand 0, single buffered']
    #allocation3 [shape = 's32[1]{0}', space=sflag, size = 0x4, scoped, tag = 'scoped memory for tpu_custom_call.1']
    #allocation4 [shape = 's32[1]{0}', space=sflag, size = 0x4, scoped, tag = 'scoped memory for tpu_custom_call.1']
    #allocation5 [shape = 'u8[8192]{0}', space=vmem, size = 0x2000, scoped, tag = 'input window, operand 1, single buffered']
    #allocation6 [shape = 's32[1]{0}', space=sflag, size = 0x4, scoped, tag = 'scoped memory for tpu_custom_call.1']
    #allocation7 [shape = 'u8[3145728]{0}', space=vmem, size = 0x300000, scoped, tag = 'input window, operand 2, single buffered']
    #allocation8 [shape = 'u8[2048]{0}', space=vmem, size = 0x800, scoped, tag = 'input window, operand 3, single buffered']
    #allocation9 [shape = 's32[1]{0}', space=sflag, size = 0x4, scoped, tag = 'scoped memory for tpu_custom_call.1']
    #allocation10 [shape = 'u8[2097152]{0}', space=vmem, size = 0x200000, scoped, tag = 'input window, operand 4, single buffered']
    #allocation11 [shape = 'u8[8192]{0}', space=vmem, size = 0x2000, scoped, tag = 'input window, operand 5, single buffered']
    #allocation12 [shape = 's32[1]{0}', space=sflag, size = 0x4, scoped, tag = 'scoped memory for tpu_custom_call.1']
    #allocation13 [shape = 'u8[131072]{0}', space=vmem, size = 0x20000, scoped, tag = 'input window, operand 6, single buffered']
    #allocation14 [shape = 'u8[512]{0}', space=vmem, size = 0x400, scoped, tag = 'input window, operand 7, single buffered']
    #allocation15 [shape = 's32[1]{0}', space=sflag, size = 0x4, scoped, tag = 'scoped memory for tpu_custom_call.1']
    #allocation16 [shape = 'u8[65536]{0}', space=vmem, size = 0x10000, scoped, tag = 'input window, operand 8, single buffered']
    #allocation17 [shape = 'u8[1024]{0}', space=vmem, size = 0x400, scoped, tag = 'input window, operand 9, single buffered']
    #allocation18 [shape = 's32[1]{0}', space=sflag, size = 0x4, scoped, tag = 'scoped memory for tpu_custom_call.1']
    #allocation19 [shape = 'u8[131072]{0}', space=vmem, size = 0x20000, scoped, tag = 'input window, operand 10, single buffered']
    #allocation20 [shape = 'u8[2048]{0}', space=vmem, size = 0x800, scoped, tag = 'input window, operand 11, single buffered']
    #allocation21 [shape = 's32[1]{0}', space=sflag, size = 0x4, scoped, tag = 'scoped memory for tpu_custom_call.1']
    #allocation22 [shape = 'u8[131072]{0}', space=vmem, size = 0x20000, scoped, tag = 'input window, operand 12, single buffered']
    #allocation23 [shape = 'u8[512]{0}', space=vmem, size = 0x400, scoped, tag = 'input window, operand 13, single buffered']
    #allocation24 [shape = 's32[1]{0}', space=sflag, size = 0x4, scoped, tag = 'scoped memory for tpu_custom_call.1']
    #allocation25 [shape = 'u8[8192]{0}', space=vmem, size = 0x2000, scoped, tag = 'output window, operand 0, single buffered']
    %19 = vsyncpa [#allocation3], 0
    %20 = vsyncpa [#allocation6], 0
    %21 = vsyncpa [#allocation9], 0
    %22 = vsyncpa [#allocation12], 0
    %23 = vsyncpa [#allocation15], 0
    %24 = vsyncpa [#allocation18], 0
    %25 = vsyncpa [#allocation21], 0
    %26 = vsyncpa [#allocation24], 0
    %27 = vsyncpa [#allocation4], 0
    // Predicated region
    $region2: #{tpu_custom_call.1} parent=1 // pred_check
      _
    $region3: #{tpu_custom_call.1} parent=1 // pred_check_branch
      %29 = sbr.rel (0) target = $region5
    $region4: #{tpu_custom_call.1} parent=1 // pred_region
      %31 = vsyncadd [#allocation3], 0
      %s32 = sshll.u32 %s0, 4
      %s33 = int_to_ptr.hbm [resolvable:$true] %s32
      %s34 = sshll.u32 [#allocation2], 4
      %s35 = int_to_ptr.vmem [resolvable:$true] %s34
      %40 = dma.hbm_to_vmem [thread:$0]  %s33, 3072, %s35, [#allocation3], 1536, 1536, 96
    $region5: #{tpu_custom_call.1} parent=1 // pred_fallthru
      _
    // Predicated region
    $region6: #{tpu_custom_call.1} parent=1 // pred_check
      _
    $region7: #{tpu_custom_call.1} parent=1 // pred_check_branch
      %42 = sbr.rel (0) target = $region9
    $region8: #{tpu_custom_call.1} parent=1 // pred_region
      %44 = vsyncadd [#allocation6], 0
      %s45 = sshll.u32 %s1, 4
      %s46 = int_to_ptr.hbm [resolvable:$true] %s45
      %s47 = sshll.u32 [#allocation5], 4
      %s48 = int_to_ptr.vmem [resolvable:$true] %s47
      %53 = dma.hbm_to_vmem [thread:$0]  %s46, 256, %s48, [#allocation6], 128, 128, 8
    $region9: #{tpu_custom_call.1} parent=1 // pred_fallthru
      _
    // Predicated region
    $region10: #{tpu_custom_call.1} parent=1 // pred_check
      _
    $region11: #{tpu_custom_call.1} parent=1 // pred_check_branch
      %55 = sbr.rel (0) target = $region13
    $region12: #{tpu_custom_call.1} parent=1 // pred_region
      %57 = vsyncadd [#allocation6], 0
      %s58 = sshll.u32 %s2, 4
      %s59 = int_to_ptr.hbm [resolvable:$true] %s58
      %s60 = sshll.u32 [#allocation7], 4
      %s61 = int_to_ptr.vmem [resolvable:$true] %s60
      %66 = dma.hbm_to_vmem [thread:$0]  %s59, 98304, %s61, [#allocation6], 256, 256, 16
    $region13: #{tpu_custom_call.1} parent=1 // pred_fallthru
      _
    // Predicated region
    $region14: #{tpu_custom_call.1} parent=1 // pred_check
      _
    $region15: #{tpu_custom_call.1} parent=1 // pred_check_branch
      %68 = sbr.rel (0) target = $region17
    $region16: #{tpu_custom_call.1} parent=1 // pred_region
      %70 = vsyncadd [#allocation9], 0
      %s72 = sshll.u32 %s3, 4
      %s73 = int_to_ptr.hbm [resolvable:$true] %s72
      %s74 = sshll.u32 [#allocation8], 4
      %s75 = int_to_ptr.vmem [resolvable:$true] %s74
      %77 = dma.hbm_to_vmem [thread:$0]  %s73, 64, %s75, [#allocation9]
    $region17: #{tpu_custom_call.1} parent=1 // pred_fallthru
      _
    // Predicated region
    $region18: #{tpu_custom_call.1} parent=1 // pred_check
      _
    $region19: #{tpu_custom_call.1} parent=1 // pred_check_branch
      %79 = sbr.rel (0) target = $region21
    $region20: #{tpu_custom_call.1} parent=1 // pred_region
      %81 = vsyncadd [#allocation9], 0
      %s82 = sshll.u32 %s4, 4
      %s83 = int_to_ptr.hbm [resolvable:$true] %s82
      %s84 = sshll.u32 [#allocation10], 4
      %s85 = int_to_ptr.vmem [resolvable:$true] %s84
      %90 = dma.hbm_to_vmem [thread:$0]  %s83, 65536, %s85, [#allocation9], 256, 256, 16
    $region21: #{tpu_custom_call.1} parent=1 // pred_fallthru
      _
    // Predicated region
    $region22: #{tpu_custom_call.1} parent=1 // pred_check
      _
    $region23: #{tpu_custom_call.1} parent=1 // pred_check_branch
      %92 = sbr.rel (0) target = $region25
    $region24: #{tpu_custom_call.1} parent=1 // pred_region
      %94 = vsyncadd [#allocation12], 0
      %s95 = sshll.u32 %s5, 4
      %s96 = int_to_ptr.hbm [resolvable:$true] %s95
      %s97 = sshll.u32 [#allocation11], 4
      %s98 = int_to_ptr.vmem [resolvable:$true] %s97
      %103 = dma.hbm_to_vmem [thread:$0]  %s96, 256, %s98, [#allocation12], 64, 64, 4
    $region25: #{tpu_custom_call.1} parent=1 // pred_fallthru
      _
    // Predicated region
    $region26: #{tpu_custom_call.1} parent=1 // pred_check
      _
    $region27: #{tpu_custom_call.1} parent=1 // pred_check_branch
      %105 = sbr.rel (0) target = $region29
    $region28: #{tpu_custom_call.1} parent=1 // pred_region
      %107 = vsyncadd [#allocation12], 0
      %s108 = sshll.u32 %s6, 4
      %s109 = int_to_ptr.hbm [resolvable:$true] %s108
      %s110 = sshll.u32 [#allocation13], 4
      %s111 = int_to_ptr.vmem [resolvable:$true] %s110
      %116 = dma.hbm_to_vmem [thread:$0]  %s109, 4096, %s111, [#allocation12], 64, 64, 4
    $region29: #{tpu_custom_call.1} parent=1 // pred_fallthru
      _
    // Predicated region
    $region30: #{tpu_custom_call.1} parent=1 // pred_check
      _
    $region31: #{tpu_custom_call.1} parent=1 // pred_check_branch
      %118 = sbr.rel (0) target = $region33
    $region32: #{tpu_custom_call.1} parent=1 // pred_region
      %120 = vsyncadd [#allocation15], 0
      %s122 = sshll.u32 %s7, 4
      %s123 = int_to_ptr.hbm [resolvable:$true] %s122
      %s124 = sshll.u32 [#allocation14], 4
      %s125 = int_to_ptr.vmem [resolvable:$true] %s124
      %127 = dma.hbm_to_vmem [thread:$0]  %s123, 16, %s125, [#allocation15]
    $region33: #{tpu_custom_call.1} parent=1 // pred_fallthru
      _
    // Predicated region
    $region34: #{tpu_custom_call.1} parent=1 // pred_check
      _
    $region35: #{tpu_custom_call.1} parent=1 // pred_check_branch
      %129 = sbr.rel (0) target = $region37
    $region36: #{tpu_custom_call.1} parent=1 // pred_region
      %131 = vsyncadd [#allocation15], 0
      %s132 = sshll.u32 %s8, 4
      %s133 = int_to_ptr.hbm [resolvable:$true] %s132
      %s134 = sshll.u32 [#allocation16], 4
      %s135 = int_to_ptr.vmem [resolvable:$true] %s134
      %140 = dma.hbm_to_vmem [thread:$0]  %s133, 2048, %s135, [#allocation15], 128, 128, 8
    $region37: #{tpu_custom_call.1} parent=1 // pred_fallthru
      _
    // Predicated region
    $region38: #{tpu_custom_call.1} parent=1 // pred_check
      _
    $region39: #{tpu_custom_call.1} parent=1 // pred_check_branch
      %142 = sbr.rel (0) target = $region41
    $region40: #{tpu_custom_call.1} parent=1 // pred_region
      %144 = vsyncadd [#allocation18], 0
      %s146 = sshll.u32 %s9, 4
      %s147 = int_to_ptr.hbm [resolvable:$true] %s146
      %s148 = sshll.u32 [#allocation17], 4
      %s149 = int_to_ptr.vmem [resolvable:$true] %s148
      %151 = dma.hbm_to_vmem [thread:$0]  %s147, 32, %s149, [#allocation18]
    $region41: #{tpu_custom_call.1} parent=1 // pred_fallthru
      _
    // Predicated region
    $region42: #{tpu_custom_call.1} parent=1 // pred_check
      _
    $region43: #{tpu_custom_call.1} parent=1 // pred_check_branch
      %153 = sbr.rel (0) target = $region45
    $region44: #{tpu_custom_call.1} parent=1 // pred_region
      %155 = vsyncadd [#allocation18], 0
      %s156 = sshll.u32 %s10, 4
      %s157 = int_to_ptr.hbm [resolvable:$true] %s156
      %s158 = sshll.u32 [#allocation19], 4
      %s159 = int_to_ptr.vmem [resolvable:$true] %s158
      %164 = dma.hbm_to_vmem [thread:$0]  %s157, 4096, %s159, [#allocation18], 256, 256, 16
    $region45: #{tpu_custom_call.1} parent=1 // pred_fallthru
      _
    // Predicated region
    $region46: #{tpu_custom_call.1} parent=1 // pred_check
      _
    $region47: #{tpu_custom_call.1} parent=1 // pred_check_branch
      %166 = sbr.rel (0) target = $region49
    $region48: #{tpu_custom_call.1} parent=1 // pred_region
      %168 = vsyncadd [#allocation21], 0
      %s170 = sshll.u32 %s11, 4
      %s171 = int_to_ptr.hbm [resolvable:$true] %s170
      %s172 = sshll.u32 [#allocation20], 4
      %s173 = int_to_ptr.vmem [resolvable:$true] %s172
      %175 = dma.hbm_to_vmem [thread:$0]  %s171, 64, %s173, [#allocation21]
    $region49: #{tpu_custom_call.1} parent=1 // pred_fallthru
      _
    // Predicated region
    $region50: #{tpu_custom_call.1} parent=1 // pred_check
      _
    $region51: #{tpu_custom_call.1} parent=1 // pred_check_branch
      %177 = sbr.rel (0) target = $region53
    $region52: #{tpu_custom_call.1} parent=1 // pred_region
      %179 = vsyncadd [#allocation21], 0
      %s180 = sshll.u32 %s12, 4
      %s181 = int_to_ptr.hbm [resolvable:$true] %s180
      %s182 = sshll.u32 [#allocation22], 4
      %s183 = int_to_ptr.vmem [resolvable:$true] %s182
      %188 = dma.hbm_to_vmem [thread:$0]  %s181, 4096, %s183, [#allocation21], 64, 64, 4
    $region53: #{tpu_custom_call.1} parent=1 // pred_fallthru
      _
    // Predicated region
    $region54: #{tpu_custom_call.1} parent=1 // pred_check
      _
    $region55: #{tpu_custom_call.1} parent=1 // pred_check_branch
      %190 = sbr.rel (0) target = $region57
    $region56: #{tpu_custom_call.1} parent=1 // pred_region
      %192 = vsyncadd [#allocation24], 0
      %s194 = sshll.u32 %s13, 4
      %s195 = int_to_ptr.hbm [resolvable:$true] %s194
      %s196 = sshll.u32 [#allocation23], 4
      %s197 = int_to_ptr.vmem [resolvable:$true] %s196
      %199 = dma.hbm_to_vmem [thread:$0]  %s195, 16, %s197, [#allocation24]
    $region57: #{tpu_custom_call.1} parent=1 // pred_fallthru
      _
    // Predicated region
    $region58: #{tpu_custom_call.1} parent=1 // pred_check
      _
    $region59: #{tpu_custom_call.1} parent=1 // pred_check_branch
      %201 = sbr.rel (0) target = $region61
    $region60: #{tpu_custom_call.1} parent=1 // pred_region
      %203 = dma.done [#allocation3], 3072
    $region61: #{tpu_custom_call.1} parent=1 // pred_fallthru
      _
    // Predicated region
    $region62: #{tpu_custom_call.1} parent=1 // pred_check
      _
    $region63: #{tpu_custom_call.1} parent=1 // pred_check_branch
      %205 = sbr.rel (0) target = $region65
    $region64: #{tpu_custom_call.1} parent=1 // pred_region
      %207 = dma.done [#allocation6], 256
    $region65: #{tpu_custom_call.1} parent=1 // pred_fallthru
      _
    // Predicated region
    $region66: #{tpu_custom_call.1} parent=1 // pred_check
      _
    $region67: #{tpu_custom_call.1} parent=1 // pred_check_branch
      %209 = sbr.rel (0) target = $region69
    $region68: #{tpu_custom_call.1} parent=1 // pred_region
      %211 = dma.done [#allocation6], 98304
    $region69: #{tpu_custom_call.1} parent=1 // pred_fallthru
      _
    // Predicated region
    $region70: #{tpu_custom_call.1} parent=1 // pred_check
      _
    $region71: #{tpu_custom_call.1} parent=1 // pred_check_branch
      %213 = sbr.rel (0) target = $region73
    $region72: #{tpu_custom_call.1} parent=1 // pred_region
      %215 = dma.done [#allocation9], 64
    $region73: #{tpu_custom_call.1} parent=1 // pred_fallthru
      _
    // Predicated region
    $region74: #{tpu_custom_call.1} parent=1 // pred_check
      _
    $region75: #{tpu_custom_call.1} parent=1 // pred_check_branch
      %217 = sbr.rel (0) target = $region77
    $region76: #{tpu_custom_call.1} parent=1 // pred_region
      %219 = dma.done [#allocation9], 65536
    $region77: #{tpu_custom_call.1} parent=1 // pred_fallthru
      _
    // Predicated region
    $region78: #{tpu_custom_call.1} parent=1 // pred_check
      _
    $region79: #{tpu_custom_call.1} parent=1 // pred_check_branch
      %221 = sbr.rel (0) target = $region81
    $region80: #{tpu_custom_call.1} parent=1 // pred_region
      %223 = dma.done [#allocation12], 256
    $region81: #{tpu_custom_call.1} parent=1 // pred_fallthru
      _
    // Predicated region
    $region82: #{tpu_custom_call.1} parent=1 // pred_check
      _
    $region83: #{tpu_custom_call.1} parent=1 // pred_check_branch
      %225 = sbr.rel (0) target = $region85
    $region84: #{tpu_custom_call.1} parent=1 // pred_region
      %227 = dma.done [#allocation12], 4096
    $region85: #{tpu_custom_call.1} parent=1 // pred_fallthru
      _
    // Predicated region
    $region86: #{tpu_custom_call.1} parent=1 // pred_check
      _
    $region87: #{tpu_custom_call.1} parent=1 // pred_check_branch
      %229 = sbr.rel (0) target = $region89
    $region88: #{tpu_custom_call.1} parent=1 // pred_region
      %231 = dma.done [#allocation15], 16
    $region89: #{tpu_custom_call.1} parent=1 // pred_fallthru
      _
    // Predicated region
    $region90: #{tpu_custom_call.1} parent=1 // pred_check
      _
    $region91: #{tpu_custom_call.1} parent=1 // pred_check_branch
      %233 = sbr.rel (0) target = $region93
    $region92: #{tpu_custom_call.1} parent=1 // pred_region
      %235 = dma.done [#allocation15], 2048
    $region93: #{tpu_custom_call.1} parent=1 // pred_fallthru
      _
    // Predicated region
    $region94: #{tpu_custom_call.1} parent=1 // pred_check
      _
    $region95: #{tpu_custom_call.1} parent=1 // pred_check_branch
      %237 = sbr.rel (0) target = $region97
    $region96: #{tpu_custom_call.1} parent=1 // pred_region
      %239 = dma.done [#allocation18], 32
    $region97: #{tpu_custom_call.1} parent=1 // pred_fallthru
      _
    // Predicated region
    $region98: #{tpu_custom_call.1} parent=1 // pred_check
      _
    $region99: #{tpu_custom_call.1} parent=1 // pred_check_branch
      %241 = sbr.rel (0) target = $region101
    $region100: #{tpu_custom_call.1} parent=1 // pred_region
      %243 = dma.done [#allocation18], 4096
    $region101: #{tpu_custom_call.1} parent=1 // pred_fallthru
      _
    // Predicated region
    $region102: #{tpu_custom_call.1} parent=1 // pred_check
      _
    $region103: #{tpu_custom_call.1} parent=1 // pred_check_branch
      %245 = sbr.rel (0) target = $region105
    $region104: #{tpu_custom_call.1} parent=1 // pred_region
      %247 = dma.done [#allocation21], 64
    $region105: #{tpu_custom_call.1} parent=1 // pred_fallthru
      _
    // Predicated region
    $region106: #{tpu_custom_call.1} parent=1 // pred_check
      _
    $region107: #{tpu_custom_call.1} parent=1 // pred_check_branch
      %249 = sbr.rel (0) target = $region109
    $region108: #{tpu_custom_call.1} parent=1 // pred_region
      %251 = dma.done [#allocation21], 4096
    $region109: #{tpu_custom_call.1} parent=1 // pred_fallthru
      _
    // Predicated region
    $region110: #{tpu_custom_call.1} parent=1 // pred_check
      _
    $region111: #{tpu_custom_call.1} parent=1 // pred_check_branch
      %253 = sbr.rel (0) target = $region113
    $region112: #{tpu_custom_call.1} parent=1 // pred_region
      %255 = dma.done [#allocation24], 16
    $region113: #{tpu_custom_call.1} parent=1 // pred_fallthru
      _
    %v256 = vld [vmem:[#allocation2] sm:$0xff]
    %v257 = vld [vmem:[#allocation2 + $0x8] sm:$0xff]
    %v258 = vld [vmem:[#allocation2 + $0x10] sm:$0xff]
    %v259 = vld [vmem:[#allocation2 + $0x18] sm:$0xff]
    %v260 = vld [vmem:[#allocation2 + $0x20] sm:$0xff]
    %v261 = vld [vmem:[#allocation2 + $0x28] sm:$0xff]
    %v262 = vld [vmem:[#allocation2 + $0x30] sm:$0xff]
    %v263 = vld [vmem:[#allocation2 + $0x38] sm:$0xff]
    %v264 = vld [vmem:[#allocation2 + $0x40] sm:$0xff]
    %v265 = vld [vmem:[#allocation2 + $0x48] sm:$0xff]
    %v266 = vld [vmem:[#allocation2 + $0x50] sm:$0xff]
    %v267 = vld [vmem:[#allocation2 + $0x58] sm:$0xff]
    %v268 = vld [vmem:[#allocation2 + $0x60] sm:$0xff]
    %v269 = vld [vmem:[#allocation2 + $0x68] sm:$0xff]
    %v270 = vld [vmem:[#allocation2 + $0x70] sm:$0xff]
    %v271 = vld [vmem:[#allocation2 + $0x78] sm:$0xff]
    %v272 = vld [vmem:[#allocation2 + $0x80] sm:$0xff]
    %v273 = vld [vmem:[#allocation2 + $0x88] sm:$0xff]
    %v274 = vld [vmem:[#allocation2 + $0x90] sm:$0xff]
    %v275 = vld [vmem:[#allocation2 + $0x98] sm:$0xff]
    %v276 = vld [vmem:[#allocation2 + $0xa0] sm:$0xff]
    %v277 = vld [vmem:[#allocation2 + $0xa8] sm:$0xff]
    %v278 = vld [vmem:[#allocation2 + $0xb0] sm:$0xff]
    %v279 = vld [vmem:[#allocation2 + $0xb8] sm:$0xff]
    %v280 = vld [vmem:[#allocation7] sm:$0xff]
    %v281 = vld [vmem:[#allocation7 + $0x8] sm:$0xff]
    %v282 = vld [vmem:[#allocation7 + $0x10] sm:$0xff]
    %v283 = vld [vmem:[#allocation7 + $0x18] sm:$0xff]
    %v284 = vld [vmem:[#allocation7 + $0x20] sm:$0xff]
    %v285 = vld [vmem:[#allocation7 + $0x28] sm:$0xff]
    %v286 = vld [vmem:[#allocation7 + $0x30] sm:$0xff]
    %v287 = vld [vmem:[#allocation7 + $0x38] sm:$0xff]
    %v288 = vld [vmem:[#allocation7 + $0x40] sm:$0xff]
    %v289 = vld [vmem:[#allocation7 + $0x48] sm:$0xff]
    %v290 = vld [vmem:[#allocation7 + $0x50] sm:$0xff]
    %v291 = vld [vmem:[#allocation7 + $0x58] sm:$0xff]
    %v292 = vld [vmem:[#allocation7 + $0x60] sm:$0xff]
    %v293 = vld [vmem:[#allocation7 + $0x68] sm:$0xff]
    %v294 = vld [vmem:[#allocation7 + $0x70] sm:$0xff]
    %v295 = vld [vmem:[#allocation7 + $0x78] sm:$0xff]
    %v296 = vld [vmem:[#allocation7 + $0x80] sm:$0xff]
    %v297 = vld [vmem:[#allocation7 + $0x88] sm:$0xff]
    %v298 = vld [vmem:[#allocation7 + $0x90] sm:$0xff]
    %v299 = vld [vmem:[#allocation7 + $0x98] sm:$0xff]
    %v300 = vld [vmem:[#allocation7 + $0xa0] sm:$0xff]
    %v301 = vld [vmem:[#allocation7 + $0xa8] sm:$0xff]
    %v302 = vld [vmem:[#allocation7 + $0xb0] sm:$0xff]
    %v303 = vld [vmem:[#allocation7 + $0xb8] sm:$0xff]
    %v304 = vld [vmem:[#allocation7 + $0xc0] sm:$0xff]
    %v305 = vld [vmem:[#allocation7 + $0xc8] sm:$0xff]
    %v306 = vld [vmem:[#allocation7 + $0xd0] sm:$0xff]
    %v307 = vld [vmem:[#allocation7 + $0xd8] sm:$0xff]
    %v308 = vld [vmem:[#allocation7 + $0xe0] sm:$0xff]
    %v309 = vld [vmem:[#allocation7 + $0xe8] sm:$0xff]
    %v310 = vld [vmem:[#allocation7 + $0xf0] sm:$0xff]
    %v311 = vld [vmem:[#allocation7 + $0xf8] sm:$0xff]
    %v312 = vld [vmem:[#allocation7 + $0x100] sm:$0xff]
    %v313 = vld [vmem:[#allocation7 + $0x108] sm:$0xff]
    %v314 = vld [vmem:[#allocation7 + $0x110] sm:$0xff]
    %v315 = vld [vmem:[#allocation7 + $0x118] sm:$0xff]
    %v316 = vld [vmem:[#allocation7 + $0x120] sm:$0xff]
    %v317 = vld [vmem:[#allocation7 + $0x128] sm:$0xff]
    %v318 = vld [vmem:[#allocation7 + $0x130] sm:$0xff]
    %v319 = vld [vmem:[#allocation7 + $0x138] sm:$0xff]
    %v320 = vld [vmem:[#allocation7 + $0x140] sm:$0xff]
    %v321 = vld [vmem:[#allocation7 + $0x148] sm:$0xff]
    %v322 = vld [vmem:[#allocation7 + $0x150] sm:$0xff]
    %v323 = vld [vmem:[#allocation7 + $0x158] sm:$0xff]
    %v324 = vld [vmem:[#allocation7 + $0x160] sm:$0xff]
    %v325 = vld [vmem:[#allocation7 + $0x168] sm:$0xff]
    %v326 = vld [vmem:[#allocation7 + $0x170] sm:$0xff]
    %v327 = vld [vmem:[#allocation7 + $0x178] sm:$0xff]
    %v328 = vld [vmem:[#allocation7 + $0x180] sm:$0xff]
    %v329 = vld [vmem:[#allocation7 + $0x188] sm:$0xff]
    %v330 = vld [vmem:[#allocation7 + $0x190] sm:$0xff]
    %v331 = vld [vmem:[#allocation7 + $0x198] sm:$0xff]
    %v332 = vld [vmem:[#allocation7 + $0x1a0] sm:$0xff]
    %v333 = vld [vmem:[#allocation7 + $0x1a8] sm:$0xff]
    %v334 = vld [vmem:[#allocation7 + $0x1b0] sm:$0xff]
    %v335 = vld [vmem:[#allocation7 + $0x1b8] sm:$0xff]
    %v336 = vld [vmem:[#allocation7 + $0x1c0] sm:$0xff]
    %v337 = vld [vmem:[#allocation7 + $0x1c8] sm:$0xff]
    %v338 = vld [vmem:[#allocation7 + $0x1d0] sm:$0xff]
    %v339 = vld [vmem:[#allocation7 + $0x1d8] sm:$0xff]
    %v340 = vld [vmem:[#allocation7 + $0x1e0] sm:$0xff]
    %v341 = vld [vmem:[#allocation7 + $0x1e8] sm:$0xff]
    %v342 = vld [vmem:[#allocation7 + $0x1f0] sm:$0xff]
    %v343 = vld [vmem:[#allocation7 + $0x1f8] sm:$0xff]
    %v344 = vld [vmem:[#allocation7 + $0x200] sm:$0xff]
    %v345 = vld [vmem:[#allocation7 + $0x208] sm:$0xff]
    %v346 = vld [vmem:[#allocation7 + $0x210] sm:$0xff]
    %v347 = vld [vmem:[#allocation7 + $0x218] sm:$0xff]
    %v348 = vld [vmem:[#allocation7 + $0x220] sm:$0xff]
    %v349 = vld [vmem:[#allocation7 + $0x228] sm:$0xff]
    %v350 = vld [vmem:[#allocation7 + $0x230] sm:$0xff]
    %v351 = vld [vmem:[#allocation7 + $0x238] sm:$0xff]
    %v352 = vld [vmem:[#allocation7 + $0x240] sm:$0xff]
    %v353 = vld [vmem:[#allocation7 + $0x248] sm:$0xff]
    %v354 = vld [vmem:[#allocation7 + $0x250] sm:$0xff]
    %v355 = vld [vmem:[#allocation7 + $0x258] sm:$0xff]
    %v356 = vld [vmem:[#allocation7 + $0x260] sm:$0xff]
    %v357 = vld [vmem:[#allocation7 + $0x268] sm:$0xff]
    %v358 = vld [vmem:[#allocation7 + $0x270] sm:$0xff]
    %v359 = vld [vmem:[#allocation7 + $0x278] sm:$0xff]
    %v360 = vld [vmem:[#allocation7 + $0x280] sm:$0xff]
    %v361 = vld [vmem:[#allocation7 + $0x288] sm:$0xff]
    %v362 = vld [vmem:[#allocation7 + $0x290] sm:$0xff]
    %v363 = vld [vmem:[#allocation7 + $0x298] sm:$0xff]
    %v364 = vld [vmem:[#allocation7 + $0x2a0] sm:$0xff]
    %v365 = vld [vmem:[#allocation7 + $0x2a8] sm:$0xff]
    %v366 = vld [vmem:[#allocation7 + $0x2b0] sm:$0xff]
    %v367 = vld [vmem:[#allocation7 + $0x2b8] sm:$0xff]
    %v368 = vld [vmem:[#allocation7 + $0x2c0] sm:$0xff]
    %v369 = vld [vmem:[#allocation7 + $0x2c8] sm:$0xff]
    %v370 = vld [vmem:[#allocation7 + $0x2d0] sm:$0xff]
    %v371 = vld [vmem:[#allocation7 + $0x2d8] sm:$0xff]
    %v372 = vld [vmem:[#allocation7 + $0x2e0] sm:$0xff]
    %v373 = vld [vmem:[#allocation7 + $0x2e8] sm:$0xff]
    %v374 = vld [vmem:[#allocation7 + $0x2f0] sm:$0xff]
    %v375 = vld [vmem:[#allocation7 + $0x2f8] sm:$0xff]
    %v376 = vld [vmem:[#allocation7 + $0x300] sm:$0xff]
    %v377 = vld [vmem:[#allocation7 + $0x308] sm:$0xff]
    %v378 = vld [vmem:[#allocation7 + $0x310] sm:$0xff]
    %v379 = vld [vmem:[#allocation7 + $0x318] sm:$0xff]
    %v380 = vld [vmem:[#allocation7 + $0x320] sm:$0xff]
    %v381 = vld [vmem:[#allocation7 + $0x328] sm:$0xff]
    %v382 = vld [vmem:[#allocation7 + $0x330] sm:$0xff]
    %v383 = vld [vmem:[#allocation7 + $0x338] sm:$0xff]
    %v384 = vld [vmem:[#allocation7 + $0x340] sm:$0xff]
    %v385 = vld [vmem:[#allocation7 + $0x348] sm:$0xff]
    %v386 = vld [vmem:[#allocation7 + $0x350] sm:$0xff]
    %v387 = vld [vmem:[#allocation7 + $0x358] sm:$0xff]
    %v388 = vld [vmem:[#allocation7 + $0x360] sm:$0xff]
    %v389 = vld [vmem:[#allocation7 + $0x368] sm:$0xff]
    %v390 = vld [vmem:[#allocation7 + $0x370] sm:$0xff]
    %v391 = vld [vmem:[#allocation7 + $0x378] sm:$0xff]
    %v392 = vld [vmem:[#allocation7 + $0x380] sm:$0xff]
    %v393 = vld [vmem:[#allocation7 + $0x388] sm:$0xff]
    %v394 = vld [vmem:[#allocation7 + $0x390] sm:$0xff]
    %v395 = vld [vmem:[#allocation7 + $0x398] sm:$0xff]
    %v396 = vld [vmem:[#allocation7 + $0x3a0] sm:$0xff]
    %v397 = vld [vmem:[#allocation7 + $0x3a8] sm:$0xff]
    %v398 = vld [vmem:[#allocation7 + $0x3b0] sm:$0xff]
    %v399 = vld [vmem:[#allocation7 + $0x3b8] sm:$0xff]
    %v400 = vld [vmem:[#allocation7 + $0x3c0] sm:$0xff]
    %v401 = vld [vmem:[#allocation7 + $0x3c8] sm:$0xff]
    %v402 = vld [vmem:[#allocation7 + $0x3d0] sm:$0xff]
    %v403 = vld [vmem:[#allocation7 + $0x3d8] sm:$0xff]
    %v404 = vld [vmem:[#allocation7 + $0x3e0] sm:$0xff]
    %v405 = vld [vmem:[#allocation7 + $0x3e8] sm:$0xff]
    %v406 = vld [vmem:[#allocation7 + $0x3f0] sm:$0xff]
    %v407 = vld [vmem:[#allocation7 + $0x3f8] sm:$0xff]
    %v408 = vld [vmem:[#allocation7 + $0x400] sm:$0xff]
    %v409 = vld [vmem:[#allocation7 + $0x408] sm:$0xff]
    %v410 = vld [vmem:[#allocation7 + $0x410] sm:$0xff]
    %v411 = vld [vmem:[#allocation7 + $0x418] sm:$0xff]
    %v412 = vld [vmem:[#allocation7 + $0x420] sm:$0xff]
    %v413 = vld [vmem:[#allocation7 + $0x428] sm:$0xff]
    %v414 = vld [vmem:[#allocation7 + $0x430] sm:$0xff]
    %v415 = vld [vmem:[#allocation7 + $0x438] sm:$0xff]
    %v416 = vld [vmem:[#allocation7 + $0x440] sm:$0xff]
    %v417 = vld [vmem:[#allocation7 + $0x448] sm:$0xff]
    %v418 = vld [vmem:[#allocation7 + $0x450] sm:$0xff]
    %v419 = vld [vmem:[#allocation7 + $0x458] sm:$0xff]
    %v420 = vld [vmem:[#allocation7 + $0x460] sm:$0xff]
    %v421 = vld [vmem:[#allocation7 + $0x468] sm:$0xff]
    %v422 = vld [vmem:[#allocation7 + $0x470] sm:$0xff]
    %v423 = vld [vmem:[#allocation7 + $0x478] sm:$0xff]
    %v424 = vld [vmem:[#allocation7 + $0x480] sm:$0xff]
    %v425 = vld [vmem:[#allocation7 + $0x488] sm:$0xff]
    %v426 = vld [vmem:[#allocation7 + $0x490] sm:$0xff]
    %v427 = vld [vmem:[#allocation7 + $0x498] sm:$0xff]
    %v428 = vld [vmem:[#allocation7 + $0x4a0] sm:$0xff]
    %v429 = vld [vmem:[#allocation7 + $0x4a8] sm:$0xff]
    %v430 = vld [vmem:[#allocation7 + $0x4b0] sm:$0xff]
    %v431 = vld [vmem:[#allocation7 + $0x4b8] sm:$0xff]
    %v432 = vld [vmem:[#allocation7 + $0x4c0] sm:$0xff]
    %v433 = vld [vmem:[#allocation7 + $0x4c8] sm:$0xff]
    %v434 = vld [vmem:[#allocation7 + $0x4d0] sm:$0xff]
    %v435 = vld [vmem:[#allocation7 + $0x4d8] sm:$0xff]
    %v436 = vld [vmem:[#allocation7 + $0x4e0] sm:$0xff]
    %v437 = vld [vmem:[#allocation7 + $0x4e8] sm:$0xff]
    %v438 = vld [vmem:[#allocation7 + $0x4f0] sm:$0xff]
    %v439 = vld [vmem:[#allocation7 + $0x4f8] sm:$0xff]
    %v440 = vld [vmem:[#allocation7 + $0x500] sm:$0xff]
    %v441 = vld [vmem:[#allocation7 + $0x508] sm:$0xff]
    %v442 = vld [vmem:[#allocation7 + $0x510] sm:$0xff]
    %v443 = vld [vmem:[#allocation7 + $0x518] sm:$0xff]
    %v444 = vld [vmem:[#allocation7 + $0x520] sm:$0xff]
    %v445 = vld [vmem:[#allocation7 + $0x528] sm:$0xff]
    %v446 = vld [vmem:[#allocation7 + $0x530] sm:$0xff]
    %v447 = vld [vmem:[#allocation7 + $0x538] sm:$0xff]
    %v448 = vld [vmem:[#allocation7 + $0x540] sm:$0xff]
    %v449 = vld [vmem:[#allocation7 + $0x548] sm:$0xff]
    %v450 = vld [vmem:[#allocation7 + $0x550] sm:$0xff]
    %v451 = vld [vmem:[#allocation7 + $0x558] sm:$0xff]
    %v452 = vld [vmem:[#allocation7 + $0x560] sm:$0xff]
    %v453 = vld [vmem:[#allocation7 + $0x568] sm:$0xff]
    %v454 = vld [vmem:[#allocation7 + $0x570] sm:$0xff]
    %v455 = vld [vmem:[#allocation7 + $0x578] sm:$0xff]
    %v456 = vld [vmem:[#allocation7 + $0x580] sm:$0xff]
    %v457 = vld [vmem:[#allocation7 + $0x588] sm:$0xff]
    %v458 = vld [vmem:[#allocation7 + $0x590] sm:$0xff]
    %v459 = vld [vmem:[#allocation7 + $0x598] sm:$0xff]
    %v460 = vld [vmem:[#allocation7 + $0x5a0] sm:$0xff]
    %v461 = vld [vmem:[#allocation7 + $0x5a8] sm:$0xff]
    %v462 = vld [vmem:[#allocation7 + $0x5b0] sm:$0xff]
    %v463 = vld [vmem:[#allocation7 + $0x5b8] sm:$0xff]
    %v464 = vld [vmem:[#allocation7 + $0x5c0] sm:$0xff]
    %v465 = vld [vmem:[#allocation7 + $0x5c8] sm:$0xff]
    %v466 = vld [vmem:[#allocation7 + $0x5d0] sm:$0xff]
    %v467 = vld [vmem:[#allocation7 + $0x5d8] sm:$0xff]
    %v468 = vld [vmem:[#allocation7 + $0x5e0] sm:$0xff]
    %v469 = vld [vmem:[#allocation7 + $0x5e8] sm:$0xff]
    %v470 = vld [vmem:[#allocation7 + $0x5f0] sm:$0xff]
    %v471 = vld [vmem:[#allocation7 + $0x5f8] sm:$0xff]
    %v472 = vld [vmem:[#allocation7 + $0x600] sm:$0xff]
    %v473 = vld [vmem:[#allocation7 + $0x608] sm:$0xff]
    %v474 = vld [vmem:[#allocation7 + $0x610] sm:$0xff]
    %v475 = vld [vmem:[#allocation7 + $0x618] sm:$0xff]
    %v476 = vld [vmem:[#allocation7 + $0x620] sm:$0xff]
    %v477 = vld [vmem:[#allocation7 + $0x628] sm:$0xff]
    %v478 = vld [vmem:[#allocation7 + $0x630] sm:$0xff]
    %v479 = vld [vmem:[#allocation7 + $0x638] sm:$0xff]
    %v480 = vld [vmem:[#allocation7 + $0x640] sm:$0xff]
    %v481 = vld [vmem:[#allocation7 + $0x648] sm:$0xff]
    %v482 = vld [vmem:[#allocation7 + $0x650] sm:$0xff]
    %v483 = vld [vmem:[#allocation7 + $0x658] sm:$0xff]
    %v484 = vld [vmem:[#allocation7 + $0x660] sm:$0xff]
    %v485 = vld [vmem:[#allocation7 + $0x668] sm:$0xff]
    %v486 = vld [vmem:[#allocation7 + $0x670] sm:$0xff]
    %v487 = vld [vmem:[#allocation7 + $0x678] sm:$0xff]
    %v488 = vld [vmem:[#allocation7 + $0x680] sm:$0xff]
    %v489 = vld [vmem:[#allocation7 + $0x688] sm:$0xff]
    %v490 = vld [vmem:[#allocation7 + $0x690] sm:$0xff]
    %v491 = vld [vmem:[#allocation7 + $0x698] sm:$0xff]
    %v492 = vld [vmem:[#allocation7 + $0x6a0] sm:$0xff]
    %v493 = vld [vmem:[#allocation7 + $0x6a8] sm:$0xff]
    %v494 = vld [vmem:[#allocation7 + $0x6b0] sm:$0xff]
    %v495 = vld [vmem:[#allocation7 + $0x6b8] sm:$0xff]
    %v496 = vld [vmem:[#allocation7 + $0x6c0] sm:$0xff]
    %v497 = vld [vmem:[#allocation7 + $0x6c8] sm:$0xff]
    %v498 = vld [vmem:[#allocation7 + $0x6d0] sm:$0xff]
    %v499 = vld [vmem:[#allocation7 + $0x6d8] sm:$0xff]
    %v500 = vld [vmem:[#allocation7 + $0x6e0] sm:$0xff]
    %v501 = vld [vmem:[#allocation7 + $0x6e8] sm:$0xff]
    %v502 = vld [vmem:[#allocation7 + $0x6f0] sm:$0xff]
    %v503 = vld [vmem:[#allocation7 + $0x6f8] sm:$0xff]
    %v504 = vld [vmem:[#allocation7 + $0x700] sm:$0xff]
    %v505 = vld [vmem:[#allocation7 + $0x708] sm:$0xff]
    %v506 = vld [vmem:[#allocation7 + $0x710] sm:$0xff]
    %v507 = vld [vmem:[#allocation7 + $0x718] sm:$0xff]
    %v508 = vld [vmem:[#allocation7 + $0x720] sm:$0xff]
    %v509 = vld [vmem:[#allocation7 + $0x728] sm:$0xff]
    %v510 = vld [vmem:[#allocation7 + $0x730] sm:$0xff]
    %v511 = vld [vmem:[#allocation7 + $0x738] sm:$0xff]
    %v512 = vld [vmem:[#allocation7 + $0x740] sm:$0xff]
    %v513 = vld [vmem:[#allocation7 + $0x748] sm:$0xff]
    %v514 = vld [vmem:[#allocation7 + $0x750] sm:$0xff]
    %v515 = vld [vmem:[#allocation7 + $0x758] sm:$0xff]
    %v516 = vld [vmem:[#allocation7 + $0x760] sm:$0xff]
    %v517 = vld [vmem:[#allocation7 + $0x768] sm:$0xff]
    %v518 = vld [vmem:[#allocation7 + $0x770] sm:$0xff]
    %v519 = vld [vmem:[#allocation7 + $0x778] sm:$0xff]
    %v520 = vld [vmem:[#allocation7 + $0x780] sm:$0xff]
    %v521 = vld [vmem:[#allocation7 + $0x788] sm:$0xff]
    %v522 = vld [vmem:[#allocation7 + $0x790] sm:$0xff]
    %v523 = vld [vmem:[#allocation7 + $0x798] sm:$0xff]
    %v524 = vld [vmem:[#allocation7 + $0x7a0] sm:$0xff]
    %v525 = vld [vmem:[#allocation7 + $0x7a8] sm:$0xff]
    %v526 = vld [vmem:[#allocation7 + $0x7b0] sm:$0xff]
    %v527 = vld [vmem:[#allocation7 + $0x7b8] sm:$0xff]
    %v528 = vld [vmem:[#allocation7 + $0x7c0] sm:$0xff]
    %v529 = vld [vmem:[#allocation7 + $0x7c8] sm:$0xff]
    %v530 = vld [vmem:[#allocation7 + $0x7d0] sm:$0xff]
    %v531 = vld [vmem:[#allocation7 + $0x7d8] sm:$0xff]
    %v532 = vld [vmem:[#allocation7 + $0x7e0] sm:$0xff]
    %v533 = vld [vmem:[#allocation7 + $0x7e8] sm:$0xff]
    %v534 = vld [vmem:[#allocation7 + $0x7f0] sm:$0xff]
    %v535 = vld [vmem:[#allocation7 + $0x7f8] sm:$0xff]
    %v536 = vld [vmem:[#allocation7 + $0x800] sm:$0xff]
    %v537 = vld [vmem:[#allocation7 + $0x808] sm:$0xff]
    %v538 = vld [vmem:[#allocation7 + $0x810] sm:$0xff]
    %v539 = vld [vmem:[#allocation7 + $0x818] sm:$0xff]
    %v540 = vld [vmem:[#allocation7 + $0x820] sm:$0xff]
    %v541 = vld [vmem:[#allocation7 + $0x828] sm:$0xff]
    %v542 = vld [vmem:[#allocation7 + $0x830] sm:$0xff]
    %v543 = vld [vmem:[#allocation7 + $0x838] sm:$0xff]
    %v544 = vld [vmem:[#allocation7 + $0x840] sm:$0xff]
    %v545 = vld [vmem:[#allocation7 + $0x848] sm:$0xff]
    %v546 = vld [vmem:[#allocation7 + $0x850] sm:$0xff]
    %v547 = vld [vmem:[#allocation7 + $0x858] sm:$0xff]
    %v548 = vld [vmem:[#allocation7 + $0x860] sm:$0xff]
    %v549 = vld [vmem:[#allocation7 + $0x868] sm:$0xff]
    %v550 = vld [vmem:[#allocation7 + $0x870] sm:$0xff]
    %v551 = vld [vmem:[#allocation7 + $0x878] sm:$0xff]
    %v552 = vld [vmem:[#allocation7 + $0x880] sm:$0xff]
    %v553 = vld [vmem:[#allocation7 + $0x888] sm:$0xff]
    %v554 = vld [vmem:[#allocation7 + $0x890] sm:$0xff]
    %v555 = vld [vmem:[#allocation7 + $0x898] sm:$0xff]
    %v556 = vld [vmem:[#allocation7 + $0x8a0] sm:$0xff]
    %v557 = vld [vmem:[#allocation7 + $0x8a8] sm:$0xff]
    %v558 = vld [vmem:[#allocation7 + $0x8b0] sm:$0xff]
    %v559 = vld [vmem:[#allocation7 + $0x8b8] sm:$0xff]
    %v560 = vld [vmem:[#allocation7 + $0x8c0] sm:$0xff]
    %v561 = vld [vmem:[#allocation7 + $0x8c8] sm:$0xff]
    %v562 = vld [vmem:[#allocation7 + $0x8d0] sm:$0xff]
    %v563 = vld [vmem:[#allocation7 + $0x8d8] sm:$0xff]
    %v564 = vld [vmem:[#allocation7 + $0x8e0] sm:$0xff]
    %v565 = vld [vmem:[#allocation7 + $0x8e8] sm:$0xff]
    %v566 = vld [vmem:[#allocation7 + $0x8f0] sm:$0xff]
    %v567 = vld [vmem:[#allocation7 + $0x8f8] sm:$0xff]
    %v568 = vld [vmem:[#allocation7 + $0x900] sm:$0xff]
    %v569 = vld [vmem:[#allocation7 + $0x908] sm:$0xff]
    %v570 = vld [vmem:[#allocation7 + $0x910] sm:$0xff]
    %v571 = vld [vmem:[#allocation7 + $0x918] sm:$0xff]
    %v572 = vld [vmem:[#allocation7 + $0x920] sm:$0xff]
    %v573 = vld [vmem:[#allocation7 + $0x928] sm:$0xff]
    %v574 = vld [vmem:[#allocation7 + $0x930] sm:$0xff]
    %v575 = vld [vmem:[#allocation7 + $0x938] sm:$0xff]
    %v576 = vld [vmem:[#allocation7 + $0x940] sm:$0xff]
    %v577 = vld [vmem:[#allocation7 + $0x948] sm:$0xff]
    %v578 = vld [vmem:[#allocation7 + $0x950] sm:$0xff]
    %v579 = vld [vmem:[#allocation7 + $0x958] sm:$0xff]
    %v580 = vld [vmem:[#allocation7 + $0x960] sm:$0xff]
    %v581 = vld [vmem:[#allocation7 + $0x968] sm:$0xff]
    %v582 = vld [vmem:[#allocation7 + $0x970] sm:$0xff]
    %v583 = vld [vmem:[#allocation7 + $0x978] sm:$0xff]
    %v584 = vld [vmem:[#allocation7 + $0x980] sm:$0xff]
    %v585 = vld [vmem:[#allocation7 + $0x988] sm:$0xff]
    %v586 = vld [vmem:[#allocation7 + $0x990] sm:$0xff]
    %v587 = vld [vmem:[#allocation7 + $0x998] sm:$0xff]
    %v588 = vld [vmem:[#allocation7 + $0x9a0] sm:$0xff]
    %v589 = vld [vmem:[#allocation7 + $0x9a8] sm:$0xff]
    %v590 = vld [vmem:[#allocation7 + $0x9b0] sm:$0xff]
    %v591 = vld [vmem:[#allocation7 + $0x9b8] sm:$0xff]
    %v592 = vld [vmem:[#allocation7 + $0x9c0] sm:$0xff]
    %v593 = vld [vmem:[#allocation7 + $0x9c8] sm:$0xff]
    %v594 = vld [vmem:[#allocation7 + $0x9d0] sm:$0xff]
    %v595 = vld [vmem:[#allocation7 + $0x9d8] sm:$0xff]
    %v596 = vld [vmem:[#allocation7 + $0x9e0] sm:$0xff]
    %v597 = vld [vmem:[#allocation7 + $0x9e8] sm:$0xff]
    %v598 = vld [vmem:[#allocation7 + $0x9f0] sm:$0xff]
    %v599 = vld [vmem:[#allocation7 + $0x9f8] sm:$0xff]
    %v600 = vld [vmem:[#allocation7 + $0xa00] sm:$0xff]
    %v601 = vld [vmem:[#allocation7 + $0xa08] sm:$0xff]
    %v602 = vld [vmem:[#allocation7 + $0xa10] sm:$0xff]
    %v603 = vld [vmem:[#allocation7 + $0xa18] sm:$0xff]
    %v604 = vld [vmem:[#allocation7 + $0xa20] sm:$0xff]
    %v605 = vld [vmem:[#allocation7 + $0xa28] sm:$0xff]
    %v606 = vld [vmem:[#allocation7 + $0xa30] sm:$0xff]
    %v607 = vld [vmem:[#allocation7 + $0xa38] sm:$0xff]
    %v608 = vld [vmem:[#allocation7 + $0xa40] sm:$0xff]
    %v609 = vld [vmem:[#allocation7 + $0xa48] sm:$0xff]
    %v610 = vld [vmem:[#allocation7 + $0xa50] sm:$0xff]
    %v611 = vld [vmem:[#allocation7 + $0xa58] sm:$0xff]
    %v612 = vld [vmem:[#allocation7 + $0xa60] sm:$0xff]
    %v613 = vld [vmem:[#allocation7 + $0xa68] sm:$0xff]
    %v614 = vld [vmem:[#allocation7 + $0xa70] sm:$0xff]
    %v615 = vld [vmem:[#allocation7 + $0xa78] sm:$0xff]
    %v616 = vld [vmem:[#allocation7 + $0xa80] sm:$0xff]
    %v617 = vld [vmem:[#allocation7 + $0xa88] sm:$0xff]
    %v618 = vld [vmem:[#allocation7 + $0xa90] sm:$0xff]
    %v619 = vld [vmem:[#allocation7 + $0xa98] sm:$0xff]
    %v620 = vld [vmem:[#allocation7 + $0xaa0] sm:$0xff]
    %v621 = vld [vmem:[#allocation7 + $0xaa8] sm:$0xff]
    %v622 = vld [vmem:[#allocation7 + $0xab0] sm:$0xff]
    %v623 = vld [vmem:[#allocation7 + $0xab8] sm:$0xff]
    %v624 = vld [vmem:[#allocation7 + $0xac0] sm:$0xff]
    %v625 = vld [vmem:[#allocation7 + $0xac8] sm:$0xff]
    %v626 = vld [vmem:[#allocation7 + $0xad0] sm:$0xff]
    %v627 = vld [vmem:[#allocation7 + $0xad8] sm:$0xff]
    %v628 = vld [vmem:[#allocation7 + $0xae0] sm:$0xff]
    %v629 = vld [vmem:[#allocation7 + $0xae8] sm:$0xff]
    %v630 = vld [vmem:[#allocation7 + $0xaf0] sm:$0xff]
    %v631 = vld [vmem:[#allocation7 + $0xaf8] sm:$0xff]
    %v632 = vld [vmem:[#allocation7 + $0xb00] sm:$0xff]
    %v633 = vld [vmem:[#allocation7 + $0xb08] sm:$0xff]
    %v634 = vld [vmem:[#allocation7 + $0xb10] sm:$0xff]
    %v635 = vld [vmem:[#allocation7 + $0xb18] sm:$0xff]
    %v636 = vld [vmem:[#allocation7 + $0xb20] sm:$0xff]
    %v637 = vld [vmem:[#allocation7 + $0xb28] sm:$0xff]
    %v638 = vld [vmem:[#allocation7 + $0xb30] sm:$0xff]
    %v639 = vld [vmem:[#allocation7 + $0xb38] sm:$0xff]
    %v640 = vld [vmem:[#allocation7 + $0xb40] sm:$0xff]
    %v641 = vld [vmem:[#allocation7 + $0xb48] sm:$0xff]
    %v642 = vld [vmem:[#allocation7 + $0xb50] sm:$0xff]
    %v643 = vld [vmem:[#allocation7 + $0xb58] sm:$0xff]
    %v644 = vld [vmem:[#allocation7 + $0xb60] sm:$0xff]
    %v645 = vld [vmem:[#allocation7 + $0xb68] sm:$0xff]
    %v646 = vld [vmem:[#allocation7 + $0xb70] sm:$0xff]
    %v647 = vld [vmem:[#allocation7 + $0xb78] sm:$0xff]
    %v648 = vld [vmem:[#allocation7 + $0xb80] sm:$0xff]
    %v649 = vld [vmem:[#allocation7 + $0xb88] sm:$0xff]
    %v650 = vld [vmem:[#allocation7 + $0xb90] sm:$0xff]
    %v651 = vld [vmem:[#allocation7 + $0xb98] sm:$0xff]
    %v652 = vld [vmem:[#allocation7 + $0xba0] sm:$0xff]
    %v653 = vld [vmem:[#allocation7 + $0xba8] sm:$0xff]
    %v654 = vld [vmem:[#allocation7 + $0xbb0] sm:$0xff]
    %v655 = vld [vmem:[#allocation7 + $0xbb8] sm:$0xff]
    %v656 = vld [vmem:[#allocation7 + $0xbc0] sm:$0xff]
    %v657 = vld [vmem:[#allocation7 + $0xbc8] sm:$0xff]
    %v658 = vld [vmem:[#allocation7 + $0xbd0] sm:$0xff]
    %v659 = vld [vmem:[#allocation7 + $0xbd8] sm:$0xff]
    %v660 = vld [vmem:[#allocation7 + $0xbe0] sm:$0xff]
    %v661 = vld [vmem:[#allocation7 + $0xbe8] sm:$0xff]
    %v662 = vld [vmem:[#allocation7 + $0xbf0] sm:$0xff]
    %v663 = vld [vmem:[#allocation7 + $0xbf8] sm:$0xff]
    %v664 = vld [vmem:[#allocation7 + $0xc00] sm:$0xff]
    %v665 = vld [vmem:[#allocation7 + $0xc08] sm:$0xff]
    %v666 = vld [vmem:[#allocation7 + $0xc10] sm:$0xff]
    %v667 = vld [vmem:[#allocation7 + $0xc18] sm:$0xff]
    %v668 = vld [vmem:[#allocation7 + $0xc20] sm:$0xff]
    %v669 = vld [vmem:[#allocation7 + $0xc28] sm:$0xff]
    %v670 = vld [vmem:[#allocation7 + $0xc30] sm:$0xff]
    %v671 = vld [vmem:[#allocation7 + $0xc38] sm:$0xff]
    %v672 = vld [vmem:[#allocation7 + $0xc40] sm:$0xff]
    %v673 = vld [vmem:[#allocation7 + $0xc48] sm:$0xff]
    %v674 = vld [vmem:[#allocation7 + $0xc50] sm:$0xff]
    %v675 = vld [vmem:[#allocation7 + $0xc58] sm:$0xff]
    %v676 = vld [vmem:[#allocation7 + $0xc60] sm:$0xff]
    %v677 = vld [vmem:[#allocation7 + $0xc68] sm:$0xff]
    %v678 = vld [vmem:[#allocation7 + $0xc70] sm:$0xff]
    %v679 = vld [vmem:[#allocation7 + $0xc78] sm:$0xff]
    %v680 = vld [vmem:[#allocation7 + $0xc80] sm:$0xff]
    %v681 = vld [vmem:[#allocation7 + $0xc88] sm:$0xff]
    %v682 = vld [vmem:[#allocation7 + $0xc90] sm:$0xff]
    %v683 = vld [vmem:[#allocation7 + $0xc98] sm:$0xff]
    %v684 = vld [vmem:[#allocation7 + $0xca0] sm:$0xff]
    %v685 = vld [vmem:[#allocation7 + $0xca8] sm:$0xff]
    %v686 = vld [vmem:[#allocation7 + $0xcb0] sm:$0xff]
    %v687 = vld [vmem:[#allocation7 + $0xcb8] sm:$0xff]
    %v688 = vld [vmem:[#allocation7 + $0xcc0] sm:$0xff]
    %v689 = vld [vmem:[#allocation7 + $0xcc8] sm:$0xff]
    %v690 = vld [vmem:[#allocation7 + $0xcd0] sm:$0xff]
    %v691 = vld [vmem:[#allocation7 + $0xcd8] sm:$0xff]
    %v692 = vld [vmem:[#allocation7 + $0xce0] sm:$0xff]
    %v693 = vld [vmem:[#allocation7 + $0xce8] sm:$0xff]
    %v694 = vld [vmem:[#allocation7 + $0xcf0] sm:$0xff]
    %v695 = vld [vmem:[#allocation7 + $0xcf8] sm:$0xff]
    %v696 = vld [vmem:[#allocation7 + $0xd00] sm:$0xff]
    %v697 = vld [vmem:[#allocation7 + $0xd08] sm:$0xff]
    %v698 = vld [vmem:[#allocation7 + $0xd10] sm:$0xff]
    %v699 = vld [vmem:[#allocation7 + $0xd18] sm:$0xff]
    %v700 = vld [vmem:[#allocation7 + $0xd20] sm:$0xff]
    %v701 = vld [vmem:[#allocation7 + $0xd28] sm:$0xff]
    %v702 = vld [vmem:[#allocation7 + $0xd30] sm:$0xff]
    %v703 = vld [vmem:[#allocation7 + $0xd38] sm:$0xff]
    %v704 = vld [vmem:[#allocation7 + $0xd40] sm:$0xff]
    %v705 = vld [vmem:[#allocation7 + $0xd48] sm:$0xff]
    %v706 = vld [vmem:[#allocation7 + $0xd50] sm:$0xff]
    %v707 = vld [vmem:[#allocation7 + $0xd58] sm:$0xff]
    %v708 = vld [vmem:[#allocation7 + $0xd60] sm:$0xff]
    %v709 = vld [vmem:[#allocation7 + $0xd68] sm:$0xff]
    %v710 = vld [vmem:[#allocation7 + $0xd70] sm:$0xff]
    %v711 = vld [vmem:[#allocation7 + $0xd78] sm:$0xff]
    %v712 = vld [vmem:[#allocation7 + $0xd80] sm:$0xff]
    %v713 = vld [vmem:[#allocation7 + $0xd88] sm:$0xff]
    %v714 = vld [vmem:[#allocation7 + $0xd90] sm:$0xff]
    %v715 = vld [vmem:[#allocation7 + $0xd98] sm:$0xff]
    %v716 = vld [vmem:[#allocation7 + $0xda0] sm:$0xff]
    %v717 = vld [vmem:[#allocation7 + $0xda8] sm:$0xff]
    %v718 = vld [vmem:[#allocation7 + $0xdb0] sm:$0xff]
    %v719 = vld [vmem:[#allocation7 + $0xdb8] sm:$0xff]
    %v720 = vld [vmem:[#allocation7 + $0xdc0] sm:$0xff]
    %v721 = vld [vmem:[#allocation7 + $0xdc8] sm:$0xff]
    %v722 = vld [vmem:[#allocation7 + $0xdd0] sm:$0xff]
    %v723 = vld [vmem:[#allocation7 + $0xdd8] sm:$0xff]
    %v724 = vld [vmem:[#allocation7 + $0xde0] sm:$0xff]
    %v725 = vld [vmem:[#allocation7 + $0xde8] sm:$0xff]
    %v726 = vld [vmem:[#allocation7 + $0xdf0] sm:$0xff]
    %v727 = vld [vmem:[#allocation7 + $0xdf8] sm:$0xff]
    %v728 = vld [vmem:[#allocation7 + $0xe00] sm:$0xff]
    %v729 = vld [vmem:[#allocation7 + $0xe08] sm:$0xff]
    %v730 = vld [vmem:[#allocation7 + $0xe10] sm:$0xff]
    %v731 = vld [vmem:[#allocation7 + $0xe18] sm:$0xff]
    %v732 = vld [vmem:[#allocation7 + $0xe20] sm:$0xff]
    %v733 = vld [vmem:[#allocation7 + $0xe28] sm:$0xff]
    %v734 = vld [vmem:[#allocation7 + $0xe30] sm:$0xff]
    %v735 = vld [vmem:[#allocation7 + $0xe38] sm:$0xff]
    %v736 = vld [vmem:[#allocation7 + $0xe40] sm:$0xff]
    %v737 = vld [vmem:[#allocation7 + $0xe48] sm:$0xff]
    %v738 = vld [vmem:[#allocation7 + $0xe50] sm:$0xff]
    %v739 = vld [vmem:[#allocation7 + $0xe58] sm:$0xff]
    %v740 = vld [vmem:[#allocation7 + $0xe60] sm:$0xff]
    %v741 = vld [vmem:[#allocation7 + $0xe68] sm:$0xff]
    %v742 = vld [vmem:[#allocation7 + $0xe70] sm:$0xff]
    %v743 = vld [vmem:[#allocation7 + $0xe78] sm:$0xff]
    %v744 = vld [vmem:[#allocation7 + $0xe80] sm:$0xff]
    %v745 = vld [vmem:[#allocation7 + $0xe88] sm:$0xff]
    %v746 = vld [vmem:[#allocation7 + $0xe90] sm:$0xff]
    %v747 = vld [vmem:[#allocation7 + $0xe98] sm:$0xff]
    %v748 = vld [vmem:[#allocation7 + $0xea0] sm:$0xff]
    %v749 = vld [vmem:[#allocation7 + $0xea8] sm:$0xff]
    %v750 = vld [vmem:[#allocation7 + $0xeb0] sm:$0xff]
    %v751 = vld [vmem:[#allocation7 + $0xeb8] sm:$0xff]
    %v752 = vld [vmem:[#allocation7 + $0xec0] sm:$0xff]
    %v753 = vld [vmem:[#allocation7 + $0xec8] sm:$0xff]
    %v754 = vld [vmem:[#allocation7 + $0xed0] sm:$0xff]
    %v755 = vld [vmem:[#allocation7 + $0xed8] sm:$0xff]
    %v756 = vld [vmem:[#allocation7 + $0xee0] sm:$0xff]
    %v757 = vld [vmem:[#allocation7 + $0xee8] sm:$0xff]
    %v758 = vld [vmem:[#allocation7 + $0xef0] sm:$0xff]
    %v759 = vld [vmem:[#allocation7 + $0xef8] sm:$0xff]
    %v760 = vld [vmem:[#allocation7 + $0xf00] sm:$0xff]
    %v761 = vld [vmem:[#allocation7 + $0xf08] sm:$0xff]
    %v762 = vld [vmem:[#allocation7 + $0xf10] sm:$0xff]
    %v763 = vld [vmem:[#allocation7 + $0xf18] sm:$0xff]
    %v764 = vld [vmem:[#allocation7 + $0xf20] sm:$0xff]
    %v765 = vld [vmem:[#allocation7 + $0xf28] sm:$0xff]
    %v766 = vld [vmem:[#allocation7 + $0xf30] sm:$0xff]
    %v767 = vld [vmem:[#allocation7 + $0xf38] sm:$0xff]
    %v768 = vld [vmem:[#allocation7 + $0xf40] sm:$0xff]
    %v769 = vld [vmem:[#allocation7 + $0xf48] sm:$0xff]
    %v770 = vld [vmem:[#allocation7 + $0xf50] sm:$0xff]
    %v771 = vld [vmem:[#allocation7 + $0xf58] sm:$0xff]
    %v772 = vld [vmem:[#allocation7 + $0xf60] sm:$0xff]
    %v773 = vld [vmem:[#allocation7 + $0xf68] sm:$0xff]
    %v774 = vld [vmem:[#allocation7 + $0xf70] sm:$0xff]
    %v775 = vld [vmem:[#allocation7 + $0xf78] sm:$0xff]
    %v776 = vld [vmem:[#allocation7 + $0xf80] sm:$0xff]
    %v777 = vld [vmem:[#allocation7 + $0xf88] sm:$0xff]
    %v778 = vld [vmem:[#allocation7 + $0xf90] sm:$0xff]
    %v779 = vld [vmem:[#allocation7 + $0xf98] sm:$0xff]
    %v780 = vld [vmem:[#allocation7 + $0xfa0] sm:$0xff]
    %v781 = vld [vmem:[#allocation7 + $0xfa8] sm:$0xff]
    %v782 = vld [vmem:[#allocation7 + $0xfb0] sm:$0xff]
    %v783 = vld [vmem:[#allocation7 + $0xfb8] sm:$0xff]
    %v784 = vld [vmem:[#allocation7 + $0xfc0] sm:$0xff]
    %v785 = vld [vmem:[#allocation7 + $0xfc8] sm:$0xff]
    %v786 = vld [vmem:[#allocation7 + $0xfd0] sm:$0xff]
    %v787 = vld [vmem:[#allocation7 + $0xfd8] sm:$0xff]
    %v788 = vld [vmem:[#allocation7 + $0xfe0] sm:$0xff]
    %v789 = vld [vmem:[#allocation7 + $0xfe8] sm:$0xff]
    %v790 = vld [vmem:[#allocation7 + $0xff0] sm:$0xff]
    %v791 = vld [vmem:[#allocation7 + $0xff8] sm:$0xff]
    %v792 = vld [vmem:[#allocation7 + $0x1000] sm:$0xff]
    %v793 = vld [vmem:[#allocation7 + $0x1008] sm:$0xff]
    %v794 = vld [vmem:[#allocation7 + $0x1010] sm:$0xff]
    %v795 = vld [vmem:[#allocation7 + $0x1018] sm:$0xff]
    %v796 = vld [vmem:[#allocation7 + $0x1020] sm:$0xff]
    %v797 = vld [vmem:[#allocation7 + $0x1028] sm:$0xff]
    %v798 = vld [vmem:[#allocation7 + $0x1030] sm:$0xff]
    %v799 = vld [vmem:[#allocation7 + $0x1038] sm:$0xff]
    %v800 = vld [vmem:[#allocation7 + $0x1040] sm:$0xff]
    %v801 = vld [vmem:[#allocation7 + $0x1048] sm:$0xff]
    %v802 = vld [vmem:[#allocation7 + $0x1050] sm:$0xff]
    %v803 = vld [vmem:[#allocation7 + $0x1058] sm:$0xff]
    %v804 = vld [vmem:[#allocation7 + $0x1060] sm:$0xff]
    %v805 = vld [vmem:[#allocation7 + $0x1068] sm:$0xff]
    %v806 = vld [vmem:[#allocation7 + $0x1070] sm:$0xff]
    %v807 = vld [vmem:[#allocation7 + $0x1078] sm:$0xff]
    %v808 = vld [vmem:[#allocation7 + $0x1080] sm:$0xff]
    %v809 = vld [vmem:[#allocation7 + $0x1088] sm:$0xff]
    %v810 = vld [vmem:[#allocation7 + $0x1090] sm:$0xff]
    %v811 = vld [vmem:[#allocation7 + $0x1098] sm:$0xff]
    %v812 = vld [vmem:[#allocation7 + $0x10a0] sm:$0xff]
    %v813 = vld [vmem:[#allocation7 + $0x10a8] sm:$0xff]
    %v814 = vld [vmem:[#allocation7 + $0x10b0] sm:$0xff]
    %v815 = vld [vmem:[#allocation7 + $0x10b8] sm:$0xff]
    %v816 = vld [vmem:[#allocation7 + $0x10c0] sm:$0xff]
    %v817 = vld [vmem:[#allocation7 + $0x10c8] sm:$0xff]
    %v818 = vld [vmem:[#allocation7 + $0x10d0] sm:$0xff]
    %v819 = vld [vmem:[#allocation7 + $0x10d8] sm:$0xff]
    %v820 = vld [vmem:[#allocation7 + $0x10e0] sm:$0xff]
    %v821 = vld [vmem:[#allocation7 + $0x10e8] sm:$0xff]
    %v822 = vld [vmem:[#allocation7 + $0x10f0] sm:$0xff]
    %v823 = vld [vmem:[#allocation7 + $0x10f8] sm:$0xff]
    %v824 = vld [vmem:[#allocation7 + $0x1100] sm:$0xff]
    %v825 = vld [vmem:[#allocation7 + $0x1108] sm:$0xff]
    %v826 = vld [vmem:[#allocation7 + $0x1110] sm:$0xff]
    %v827 = vld [vmem:[#allocation7 + $0x1118] sm:$0xff]
    %v828 = vld [vmem:[#allocation7 + $0x1120] sm:$0xff]
    %v829 = vld [vmem:[#allocation7 + $0x1128] sm:$0xff]
    %v830 = vld [vmem:[#allocation7 + $0x1130] sm:$0xff]
    %v831 = vld [vmem:[#allocation7 + $0x1138] sm:$0xff]
    %v832 = vld [vmem:[#allocation7 + $0x1140] sm:$0xff]
    %v833 = vld [vmem:[#allocation7 + $0x1148] sm:$0xff]
    %v834 = vld [vmem:[#allocation7 + $0x1150] sm:$0xff]
    %v835 = vld [vmem:[#allocation7 + $0x1158] sm:$0xff]
    %v836 = vld [vmem:[#allocation7 + $0x1160] sm:$0xff]
    %v837 = vld [vmem:[#allocation7 + $0x1168] sm:$0xff]
    %v838 = vld [vmem:[#allocation7 + $0x1170] sm:$0xff]
    %v839 = vld [vmem:[#allocation7 + $0x1178] sm:$0xff]
    %v840 = vld [vmem:[#allocation7 + $0x1180] sm:$0xff]
    %v841 = vld [vmem:[#allocation7 + $0x1188] sm:$0xff]
    %v842 = vld [vmem:[#allocation7 + $0x1190] sm:$0xff]
    %v843 = vld [vmem:[#allocation7 + $0x1198] sm:$0xff]
    %v844 = vld [vmem:[#allocation7 + $0x11a0] sm:$0xff]
    %v845 = vld [vmem:[#allocation7 + $0x11a8] sm:$0xff]
    %v846 = vld [vmem:[#allocation7 + $0x11b0] sm:$0xff]
    %v847 = vld [vmem:[#allocation7 + $0x11b8] sm:$0xff]
    %v848 = vld [vmem:[#allocation7 + $0x11c0] sm:$0xff]
    %v849 = vld [vmem:[#allocation7 + $0x11c8] sm:$0xff]
    %v850 = vld [vmem:[#allocation7 + $0x11d0] sm:$0xff]
    %v851 = vld [vmem:[#allocation7 + $0x11d8] sm:$0xff]
    %v852 = vld [vmem:[#allocation7 + $0x11e0] sm:$0xff]
    %v853 = vld [vmem:[#allocation7 + $0x11e8] sm:$0xff]
    %v854 = vld [vmem:[#allocation7 + $0x11f0] sm:$0xff]
    %v855 = vld [vmem:[#allocation7 + $0x11f8] sm:$0xff]
    %v856 = vld [vmem:[#allocation7 + $0x1200] sm:$0xff]
    %v857 = vld [vmem:[#allocation7 + $0x1208] sm:$0xff]
    %v858 = vld [vmem:[#allocation7 + $0x1210] sm:$0xff]
    %v859 = vld [vmem:[#allocation7 + $0x1218] sm:$0xff]
    %v860 = vld [vmem:[#allocation7 + $0x1220] sm:$0xff]
    %v861 = vld [vmem:[#allocation7 + $0x1228] sm:$0xff]
    %v862 = vld [vmem:[#allocation7 + $0x1230] sm:$0xff]
    %v863 = vld [vmem:[#allocation7 + $0x1238] sm:$0xff]
    %v864 = vld [vmem:[#allocation7 + $0x1240] sm:$0xff]
    %v865 = vld [vmem:[#allocation7 + $0x1248] sm:$0xff]
    %v866 = vld [vmem:[#allocation7 + $0x1250] sm:$0xff]
    %v867 = vld [vmem:[#allocation7 + $0x1258] sm:$0xff]
    %v868 = vld [vmem:[#allocation7 + $0x1260] sm:$0xff]
    %v869 = vld [vmem:[#allocation7 + $0x1268] sm:$0xff]
    %v870 = vld [vmem:[#allocation7 + $0x1270] sm:$0xff]
    %v871 = vld [vmem:[#allocation7 + $0x1278] sm:$0xff]
    %v872 = vld [vmem:[#allocation7 + $0x1280] sm:$0xff]
    %v873 = vld [vmem:[#allocation7 + $0x1288] sm:$0xff]
    %v874 = vld [vmem:[#allocation7 + $0x1290] sm:$0xff]
    %v875 = vld [vmem:[#allocation7 + $0x1298] sm:$0xff]
    %v876 = vld [vmem:[#allocation7 + $0x12a0] sm:$0xff]
    %v877 = vld [vmem:[#allocation7 + $0x12a8] sm:$0xff]
    %v878 = vld [vmem:[#allocation7 + $0x12b0] sm:$0xff]
    %v879 = vld [vmem:[#allocation7 + $0x12b8] sm:$0xff]
    %v880 = vld [vmem:[#allocation7 + $0x12c0] sm:$0xff]
    %v881 = vld [vmem:[#allocation7 + $0x12c8] sm:$0xff]
    %v882 = vld [vmem:[#allocation7 + $0x12d0] sm:$0xff]
    %v883 = vld [vmem:[#allocation7 + $0x12d8] sm:$0xff]
    %v884 = vld [vmem:[#allocation7 + $0x12e0] sm:$0xff]
    %v885 = vld [vmem:[#allocation7 + $0x12e8] sm:$0xff]
    %v886 = vld [vmem:[#allocation7 + $0x12f0] sm:$0xff]
    %v887 = vld [vmem:[#allocation7 + $0x12f8] sm:$0xff]
    %v888 = vld [vmem:[#allocation7 + $0x1300] sm:$0xff]
    %v889 = vld [vmem:[#allocation7 + $0x1308] sm:$0xff]
    %v890 = vld [vmem:[#allocation7 + $0x1310] sm:$0xff]
    %v891 = vld [vmem:[#allocation7 + $0x1318] sm:$0xff]
    %v892 = vld [vmem:[#allocation7 + $0x1320] sm:$0xff]
    %v893 = vld [vmem:[#allocation7 + $0x1328] sm:$0xff]
    %v894 = vld [vmem:[#allocation7 + $0x1330] sm:$0xff]
    %v895 = vld [vmem:[#allocation7 + $0x1338] sm:$0xff]
    %v896 = vld [vmem:[#allocation7 + $0x1340] sm:$0xff]
    %v897 = vld [vmem:[#allocation7 + $0x1348] sm:$0xff]
    %v898 = vld [vmem:[#allocation7 + $0x1350] sm:$0xff]
    %v899 = vld [vmem:[#allocation7 + $0x1358] sm:$0xff]
    %v900 = vld [vmem:[#allocation7 + $0x1360] sm:$0xff]
    %v901 = vld [vmem:[#allocation7 + $0x1368] sm:$0xff]
    %v902 = vld [vmem:[#allocation7 + $0x1370] sm:$0xff]
    %v903 = vld [vmem:[#allocation7 + $0x1378] sm:$0xff]
    %v904 = vld [vmem:[#allocation7 + $0x1380] sm:$0xff]
    %v905 = vld [vmem:[#allocation7 + $0x1388] sm:$0xff]
    %v906 = vld [vmem:[#allocation7 + $0x1390] sm:$0xff]
    %v907 = vld [vmem:[#allocation7 + $0x1398] sm:$0xff]
    %v908 = vld [vmem:[#allocation7 + $0x13a0] sm:$0xff]
    %v909 = vld [vmem:[#allocation7 + $0x13a8] sm:$0xff]
    %v910 = vld [vmem:[#allocation7 + $0x13b0] sm:$0xff]
    %v911 = vld [vmem:[#allocation7 + $0x13b8] sm:$0xff]
    %v912 = vld [vmem:[#allocation7 + $0x13c0] sm:$0xff]
    %v913 = vld [vmem:[#allocation7 + $0x13c8] sm:$0xff]
    %v914 = vld [vmem:[#allocation7 + $0x13d0] sm:$0xff]
    %v915 = vld [vmem:[#allocation7 + $0x13d8] sm:$0xff]
    %v916 = vld [vmem:[#allocation7 + $0x13e0] sm:$0xff]
    %v917 = vld [vmem:[#allocation7 + $0x13e8] sm:$0xff]
    %v918 = vld [vmem:[#allocation7 + $0x13f0] sm:$0xff]
    %v919 = vld [vmem:[#allocation7 + $0x13f8] sm:$0xff]
    %v920 = vld [vmem:[#allocation7 + $0x1400] sm:$0xff]
    %v921 = vld [vmem:[#allocation7 + $0x1408] sm:$0xff]
    %v922 = vld [vmem:[#allocation7 + $0x1410] sm:$0xff]
    %v923 = vld [vmem:[#allocation7 + $0x1418] sm:$0xff]
    %v924 = vld [vmem:[#allocation7 + $0x1420] sm:$0xff]
    %v925 = vld [vmem:[#allocation7 + $0x1428] sm:$0xff]
    %v926 = vld [vmem:[#allocation7 + $0x1430] sm:$0xff]
    %v927 = vld [vmem:[#allocation7 + $0x1438] sm:$0xff]
    %v928 = vld [vmem:[#allocation7 + $0x1440] sm:$0xff]
    %v929 = vld [vmem:[#allocation7 + $0x1448] sm:$0xff]
    %v930 = vld [vmem:[#allocation7 + $0x1450] sm:$0xff]
    %v931 = vld [vmem:[#allocation7 + $0x1458] sm:$0xff]
    %v932 = vld [vmem:[#allocation7 + $0x1460] sm:$0xff]
    %v933 = vld [vmem:[#allocation7 + $0x1468] sm:$0xff]
    %v934 = vld [vmem:[#allocation7 + $0x1470] sm:$0xff]
    %v935 = vld [vmem:[#allocation7 + $0x1478] sm:$0xff]
    %v936 = vld [vmem:[#allocation7 + $0x1480] sm:$0xff]
    %v937 = vld [vmem:[#allocation7 + $0x1488] sm:$0xff]
    %v938 = vld [vmem:[#allocation7 + $0x1490] sm:$0xff]
    %v939 = vld [vmem:[#allocation7 + $0x1498] sm:$0xff]
    %v940 = vld [vmem:[#allocation7 + $0x14a0] sm:$0xff]
    %v941 = vld [vmem:[#allocation7 + $0x14a8] sm:$0xff]
    %v942 = vld [vmem:[#allocation7 + $0x14b0] sm:$0xff]
    %v943 = vld [vmem:[#allocation7 + $0x14b8] sm:$0xff]
    %v944 = vld [vmem:[#allocation7 + $0x14c0] sm:$0xff]
    %v945 = vld [vmem:[#allocation7 + $0x14c8] sm:$0xff]
    %v946 = vld [vmem:[#allocation7 + $0x14d0] sm:$0xff]
    %v947 = vld [vmem:[#allocation7 + $0x14d8] sm:$0xff]
    %v948 = vld [vmem:[#allocation7 + $0x14e0] sm:$0xff]
    %v949 = vld [vmem:[#allocation7 + $0x14e8] sm:$0xff]
    %v950 = vld [vmem:[#allocation7 + $0x14f0] sm:$0xff]
    %v951 = vld [vmem:[#allocation7 + $0x14f8] sm:$0xff]
    %v952 = vld [vmem:[#allocation7 + $0x1500] sm:$0xff]
    %v953 = vld [vmem:[#allocation7 + $0x1508] sm:$0xff]
    %v954 = vld [vmem:[#allocation7 + $0x1510] sm:$0xff]
    %v955 = vld [vmem:[#allocation7 + $0x1518] sm:$0xff]
    %v956 = vld [vmem:[#allocation7 + $0x1520] sm:$0xff]
    %v957 = vld [vmem:[#allocation7 + $0x1528] sm:$0xff]
    %v958 = vld [vmem:[#allocation7 + $0x1530] sm:$0xff]
    %v959 = vld [vmem:[#allocation7 + $0x1538] sm:$0xff]
    %v960 = vld [vmem:[#allocation7 + $0x1540] sm:$0xff]
    %v961 = vld [vmem:[#allocation7 + $0x1548] sm:$0xff]
    %v962 = vld [vmem:[#allocation7 + $0x1550] sm:$0xff]
    %v963 = vld [vmem:[#allocation7 + $0x1558] sm:$0xff]
    %v964 = vld [vmem:[#allocation7 + $0x1560] sm:$0xff]
    %v965 = vld [vmem:[#allocation7 + $0x1568] sm:$0xff]
    %v966 = vld [vmem:[#allocation7 + $0x1570] sm:$0xff]
    %v967 = vld [vmem:[#allocation7 + $0x1578] sm:$0xff]
    %v968 = vld [vmem:[#allocation7 + $0x1580] sm:$0xff]
    %v969 = vld [vmem:[#allocation7 + $0x1588] sm:$0xff]
    %v970 = vld [vmem:[#allocation7 + $0x1590] sm:$0xff]
    %v971 = vld [vmem:[#allocation7 + $0x1598] sm:$0xff]
    %v972 = vld [vmem:[#allocation7 + $0x15a0] sm:$0xff]
    %v973 = vld [vmem:[#allocation7 + $0x15a8] sm:$0xff]
    %v974 = vld [vmem:[#allocation7 + $0x15b0] sm:$0xff]
    %v975 = vld [vmem:[#allocation7 + $0x15b8] sm:$0xff]
    %v976 = vld [vmem:[#allocation7 + $0x15c0] sm:$0xff]
    %v977 = vld [vmem:[#allocation7 + $0x15c8] sm:$0xff]
    %v978 = vld [vmem:[#allocation7 + $0x15d0] sm:$0xff]
    %v979 = vld [vmem:[#allocation7 + $0x15d8] sm:$0xff]
    %v980 = vld [vmem:[#allocation7 + $0x15e0] sm:$0xff]
    %v981 = vld [vmem:[#allocation7 + $0x15e8] sm:$0xff]
    %v982 = vld [vmem:[#allocation7 + $0x15f0] sm:$0xff]
    %v983 = vld [vmem:[#allocation7 + $0x15f8] sm:$0xff]
    %v984 = vld [vmem:[#allocation7 + $0x1600] sm:$0xff]
    %v985 = vld [vmem:[#allocation7 + $0x1608] sm:$0xff]
    %v986 = vld [vmem:[#allocation7 + $0x1610] sm:$0xff]
    %v987 = vld [vmem:[#allocation7 + $0x1618] sm:$0xff]
    %v988 = vld [vmem:[#allocation7 + $0x1620] sm:$0xff]
    %v989 = vld [vmem:[#allocation7 + $0x1628] sm:$0xff]
    %v990 = vld [vmem:[#allocation7 + $0x1630] sm:$0xff]
    %v991 = vld [vmem:[#allocation7 + $0x1638] sm:$0xff]
    %v992 = vld [vmem:[#allocation7 + $0x1640] sm:$0xff]
    %v993 = vld [vmem:[#allocation7 + $0x1648] sm:$0xff]
    %v994 = vld [vmem:[#allocation7 + $0x1650] sm:$0xff]
    %v995 = vld [vmem:[#allocation7 + $0x1658] sm:$0xff]
    %v996 = vld [vmem:[#allocation7 + $0x1660] sm:$0xff]
    %v997 = vld [vmem:[#allocation7 + $0x1668] sm:$0xff]
    %v998 = vld [vmem:[#allocation7 + $0x1670] sm:$0xff]
    %v999 = vld [vmem:[#allocation7 + $0x1678] sm:$0xff]
    %v1000 = vld [vmem:[#allocation7 + $0x1680] sm:$0xff]
    %v1001 = vld [vmem:[#allocation7 + $0x1688] sm:$0xff]
    %v1002 = vld [vmem:[#allocation7 + $0x1690] sm:$0xff]
    %v1003 = vld [vmem:[#allocation7 + $0x1698] sm:$0xff]
    %v1004 = vld [vmem:[#allocation7 + $0x16a0] sm:$0xff]
    %v1005 = vld [vmem:[#allocation7 + $0x16a8] sm:$0xff]
    %v1006 = vld [vmem:[#allocation7 + $0x16b0] sm:$0xff]
    %v1007 = vld [vmem:[#allocation7 + $0x16b8] sm:$0xff]
    %v1008 = vld [vmem:[#allocation7 + $0x16c0] sm:$0xff]
    %v1009 = vld [vmem:[#allocation7 + $0x16c8] sm:$0xff]
    %v1010 = vld [vmem:[#allocation7 + $0x16d0] sm:$0xff]
    %v1011 = vld [vmem:[#allocation7 + $0x16d8] sm:$0xff]
    %v1012 = vld [vmem:[#allocation7 + $0x16e0] sm:$0xff]
    %v1013 = vld [vmem:[#allocation7 + $0x16e8] sm:$0xff]
    %v1014 = vld [vmem:[#allocation7 + $0x16f0] sm:$0xff]
    %v1015 = vld [vmem:[#allocation7 + $0x16f8] sm:$0xff]
    %v1016 = vld [vmem:[#allocation7 + $0x1700] sm:$0xff]
    %v1017 = vld [vmem:[#allocation7 + $0x1708] sm:$0xff]
    %v1018 = vld [vmem:[#allocation7 + $0x1710] sm:$0xff]
    %v1019 = vld [vmem:[#allocation7 + $0x1718] sm:$0xff]
    %v1020 = vld [vmem:[#allocation7 + $0x1720] sm:$0xff]
    %v1021 = vld [vmem:[#allocation7 + $0x1728] sm:$0xff]
    %v1022 = vld [vmem:[#allocation7 + $0x1730] sm:$0xff]
    %v1023 = vld [vmem:[#allocation7 + $0x1738] sm:$0xff]
    %v1024 = vld [vmem:[#allocation7 + $0x1740] sm:$0xff]
    %v1025 = vld [vmem:[#allocation7 + $0x1748] sm:$0xff]
    %v1026 = vld [vmem:[#allocation7 + $0x1750] sm:$0xff]
    %v1027 = vld [vmem:[#allocation7 + $0x1758] sm:$0xff]
    %v1028 = vld [vmem:[#allocation7 + $0x1760] sm:$0xff]
    %v1029 = vld [vmem:[#allocation7 + $0x1768] sm:$0xff]
    %v1030 = vld [vmem:[#allocation7 + $0x1770] sm:$0xff]
    %v1031 = vld [vmem:[#allocation7 + $0x1778] sm:$0xff]
    %v1032 = vld [vmem:[#allocation7 + $0x1780] sm:$0xff]
    %v1033 = vld [vmem:[#allocation7 + $0x1788] sm:$0xff]
    %v1034 = vld [vmem:[#allocation7 + $0x1790] sm:$0xff]
    %v1035 = vld [vmem:[#allocation7 + $0x1798] sm:$0xff]
    %v1036 = vld [vmem:[#allocation7 + $0x17a0] sm:$0xff]
    %v1037 = vld [vmem:[#allocation7 + $0x17a8] sm:$0xff]
    %v1038 = vld [vmem:[#allocation7 + $0x17b0] sm:$0xff]
    %v1039 = vld [vmem:[#allocation7 + $0x17b8] sm:$0xff]
    %v1040 = vld [vmem:[#allocation7 + $0x17c0] sm:$0xff]
    %v1041 = vld [vmem:[#allocation7 + $0x17c8] sm:$0xff]
    %v1042 = vld [vmem:[#allocation7 + $0x17d0] sm:$0xff]
    %v1043 = vld [vmem:[#allocation7 + $0x17d8] sm:$0xff]
    %v1044 = vld [vmem:[#allocation7 + $0x17e0] sm:$0xff]
    %v1045 = vld [vmem:[#allocation7 + $0x17e8] sm:$0xff]
    %v1046 = vld [vmem:[#allocation7 + $0x17f0] sm:$0xff]
    %v1047 = vld [vmem:[#allocation7 + $0x17f8] sm:$0xff]
    %v1048 = vld [vmem:[#allocation8] sm:$0xf]
    %v1050 = vperm.slane %v1048, 0
    %v1051 = vperm.slane %v1048, 1
    %v1052 = vperm.slane %v1048, 2
    %v1053 = vperm.slane %v1048, 3
    %v1082 = vunpack.c.l.b16 %v256
    %v1083 = vunpack.c.h.b16 %v256
    %v1084 = vunpack.c.l.b16 %v257
    %v1085 = vunpack.c.h.b16 %v257
    %v1086 = vunpack.c.l.b16 %v258
    %v1087 = vunpack.c.h.b16 %v258
    %v1088 = vunpack.c.l.b16 %v259
    %v1089 = vunpack.c.h.b16 %v259
    %v1090 = vunpack.c.l.b16 %v260
    %v1091 = vunpack.c.h.b16 %v260
    %v1092 = vunpack.c.l.b16 %v261
    %v1093 = vunpack.c.h.b16 %v261
    %v1094 = vunpack.c.l.b16 %v262
    %v1095 = vunpack.c.h.b16 %v262
    %v1096 = vunpack.c.l.b16 %v263
    %v1097 = vunpack.c.h.b16 %v263
    %v1098 = vunpack.c.l.b16 %v264
    %v1099 = vunpack.c.h.b16 %v264
    %v1100 = vunpack.c.l.b16 %v265
    %v1101 = vunpack.c.h.b16 %v265
    %v1102 = vunpack.c.l.b16 %v266
    %v1103 = vunpack.c.h.b16 %v266
    %v1104 = vunpack.c.l.b16 %v267
    %v1105 = vunpack.c.h.b16 %v267
    %v1106 = vunpack.c.l.b16 %v268
    %v1107 = vunpack.c.h.b16 %v268
    %v1108 = vunpack.c.l.b16 %v269
    %v1109 = vunpack.c.h.b16 %v269
    %v1110 = vunpack.c.l.b16 %v270
    %v1111 = vunpack.c.h.b16 %v270
    %v1112 = vunpack.c.l.b16 %v271
    %v1113 = vunpack.c.h.b16 %v271
    %v1114 = vunpack.c.l.b16 %v272
    %v1115 = vunpack.c.h.b16 %v272
    %v1116 = vunpack.c.l.b16 %v273
    %v1117 = vunpack.c.h.b16 %v273
    %v1118 = vunpack.c.l.b16 %v274
    %v1119 = vunpack.c.h.b16 %v274
    %v1120 = vunpack.c.l.b16 %v275
    %v1121 = vunpack.c.h.b16 %v275
    %v1122 = vunpack.c.l.b16 %v276
    %v1123 = vunpack.c.h.b16 %v276
    %v1124 = vunpack.c.l.b16 %v277
    %v1125 = vunpack.c.h.b16 %v277
    %v1126 = vunpack.c.l.b16 %v278
    %v1127 = vunpack.c.h.b16 %v278
    %v1128 = vunpack.c.l.b16 %v279
    %v1129 = vunpack.c.h.b16 %v279
    %v1130 = vpack.c.b16 %v1106, %v1082
    %v1131 = vpack.c.b16 %v1107, %v1083
    %v1132 = vpack.c.b16 %v1108, %v1084
    %v1133 = vpack.c.b16 %v1109, %v1085
    %v1134 = vpack.c.b16 %v1110, %v1086
    %v1135 = vpack.c.b16 %v1111, %v1087
    %v1136 = vpack.c.b16 %v1112, %v1088
    %v1137 = vpack.c.b16 %v1113, %v1089
    %v1138 = vpack.c.b16 %v1114, %v1090
    %v1139 = vpack.c.b16 %v1115, %v1091
    %v1140 = vpack.c.b16 %v1116, %v1092
    %v1141 = vpack.c.b16 %v1117, %v1093
    %v1142 = vpack.c.b16 %v1118, %v1094
    %v1143 = vpack.c.b16 %v1119, %v1095
    %v1144 = vpack.c.b16 %v1120, %v1096
    %v1145 = vpack.c.b16 %v1121, %v1097
    %v1146 = vpack.c.b16 %v1122, %v1098
    %v1147 = vpack.c.b16 %v1123, %v1099
    %v1148 = vpack.c.b16 %v1124, %v1100
    %v1149 = vpack.c.b16 %v1125, %v1101
    %v1150 = vpack.c.b16 %v1126, %v1102
    %v1151 = vpack.c.b16 %v1127, %v1103
    %v1152 = vpack.c.b16 %v1128, %v1104
    %v1153 = vpack.c.b16 %v1129, %v1105
    %v1946 = vunpack.c.l.b16 %v280
    %v1947 = vunpack.c.h.b16 %v280
    %v1948 = vunpack.c.l.b16 %v281
    %v1949 = vunpack.c.h.b16 %v281
    %v1950 = vunpack.c.l.b16 %v282
    %v1951 = vunpack.c.h.b16 %v282
    %v1952 = vunpack.c.l.b16 %v283
    %v1953 = vunpack.c.h.b16 %v283
    %v1954 = vunpack.c.l.b16 %v284
    %v1955 = vunpack.c.h.b16 %v284
    %v1956 = vunpack.c.l.b16 %v285
    %v1957 = vunpack.c.h.b16 %v285
    %v1958 = vunpack.c.l.b16 %v286
    %v1959 = vunpack.c.h.b16 %v286
    %v1960 = vunpack.c.l.b16 %v287
    %v1961 = vunpack.c.h.b16 %v287
    %v1962 = vunpack.c.l.b16 %v288
    %v1963 = vunpack.c.h.b16 %v288
    %v1964 = vunpack.c.l.b16 %v289
    %v1965 = vunpack.c.h.b16 %v289
    %v1966 = vunpack.c.l.b16 %v290
    %v1967 = vunpack.c.h.b16 %v290
    %v1968 = vunpack.c.l.b16 %v291
    %v1969 = vunpack.c.h.b16 %v291
    %v1970 = vunpack.c.l.b16 %v292
    %v1971 = vunpack.c.h.b16 %v292
    %v1972 = vunpack.c.l.b16 %v293
    %v1973 = vunpack.c.h.b16 %v293
    %v1974 = vunpack.c.l.b16 %v294
    %v1975 = vunpack.c.h.b16 %v294
    %v1976 = vunpack.c.l.b16 %v295
    %v1977 = vunpack.c.h.b16 %v295
    %v1978 = vunpack.c.l.b16 %v296
    %v1979 = vunpack.c.h.b16 %v296
    %v1980 = vunpack.c.l.b16 %v297
    %v1981 = vunpack.c.h.b16 %v297
    %v1982 = vunpack.c.l.b16 %v298
    %v1983 = vunpack.c.h.b16 %v298
    %v1984 = vunpack.c.l.b16 %v299
    %v1985 = vunpack.c.h.b16 %v299
    %v1986 = vunpack.c.l.b16 %v300
    %v1987 = vunpack.c.h.b16 %v300
    %v1988 = vunpack.c.l.b16 %v301
    %v1989 = vunpack.c.h.b16 %v301
    %v1990 = vunpack.c.l.b16 %v302
    %v1991 = vunpack.c.h.b16 %v302
    %v1992 = vunpack.c.l.b16 %v303
    %v1993 = vunpack.c.h.b16 %v303
    %v1994 = vunpack.c.l.b16 %v304
    %v1995 = vunpack.c.h.b16 %v304
    %v1996 = vunpack.c.l.b16 %v305
    %v1997 = vunpack.c.h.b16 %v305
    %v1998 = vunpack.c.l.b16 %v306
    %v1999 = vunpack.c.h.b16 %v306
    %v2000 = vunpack.c.l.b16 %v307
    %v2001 = vunpack.c.h.b16 %v307
    %v2002 = vunpack.c.l.b16 %v308
    %v2003 = vunpack.c.h.b16 %v308
    %v2004 = vunpack.c.l.b16 %v309
    %v2005 = vunpack.c.h.b16 %v309
    %v2006 = vunpack.c.l.b16 %v310
    %v2007 = vunpack.c.h.b16 %v310
    %v2008 = vunpack.c.l.b16 %v311
    %v2009 = vunpack.c.h.b16 %v311
    %v2010 = vunpack.c.l.b16 %v312
    %v2011 = vunpack.c.h.b16 %v312
    %v2012 = vunpack.c.l.b16 %v313
    %v2013 = vunpack.c.h.b16 %v313
    %v2014 = vunpack.c.l.b16 %v314
    %v2015 = vunpack.c.h.b16 %v314
    %v2016 = vunpack.c.l.b16 %v315
    %v2017 = vunpack.c.h.b16 %v315
    %v2018 = vunpack.c.l.b16 %v316
    %v2019 = vunpack.c.h.b16 %v316
    %v2020 = vunpack.c.l.b16 %v317
    %v2021 = vunpack.c.h.b16 %v317
    %v2022 = vunpack.c.l.b16 %v318
    %v2023 = vunpack.c.h.b16 %v318
    %v2024 = vunpack.c.l.b16 %v319
    %v2025 = vunpack.c.h.b16 %v319
    %v2026 = vunpack.c.l.b16 %v320
    %v2027 = vunpack.c.h.b16 %v320
    %v2028 = vunpack.c.l.b16 %v321
    %v2029 = vunpack.c.h.b16 %v321
    %v2030 = vunpack.c.l.b16 %v322
    %v2031 = vunpack.c.h.b16 %v322
    %v2032 = vunpack.c.l.b16 %v323
    %v2033 = vunpack.c.h.b16 %v323
    %v2034 = vunpack.c.l.b16 %v324
    %v2035 = vunpack.c.h.b16 %v324
    %v2036 = vunpack.c.l.b16 %v325
    %v2037 = vunpack.c.h.b16 %v325
    %v2038 = vunpack.c.l.b16 %v326
    %v2039 = vunpack.c.h.b16 %v326
    %v2040 = vunpack.c.l.b16 %v327
    %v2041 = vunpack.c.h.b16 %v327
    %v2042 = vunpack.c.l.b16 %v328
    %v2043 = vunpack.c.h.b16 %v328
    %v2044 = vunpack.c.l.b16 %v329
    %v2045 = vunpack.c.h.b16 %v329
    %v2046 = vunpack.c.l.b16 %v330
    %v2047 = vunpack.c.h.b16 %v330
    %v2048 = vunpack.c.l.b16 %v331
    %v2049 = vunpack.c.h.b16 %v331
    %v2050 = vunpack.c.l.b16 %v332
    %v2051 = vunpack.c.h.b16 %v332
    %v2052 = vunpack.c.l.b16 %v333
    %v2053 = vunpack.c.h.b16 %v333
    %v2054 = vunpack.c.l.b16 %v334
    %v2055 = vunpack.c.h.b16 %v334
    %v2056 = vunpack.c.l.b16 %v335
    %v2057 = vunpack.c.h.b16 %v335
    %v2058 = vunpack.c.l.b16 %v336
    %v2059 = vunpack.c.h.b16 %v336
    %v2060 = vunpack.c.l.b16 %v337
    %v2061 = vunpack.c.h.b16 %v337
    %v2062 = vunpack.c.l.b16 %v338
    %v2063 = vunpack.c.h.b16 %v338
    %v2064 = vunpack.c.l.b16 %v339
    %v2065 = vunpack.c.h.b16 %v339
    %v2066 = vunpack.c.l.b16 %v340
    %v2067 = vunpack.c.h.b16 %v340
    %v2068 = vunpack.c.l.b16 %v341
    %v2069 = vunpack.c.h.b16 %v341
    %v2070 = vunpack.c.l.b16 %v342
    %v2071 = vunpack.c.h.b16 %v342
    %v2072 = vunpack.c.l.b16 %v343
    %v2073 = vunpack.c.h.b16 %v343
    %v2074 = vunpack.c.l.b16 %v344
    %v2075 = vunpack.c.h.b16 %v344
    %v2076 = vunpack.c.l.b16 %v345
    %v2077 = vunpack.c.h.b16 %v345
    %v2078 = vunpack.c.l.b16 %v346
    %v2079 = vunpack.c.h.b16 %v346
    %v2080 = vunpack.c.l.b16 %v347
    %v2081 = vunpack.c.h.b16 %v347
    %v2082 = vunpack.c.l.b16 %v348
    %v2083 = vunpack.c.h.b16 %v348
    %v2084 = vunpack.c.l.b16 %v349
    %v2085 = vunpack.c.h.b16 %v349
    %v2086 = vunpack.c.l.b16 %v350
    %v2087 = vunpack.c.h.b16 %v350
    %v2088 = vunpack.c.l.b16 %v351
    %v2089 = vunpack.c.h.b16 %v351
    %v2090 = vunpack.c.l.b16 %v352
    %v2091 = vunpack.c.h.b16 %v352
    %v2092 = vunpack.c.l.b16 %v353
    %v2093 = vunpack.c.h.b16 %v353
    %v2094 = vunpack.c.l.b16 %v354
    %v2095 = vunpack.c.h.b16 %v354
    %v2096 = vunpack.c.l.b16 %v355
    %v2097 = vunpack.c.h.b16 %v355
    %v2098 = vunpack.c.l.b16 %v356
    %v2099 = vunpack.c.h.b16 %v356
    %v2100 = vunpack.c.l.b16 %v357
    %v2101 = vunpack.c.h.b16 %v357
    %v2102 = vunpack.c.l.b16 %v358
    %v2103 = vunpack.c.h.b16 %v358
    %v2104 = vunpack.c.l.b16 %v359
    %v2105 = vunpack.c.h.b16 %v359
    %v2106 = vunpack.c.l.b16 %v360
    %v2107 = vunpack.c.h.b16 %v360
    %v2108 = vunpack.c.l.b16 %v361
    %v2109 = vunpack.c.h.b16 %v361
    %v2110 = vunpack.c.l.b16 %v362
    %v2111 = vunpack.c.h.b16 %v362
    %v2112 = vunpack.c.l.b16 %v363
    %v2113 = vunpack.c.h.b16 %v363
    %v2114 = vunpack.c.l.b16 %v364
    %v2115 = vunpack.c.h.b16 %v364
    %v2116 = vunpack.c.l.b16 %v365
    %v2117 = vunpack.c.h.b16 %v365
    %v2118 = vunpack.c.l.b16 %v366
    %v2119 = vunpack.c.h.b16 %v366
    %v2120 = vunpack.c.l.b16 %v367
    %v2121 = vunpack.c.h.b16 %v367
    %v2122 = vunpack.c.l.b16 %v368
    %v2123 = vunpack.c.h.b16 %v368
    %v2124 = vunpack.c.l.b16 %v369
    %v2125 = vunpack.c.h.b16 %v369
    %v2126 = vunpack.c.l.b16 %v370
    %v2127 = vunpack.c.h.b16 %v370
    %v2128 = vunpack.c.l.b16 %v371
    %v2129 = vunpack.c.h.b16 %v371
    %v2130 = vunpack.c.l.b16 %v372
    %v2131 = vunpack.c.h.b16 %v372
    %v2132 = vunpack.c.l.b16 %v373
    %v2133 = vunpack.c.h.b16 %v373
    %v2134 = vunpack.c.l.b16 %v374
    %v2135 = vunpack.c.h.b16 %v374
    %v2136 = vunpack.c.l.b16 %v375
    %v2137 = vunpack.c.h.b16 %v375
    %v2138 = vunpack.c.l.b16 %v376
    %v2139 = vunpack.c.h.b16 %v376
    %v2140 = vunpack.c.l.b16 %v377
    %v2141 = vunpack.c.h.b16 %v377
    %v2142 = vunpack.c.l.b16 %v378
    %v2143 = vunpack.c.h.b16 %v378
    %v2144 = vunpack.c.l.b16 %v379
    %v2145 = vunpack.c.h.b16 %v379
    %v2146 = vunpack.c.l.b16 %v380
    %v2147 = vunpack.c.h.b16 %v380
    %v2148 = vunpack.c.l.b16 %v381
    %v2149 = vunpack.c.h.b16 %v381
    %v2150 = vunpack.c.l.b16 %v382
    %v2151 = vunpack.c.h.b16 %v382
    %v2152 = vunpack.c.l.b16 %v383
    %v2153 = vunpack.c.h.b16 %v383
    %v2154 = vunpack.c.l.b16 %v384
    %v2155 = vunpack.c.h.b16 %v384
    %v2156 = vunpack.c.l.b16 %v385
    %v2157 = vunpack.c.h.b16 %v385
    %v2158 = vunpack.c.l.b16 %v386
    %v2159 = vunpack.c.h.b16 %v386
    %v2160 = vunpack.c.l.b16 %v387
    %v2161 = vunpack.c.h.b16 %v387
    %v2162 = vunpack.c.l.b16 %v388
    %v2163 = vunpack.c.h.b16 %v388
    %v2164 = vunpack.c.l.b16 %v389
    %v2165 = vunpack.c.h.b16 %v389
    %v2166 = vunpack.c.l.b16 %v390
    %v2167 = vunpack.c.h.b16 %v390
    %v2168 = vunpack.c.l.b16 %v391
    %v2169 = vunpack.c.h.b16 %v391
    %v2170 = vunpack.c.l.b16 %v392
    %v2171 = vunpack.c.h.b16 %v392
    %v2172 = vunpack.c.l.b16 %v393
    %v2173 = vunpack.c.h.b16 %v393
    %v2174 = vunpack.c.l.b16 %v394
    %v2175 = vunpack.c.h.b16 %v394
    %v2176 = vunpack.c.l.b16 %v395
    %v2177 = vunpack.c.h.b16 %v395
    %v2178 = vunpack.c.l.b16 %v396
    %v2179 = vunpack.c.h.b16 %v396
    %v2180 = vunpack.c.l.b16 %v397
    %v2181 = vunpack.c.h.b16 %v397
    %v2182 = vunpack.c.l.b16 %v398
    %v2183 = vunpack.c.h.b16 %v398
    %v2184 = vunpack.c.l.b16 %v399
    %v2185 = vunpack.c.h.b16 %v399
    %v2186 = vunpack.c.l.b16 %v400
    %v2187 = vunpack.c.h.b16 %v400
    %v2188 = vunpack.c.l.b16 %v401
    %v2189 = vunpack.c.h.b16 %v401
    %v2190 = vunpack.c.l.b16 %v402
    %v2191 = vunpack.c.h.b16 %v402
    %v2192 = vunpack.c.l.b16 %v403
    %v2193 = vunpack.c.h.b16 %v403
    %v2194 = vunpack.c.l.b16 %v404
    %v2195 = vunpack.c.h.b16 %v404
    %v2196 = vunpack.c.l.b16 %v405
    %v2197 = vunpack.c.h.b16 %v405
    %v2198 = vunpack.c.l.b16 %v406
    %v2199 = vunpack.c.h.b16 %v406
    %v2200 = vunpack.c.l.b16 %v407
    %v2201 = vunpack.c.h.b16 %v407
    %v2202 = vunpack.c.l.b16 %v408
    %v2203 = vunpack.c.h.b16 %v408
    %v2204 = vunpack.c.l.b16 %v409
    %v2205 = vunpack.c.h.b16 %v409
    %v2206 = vunpack.c.l.b16 %v410
    %v2207 = vunpack.c.h.b16 %v410
    %v2208 = vunpack.c.l.b16 %v411
    %v2209 = vunpack.c.h.b16 %v411
    %v2210 = vunpack.c.l.b16 %v412
    %v2211 = vunpack.c.h.b16 %v412
    %v2212 = vunpack.c.l.b16 %v413
    %v2213 = vunpack.c.h.b16 %v413
    %v2214 = vunpack.c.l.b16 %v414
    %v2215 = vunpack.c.h.b16 %v414
    %v2216 = vunpack.c.l.b16 %v415
    %v2217 = vunpack.c.h.b16 %v415
    %v2218 = vunpack.c.l.b16 %v416
    %v2219 = vunpack.c.h.b16 %v416
    %v2220 = vunpack.c.l.b16 %v417
    %v2221 = vunpack.c.h.b16 %v417
    %v2222 = vunpack.c.l.b16 %v418
    %v2223 = vunpack.c.h.b16 %v418
    %v2224 = vunpack.c.l.b16 %v419
    %v2225 = vunpack.c.h.b16 %v419
    %v2226 = vunpack.c.l.b16 %v420
    %v2227 = vunpack.c.h.b16 %v420
    %v2228 = vunpack.c.l.b16 %v421
    %v2229 = vunpack.c.h.b16 %v421
    %v2230 = vunpack.c.l.b16 %v422
    %v2231 = vunpack.c.h.b16 %v422
    %v2232 = vunpack.c.l.b16 %v423
    %v2233 = vunpack.c.h.b16 %v423
    %v2234 = vunpack.c.l.b16 %v424
    %v2235 = vunpack.c.h.b16 %v424
    %v2236 = vunpack.c.l.b16 %v425
    %v2237 = vunpack.c.h.b16 %v425
    %v2238 = vunpack.c.l.b16 %v426
    %v2239 = vunpack.c.h.b16 %v426
    %v2240 = vunpack.c.l.b16 %v427
    %v2241 = vunpack.c.h.b16 %v427
    %v2242 = vunpack.c.l.b16 %v428
    %v2243 = vunpack.c.h.b16 %v428
    %v2244 = vunpack.c.l.b16 %v429
    %v2245 = vunpack.c.h.b16 %v429
    %v2246 = vunpack.c.l.b16 %v430
    %v2247 = vunpack.c.h.b16 %v430
    %v2248 = vunpack.c.l.b16 %v431
    %v2249 = vunpack.c.h.b16 %v431
    %v2250 = vunpack.c.l.b16 %v432
    %v2251 = vunpack.c.h.b16 %v432
    %v2252 = vunpack.c.l.b16 %v433
    %v2253 = vunpack.c.h.b16 %v433
    %v2254 = vunpack.c.l.b16 %v434
    %v2255 = vunpack.c.h.b16 %v434
    %v2256 = vunpack.c.l.b16 %v435
    %v2257 = vunpack.c.h.b16 %v435
    %v2258 = vunpack.c.l.b16 %v436
    %v2259 = vunpack.c.h.b16 %v436
    %v2260 = vunpack.c.l.b16 %v437
    %v2261 = vunpack.c.h.b16 %v437
    %v2262 = vunpack.c.l.b16 %v438
    %v2263 = vunpack.c.h.b16 %v438
    %v2264 = vunpack.c.l.b16 %v439
    %v2265 = vunpack.c.h.b16 %v439
    %v2266 = vunpack.c.l.b16 %v440
    %v2267 = vunpack.c.h.b16 %v440
    %v2268 = vunpack.c.l.b16 %v441
    %v2269 = vunpack.c.h.b16 %v441
    %v2270 = vunpack.c.l.b16 %v442
    %v2271 = vunpack.c.h.b16 %v442
    %v2272 = vunpack.c.l.b16 %v443
    %v2273 = vunpack.c.h.b16 %v443
    %v2274 = vunpack.c.l.b16 %v444
    %v2275 = vunpack.c.h.b16 %v444
    %v2276 = vunpack.c.l.b16 %v445
    %v2277 = vunpack.c.h.b16 %v445
    %v2278 = vunpack.c.l.b16 %v446
    %v2279 = vunpack.c.h.b16 %v446
    %v2280 = vunpack.c.l.b16 %v447
    %v2281 = vunpack.c.h.b16 %v447
    %v2282 = vunpack.c.l.b16 %v448
    %v2283 = vunpack.c.h.b16 %v448
    %v2284 = vunpack.c.l.b16 %v449
    %v2285 = vunpack.c.h.b16 %v449
    %v2286 = vunpack.c.l.b16 %v450
    %v2287 = vunpack.c.h.b16 %v450
    %v2288 = vunpack.c.l.b16 %v451
    %v2289 = vunpack.c.h.b16 %v451
    %v2290 = vunpack.c.l.b16 %v452
    %v2291 = vunpack.c.h.b16 %v452
    %v2292 = vunpack.c.l.b16 %v453
    %v2293 = vunpack.c.h.b16 %v453
    %v2294 = vunpack.c.l.b16 %v454
    %v2295 = vunpack.c.h.b16 %v454
    %v2296 = vunpack.c.l.b16 %v455
    %v2297 = vunpack.c.h.b16 %v455
    %v2298 = vunpack.c.l.b16 %v456
    %v2299 = vunpack.c.h.b16 %v456
    %v2300 = vunpack.c.l.b16 %v457
    %v2301 = vunpack.c.h.b16 %v457
    %v2302 = vunpack.c.l.b16 %v458
    %v2303 = vunpack.c.h.b16 %v458
    %v2304 = vunpack.c.l.b16 %v459
    %v2305 = vunpack.c.h.b16 %v459
    %v2306 = vunpack.c.l.b16 %v460
    %v2307 = vunpack.c.h.b16 %v460
    %v2308 = vunpack.c.l.b16 %v461
    %v2309 = vunpack.c.h.b16 %v461
    %v2310 = vunpack.c.l.b16 %v462
    %v2311 = vunpack.c.h.b16 %v462
    %v2312 = vunpack.c.l.b16 %v463
    %v2313 = vunpack.c.h.b16 %v463
    %v2314 = vunpack.c.l.b16 %v464
    %v2315 = vunpack.c.h.b16 %v464
    %v2316 = vunpack.c.l.b16 %v465
    %v2317 = vunpack.c.h.b16 %v465
    %v2318 = vunpack.c.l.b16 %v466
    %v2319 = vunpack.c.h.b16 %v466
    %v2320 = vunpack.c.l.b16 %v467
    %v2321 = vunpack.c.h.b16 %v467
    %v2322 = vunpack.c.l.b16 %v468
    %v2323 = vunpack.c.h.b16 %v468
    %v2324 = vunpack.c.l.b16 %v469
    %v2325 = vunpack.c.h.b16 %v469
    %v2326 = vunpack.c.l.b16 %v470
    %v2327 = vunpack.c.h.b16 %v470
    %v2328 = vunpack.c.l.b16 %v471
    %v2329 = vunpack.c.h.b16 %v471
    %v2330 = vunpack.c.l.b16 %v472
    %v2331 = vunpack.c.h.b16 %v472
    %v2332 = vunpack.c.l.b16 %v473
    %v2333 = vunpack.c.h.b16 %v473
    %v2334 = vunpack.c.l.b16 %v474
    %v2335 = vunpack.c.h.b16 %v474
    %v2336 = vunpack.c.l.b16 %v475
    %v2337 = vunpack.c.h.b16 %v475
    %v2338 = vunpack.c.l.b16 %v476
    %v2339 = vunpack.c.h.b16 %v476
    %v2340 = vunpack.c.l.b16 %v477
    %v2341 = vunpack.c.h.b16 %v477
    %v2342 = vunpack.c.l.b16 %v478
    %v2343 = vunpack.c.h.b16 %v478
    %v2344 = vunpack.c.l.b16 %v479
    %v2345 = vunpack.c.h.b16 %v479
    %v2346 = vunpack.c.l.b16 %v480
    %v2347 = vunpack.c.h.b16 %v480
    %v2348 = vunpack.c.l.b16 %v481
    %v2349 = vunpack.c.h.b16 %v481
    %v2350 = vunpack.c.l.b16 %v482
    %v2351 = vunpack.c.h.b16 %v482
    %v2352 = vunpack.c.l.b16 %v483
    %v2353 = vunpack.c.h.b16 %v483
    %v2354 = vunpack.c.l.b16 %v484
    %v2355 = vunpack.c.h.b16 %v484
    %v2356 = vunpack.c.l.b16 %v485
    %v2357 = vunpack.c.h.b16 %v485
    %v2358 = vunpack.c.l.b16 %v486
    %v2359 = vunpack.c.h.b16 %v486
    %v2360 = vunpack.c.l.b16 %v487
    %v2361 = vunpack.c.h.b16 %v487
    %v2362 = vunpack.c.l.b16 %v488
    %v2363 = vunpack.c.h.b16 %v488
    %v2364 = vunpack.c.l.b16 %v489
    %v2365 = vunpack.c.h.b16 %v489
    %v2366 = vunpack.c.l.b16 %v490
    %v2367 = vunpack.c.h.b16 %v490
    %v2368 = vunpack.c.l.b16 %v491
    %v2369 = vunpack.c.h.b16 %v491
    %v2370 = vunpack.c.l.b16 %v492
    %v2371 = vunpack.c.h.b16 %v492
    %v2372 = vunpack.c.l.b16 %v493
    %v2373 = vunpack.c.h.b16 %v493
    %v2374 = vunpack.c.l.b16 %v494
    %v2375 = vunpack.c.h.b16 %v494
    %v2376 = vunpack.c.l.b16 %v495
    %v2377 = vunpack.c.h.b16 %v495
    %v2378 = vunpack.c.l.b16 %v496
    %v2379 = vunpack.c.h.b16 %v496
    %v2380 = vunpack.c.l.b16 %v497
    %v2381 = vunpack.c.h.b16 %v497
    %v2382 = vunpack.c.l.b16 %v498
    %v2383 = vunpack.c.h.b16 %v498
    %v2384 = vunpack.c.l.b16 %v499
    %v2385 = vunpack.c.h.b16 %v499
    %v2386 = vunpack.c.l.b16 %v500
    %v2387 = vunpack.c.h.b16 %v500
    %v2388 = vunpack.c.l.b16 %v501
    %v2389 = vunpack.c.h.b16 %v501
    %v2390 = vunpack.c.l.b16 %v502
    %v2391 = vunpack.c.h.b16 %v502
    %v2392 = vunpack.c.l.b16 %v503
    %v2393 = vunpack.c.h.b16 %v503
    %v2394 = vunpack.c.l.b16 %v504
    %v2395 = vunpack.c.h.b16 %v504
    %v2396 = vunpack.c.l.b16 %v505
    %v2397 = vunpack.c.h.b16 %v505
    %v2398 = vunpack.c.l.b16 %v506
    %v2399 = vunpack.c.h.b16 %v506
    %v2400 = vunpack.c.l.b16 %v507
    %v2401 = vunpack.c.h.b16 %v507
    %v2402 = vunpack.c.l.b16 %v508
    %v2403 = vunpack.c.h.b16 %v508
    %v2404 = vunpack.c.l.b16 %v509
    %v2405 = vunpack.c.h.b16 %v509
    %v2406 = vunpack.c.l.b16 %v510
    %v2407 = vunpack.c.h.b16 %v510
    %v2408 = vunpack.c.l.b16 %v511
    %v2409 = vunpack.c.h.b16 %v511
    %v2410 = vunpack.c.l.b16 %v512
    %v2411 = vunpack.c.h.b16 %v512
    %v2412 = vunpack.c.l.b16 %v513
    %v2413 = vunpack.c.h.b16 %v513
    %v2414 = vunpack.c.l.b16 %v514
    %v2415 = vunpack.c.h.b16 %v514
    %v2416 = vunpack.c.l.b16 %v515
    %v2417 = vunpack.c.h.b16 %v515
    %v2418 = vunpack.c.l.b16 %v516
    %v2419 = vunpack.c.h.b16 %v516
    %v2420 = vunpack.c.l.b16 %v517
    %v2421 = vunpack.c.h.b16 %v517
    %v2422 = vunpack.c.l.b16 %v518
    %v2423 = vunpack.c.h.b16 %v518
    %v2424 = vunpack.c.l.b16 %v519
    %v2425 = vunpack.c.h.b16 %v519
    %v2426 = vunpack.c.l.b16 %v520
    %v2427 = vunpack.c.h.b16 %v520
    %v2428 = vunpack.c.l.b16 %v521
    %v2429 = vunpack.c.h.b16 %v521
    %v2430 = vunpack.c.l.b16 %v522
    %v2431 = vunpack.c.h.b16 %v522
    %v2432 = vunpack.c.l.b16 %v523
    %v2433 = vunpack.c.h.b16 %v523
    %v2434 = vunpack.c.l.b16 %v524
    %v2435 = vunpack.c.h.b16 %v524
    %v2436 = vunpack.c.l.b16 %v525
    %v2437 = vunpack.c.h.b16 %v525
    %v2438 = vunpack.c.l.b16 %v526
    %v2439 = vunpack.c.h.b16 %v526
    %v2440 = vunpack.c.l.b16 %v527
    %v2441 = vunpack.c.h.b16 %v527
    %v2442 = vunpack.c.l.b16 %v528
    %v2443 = vunpack.c.h.b16 %v528
    %v2444 = vunpack.c.l.b16 %v529
    %v2445 = vunpack.c.h.b16 %v529
    %v2446 = vunpack.c.l.b16 %v530
    %v2447 = vunpack.c.h.b16 %v530
    %v2448 = vunpack.c.l.b16 %v531
    %v2449 = vunpack.c.h.b16 %v531
    %v2450 = vunpack.c.l.b16 %v532
    %v2451 = vunpack.c.h.b16 %v532
    %v2452 = vunpack.c.l.b16 %v533
    %v2453 = vunpack.c.h.b16 %v533
    %v2454 = vunpack.c.l.b16 %v534
    %v2455 = vunpack.c.h.b16 %v534
    %v2456 = vunpack.c.l.b16 %v535
    %v2457 = vunpack.c.h.b16 %v535
    %v2458 = vunpack.c.l.b16 %v536
    %v2459 = vunpack.c.h.b16 %v536
    %v2460 = vunpack.c.l.b16 %v537
    %v2461 = vunpack.c.h.b16 %v537
    %v2462 = vunpack.c.l.b16 %v538
    %v2463 = vunpack.c.h.b16 %v538
    %v2464 = vunpack.c.l.b16 %v539
    %v2465 = vunpack.c.h.b16 %v539
    %v2466 = vunpack.c.l.b16 %v540
    %v2467 = vunpack.c.h.b16 %v540
    %v2468 = vunpack.c.l.b16 %v541
    %v2469 = vunpack.c.h.b16 %v541
    %v2470 = vunpack.c.l.b16 %v542
    %v2471 = vunpack.c.h.b16 %v542
    %v2472 = vunpack.c.l.b16 %v543
    %v2473 = vunpack.c.h.b16 %v543
    %v2474 = vunpack.c.l.b16 %v544
    %v2475 = vunpack.c.h.b16 %v544
    %v2476 = vunpack.c.l.b16 %v545
    %v2477 = vunpack.c.h.b16 %v545
    %v2478 = vunpack.c.l.b16 %v546
    %v2479 = vunpack.c.h.b16 %v546
    %v2480 = vunpack.c.l.b16 %v547
    %v2481 = vunpack.c.h.b16 %v547
    %v2482 = vunpack.c.l.b16 %v548
    %v2483 = vunpack.c.h.b16 %v548
    %v2484 = vunpack.c.l.b16 %v549
    %v2485 = vunpack.c.h.b16 %v549
    %v2486 = vunpack.c.l.b16 %v550
    %v2487 = vunpack.c.h.b16 %v550
    %v2488 = vunpack.c.l.b16 %v551
    %v2489 = vunpack.c.h.b16 %v551
    %v2490 = vunpack.c.l.b16 %v552
    %v2491 = vunpack.c.h.b16 %v552
    %v2492 = vunpack.c.l.b16 %v553
    %v2493 = vunpack.c.h.b16 %v553
    %v2494 = vunpack.c.l.b16 %v554
    %v2495 = vunpack.c.h.b16 %v554
    %v2496 = vunpack.c.l.b16 %v555
    %v2497 = vunpack.c.h.b16 %v555
    %v2498 = vunpack.c.l.b16 %v556
    %v2499 = vunpack.c.h.b16 %v556
    %v2500 = vunpack.c.l.b16 %v557
    %v2501 = vunpack.c.h.b16 %v557
    %v2502 = vunpack.c.l.b16 %v558
    %v2503 = vunpack.c.h.b16 %v558
    %v2504 = vunpack.c.l.b16 %v559
    %v2505 = vunpack.c.h.b16 %v559
    %v2506 = vunpack.c.l.b16 %v560
    %v2507 = vunpack.c.h.b16 %v560
    %v2508 = vunpack.c.l.b16 %v561
    %v2509 = vunpack.c.h.b16 %v561
    %v2510 = vunpack.c.l.b16 %v562
    %v2511 = vunpack.c.h.b16 %v562
    %v2512 = vunpack.c.l.b16 %v563
    %v2513 = vunpack.c.h.b16 %v563
    %v2514 = vunpack.c.l.b16 %v564
    %v2515 = vunpack.c.h.b16 %v564
    %v2516 = vunpack.c.l.b16 %v565
    %v2517 = vunpack.c.h.b16 %v565
    %v2518 = vunpack.c.l.b16 %v566
    %v2519 = vunpack.c.h.b16 %v566
    %v2520 = vunpack.c.l.b16 %v567
    %v2521 = vunpack.c.h.b16 %v567
    %v2522 = vunpack.c.l.b16 %v568
    %v2523 = vunpack.c.h.b16 %v568
    %v2524 = vunpack.c.l.b16 %v569
    %v2525 = vunpack.c.h.b16 %v569
    %v2526 = vunpack.c.l.b16 %v570
    %v2527 = vunpack.c.h.b16 %v570
    %v2528 = vunpack.c.l.b16 %v571
    %v2529 = vunpack.c.h.b16 %v571
    %v2530 = vunpack.c.l.b16 %v572
    %v2531 = vunpack.c.h.b16 %v572
    %v2532 = vunpack.c.l.b16 %v573
    %v2533 = vunpack.c.h.b16 %v573
    %v2534 = vunpack.c.l.b16 %v574
    %v2535 = vunpack.c.h.b16 %v574
    %v2536 = vunpack.c.l.b16 %v575
    %v2537 = vunpack.c.h.b16 %v575
    %v2538 = vunpack.c.l.b16 %v576
    %v2539 = vunpack.c.h.b16 %v576
    %v2540 = vunpack.c.l.b16 %v577
    %v2541 = vunpack.c.h.b16 %v577
    %v2542 = vunpack.c.l.b16 %v578
    %v2543 = vunpack.c.h.b16 %v578
    %v2544 = vunpack.c.l.b16 %v579
    %v2545 = vunpack.c.h.b16 %v579
    %v2546 = vunpack.c.l.b16 %v580
    %v2547 = vunpack.c.h.b16 %v580
    %v2548 = vunpack.c.l.b16 %v581
    %v2549 = vunpack.c.h.b16 %v581
    %v2550 = vunpack.c.l.b16 %v582
    %v2551 = vunpack.c.h.b16 %v582
    %v2552 = vunpack.c.l.b16 %v583
    %v2553 = vunpack.c.h.b16 %v583
    %v2554 = vunpack.c.l.b16 %v584
    %v2555 = vunpack.c.h.b16 %v584
    %v2556 = vunpack.c.l.b16 %v585
    %v2557 = vunpack.c.h.b16 %v585
    %v2558 = vunpack.c.l.b16 %v586
    %v2559 = vunpack.c.h.b16 %v586
    %v2560 = vunpack.c.l.b16 %v587
    %v2561 = vunpack.c.h.b16 %v587
    %v2562 = vunpack.c.l.b16 %v588
    %v2563 = vunpack.c.h.b16 %v588
    %v2564 = vunpack.c.l.b16 %v589
    %v2565 = vunpack.c.h.b16 %v589
    %v2566 = vunpack.c.l.b16 %v590
    %v2567 = vunpack.c.h.b16 %v590
    %v2568 = vunpack.c.l.b16 %v591
    %v2569 = vunpack.c.h.b16 %v591
    %v2570 = vunpack.c.l.b16 %v592
    %v2571 = vunpack.c.h.b16 %v592
    %v2572 = vunpack.c.l.b16 %v593
    %v2573 = vunpack.c.h.b16 %v593
    %v2574 = vunpack.c.l.b16 %v594
    %v2575 = vunpack.c.h.b16 %v594
    %v2576 = vunpack.c.l.b16 %v595
    %v2577 = vunpack.c.h.b16 %v595
    %v2578 = vunpack.c.l.b16 %v596
    %v2579 = vunpack.c.h.b16 %v596
    %v2580 = vunpack.c.l.b16 %v597
    %v2581 = vunpack.c.h.b16 %v597
    %v2582 = vunpack.c.l.b16 %v598
    %v2583 = vunpack.c.h.b16 %v598
    %v2584 = vunpack.c.l.b16 %v599
    %v2585 = vunpack.c.h.b16 %v599
    %v2586 = vunpack.c.l.b16 %v600
    %v2587 = vunpack.c.h.b16 %v600
    %v2588 = vunpack.c.l.b16 %v601
    %v2589 = vunpack.c.h.b16 %v601
    %v2590 = vunpack.c.l.b16 %v602
    %v2591 = vunpack.c.h.b16 %v602
    %v2592 = vunpack.c.l.b16 %v603
    %v2593 = vunpack.c.h.b16 %v603
    %v2594 = vunpack.c.l.b16 %v604
    %v2595 = vunpack.c.h.b16 %v604
    %v2596 = vunpack.c.l.b16 %v605
    %v2597 = vunpack.c.h.b16 %v605
    %v2598 = vunpack.c.l.b16 %v606
    %v2599 = vunpack.c.h.b16 %v606
    %v2600 = vunpack.c.l.b16 %v607
    %v2601 = vunpack.c.h.b16 %v607
    %v2602 = vunpack.c.l.b16 %v608
    %v2603 = vunpack.c.h.b16 %v608
    %v2604 = vunpack.c.l.b16 %v609
    %v2605 = vunpack.c.h.b16 %v609
    %v2606 = vunpack.c.l.b16 %v610
    %v2607 = vunpack.c.h.b16 %v610
    %v2608 = vunpack.c.l.b16 %v611
    %v2609 = vunpack.c.h.b16 %v611
    %v2610 = vunpack.c.l.b16 %v612
    %v2611 = vunpack.c.h.b16 %v612
    %v2612 = vunpack.c.l.b16 %v613
    %v2613 = vunpack.c.h.b16 %v613
    %v2614 = vunpack.c.l.b16 %v614
    %v2615 = vunpack.c.h.b16 %v614
    %v2616 = vunpack.c.l.b16 %v615
    %v2617 = vunpack.c.h.b16 %v615
    %v2618 = vunpack.c.l.b16 %v616
    %v2619 = vunpack.c.h.b16 %v616
    %v2620 = vunpack.c.l.b16 %v617
    %v2621 = vunpack.c.h.b16 %v617
    %v2622 = vunpack.c.l.b16 %v618
    %v2623 = vunpack.c.h.b16 %v618
    %v2624 = vunpack.c.l.b16 %v619
    %v2625 = vunpack.c.h.b16 %v619
    %v2626 = vunpack.c.l.b16 %v620
    %v2627 = vunpack.c.h.b16 %v620
    %v2628 = vunpack.c.l.b16 %v621
    %v2629 = vunpack.c.h.b16 %v621
    %v2630 = vunpack.c.l.b16 %v622
    %v2631 = vunpack.c.h.b16 %v622
    %v2632 = vunpack.c.l.b16 %v623
    %v2633 = vunpack.c.h.b16 %v623
    %v2634 = vunpack.c.l.b16 %v624
    %v2635 = vunpack.c.h.b16 %v624
    %v2636 = vunpack.c.l.b16 %v625
    %v2637 = vunpack.c.h.b16 %v625
    %v2638 = vunpack.c.l.b16 %v626
    %v2639 = vunpack.c.h.b16 %v626
    %v2640 = vunpack.c.l.b16 %v627
    %v2641 = vunpack.c.h.b16 %v627
    %v2642 = vunpack.c.l.b16 %v628
    %v2643 = vunpack.c.h.b16 %v628
    %v2644 = vunpack.c.l.b16 %v629
    %v2645 = vunpack.c.h.b16 %v629
    %v2646 = vunpack.c.l.b16 %v630
    %v2647 = vunpack.c.h.b16 %v630
    %v2648 = vunpack.c.l.b16 %v631
    %v2649 = vunpack.c.h.b16 %v631
    %v2650 = vunpack.c.l.b16 %v632
    %v2651 = vunpack.c.h.b16 %v632
    %v2652 = vunpack.c.l.b16 %v633
    %v2653 = vunpack.c.h.b16 %v633
    %v2654 = vunpack.c.l.b16 %v634
    %v2655 = vunpack.c.h.b16 %v634
    %v2656 = vunpack.c.l.b16 %v635
    %v2657 = vunpack.c.h.b16 %v635
    %v2658 = vunpack.c.l.b16 %v636
    %v2659 = vunpack.c.h.b16 %v636
    %v2660 = vunpack.c.l.b16 %v637
    %v2661 = vunpack.c.h.b16 %v637
    %v2662 = vunpack.c.l.b16 %v638
    %v2663 = vunpack.c.h.b16 %v638
    %v2664 = vunpack.c.l.b16 %v639
    %v2665 = vunpack.c.h.b16 %v639
    %v2666 = vunpack.c.l.b16 %v640
    %v2667 = vunpack.c.h.b16 %v640
    %v2668 = vunpack.c.l.b16 %v641
    %v2669 = vunpack.c.h.b16 %v641
    %v2670 = vunpack.c.l.b16 %v642
    %v2671 = vunpack.c.h.b16 %v642
    %v2672 = vunpack.c.l.b16 %v643
    %v2673 = vunpack.c.h.b16 %v643
    %v2674 = vunpack.c.l.b16 %v644
    %v2675 = vunpack.c.h.b16 %v644
    %v2676 = vunpack.c.l.b16 %v645
    %v2677 = vunpack.c.h.b16 %v645
    %v2678 = vunpack.c.l.b16 %v646
    %v2679 = vunpack.c.h.b16 %v646
    %v2680 = vunpack.c.l.b16 %v647
    %v2681 = vunpack.c.h.b16 %v647
    %v2682 = vunpack.c.l.b16 %v648
    %v2683 = vunpack.c.h.b16 %v648
    %v2684 = vunpack.c.l.b16 %v649
    %v2685 = vunpack.c.h.b16 %v649
    %v2686 = vunpack.c.l.b16 %v650
    %v2687 = vunpack.c.h.b16 %v650
    %v2688 = vunpack.c.l.b16 %v651
    %v2689 = vunpack.c.h.b16 %v651
    %v2690 = vunpack.c.l.b16 %v652
    %v2691 = vunpack.c.h.b16 %v652
    %v2692 = vunpack.c.l.b16 %v653
    %v2693 = vunpack.c.h.b16 %v653
    %v2694 = vunpack.c.l.b16 %v654
    %v2695 = vunpack.c.h.b16 %v654
    %v2696 = vunpack.c.l.b16 %v655
    %v2697 = vunpack.c.h.b16 %v655
    %v2698 = vunpack.c.l.b16 %v656
    %v2699 = vunpack.c.h.b16 %v656
    %v2700 = vunpack.c.l.b16 %v657
    %v2701 = vunpack.c.h.b16 %v657
    %v2702 = vunpack.c.l.b16 %v658
    %v2703 = vunpack.c.h.b16 %v658
    %v2704 = vunpack.c.l.b16 %v659
    %v2705 = vunpack.c.h.b16 %v659
    %v2706 = vunpack.c.l.b16 %v660
    %v2707 = vunpack.c.h.b16 %v660
    %v2708 = vunpack.c.l.b16 %v661
    %v2709 = vunpack.c.h.b16 %v661
    %v2710 = vunpack.c.l.b16 %v662
    %v2711 = vunpack.c.h.b16 %v662
    %v2712 = vunpack.c.l.b16 %v663
    %v2713 = vunpack.c.h.b16 %v663
    %v2714 = vunpack.c.l.b16 %v664
    %v2715 = vunpack.c.h.b16 %v664
    %v2716 = vunpack.c.l.b16 %v665
    %v2717 = vunpack.c.h.b16 %v665
    %v2718 = vunpack.c.l.b16 %v666
    %v2719 = vunpack.c.h.b16 %v666
    %v2720 = vunpack.c.l.b16 %v667
    %v2721 = vunpack.c.h.b16 %v667
    %v2722 = vunpack.c.l.b16 %v668
    %v2723 = vunpack.c.h.b16 %v668
    %v2724 = vunpack.c.l.b16 %v669
    %v2725 = vunpack.c.h.b16 %v669
    %v2726 = vunpack.c.l.b16 %v670
    %v2727 = vunpack.c.h.b16 %v670
    %v2728 = vunpack.c.l.b16 %v671
    %v2729 = vunpack.c.h.b16 %v671
    %v2730 = vunpack.c.l.b16 %v672
    %v2731 = vunpack.c.h.b16 %v672
    %v2732 = vunpack.c.l.b16 %v673
    %v2733 = vunpack.c.h.b16 %v673
    %v2734 = vunpack.c.l.b16 %v674
    %v2735 = vunpack.c.h.b16 %v674
    %v2736 = vunpack.c.l.b16 %v675
    %v2737 = vunpack.c.h.b16 %v675
    %v2738 = vunpack.c.l.b16 %v676
    %v2739 = vunpack.c.h.b16 %v676
    %v2740 = vunpack.c.l.b16 %v677
    %v2741 = vunpack.c.h.b16 %v677
    %v2742 = vunpack.c.l.b16 %v678
    %v2743 = vunpack.c.h.b16 %v678
    %v2744 = vunpack.c.l.b16 %v679
    %v2745 = vunpack.c.h.b16 %v679
    %v2746 = vunpack.c.l.b16 %v680
    %v2747 = vunpack.c.h.b16 %v680
    %v2748 = vunpack.c.l.b16 %v681
    %v2749 = vunpack.c.h.b16 %v681
    %v2750 = vunpack.c.l.b16 %v682
    %v2751 = vunpack.c.h.b16 %v682
    %v2752 = vunpack.c.l.b16 %v683
    %v2753 = vunpack.c.h.b16 %v683
    %v2754 = vunpack.c.l.b16 %v684
    %v2755 = vunpack.c.h.b16 %v684
    %v2756 = vunpack.c.l.b16 %v685
    %v2757 = vunpack.c.h.b16 %v685
    %v2758 = vunpack.c.l.b16 %v686
    %v2759 = vunpack.c.h.b16 %v686
    %v2760 = vunpack.c.l.b16 %v687
    %v2761 = vunpack.c.h.b16 %v687
    %v2762 = vunpack.c.l.b16 %v688
    %v2763 = vunpack.c.h.b16 %v688
    %v2764 = vunpack.c.l.b16 %v689
    %v2765 = vunpack.c.h.b16 %v689
    %v2766 = vunpack.c.l.b16 %v690
    %v2767 = vunpack.c.h.b16 %v690
    %v2768 = vunpack.c.l.b16 %v691
    %v2769 = vunpack.c.h.b16 %v691
    %v2770 = vunpack.c.l.b16 %v692
    %v2771 = vunpack.c.h.b16 %v692
    %v2772 = vunpack.c.l.b16 %v693
    %v2773 = vunpack.c.h.b16 %v693
    %v2774 = vunpack.c.l.b16 %v694
    %v2775 = vunpack.c.h.b16 %v694
    %v2776 = vunpack.c.l.b16 %v695
    %v2777 = vunpack.c.h.b16 %v695
    %v2778 = vunpack.c.l.b16 %v696
    %v2779 = vunpack.c.h.b16 %v696
    %v2780 = vunpack.c.l.b16 %v697
    %v2781 = vunpack.c.h.b16 %v697
    %v2782 = vunpack.c.l.b16 %v698
    %v2783 = vunpack.c.h.b16 %v698
    %v2784 = vunpack.c.l.b16 %v699
    %v2785 = vunpack.c.h.b16 %v699
    %v2786 = vunpack.c.l.b16 %v700
    %v2787 = vunpack.c.h.b16 %v700
    %v2788 = vunpack.c.l.b16 %v701
    %v2789 = vunpack.c.h.b16 %v701
    %v2790 = vunpack.c.l.b16 %v702
    %v2791 = vunpack.c.h.b16 %v702
    %v2792 = vunpack.c.l.b16 %v703
    %v2793 = vunpack.c.h.b16 %v703
    %v2794 = vunpack.c.l.b16 %v704
    %v2795 = vunpack.c.h.b16 %v704
    %v2796 = vunpack.c.l.b16 %v705
    %v2797 = vunpack.c.h.b16 %v705
    %v2798 = vunpack.c.l.b16 %v706
    %v2799 = vunpack.c.h.b16 %v706
    %v2800 = vunpack.c.l.b16 %v707
    %v2801 = vunpack.c.h.b16 %v707
    %v2802 = vunpack.c.l.b16 %v708
    %v2803 = vunpack.c.h.b16 %v708
    %v2804 = vunpack.c.l.b16 %v709
    %v2805 = vunpack.c.h.b16 %v709
    %v2806 = vunpack.c.l.b16 %v710
    %v2807 = vunpack.c.h.b16 %v710
    %v2808 = vunpack.c.l.b16 %v711
    %v2809 = vunpack.c.h.b16 %v711
    %v2810 = vunpack.c.l.b16 %v712
    %v2811 = vunpack.c.h.b16 %v712
    %v2812 = vunpack.c.l.b16 %v713
    %v2813 = vunpack.c.h.b16 %v713
    %v2814 = vunpack.c.l.b16 %v714
    %v2815 = vunpack.c.h.b16 %v714
    %v2816 = vunpack.c.l.b16 %v715
    %v2817 = vunpack.c.h.b16 %v715
    %v2818 = vunpack.c.l.b16 %v716
    %v2819 = vunpack.c.h.b16 %v716
    %v2820 = vunpack.c.l.b16 %v717
    %v2821 = vunpack.c.h.b16 %v717
    %v2822 = vunpack.c.l.b16 %v718
    %v2823 = vunpack.c.h.b16 %v718
    %v2824 = vunpack.c.l.b16 %v719
    %v2825 = vunpack.c.h.b16 %v719
    %v2826 = vunpack.c.l.b16 %v720
    %v2827 = vunpack.c.h.b16 %v720
    %v2828 = vunpack.c.l.b16 %v721
    %v2829 = vunpack.c.h.b16 %v721
    %v2830 = vunpack.c.l.b16 %v722
    %v2831 = vunpack.c.h.b16 %v722
    %v2832 = vunpack.c.l.b16 %v723
    %v2833 = vunpack.c.h.b16 %v723
    %v2834 = vunpack.c.l.b16 %v724
    %v2835 = vunpack.c.h.b16 %v724
    %v2836 = vunpack.c.l.b16 %v725
    %v2837 = vunpack.c.h.b16 %v725
    %v2838 = vunpack.c.l.b16 %v726
    %v2839 = vunpack.c.h.b16 %v726
    %v2840 = vunpack.c.l.b16 %v727
    %v2841 = vunpack.c.h.b16 %v727
    %v2842 = vunpack.c.l.b16 %v728
    %v2843 = vunpack.c.h.b16 %v728
    %v2844 = vunpack.c.l.b16 %v729
    %v2845 = vunpack.c.h.b16 %v729
    %v2846 = vunpack.c.l.b16 %v730
    %v2847 = vunpack.c.h.b16 %v730
    %v2848 = vunpack.c.l.b16 %v731
    %v2849 = vunpack.c.h.b16 %v731
    %v2850 = vunpack.c.l.b16 %v732
    %v2851 = vunpack.c.h.b16 %v732
    %v2852 = vunpack.c.l.b16 %v733
    %v2853 = vunpack.c.h.b16 %v733
    %v2854 = vunpack.c.l.b16 %v734
    %v2855 = vunpack.c.h.b16 %v734
    %v2856 = vunpack.c.l.b16 %v735
    %v2857 = vunpack.c.h.b16 %v735
    %v2858 = vunpack.c.l.b16 %v736
    %v2859 = vunpack.c.h.b16 %v736
    %v2860 = vunpack.c.l.b16 %v737
    %v2861 = vunpack.c.h.b16 %v737
    %v2862 = vunpack.c.l.b16 %v738
    %v2863 = vunpack.c.h.b16 %v738
    %v2864 = vunpack.c.l.b16 %v739
    %v2865 = vunpack.c.h.b16 %v739
    %v2866 = vunpack.c.l.b16 %v740
    %v2867 = vunpack.c.h.b16 %v740
    %v2868 = vunpack.c.l.b16 %v741
    %v2869 = vunpack.c.h.b16 %v741
    %v2870 = vunpack.c.l.b16 %v742
    %v2871 = vunpack.c.h.b16 %v742
    %v2872 = vunpack.c.l.b16 %v743
    %v2873 = vunpack.c.h.b16 %v743
    %v2874 = vunpack.c.l.b16 %v744
    %v2875 = vunpack.c.h.b16 %v744
    %v2876 = vunpack.c.l.b16 %v745
    %v2877 = vunpack.c.h.b16 %v745
    %v2878 = vunpack.c.l.b16 %v746
    %v2879 = vunpack.c.h.b16 %v746
    %v2880 = vunpack.c.l.b16 %v747
    %v2881 = vunpack.c.h.b16 %v747
    %v2882 = vunpack.c.l.b16 %v748
    %v2883 = vunpack.c.h.b16 %v748
    %v2884 = vunpack.c.l.b16 %v749
    %v2885 = vunpack.c.h.b16 %v749
    %v2886 = vunpack.c.l.b16 %v750
    %v2887 = vunpack.c.h.b16 %v750
    %v2888 = vunpack.c.l.b16 %v751
    %v2889 = vunpack.c.h.b16 %v751
    %v2890 = vunpack.c.l.b16 %v752
    %v2891 = vunpack.c.h.b16 %v752
    %v2892 = vunpack.c.l.b16 %v753
    %v2893 = vunpack.c.h.b16 %v753
    %v2894 = vunpack.c.l.b16 %v754
    %v2895 = vunpack.c.h.b16 %v754
    %v2896 = vunpack.c.l.b16 %v755
    %v2897 = vunpack.c.h.b16 %v755
    %v2898 = vunpack.c.l.b16 %v756
    %v2899 = vunpack.c.h.b16 %v756
    %v2900 = vunpack.c.l.b16 %v757
    %v2901 = vunpack.c.h.b16 %v757
    %v2902 = vunpack.c.l.b16 %v758
    %v2903 = vunpack.c.h.b16 %v758
    %v2904 = vunpack.c.l.b16 %v759
    %v2905 = vunpack.c.h.b16 %v759
    %v2906 = vunpack.c.l.b16 %v760
    %v2907 = vunpack.c.h.b16 %v760
    %v2908 = vunpack.c.l.b16 %v761
    %v2909 = vunpack.c.h.b16 %v761
    %v2910 = vunpack.c.l.b16 %v762
    %v2911 = vunpack.c.h.b16 %v762
    %v2912 = vunpack.c.l.b16 %v763
    %v2913 = vunpack.c.h.b16 %v763
    %v2914 = vunpack.c.l.b16 %v764
    %v2915 = vunpack.c.h.b16 %v764
    %v2916 = vunpack.c.l.b16 %v765
    %v2917 = vunpack.c.h.b16 %v765
    %v2918 = vunpack.c.l.b16 %v766
    %v2919 = vunpack.c.h.b16 %v766
    %v2920 = vunpack.c.l.b16 %v767
    %v2921 = vunpack.c.h.b16 %v767
    %v2922 = vunpack.c.l.b16 %v768
    %v2923 = vunpack.c.h.b16 %v768
    %v2924 = vunpack.c.l.b16 %v769
    %v2925 = vunpack.c.h.b16 %v769
    %v2926 = vunpack.c.l.b16 %v770
    %v2927 = vunpack.c.h.b16 %v770
    %v2928 = vunpack.c.l.b16 %v771
    %v2929 = vunpack.c.h.b16 %v771
    %v2930 = vunpack.c.l.b16 %v772
    %v2931 = vunpack.c.h.b16 %v772
    %v2932 = vunpack.c.l.b16 %v773
    %v2933 = vunpack.c.h.b16 %v773
    %v2934 = vunpack.c.l.b16 %v774
    %v2935 = vunpack.c.h.b16 %v774
    %v2936 = vunpack.c.l.b16 %v775
    %v2937 = vunpack.c.h.b16 %v775
    %v2938 = vunpack.c.l.b16 %v776
    %v2939 = vunpack.c.h.b16 %v776
    %v2940 = vunpack.c.l.b16 %v777
    %v2941 = vunpack.c.h.b16 %v777
    %v2942 = vunpack.c.l.b16 %v778
    %v2943 = vunpack.c.h.b16 %v778
    %v2944 = vunpack.c.l.b16 %v779
    %v2945 = vunpack.c.h.b16 %v779
    %v2946 = vunpack.c.l.b16 %v780
    %v2947 = vunpack.c.h.b16 %v780
    %v2948 = vunpack.c.l.b16 %v781
    %v2949 = vunpack.c.h.b16 %v781
    %v2950 = vunpack.c.l.b16 %v782
    %v2951 = vunpack.c.h.b16 %v782
    %v2952 = vunpack.c.l.b16 %v783
    %v2953 = vunpack.c.h.b16 %v783
    %v2954 = vunpack.c.l.b16 %v784
    %v2955 = vunpack.c.h.b16 %v784
    %v2956 = vunpack.c.l.b16 %v785
    %v2957 = vunpack.c.h.b16 %v785
    %v2958 = vunpack.c.l.b16 %v786
    %v2959 = vunpack.c.h.b16 %v786
    %v2960 = vunpack.c.l.b16 %v787
    %v2961 = vunpack.c.h.b16 %v787
    %v2962 = vunpack.c.l.b16 %v788
    %v2963 = vunpack.c.h.b16 %v788
    %v2964 = vunpack.c.l.b16 %v789
    %v2965 = vunpack.c.h.b16 %v789
    %v2966 = vunpack.c.l.b16 %v790
    %v2967 = vunpack.c.h.b16 %v790
    %v2968 = vunpack.c.l.b16 %v791
    %v2969 = vunpack.c.h.b16 %v791
    %v2970 = vunpack.c.l.b16 %v792
    %v2971 = vunpack.c.h.b16 %v792
    %v2972 = vunpack.c.l.b16 %v793
    %v2973 = vunpack.c.h.b16 %v793
    %v2974 = vunpack.c.l.b16 %v794
    %v2975 = vunpack.c.h.b16 %v794
    %v2976 = vunpack.c.l.b16 %v795
    %v2977 = vunpack.c.h.b16 %v795
    %v2978 = vunpack.c.l.b16 %v796
    %v2979 = vunpack.c.h.b16 %v796
    %v2980 = vunpack.c.l.b16 %v797
    %v2981 = vunpack.c.h.b16 %v797
    %v2982 = vunpack.c.l.b16 %v798
    %v2983 = vunpack.c.h.b16 %v798
    %v2984 = vunpack.c.l.b16 %v799
    %v2985 = vunpack.c.h.b16 %v799
    %v2986 = vunpack.c.l.b16 %v800
    %v2987 = vunpack.c.h.b16 %v800
    %v2988 = vunpack.c.l.b16 %v801
    %v2989 = vunpack.c.h.b16 %v801
    %v2990 = vunpack.c.l.b16 %v802
    %v2991 = vunpack.c.h.b16 %v802
    %v2992 = vunpack.c.l.b16 %v803
    %v2993 = vunpack.c.h.b16 %v803
    %v2994 = vunpack.c.l.b16 %v804
    %v2995 = vunpack.c.h.b16 %v804
    %v2996 = vunpack.c.l.b16 %v805
    %v2997 = vunpack.c.h.b16 %v805
    %v2998 = vunpack.c.l.b16 %v806
    %v2999 = vunpack.c.h.b16 %v806
    %v3000 = vunpack.c.l.b16 %v807
    %v3001 = vunpack.c.h.b16 %v807
    %v3002 = vunpack.c.l.b16 %v808
    %v3003 = vunpack.c.h.b16 %v808
    %v3004 = vunpack.c.l.b16 %v809
    %v3005 = vunpack.c.h.b16 %v809
    %v3006 = vunpack.c.l.b16 %v810
    %v3007 = vunpack.c.h.b16 %v810
    %v3008 = vunpack.c.l.b16 %v811
    %v3009 = vunpack.c.h.b16 %v811
    %v3010 = vunpack.c.l.b16 %v812
    %v3011 = vunpack.c.h.b16 %v812
    %v3012 = vunpack.c.l.b16 %v813
    %v3013 = vunpack.c.h.b16 %v813
    %v3014 = vunpack.c.l.b16 %v814
    %v3015 = vunpack.c.h.b16 %v814
    %v3016 = vunpack.c.l.b16 %v815
    %v3017 = vunpack.c.h.b16 %v815
    %v3018 = vunpack.c.l.b16 %v816
    %v3019 = vunpack.c.h.b16 %v816
    %v3020 = vunpack.c.l.b16 %v817
    %v3021 = vunpack.c.h.b16 %v817
    %v3022 = vunpack.c.l.b16 %v818
    %v3023 = vunpack.c.h.b16 %v818
    %v3024 = vunpack.c.l.b16 %v819
    %v3025 = vunpack.c.h.b16 %v819
    %v3026 = vunpack.c.l.b16 %v820
    %v3027 = vunpack.c.h.b16 %v820
    %v3028 = vunpack.c.l.b16 %v821
    %v3029 = vunpack.c.h.b16 %v821
    %v3030 = vunpack.c.l.b16 %v822
    %v3031 = vunpack.c.h.b16 %v822
    %v3032 = vunpack.c.l.b16 %v823
    %v3033 = vunpack.c.h.b16 %v823
    %v3034 = vunpack.c.l.b16 %v824
    %v3035 = vunpack.c.h.b16 %v824
    %v3036 = vunpack.c.l.b16 %v825
    %v3037 = vunpack.c.h.b16 %v825
    %v3038 = vunpack.c.l.b16 %v826
    %v3039 = vunpack.c.h.b16 %v826
    %v3040 = vunpack.c.l.b16 %v827
    %v3041 = vunpack.c.h.b16 %v827
    %v3042 = vunpack.c.l.b16 %v828
    %v3043 = vunpack.c.h.b16 %v828
    %v3044 = vunpack.c.l.b16 %v829
    %v3045 = vunpack.c.h.b16 %v829
    %v3046 = vunpack.c.l.b16 %v830
    %v3047 = vunpack.c.h.b16 %v830
    %v3048 = vunpack.c.l.b16 %v831
    %v3049 = vunpack.c.h.b16 %v831
    %v3050 = vunpack.c.l.b16 %v832
    %v3051 = vunpack.c.h.b16 %v832
    %v3052 = vunpack.c.l.b16 %v833
    %v3053 = vunpack.c.h.b16 %v833
    %v3054 = vunpack.c.l.b16 %v834
    %v3055 = vunpack.c.h.b16 %v834
    %v3056 = vunpack.c.l.b16 %v835
    %v3057 = vunpack.c.h.b16 %v835
    %v3058 = vunpack.c.l.b16 %v836
    %v3059 = vunpack.c.h.b16 %v836
    %v3060 = vunpack.c.l.b16 %v837
    %v3061 = vunpack.c.h.b16 %v837
    %v3062 = vunpack.c.l.b16 %v838
    %v3063 = vunpack.c.h.b16 %v838
    %v3064 = vunpack.c.l.b16 %v839
    %v3065 = vunpack.c.h.b16 %v839
    %v3066 = vunpack.c.l.b16 %v840
    %v3067 = vunpack.c.h.b16 %v840
    %v3068 = vunpack.c.l.b16 %v841
    %v3069 = vunpack.c.h.b16 %v841
    %v3070 = vunpack.c.l.b16 %v842
    %v3071 = vunpack.c.h.b16 %v842
    %v3072 = vunpack.c.l.b16 %v843
    %v3073 = vunpack.c.h.b16 %v843
    %v3074 = vunpack.c.l.b16 %v844
    %v3075 = vunpack.c.h.b16 %v844
    %v3076 = vunpack.c.l.b16 %v845
    %v3077 = vunpack.c.h.b16 %v845
    %v3078 = vunpack.c.l.b16 %v846
    %v3079 = vunpack.c.h.b16 %v846
    %v3080 = vunpack.c.l.b16 %v847
    %v3081 = vunpack.c.h.b16 %v847
    %v3082 = vunpack.c.l.b16 %v848
    %v3083 = vunpack.c.h.b16 %v848
    %v3084 = vunpack.c.l.b16 %v849
    %v3085 = vunpack.c.h.b16 %v849
    %v3086 = vunpack.c.l.b16 %v850
    %v3087 = vunpack.c.h.b16 %v850
    %v3088 = vunpack.c.l.b16 %v851
    %v3089 = vunpack.c.h.b16 %v851
    %v3090 = vunpack.c.l.b16 %v852
    %v3091 = vunpack.c.h.b16 %v852
    %v3092 = vunpack.c.l.b16 %v853
    %v3093 = vunpack.c.h.b16 %v853
    %v3094 = vunpack.c.l.b16 %v854
    %v3095 = vunpack.c.h.b16 %v854
    %v3096 = vunpack.c.l.b16 %v855
    %v3097 = vunpack.c.h.b16 %v855
    %v3098 = vunpack.c.l.b16 %v856
    %v3099 = vunpack.c.h.b16 %v856
    %v3100 = vunpack.c.l.b16 %v857
    %v3101 = vunpack.c.h.b16 %v857
    %v3102 = vunpack.c.l.b16 %v858
    %v3103 = vunpack.c.h.b16 %v858
    %v3104 = vunpack.c.l.b16 %v859
    %v3105 = vunpack.c.h.b16 %v859
    %v3106 = vunpack.c.l.b16 %v860
    %v3107 = vunpack.c.h.b16 %v860
    %v3108 = vunpack.c.l.b16 %v861
    %v3109 = vunpack.c.h.b16 %v861
    %v3110 = vunpack.c.l.b16 %v862
    %v3111 = vunpack.c.h.b16 %v862
    %v3112 = vunpack.c.l.b16 %v863
    %v3113 = vunpack.c.h.b16 %v863
    %v3114 = vunpack.c.l.b16 %v864
    %v3115 = vunpack.c.h.b16 %v864
    %v3116 = vunpack.c.l.b16 %v865
    %v3117 = vunpack.c.h.b16 %v865
    %v3118 = vunpack.c.l.b16 %v866
    %v3119 = vunpack.c.h.b16 %v866
    %v3120 = vunpack.c.l.b16 %v867
    %v3121 = vunpack.c.h.b16 %v867
    %v3122 = vunpack.c.l.b16 %v868
    %v3123 = vunpack.c.h.b16 %v868
    %v3124 = vunpack.c.l.b16 %v869
    %v3125 = vunpack.c.h.b16 %v869
    %v3126 = vunpack.c.l.b16 %v870
    %v3127 = vunpack.c.h.b16 %v870
    %v3128 = vunpack.c.l.b16 %v871
    %v3129 = vunpack.c.h.b16 %v871
    %v3130 = vunpack.c.l.b16 %v872
    %v3131 = vunpack.c.h.b16 %v872
    %v3132 = vunpack.c.l.b16 %v873
    %v3133 = vunpack.c.h.b16 %v873
    %v3134 = vunpack.c.l.b16 %v874
    %v3135 = vunpack.c.h.b16 %v874
    %v3136 = vunpack.c.l.b16 %v875
    %v3137 = vunpack.c.h.b16 %v875
    %v3138 = vunpack.c.l.b16 %v876
    %v3139 = vunpack.c.h.b16 %v876
    %v3140 = vunpack.c.l.b16 %v877
    %v3141 = vunpack.c.h.b16 %v877
    %v3142 = vunpack.c.l.b16 %v878
    %v3143 = vunpack.c.h.b16 %v878
    %v3144 = vunpack.c.l.b16 %v879
    %v3145 = vunpack.c.h.b16 %v879
    %v3146 = vunpack.c.l.b16 %v880
    %v3147 = vunpack.c.h.b16 %v880
    %v3148 = vunpack.c.l.b16 %v881
    %v3149 = vunpack.c.h.b16 %v881
    %v3150 = vunpack.c.l.b16 %v882
    %v3151 = vunpack.c.h.b16 %v882
    %v3152 = vunpack.c.l.b16 %v883
    %v3153 = vunpack.c.h.b16 %v883
    %v3154 = vunpack.c.l.b16 %v884
    %v3155 = vunpack.c.h.b16 %v884
    %v3156 = vunpack.c.l.b16 %v885
    %v3157 = vunpack.c.h.b16 %v885
    %v3158 = vunpack.c.l.b16 %v886
    %v3159 = vunpack.c.h.b16 %v886
    %v3160 = vunpack.c.l.b16 %v887
    %v3161 = vunpack.c.h.b16 %v887
    %v3162 = vunpack.c.l.b16 %v888
    %v3163 = vunpack.c.h.b16 %v888
    %v3164 = vunpack.c.l.b16 %v889
    %v3165 = vunpack.c.h.b16 %v889
    %v3166 = vunpack.c.l.b16 %v890
    %v3167 = vunpack.c.h.b16 %v890
    %v3168 = vunpack.c.l.b16 %v891
    %v3169 = vunpack.c.h.b16 %v891
    %v3170 = vunpack.c.l.b16 %v892
    %v3171 = vunpack.c.h.b16 %v892
    %v3172 = vunpack.c.l.b16 %v893
    %v3173 = vunpack.c.h.b16 %v893
    %v3174 = vunpack.c.l.b16 %v894
    %v3175 = vunpack.c.h.b16 %v894
    %v3176 = vunpack.c.l.b16 %v895
    %v3177 = vunpack.c.h.b16 %v895
    %v3178 = vunpack.c.l.b16 %v896
    %v3179 = vunpack.c.h.b16 %v896
    %v3180 = vunpack.c.l.b16 %v897
    %v3181 = vunpack.c.h.b16 %v897
    %v3182 = vunpack.c.l.b16 %v898
    %v3183 = vunpack.c.h.b16 %v898
    %v3184 = vunpack.c.l.b16 %v899
    %v3185 = vunpack.c.h.b16 %v899
    %v3186 = vunpack.c.l.b16 %v900
    %v3187 = vunpack.c.h.b16 %v900
    %v3188 = vunpack.c.l.b16 %v901
    %v3189 = vunpack.c.h.b16 %v901
    %v3190 = vunpack.c.l.b16 %v902
    %v3191 = vunpack.c.h.b16 %v902
    %v3192 = vunpack.c.l.b16 %v903
    %v3193 = vunpack.c.h.b16 %v903
    %v3194 = vunpack.c.l.b16 %v904
    %v3195 = vunpack.c.h.b16 %v904
    %v3196 = vunpack.c.l.b16 %v905
    %v3197 = vunpack.c.h.b16 %v905
    %v3198 = vunpack.c.l.b16 %v906
    %v3199 = vunpack.c.h.b16 %v906
    %v3200 = vunpack.c.l.b16 %v907
    %v3201 = vunpack.c.h.b16 %v907
    %v3202 = vunpack.c.l.b16 %v908
    %v3203 = vunpack.c.h.b16 %v908
    %v3204 = vunpack.c.l.b16 %v909
    %v3205 = vunpack.c.h.b16 %v909
    %v3206 = vunpack.c.l.b16 %v910
    %v3207 = vunpack.c.h.b16 %v910
    %v3208 = vunpack.c.l.b16 %v911
    %v3209 = vunpack.c.h.b16 %v911
    %v3210 = vunpack.c.l.b16 %v912
    %v3211 = vunpack.c.h.b16 %v912
    %v3212 = vunpack.c.l.b16 %v913
    %v3213 = vunpack.c.h.b16 %v913
    %v3214 = vunpack.c.l.b16 %v914
    %v3215 = vunpack.c.h.b16 %v914
    %v3216 = vunpack.c.l.b16 %v915
    %v3217 = vunpack.c.h.b16 %v915
    %v3218 = vunpack.c.l.b16 %v916
    %v3219 = vunpack.c.h.b16 %v916
    %v3220 = vunpack.c.l.b16 %v917
    %v3221 = vunpack.c.h.b16 %v917
    %v3222 = vunpack.c.l.b16 %v918
    %v3223 = vunpack.c.h.b16 %v918
    %v3224 = vunpack.c.l.b16 %v919
    %v3225 = vunpack.c.h.b16 %v919
    %v3226 = vunpack.c.l.b16 %v920
    %v3227 = vunpack.c.h.b16 %v920
    %v3228 = vunpack.c.l.b16 %v921
    %v3229 = vunpack.c.h.b16 %v921
    %v3230 = vunpack.c.l.b16 %v922
    %v3231 = vunpack.c.h.b16 %v922
    %v3232 = vunpack.c.l.b16 %v923
    %v3233 = vunpack.c.h.b16 %v923
    %v3234 = vunpack.c.l.b16 %v924
    %v3235 = vunpack.c.h.b16 %v924
    %v3236 = vunpack.c.l.b16 %v925
    %v3237 = vunpack.c.h.b16 %v925
    %v3238 = vunpack.c.l.b16 %v926
    %v3239 = vunpack.c.h.b16 %v926
    %v3240 = vunpack.c.l.b16 %v927
    %v3241 = vunpack.c.h.b16 %v927
    %v3242 = vunpack.c.l.b16 %v928
    %v3243 = vunpack.c.h.b16 %v928
    %v3244 = vunpack.c.l.b16 %v929
    %v3245 = vunpack.c.h.b16 %v929
    %v3246 = vunpack.c.l.b16 %v930
    %v3247 = vunpack.c.h.b16 %v930
    %v3248 = vunpack.c.l.b16 %v931
    %v3249 = vunpack.c.h.b16 %v931
    %v3250 = vunpack.c.l.b16 %v932
    %v3251 = vunpack.c.h.b16 %v932
    %v3252 = vunpack.c.l.b16 %v933
    %v3253 = vunpack.c.h.b16 %v933
    %v3254 = vunpack.c.l.b16 %v934
    %v3255 = vunpack.c.h.b16 %v934
    %v3256 = vunpack.c.l.b16 %v935
    %v3257 = vunpack.c.h.b16 %v935
    %v3258 = vunpack.c.l.b16 %v936
    %v3259 = vunpack.c.h.b16 %v936
    %v3260 = vunpack.c.l.b16 %v937
    %v3261 = vunpack.c.h.b16 %v937
    %v3262 = vunpack.c.l.b16 %v938
    %v3263 = vunpack.c.h.b16 %v938
    %v3264 = vunpack.c.l.b16 %v939
    %v3265 = vunpack.c.h.b16 %v939
    %v3266 = vunpack.c.l.b16 %v940
    %v3267 = vunpack.c.h.b16 %v940
    %v3268 = vunpack.c.l.b16 %v941
    %v3269 = vunpack.c.h.b16 %v941
    %v3270 = vunpack.c.l.b16 %v942
    %v3271 = vunpack.c.h.b16 %v942
    %v3272 = vunpack.c.l.b16 %v943
    %v3273 = vunpack.c.h.b16 %v943
    %v3274 = vunpack.c.l.b16 %v944
    %v3275 = vunpack.c.h.b16 %v944
    %v3276 = vunpack.c.l.b16 %v945
    %v3277 = vunpack.c.h.b16 %v945
    %v3278 = vunpack.c.l.b16 %v946
    %v3279 = vunpack.c.h.b16 %v946
    %v3280 = vunpack.c.l.b16 %v947
    %v3281 = vunpack.c.h.b16 %v947
    %v3282 = vunpack.c.l.b16 %v948
    %v3283 = vunpack.c.h.b16 %v948
    %v3284 = vunpack.c.l.b16 %v949
    %v3285 = vunpack.c.h.b16 %v949
    %v3286 = vunpack.c.l.b16 %v950
    %v3287 = vunpack.c.h.b16 %v950
    %v3288 = vunpack.c.l.b16 %v951
    %v3289 = vunpack.c.h.b16 %v951
    %v3290 = vunpack.c.l.b16 %v952
    %v3291 = vunpack.c.h.b16 %v952
    %v3292 = vunpack.c.l.b16 %v953
    %v3293 = vunpack.c.h.b16 %v953
    %v3294 = vunpack.c.l.b16 %v954
    %v3295 = vunpack.c.h.b16 %v954
    %v3296 = vunpack.c.l.b16 %v955
    %v3297 = vunpack.c.h.b16 %v955
    %v3298 = vunpack.c.l.b16 %v956
    %v3299 = vunpack.c.h.b16 %v956
    %v3300 = vunpack.c.l.b16 %v957
    %v3301 = vunpack.c.h.b16 %v957
    %v3302 = vunpack.c.l.b16 %v958
    %v3303 = vunpack.c.h.b16 %v958
    %v3304 = vunpack.c.l.b16 %v959
    %v3305 = vunpack.c.h.b16 %v959
    %v3306 = vunpack.c.l.b16 %v960
    %v3307 = vunpack.c.h.b16 %v960
    %v3308 = vunpack.c.l.b16 %v961
    %v3309 = vunpack.c.h.b16 %v961
    %v3310 = vunpack.c.l.b16 %v962
    %v3311 = vunpack.c.h.b16 %v962
    %v3312 = vunpack.c.l.b16 %v963
    %v3313 = vunpack.c.h.b16 %v963
    %v3314 = vunpack.c.l.b16 %v964
    %v3315 = vunpack.c.h.b16 %v964
    %v3316 = vunpack.c.l.b16 %v965
    %v3317 = vunpack.c.h.b16 %v965
    %v3318 = vunpack.c.l.b16 %v966
    %v3319 = vunpack.c.h.b16 %v966
    %v3320 = vunpack.c.l.b16 %v967
    %v3321 = vunpack.c.h.b16 %v967
    %v3322 = vunpack.c.l.b16 %v968
    %v3323 = vunpack.c.h.b16 %v968
    %v3324 = vunpack.c.l.b16 %v969
    %v3325 = vunpack.c.h.b16 %v969
    %v3326 = vunpack.c.l.b16 %v970
    %v3327 = vunpack.c.h.b16 %v970
    %v3328 = vunpack.c.l.b16 %v971
    %v3329 = vunpack.c.h.b16 %v971
    %v3330 = vunpack.c.l.b16 %v972
    %v3331 = vunpack.c.h.b16 %v972
    %v3332 = vunpack.c.l.b16 %v973
    %v3333 = vunpack.c.h.b16 %v973
    %v3334 = vunpack.c.l.b16 %v974
    %v3335 = vunpack.c.h.b16 %v974
    %v3336 = vunpack.c.l.b16 %v975
    %v3337 = vunpack.c.h.b16 %v975
    %v3338 = vunpack.c.l.b16 %v976
    %v3339 = vunpack.c.h.b16 %v976
    %v3340 = vunpack.c.l.b16 %v977
    %v3341 = vunpack.c.h.b16 %v977
    %v3342 = vunpack.c.l.b16 %v978
    %v3343 = vunpack.c.h.b16 %v978
    %v3344 = vunpack.c.l.b16 %v979
    %v3345 = vunpack.c.h.b16 %v979
    %v3346 = vunpack.c.l.b16 %v980
    %v3347 = vunpack.c.h.b16 %v980
    %v3348 = vunpack.c.l.b16 %v981
    %v3349 = vunpack.c.h.b16 %v981
    %v3350 = vunpack.c.l.b16 %v982
    %v3351 = vunpack.c.h.b16 %v982
    %v3352 = vunpack.c.l.b16 %v983
    %v3353 = vunpack.c.h.b16 %v983
    %v3354 = vunpack.c.l.b16 %v984
    %v3355 = vunpack.c.h.b16 %v984
    %v3356 = vunpack.c.l.b16 %v985
    %v3357 = vunpack.c.h.b16 %v985
    %v3358 = vunpack.c.l.b16 %v986
    %v3359 = vunpack.c.h.b16 %v986
    %v3360 = vunpack.c.l.b16 %v987
    %v3361 = vunpack.c.h.b16 %v987
    %v3362 = vunpack.c.l.b16 %v988
    %v3363 = vunpack.c.h.b16 %v988
    %v3364 = vunpack.c.l.b16 %v989
    %v3365 = vunpack.c.h.b16 %v989
    %v3366 = vunpack.c.l.b16 %v990
    %v3367 = vunpack.c.h.b16 %v990
    %v3368 = vunpack.c.l.b16 %v991
    %v3369 = vunpack.c.h.b16 %v991
    %v3370 = vunpack.c.l.b16 %v992
    %v3371 = vunpack.c.h.b16 %v992
    %v3372 = vunpack.c.l.b16 %v993
    %v3373 = vunpack.c.h.b16 %v993
    %v3374 = vunpack.c.l.b16 %v994
    %v3375 = vunpack.c.h.b16 %v994
    %v3376 = vunpack.c.l.b16 %v995
    %v3377 = vunpack.c.h.b16 %v995
    %v3378 = vunpack.c.l.b16 %v996
    %v3379 = vunpack.c.h.b16 %v996
    %v3380 = vunpack.c.l.b16 %v997
    %v3381 = vunpack.c.h.b16 %v997
    %v3382 = vunpack.c.l.b16 %v998
    %v3383 = vunpack.c.h.b16 %v998
    %v3384 = vunpack.c.l.b16 %v999
    %v3385 = vunpack.c.h.b16 %v999
    %v3386 = vunpack.c.l.b16 %v1000
    %v3387 = vunpack.c.h.b16 %v1000
    %v3388 = vunpack.c.l.b16 %v1001
    %v3389 = vunpack.c.h.b16 %v1001
    %v3390 = vunpack.c.l.b16 %v1002
    %v3391 = vunpack.c.h.b16 %v1002
    %v3392 = vunpack.c.l.b16 %v1003
    %v3393 = vunpack.c.h.b16 %v1003
    %v3394 = vunpack.c.l.b16 %v1004
    %v3395 = vunpack.c.h.b16 %v1004
    %v3396 = vunpack.c.l.b16 %v1005
    %v3397 = vunpack.c.h.b16 %v1005
    %v3398 = vunpack.c.l.b16 %v1006
    %v3399 = vunpack.c.h.b16 %v1006
    %v3400 = vunpack.c.l.b16 %v1007
    %v3401 = vunpack.c.h.b16 %v1007
    %v3402 = vunpack.c.l.b16 %v1008
    %v3403 = vunpack.c.h.b16 %v1008
    %v3404 = vunpack.c.l.b16 %v1009
    %v3405 = vunpack.c.h.b16 %v1009
    %v3406 = vunpack.c.l.b16 %v1010
    %v3407 = vunpack.c.h.b16 %v1010
    %v3408 = vunpack.c.l.b16 %v1011
    %v3409 = vunpack.c.h.b16 %v1011
    %v3410 = vunpack.c.l.b16 %v1012
    %v3411 = vunpack.c.h.b16 %v1012
    %v3412 = vunpack.c.l.b16 %v1013
    %v3413 = vunpack.c.h.b16 %v1013
    %v3414 = vunpack.c.l.b16 %v1014
    %v3415 = vunpack.c.h.b16 %v1014
    %v3416 = vunpack.c.l.b16 %v1015
    %v3417 = vunpack.c.h.b16 %v1015
    %v3418 = vunpack.c.l.b16 %v1016
    %v3419 = vunpack.c.h.b16 %v1016
    %v3420 = vunpack.c.l.b16 %v1017
    %v3421 = vunpack.c.h.b16 %v1017
    %v3422 = vunpack.c.l.b16 %v1018
    %v3423 = vunpack.c.h.b16 %v1018
    %v3424 = vunpack.c.l.b16 %v1019
    %v3425 = vunpack.c.h.b16 %v1019
    %v3426 = vunpack.c.l.b16 %v1020
    %v3427 = vunpack.c.h.b16 %v1020
    %v3428 = vunpack.c.l.b16 %v1021
    %v3429 = vunpack.c.h.b16 %v1021
    %v3430 = vunpack.c.l.b16 %v1022
    %v3431 = vunpack.c.h.b16 %v1022
    %v3432 = vunpack.c.l.b16 %v1023
    %v3433 = vunpack.c.h.b16 %v1023
    %v3434 = vunpack.c.l.b16 %v1024
    %v3435 = vunpack.c.h.b16 %v1024
    %v3436 = vunpack.c.l.b16 %v1025
    %v3437 = vunpack.c.h.b16 %v1025
    %v3438 = vunpack.c.l.b16 %v1026
    %v3439 = vunpack.c.h.b16 %v1026
    %v3440 = vunpack.c.l.b16 %v1027
    %v3441 = vunpack.c.h.b16 %v1027
    %v3442 = vunpack.c.l.b16 %v1028
    %v3443 = vunpack.c.h.b16 %v1028
    %v3444 = vunpack.c.l.b16 %v1029
    %v3445 = vunpack.c.h.b16 %v1029
    %v3446 = vunpack.c.l.b16 %v1030
    %v3447 = vunpack.c.h.b16 %v1030
    %v3448 = vunpack.c.l.b16 %v1031
    %v3449 = vunpack.c.h.b16 %v1031
    %v3450 = vunpack.c.l.b16 %v1032
    %v3451 = vunpack.c.h.b16 %v1032
    %v3452 = vunpack.c.l.b16 %v1033
    %v3453 = vunpack.c.h.b16 %v1033
    %v3454 = vunpack.c.l.b16 %v1034
    %v3455 = vunpack.c.h.b16 %v1034
    %v3456 = vunpack.c.l.b16 %v1035
    %v3457 = vunpack.c.h.b16 %v1035
    %v3458 = vunpack.c.l.b16 %v1036
    %v3459 = vunpack.c.h.b16 %v1036
    %v3460 = vunpack.c.l.b16 %v1037
    %v3461 = vunpack.c.h.b16 %v1037
    %v3462 = vunpack.c.l.b16 %v1038
    %v3463 = vunpack.c.h.b16 %v1038
    %v3464 = vunpack.c.l.b16 %v1039
    %v3465 = vunpack.c.h.b16 %v1039
    %v3466 = vunpack.c.l.b16 %v1040
    %v3467 = vunpack.c.h.b16 %v1040
    %v3468 = vunpack.c.l.b16 %v1041
    %v3469 = vunpack.c.h.b16 %v1041
    %v3470 = vunpack.c.l.b16 %v1042
    %v3471 = vunpack.c.h.b16 %v1042
    %v3472 = vunpack.c.l.b16 %v1043
    %v3473 = vunpack.c.h.b16 %v1043
    %v3474 = vunpack.c.l.b16 %v1044
    %v3475 = vunpack.c.h.b16 %v1044
    %v3476 = vunpack.c.l.b16 %v1045
    %v3477 = vunpack.c.h.b16 %v1045
    %v3478 = vunpack.c.l.b16 %v1046
    %v3479 = vunpack.c.h.b16 %v1046
    %v3480 = vunpack.c.l.b16 %v1047
    %v3481 = vunpack.c.h.b16 %v1047
    %v3482 = vpack.c.b16 %v1950, %v1946
    %v3483 = vpack.c.b16 %v1951, %v1947
    %v3484 = vpack.c.b16 %v1952, %v1948
    %v3485 = vpack.c.b16 %v1953, %v1949
    %v3486 = vpack.c.b16 %v1958, %v1954
    %v3487 = vpack.c.b16 %v1959, %v1955
    %v3488 = vpack.c.b16 %v1960, %v1956
    %v3489 = vpack.c.b16 %v1961, %v1957
    %v3490 = vpack.c.b16 %v1966, %v1962
    %v3491 = vpack.c.b16 %v1967, %v1963
    %v3492 = vpack.c.b16 %v1968, %v1964
    %v3493 = vpack.c.b16 %v1969, %v1965
    %v3494 = vpack.c.b16 %v1974, %v1970
    %v3495 = vpack.c.b16 %v1975, %v1971
    %v3496 = vpack.c.b16 %v1976, %v1972
    %v3497 = vpack.c.b16 %v1977, %v1973
    %v3498 = vpack.c.b16 %v1982, %v1978
    %v3499 = vpack.c.b16 %v1983, %v1979
    %v3500 = vpack.c.b16 %v1984, %v1980
    %v3501 = vpack.c.b16 %v1985, %v1981
    %v3502 = vpack.c.b16 %v1990, %v1986
    %v3503 = vpack.c.b16 %v1991, %v1987
    %v3504 = vpack.c.b16 %v1992, %v1988
    %v3505 = vpack.c.b16 %v1993, %v1989
    %v3506 = vpack.c.b16 %v1998, %v1994
    %v3507 = vpack.c.b16 %v1999, %v1995
    %v3508 = vpack.c.b16 %v2000, %v1996
    %v3509 = vpack.c.b16 %v2001, %v1997
    %v3510 = vpack.c.b16 %v2006, %v2002
    %v3511 = vpack.c.b16 %v2007, %v2003
    %v3512 = vpack.c.b16 %v2008, %v2004
    %v3513 = vpack.c.b16 %v2009, %v2005
    %v3514 = vpack.c.b16 %v2014, %v2010
    %v3515 = vpack.c.b16 %v2015, %v2011
    %v3516 = vpack.c.b16 %v2016, %v2012
    %v3517 = vpack.c.b16 %v2017, %v2013
    %v3518 = vpack.c.b16 %v2022, %v2018
    %v3519 = vpack.c.b16 %v2023, %v2019
    %v3520 = vpack.c.b16 %v2024, %v2020
    %v3521 = vpack.c.b16 %v2025, %v2021
    %v3522 = vpack.c.b16 %v2030, %v2026
    %v3523 = vpack.c.b16 %v2031, %v2027
    %v3524 = vpack.c.b16 %v2032, %v2028
    %v3525 = vpack.c.b16 %v2033, %v2029
    %v3526 = vpack.c.b16 %v2038, %v2034
    %v3527 = vpack.c.b16 %v2039, %v2035
    %v3528 = vpack.c.b16 %v2040, %v2036
    %v3529 = vpack.c.b16 %v2041, %v2037
    %v3530 = vpack.c.b16 %v2046, %v2042
    %v3531 = vpack.c.b16 %v2047, %v2043
    %v3532 = vpack.c.b16 %v2048, %v2044
    %v3533 = vpack.c.b16 %v2049, %v2045
    %v3534 = vpack.c.b16 %v2054, %v2050
    %v3535 = vpack.c.b16 %v2055, %v2051
    %v3536 = vpack.c.b16 %v2056, %v2052
    %v3537 = vpack.c.b16 %v2057, %v2053
    %v3538 = vpack.c.b16 %v2062, %v2058
    %v3539 = vpack.c.b16 %v2063, %v2059
    %v3540 = vpack.c.b16 %v2064, %v2060
    %v3541 = vpack.c.b16 %v2065, %v2061
    %v3542 = vpack.c.b16 %v2070, %v2066
    %v3543 = vpack.c.b16 %v2071, %v2067
    %v3544 = vpack.c.b16 %v2072, %v2068
    %v3545 = vpack.c.b16 %v2073, %v2069
    %v3546 = vpack.c.b16 %v2078, %v2074
    %v3547 = vpack.c.b16 %v2079, %v2075
    %v3548 = vpack.c.b16 %v2080, %v2076
    %v3549 = vpack.c.b16 %v2081, %v2077
    %v3550 = vpack.c.b16 %v2086, %v2082
    %v3551 = vpack.c.b16 %v2087, %v2083
    %v3552 = vpack.c.b16 %v2088, %v2084
    %v3553 = vpack.c.b16 %v2089, %v2085
    %v3554 = vpack.c.b16 %v2094, %v2090
    %v3555 = vpack.c.b16 %v2095, %v2091
    %v3556 = vpack.c.b16 %v2096, %v2092
    %v3557 = vpack.c.b16 %v2097, %v2093
    %v3558 = vpack.c.b16 %v2102, %v2098
    %v3559 = vpack.c.b16 %v2103, %v2099
    %v3560 = vpack.c.b16 %v2104, %v2100
    %v3561 = vpack.c.b16 %v2105, %v2101
    %v3562 = vpack.c.b16 %v2110, %v2106
    %v3563 = vpack.c.b16 %v2111, %v2107
    %v3564 = vpack.c.b16 %v2112, %v2108
    %v3565 = vpack.c.b16 %v2113, %v2109
    %v3566 = vpack.c.b16 %v2118, %v2114
    %v3567 = vpack.c.b16 %v2119, %v2115
    %v3568 = vpack.c.b16 %v2120, %v2116
    %v3569 = vpack.c.b16 %v2121, %v2117
    %v3570 = vpack.c.b16 %v2126, %v2122
    %v3571 = vpack.c.b16 %v2127, %v2123
    %v3572 = vpack.c.b16 %v2128, %v2124
    %v3573 = vpack.c.b16 %v2129, %v2125
    %v3574 = vpack.c.b16 %v2134, %v2130
    %v3575 = vpack.c.b16 %v2135, %v2131
    %v3576 = vpack.c.b16 %v2136, %v2132
    %v3577 = vpack.c.b16 %v2137, %v2133
    %v3578 = vpack.c.b16 %v2142, %v2138
    %v3579 = vpack.c.b16 %v2143, %v2139
    %v3580 = vpack.c.b16 %v2144, %v2140
    %v3581 = vpack.c.b16 %v2145, %v2141
    %v3582 = vpack.c.b16 %v2150, %v2146
    %v3583 = vpack.c.b16 %v2151, %v2147
    %v3584 = vpack.c.b16 %v2152, %v2148
    %v3585 = vpack.c.b16 %v2153, %v2149
    %v3586 = vpack.c.b16 %v2158, %v2154
    %v3587 = vpack.c.b16 %v2159, %v2155
    %v3588 = vpack.c.b16 %v2160, %v2156
    %v3589 = vpack.c.b16 %v2161, %v2157
    %v3590 = vpack.c.b16 %v2166, %v2162
    %v3591 = vpack.c.b16 %v2167, %v2163
    %v3592 = vpack.c.b16 %v2168, %v2164
    %v3593 = vpack.c.b16 %v2169, %v2165
    %v3594 = vpack.c.b16 %v2174, %v2170
    %v3595 = vpack.c.b16 %v2175, %v2171
    %v3596 = vpack.c.b16 %v2176, %v2172
    %v3597 = vpack.c.b16 %v2177, %v2173
    %v3598 = vpack.c.b16 %v2182, %v2178
    %v3599 = vpack.c.b16 %v2183, %v2179
    %v3600 = vpack.c.b16 %v2184, %v2180
    %v3601 = vpack.c.b16 %v2185, %v2181
    %v3602 = vpack.c.b16 %v2190, %v2186
    %v3603 = vpack.c.b16 %v2191, %v2187
    %v3604 = vpack.c.b16 %v2192, %v2188
    %v3605 = vpack.c.b16 %v2193, %v2189
    %v3606 = vpack.c.b16 %v2198, %v2194
    %v3607 = vpack.c.b16 %v2199, %v2195
    %v3608 = vpack.c.b16 %v2200, %v2196
    %v3609 = vpack.c.b16 %v2201, %v2197
    %v3610 = vpack.c.b16 %v2206, %v2202
    %v3611 = vpack.c.b16 %v2207, %v2203
    %v3612 = vpack.c.b16 %v2208, %v2204
    %v3613 = vpack.c.b16 %v2209, %v2205
    %v3614 = vpack.c.b16 %v2214, %v2210
    %v3615 = vpack.c.b16 %v2215, %v2211
    %v3616 = vpack.c.b16 %v2216, %v2212
    %v3617 = vpack.c.b16 %v2217, %v2213
    %v3618 = vpack.c.b16 %v2222, %v2218
    %v3619 = vpack.c.b16 %v2223, %v2219
    %v3620 = vpack.c.b16 %v2224, %v2220
    %v3621 = vpack.c.b16 %v2225, %v2221
    %v3622 = vpack.c.b16 %v2230, %v2226
    %v3623 = vpack.c.b16 %v2231, %v2227
    %v3624 = vpack.c.b16 %v2232, %v2228
    %v3625 = vpack.c.b16 %v2233, %v2229
    %v3626 = vpack.c.b16 %v2238, %v2234
    %v3627 = vpack.c.b16 %v2239, %v2235
    %v3628 = vpack.c.b16 %v2240, %v2236
    %v3629 = vpack.c.b16 %v2241, %v2237
    %v3630 = vpack.c.b16 %v2246, %v2242
    %v3631 = vpack.c.b16 %v2247, %v2243
    %v3632 = vpack.c.b16 %v2248, %v2244
    %v3633 = vpack.c.b16 %v2249, %v2245
    %v3634 = vpack.c.b16 %v2254, %v2250
    %v3635 = vpack.c.b16 %v2255, %v2251
    %v3636 = vpack.c.b16 %v2256, %v2252
    %v3637 = vpack.c.b16 %v2257, %v2253
    %v3638 = vpack.c.b16 %v2262, %v2258
    %v3639 = vpack.c.b16 %v2263, %v2259
    %v3640 = vpack.c.b16 %v2264, %v2260
    %v3641 = vpack.c.b16 %v2265, %v2261
    %v3642 = vpack.c.b16 %v2270, %v2266
    %v3643 = vpack.c.b16 %v2271, %v2267
    %v3644 = vpack.c.b16 %v2272, %v2268
    %v3645 = vpack.c.b16 %v2273, %v2269
    %v3646 = vpack.c.b16 %v2278, %v2274
    %v3647 = vpack.c.b16 %v2279, %v2275
    %v3648 = vpack.c.b16 %v2280, %v2276
    %v3649 = vpack.c.b16 %v2281, %v2277
    %v3650 = vpack.c.b16 %v2286, %v2282
    %v3651 = vpack.c.b16 %v2287, %v2283
    %v3652 = vpack.c.b16 %v2288, %v2284
    %v3653 = vpack.c.b16 %v2289, %v2285
    %v3654 = vpack.c.b16 %v2294, %v2290
    %v3655 = vpack.c.b16 %v2295, %v2291
    %v3656 = vpack.c.b16 %v2296, %v2292
    %v3657 = vpack.c.b16 %v2297, %v2293
    %v3658 = vpack.c.b16 %v2302, %v2298
    %v3659 = vpack.c.b16 %v2303, %v2299
    %v3660 = vpack.c.b16 %v2304, %v2300
    %v3661 = vpack.c.b16 %v2305, %v2301
    %v3662 = vpack.c.b16 %v2310, %v2306
    %v3663 = vpack.c.b16 %v2311, %v2307
    %v3664 = vpack.c.b16 %v2312, %v2308
    %v3665 = vpack.c.b16 %v2313, %v2309
    %v3666 = vpack.c.b16 %v2318, %v2314
    %v3667 = vpack.c.b16 %v2319, %v2315
    %v3668 = vpack.c.b16 %v2320, %v2316
    %v3669 = vpack.c.b16 %v2321, %v2317
    %v3670 = vpack.c.b16 %v2326, %v2322
    %v3671 = vpack.c.b16 %v2327, %v2323
    %v3672 = vpack.c.b16 %v2328, %v2324
    %v3673 = vpack.c.b16 %v2329, %v2325
    %v3674 = vpack.c.b16 %v2334, %v2330
    %v3675 = vpack.c.b16 %v2335, %v2331
    %v3676 = vpack.c.b16 %v2336, %v2332
    %v3677 = vpack.c.b16 %v2337, %v2333
    %v3678 = vpack.c.b16 %v2342, %v2338
    %v3679 = vpack.c.b16 %v2343, %v2339
    %v3680 = vpack.c.b16 %v2344, %v2340
    %v3681 = vpack.c.b16 %v2345, %v2341
    %v3682 = vpack.c.b16 %v2350, %v2346
    %v3683 = vpack.c.b16 %v2351, %v2347
    %v3684 = vpack.c.b16 %v2352, %v2348
    %v3685 = vpack.c.b16 %v2353, %v2349
    %v3686 = vpack.c.b16 %v2358, %v2354
    %v3687 = vpack.c.b16 %v2359, %v2355
    %v3688 = vpack.c.b16 %v2360, %v2356
    %v3689 = vpack.c.b16 %v2361, %v2357
    %v3690 = vpack.c.b16 %v2366, %v2362
    %v3691 = vpack.c.b16 %v2367, %v2363
    %v3692 = vpack.c.b16 %v2368, %v2364
    %v3693 = vpack.c.b16 %v2369, %v2365
    %v3694 = vpack.c.b16 %v2374, %v2370
    %v3695 = vpack.c.b16 %v2375, %v2371
    %v3696 = vpack.c.b16 %v2376, %v2372
    %v3697 = vpack.c.b16 %v2377, %v2373
    %v3698 = vpack.c.b16 %v2382, %v2378
    %v3699 = vpack.c.b16 %v2383, %v2379
    %v3700 = vpack.c.b16 %v2384, %v2380
    %v3701 = vpack.c.b16 %v2385, %v2381
    %v3702 = vpack.c.b16 %v2390, %v2386
    %v3703 = vpack.c.b16 %v2391, %v2387
    %v3704 = vpack.c.b16 %v2392, %v2388
    %v3705 = vpack.c.b16 %v2393, %v2389
    %v3706 = vpack.c.b16 %v2398, %v2394
    %v3707 = vpack.c.b16 %v2399, %v2395
    %v3708 = vpack.c.b16 %v2400, %v2396
    %v3709 = vpack.c.b16 %v2401, %v2397
    %v3710 = vpack.c.b16 %v2406, %v2402
    %v3711 = vpack.c.b16 %v2407, %v2403
    %v3712 = vpack.c.b16 %v2408, %v2404
    %v3713 = vpack.c.b16 %v2409, %v2405
    %v3714 = vpack.c.b16 %v2414, %v2410
    %v3715 = vpack.c.b16 %v2415, %v2411
    %v3716 = vpack.c.b16 %v2416, %v2412
    %v3717 = vpack.c.b16 %v2417, %v2413
    %v3718 = vpack.c.b16 %v2422, %v2418
    %v3719 = vpack.c.b16 %v2423, %v2419
    %v3720 = vpack.c.b16 %v2424, %v2420
    %v3721 = vpack.c.b16 %v2425, %v2421
    %v3722 = vpack.c.b16 %v2430, %v2426
    %v3723 = vpack.c.b16 %v2431, %v2427
    %v3724 = vpack.c.b16 %v2432, %v2428
    %v3725 = vpack.c.b16 %v2433, %v2429
    %v3726 = vpack.c.b16 %v2438, %v2434
    %v3727 = vpack.c.b16 %v2439, %v2435
    %v3728 = vpack.c.b16 %v2440, %v2436
    %v3729 = vpack.c.b16 %v2441, %v2437
    %v3730 = vpack.c.b16 %v2446, %v2442
    %v3731 = vpack.c.b16 %v2447, %v2443
    %v3732 = vpack.c.b16 %v2448, %v2444
    %v3733 = vpack.c.b16 %v2449, %v2445
    %v3734 = vpack.c.b16 %v2454, %v2450
    %v3735 = vpack.c.b16 %v2455, %v2451
    %v3736 = vpack.c.b16 %v2456, %v2452
    %v3737 = vpack.c.b16 %v2457, %v2453
    %v3738 = vpack.c.b16 %v2462, %v2458
    %v3739 = vpack.c.b16 %v2463, %v2459
    %v3740 = vpack.c.b16 %v2464, %v2460
    %v3741 = vpack.c.b16 %v2465, %v2461
    %v3742 = vpack.c.b16 %v2470, %v2466
    %v3743 = vpack.c.b16 %v2471, %v2467
    %v3744 = vpack.c.b16 %v2472, %v2468
    %v3745 = vpack.c.b16 %v2473, %v2469
    %v3746 = vpack.c.b16 %v2478, %v2474
    %v3747 = vpack.c.b16 %v2479, %v2475
    %v3748 = vpack.c.b16 %v2480, %v2476
    %v3749 = vpack.c.b16 %v2481, %v2477
    %v3750 = vpack.c.b16 %v2486, %v2482
    %v3751 = vpack.c.b16 %v2487, %v2483
    %v3752 = vpack.c.b16 %v2488, %v2484
    %v3753 = vpack.c.b16 %v2489, %v2485
    %v3754 = vpack.c.b16 %v2494, %v2490
    %v3755 = vpack.c.b16 %v2495, %v2491
    %v3756 = vpack.c.b16 %v2496, %v2492
    %v3757 = vpack.c.b16 %v2497, %v2493
    %v3758 = vpack.c.b16 %v2502, %v2498
    %v3759 = vpack.c.b16 %v2503, %v2499
    %v3760 = vpack.c.b16 %v2504, %v2500
    %v3761 = vpack.c.b16 %v2505, %v2501
    %v3762 = vpack.c.b16 %v2510, %v2506
    %v3763 = vpack.c.b16 %v2511, %v2507
    %v3764 = vpack.c.b16 %v2512, %v2508
    %v3765 = vpack.c.b16 %v2513, %v2509
    %v3766 = vpack.c.b16 %v2518, %v2514
    %v3767 = vpack.c.b16 %v2519, %v2515
    %v3768 = vpack.c.b16 %v2520, %v2516
    %v3769 = vpack.c.b16 %v2521, %v2517
    %v3770 = vpack.c.b16 %v2526, %v2522
    %v3771 = vpack.c.b16 %v2527, %v2523
    %v3772 = vpack.c.b16 %v2528, %v2524
    %v3773 = vpack.c.b16 %v2529, %v2525
    %v3774 = vpack.c.b16 %v2534, %v2530
    %v3775 = vpack.c.b16 %v2535, %v2531
    %v3776 = vpack.c.b16 %v2536, %v2532
    %v3777 = vpack.c.b16 %v2537, %v2533
    %v3778 = vpack.c.b16 %v2542, %v2538
    %v3779 = vpack.c.b16 %v2543, %v2539
    %v3780 = vpack.c.b16 %v2544, %v2540
    %v3781 = vpack.c.b16 %v2545, %v2541
    %v3782 = vpack.c.b16 %v2550, %v2546
    %v3783 = vpack.c.b16 %v2551, %v2547
    %v3784 = vpack.c.b16 %v2552, %v2548
    %v3785 = vpack.c.b16 %v2553, %v2549
    %v3786 = vpack.c.b16 %v2558, %v2554
    %v3787 = vpack.c.b16 %v2559, %v2555
    %v3788 = vpack.c.b16 %v2560, %v2556
    %v3789 = vpack.c.b16 %v2561, %v2557
    %v3790 = vpack.c.b16 %v2566, %v2562
    %v3791 = vpack.c.b16 %v2567, %v2563
    %v3792 = vpack.c.b16 %v2568, %v2564
    %v3793 = vpack.c.b16 %v2569, %v2565
    %v3794 = vpack.c.b16 %v2574, %v2570
    %v3795 = vpack.c.b16 %v2575, %v2571
    %v3796 = vpack.c.b16 %v2576, %v2572
    %v3797 = vpack.c.b16 %v2577, %v2573
    %v3798 = vpack.c.b16 %v2582, %v2578
    %v3799 = vpack.c.b16 %v2583, %v2579
    %v3800 = vpack.c.b16 %v2584, %v2580
    %v3801 = vpack.c.b16 %v2585, %v2581
    %v3802 = vpack.c.b16 %v2590, %v2586
    %v3803 = vpack.c.b16 %v2591, %v2587
    %v3804 = vpack.c.b16 %v2592, %v2588
    %v3805 = vpack.c.b16 %v2593, %v2589
    %v3806 = vpack.c.b16 %v2598, %v2594
    %v3807 = vpack.c.b16 %v2599, %v2595
    %v3808 = vpack.c.b16 %v2600, %v2596
    %v3809 = vpack.c.b16 %v2601, %v2597
    %v3810 = vpack.c.b16 %v2606, %v2602
    %v3811 = vpack.c.b16 %v2607, %v2603
    %v3812 = vpack.c.b16 %v2608, %v2604
    %v3813 = vpack.c.b16 %v2609, %v2605
    %v3814 = vpack.c.b16 %v2614, %v2610
    %v3815 = vpack.c.b16 %v2615, %v2611
    %v3816 = vpack.c.b16 %v2616, %v2612
    %v3817 = vpack.c.b16 %v2617, %v2613
    %v3818 = vpack.c.b16 %v2622, %v2618
    %v3819 = vpack.c.b16 %v2623, %v2619
    %v3820 = vpack.c.b16 %v2624, %v2620
    %v3821 = vpack.c.b16 %v2625, %v2621
    %v3822 = vpack.c.b16 %v2630, %v2626
    %v3823 = vpack.c.b16 %v2631, %v2627
    %v3824 = vpack.c.b16 %v2632, %v2628
    %v3825 = vpack.c.b16 %v2633, %v2629
    %v3826 = vpack.c.b16 %v2638, %v2634
    %v3827 = vpack.c.b16 %v2639, %v2635
    %v3828 = vpack.c.b16 %v2640, %v2636
    %v3829 = vpack.c.b16 %v2641, %v2637
    %v3830 = vpack.c.b16 %v2646, %v2642
    %v3831 = vpack.c.b16 %v2647, %v2643
    %v3832 = vpack.c.b16 %v2648, %v2644
    %v3833 = vpack.c.b16 %v2649, %v2645
    %v3834 = vpack.c.b16 %v2654, %v2650
    %v3835 = vpack.c.b16 %v2655, %v2651
    %v3836 = vpack.c.b16 %v2656, %v2652
    %v3837 = vpack.c.b16 %v2657, %v2653
    %v3838 = vpack.c.b16 %v2662, %v2658
    %v3839 = vpack.c.b16 %v2663, %v2659
    %v3840 = vpack.c.b16 %v2664, %v2660
    %v3841 = vpack.c.b16 %v2665, %v2661
    %v3842 = vpack.c.b16 %v2670, %v2666
    %v3843 = vpack.c.b16 %v2671, %v2667
    %v3844 = vpack.c.b16 %v2672, %v2668
    %v3845 = vpack.c.b16 %v2673, %v2669
    %v3846 = vpack.c.b16 %v2678, %v2674
    %v3847 = vpack.c.b16 %v2679, %v2675
    %v3848 = vpack.c.b16 %v2680, %v2676
    %v3849 = vpack.c.b16 %v2681, %v2677
    %v3850 = vpack.c.b16 %v2686, %v2682
    %v3851 = vpack.c.b16 %v2687, %v2683
    %v3852 = vpack.c.b16 %v2688, %v2684
    %v3853 = vpack.c.b16 %v2689, %v2685
    %v3854 = vpack.c.b16 %v2694, %v2690
    %v3855 = vpack.c.b16 %v2695, %v2691
    %v3856 = vpack.c.b16 %v2696, %v2692
    %v3857 = vpack.c.b16 %v2697, %v2693
    %v3858 = vpack.c.b16 %v2702, %v2698
    %v3859 = vpack.c.b16 %v2703, %v2699
    %v3860 = vpack.c.b16 %v2704, %v2700
    %v3861 = vpack.c.b16 %v2705, %v2701
    %v3862 = vpack.c.b16 %v2710, %v2706
    %v3863 = vpack.c.b16 %v2711, %v2707
    %v3864 = vpack.c.b16 %v2712, %v2708
    %v3865 = vpack.c.b16 %v2713, %v2709
    %v3866 = vpack.c.b16 %v2718, %v2714
    %v3867 = vpack.c.b16 %v2719, %v2715
    %v3868 = vpack.c.b16 %v2720, %v2716
    %v3869 = vpack.c.b16 %v2721, %v2717
    %v3870 = vpack.c.b16 %v2726, %v2722
    %v3871 = vpack.c.b16 %v2727, %v2723
    %v3872 = vpack.c.b16 %v2728, %v2724
    %v3873 = vpack.c.b16 %v2729, %v2725
    %v3874 = vpack.c.b16 %v2734, %v2730
    %v3875 = vpack.c.b16 %v2735, %v2731
    %v3876 = vpack.c.b16 %v2736, %v2732
    %v3877 = vpack.c.b16 %v2737, %v2733
    %v3878 = vpack.c.b16 %v2742, %v2738
    %v3879 = vpack.c.b16 %v2743, %v2739
    %v3880 = vpack.c.b16 %v2744, %v2740
    %v3881 = vpack.c.b16 %v2745, %v2741
    %v3882 = vpack.c.b16 %v2750, %v2746
    %v3883 = vpack.c.b16 %v2751, %v2747
    %v3884 = vpack.c.b16 %v2752, %v2748
    %v3885 = vpack.c.b16 %v2753, %v2749
    %v3886 = vpack.c.b16 %v2758, %v2754
    %v3887 = vpack.c.b16 %v2759, %v2755
    %v3888 = vpack.c.b16 %v2760, %v2756
    %v3889 = vpack.c.b16 %v2761, %v2757
    %v3890 = vpack.c.b16 %v2766, %v2762
    %v3891 = vpack.c.b16 %v2767, %v2763
    %v3892 = vpack.c.b16 %v2768, %v2764
    %v3893 = vpack.c.b16 %v2769, %v2765
    %v3894 = vpack.c.b16 %v2774, %v2770
    %v3895 = vpack.c.b16 %v2775, %v2771
    %v3896 = vpack.c.b16 %v2776, %v2772
    %v3897 = vpack.c.b16 %v2777, %v2773
    %v3898 = vpack.c.b16 %v2782, %v2778
    %v3899 = vpack.c.b16 %v2783, %v2779
    %v3900 = vpack.c.b16 %v2784, %v2780
    %v3901 = vpack.c.b16 %v2785, %v2781
    %v3902 = vpack.c.b16 %v2790, %v2786
    %v3903 = vpack.c.b16 %v2791, %v2787
    %v3904 = vpack.c.b16 %v2792, %v2788
    %v3905 = vpack.c.b16 %v2793, %v2789
    %v3906 = vpack.c.b16 %v2798, %v2794
    %v3907 = vpack.c.b16 %v2799, %v2795
    %v3908 = vpack.c.b16 %v2800, %v2796
    %v3909 = vpack.c.b16 %v2801, %v2797
    %v3910 = vpack.c.b16 %v2806, %v2802
    %v3911 = vpack.c.b16 %v2807, %v2803
    %v3912 = vpack.c.b16 %v2808, %v2804
    %v3913 = vpack.c.b16 %v2809, %v2805
    %v3914 = vpack.c.b16 %v2814, %v2810
    %v3915 = vpack.c.b16 %v2815, %v2811
    %v3916 = vpack.c.b16 %v2816, %v2812
    %v3917 = vpack.c.b16 %v2817, %v2813
    %v3918 = vpack.c.b16 %v2822, %v2818
    %v3919 = vpack.c.b16 %v2823, %v2819
    %v3920 = vpack.c.b16 %v2824, %v2820
    %v3921 = vpack.c.b16 %v2825, %v2821
    %v3922 = vpack.c.b16 %v2830, %v2826
    %v3923 = vpack.c.b16 %v2831, %v2827
    %v3924 = vpack.c.b16 %v2832, %v2828
    %v3925 = vpack.c.b16 %v2833, %v2829
    %v3926 = vpack.c.b16 %v2838, %v2834
    %v3927 = vpack.c.b16 %v2839, %v2835
    %v3928 = vpack.c.b16 %v2840, %v2836
    %v3929 = vpack.c.b16 %v2841, %v2837
    %v3930 = vpack.c.b16 %v2846, %v2842
    %v3931 = vpack.c.b16 %v2847, %v2843
    %v3932 = vpack.c.b16 %v2848, %v2844
    %v3933 = vpack.c.b16 %v2849, %v2845
    %v3934 = vpack.c.b16 %v2854, %v2850
    %v3935 = vpack.c.b16 %v2855, %v2851
    %v3936 = vpack.c.b16 %v2856, %v2852
    %v3937 = vpack.c.b16 %v2857, %v2853
    %v3938 = vpack.c.b16 %v2862, %v2858
    %v3939 = vpack.c.b16 %v2863, %v2859
    %v3940 = vpack.c.b16 %v2864, %v2860
    %v3941 = vpack.c.b16 %v2865, %v2861
    %v3942 = vpack.c.b16 %v2870, %v2866
    %v3943 = vpack.c.b16 %v2871, %v2867
    %v3944 = vpack.c.b16 %v2872, %v2868
    %v3945 = vpack.c.b16 %v2873, %v2869
    %v3946 = vpack.c.b16 %v2878, %v2874
    %v3947 = vpack.c.b16 %v2879, %v2875
    %v3948 = vpack.c.b16 %v2880, %v2876
    %v3949 = vpack.c.b16 %v2881, %v2877
    %v3950 = vpack.c.b16 %v2886, %v2882
    %v3951 = vpack.c.b16 %v2887, %v2883
    %v3952 = vpack.c.b16 %v2888, %v2884
    %v3953 = vpack.c.b16 %v2889, %v2885
    %v3954 = vpack.c.b16 %v2894, %v2890
    %v3955 = vpack.c.b16 %v2895, %v2891
    %v3956 = vpack.c.b16 %v2896, %v2892
    %v3957 = vpack.c.b16 %v2897, %v2893
    %v3958 = vpack.c.b16 %v2902, %v2898
    %v3959 = vpack.c.b16 %v2903, %v2899
    %v3960 = vpack.c.b16 %v2904, %v2900
    %v3961 = vpack.c.b16 %v2905, %v2901
    %v3962 = vpack.c.b16 %v2910, %v2906
    %v3963 = vpack.c.b16 %v2911, %v2907
    %v3964 = vpack.c.b16 %v2912, %v2908
    %v3965 = vpack.c.b16 %v2913, %v2909
    %v3966 = vpack.c.b16 %v2918, %v2914
    %v3967 = vpack.c.b16 %v2919, %v2915
    %v3968 = vpack.c.b16 %v2920, %v2916
    %v3969 = vpack.c.b16 %v2921, %v2917
    %v3970 = vpack.c.b16 %v2926, %v2922
    %v3971 = vpack.c.b16 %v2927, %v2923
    %v3972 = vpack.c.b16 %v2928, %v2924
    %v3973 = vpack.c.b16 %v2929, %v2925
    %v3974 = vpack.c.b16 %v2934, %v2930
    %v3975 = vpack.c.b16 %v2935, %v2931
    %v3976 = vpack.c.b16 %v2936, %v2932
    %v3977 = vpack.c.b16 %v2937, %v2933
    %v3978 = vpack.c.b16 %v2942, %v2938
    %v3979 = vpack.c.b16 %v2943, %v2939
    %v3980 = vpack.c.b16 %v2944, %v2940
    %v3981 = vpack.c.b16 %v2945, %v2941
    %v3982 = vpack.c.b16 %v2950, %v2946
    %v3983 = vpack.c.b16 %v2951, %v2947
    %v3984 = vpack.c.b16 %v2952, %v2948
    %v3985 = vpack.c.b16 %v2953, %v2949
    %v3986 = vpack.c.b16 %v2958, %v2954
    %v3987 = vpack.c.b16 %v2959, %v2955
    %v3988 = vpack.c.b16 %v2960, %v2956
    %v3989 = vpack.c.b16 %v2961, %v2957
    %v3990 = vpack.c.b16 %v2966, %v2962
    %v3991 = vpack.c.b16 %v2967, %v2963
    %v3992 = vpack.c.b16 %v2968, %v2964
    %v3993 = vpack.c.b16 %v2969, %v2965
    %v3994 = vpack.c.b16 %v2974, %v2970
    %v3995 = vpack.c.b16 %v2975, %v2971
    %v3996 = vpack.c.b16 %v2976, %v2972
    %v3997 = vpack.c.b16 %v2977, %v2973
    %v3998 = vpack.c.b16 %v2982, %v2978
    %v3999 = vpack.c.b16 %v2983, %v2979
    %v4000 = vpack.c.b16 %v2984, %v2980
    %v4001 = vpack.c.b16 %v2985, %v2981
    %v4002 = vpack.c.b16 %v2990, %v2986
    %v4003 = vpack.c.b16 %v2991, %v2987
    %v4004 = vpack.c.b16 %v2992, %v2988
    %v4005 = vpack.c.b16 %v2993, %v2989
    %v4006 = vpack.c.b16 %v2998, %v2994
    %v4007 = vpack.c.b16 %v2999, %v2995
    %v4008 = vpack.c.b16 %v3000, %v2996
    %v4009 = vpack.c.b16 %v3001, %v2997
    %v4010 = vpack.c.b16 %v3006, %v3002
    %v4011 = vpack.c.b16 %v3007, %v3003
    %v4012 = vpack.c.b16 %v3008, %v3004
    %v4013 = vpack.c.b16 %v3009, %v3005
    %v4014 = vpack.c.b16 %v3014, %v3010
    %v4015 = vpack.c.b16 %v3015, %v3011
    %v4016 = vpack.c.b16 %v3016, %v3012
    %v4017 = vpack.c.b16 %v3017, %v3013
    %v4018 = vpack.c.b16 %v3022, %v3018
    %v4019 = vpack.c.b16 %v3023, %v3019
    %v4020 = vpack.c.b16 %v3024, %v3020
    %v4021 = vpack.c.b16 %v3025, %v3021
    %v4022 = vpack.c.b16 %v3030, %v3026
    %v4023 = vpack.c.b16 %v3031, %v3027
    %v4024 = vpack.c.b16 %v3032, %v3028
    %v4025 = vpack.c.b16 %v3033, %v3029
    %v4026 = vpack.c.b16 %v3038, %v3034
    %v4027 = vpack.c.b16 %v3039, %v3035
    %v4028 = vpack.c.b16 %v3040, %v3036
    %v4029 = vpack.c.b16 %v3041, %v3037
    %v4030 = vpack.c.b16 %v3046, %v3042
    %v4031 = vpack.c.b16 %v3047, %v3043
    %v4032 = vpack.c.b16 %v3048, %v3044
    %v4033 = vpack.c.b16 %v3049, %v3045
    %v4034 = vpack.c.b16 %v3054, %v3050
    %v4035 = vpack.c.b16 %v3055, %v3051
    %v4036 = vpack.c.b16 %v3056, %v3052
    %v4037 = vpack.c.b16 %v3057, %v3053
    %v4038 = vpack.c.b16 %v3062, %v3058
    %v4039 = vpack.c.b16 %v3063, %v3059
    %v4040 = vpack.c.b16 %v3064, %v3060
    %v4041 = vpack.c.b16 %v3065, %v3061
    %v4042 = vpack.c.b16 %v3070, %v3066
    %v4043 = vpack.c.b16 %v3071, %v3067
    %v4044 = vpack.c.b16 %v3072, %v3068
    %v4045 = vpack.c.b16 %v3073, %v3069
    %v4046 = vpack.c.b16 %v3078, %v3074
    %v4047 = vpack.c.b16 %v3079, %v3075
    %v4048 = vpack.c.b16 %v3080, %v3076
    %v4049 = vpack.c.b16 %v3081, %v3077
    %v4050 = vpack.c.b16 %v3086, %v3082
    %v4051 = vpack.c.b16 %v3087, %v3083
    %v4052 = vpack.c.b16 %v3088, %v3084
    %v4053 = vpack.c.b16 %v3089, %v3085
    %v4054 = vpack.c.b16 %v3094, %v3090
    %v4055 = vpack.c.b16 %v3095, %v3091
    %v4056 = vpack.c.b16 %v3096, %v3092
    %v4057 = vpack.c.b16 %v3097, %v3093
    %v4058 = vpack.c.b16 %v3102, %v3098
    %v4059 = vpack.c.b16 %v3103, %v3099
    %v4060 = vpack.c.b16 %v3104, %v3100
    %v4061 = vpack.c.b16 %v3105, %v3101
    %v4062 = vpack.c.b16 %v3110, %v3106
    %v4063 = vpack.c.b16 %v3111, %v3107
    %v4064 = vpack.c.b16 %v3112, %v3108
    %v4065 = vpack.c.b16 %v3113, %v3109
    %v4066 = vpack.c.b16 %v3118, %v3114
    %v4067 = vpack.c.b16 %v3119, %v3115
    %v4068 = vpack.c.b16 %v3120, %v3116
    %v4069 = vpack.c.b16 %v3121, %v3117
    %v4070 = vpack.c.b16 %v3126, %v3122
    %v4071 = vpack.c.b16 %v3127, %v3123
    %v4072 = vpack.c.b16 %v3128, %v3124
    %v4073 = vpack.c.b16 %v3129, %v3125
    %v4074 = vpack.c.b16 %v3134, %v3130
    %v4075 = vpack.c.b16 %v3135, %v3131
    %v4076 = vpack.c.b16 %v3136, %v3132
    %v4077 = vpack.c.b16 %v3137, %v3133
    %v4078 = vpack.c.b16 %v3142, %v3138
    %v4079 = vpack.c.b16 %v3143, %v3139
    %v4080 = vpack.c.b16 %v3144, %v3140
    %v4081 = vpack.c.b16 %v3145, %v3141
    %v4082 = vpack.c.b16 %v3150, %v3146
    %v4083 = vpack.c.b16 %v3151, %v3147
    %v4084 = vpack.c.b16 %v3152, %v3148
    %v4085 = vpack.c.b16 %v3153, %v3149
    %v4086 = vpack.c.b16 %v3158, %v3154
    %v4087 = vpack.c.b16 %v3159, %v3155
    %v4088 = vpack.c.b16 %v3160, %v3156
    %v4089 = vpack.c.b16 %v3161, %v3157
    %v4090 = vpack.c.b16 %v3166, %v3162
    %v4091 = vpack.c.b16 %v3167, %v3163
    %v4092 = vpack.c.b16 %v3168, %v3164
    %v4093 = vpack.c.b16 %v3169, %v3165
    %v4094 = vpack.c.b16 %v3174, %v3170
    %v4095 = vpack.c.b16 %v3175, %v3171
    %v4096 = vpack.c.b16 %v3176, %v3172
    %v4097 = vpack.c.b16 %v3177, %v3173
    %v4098 = vpack.c.b16 %v3182, %v3178
    %v4099 = vpack.c.b16 %v3183, %v3179
    %v4100 = vpack.c.b16 %v3184, %v3180
    %v4101 = vpack.c.b16 %v3185, %v3181
    %v4102 = vpack.c.b16 %v3190, %v3186
    %v4103 = vpack.c.b16 %v3191, %v3187
    %v4104 = vpack.c.b16 %v3192, %v3188
    %v4105 = vpack.c.b16 %v3193, %v3189
    %v4106 = vpack.c.b16 %v3198, %v3194
    %v4107 = vpack.c.b16 %v3199, %v3195
    %v4108 = vpack.c.b16 %v3200, %v3196
    %v4109 = vpack.c.b16 %v3201, %v3197
    %v4110 = vpack.c.b16 %v3206, %v3202
    %v4111 = vpack.c.b16 %v3207, %v3203
    %v4112 = vpack.c.b16 %v3208, %v3204
    %v4113 = vpack.c.b16 %v3209, %v3205
    %v4114 = vpack.c.b16 %v3214, %v3210
    %v4115 = vpack.c.b16 %v3215, %v3211
    %v4116 = vpack.c.b16 %v3216, %v3212
    %v4117 = vpack.c.b16 %v3217, %v3213
    %v4118 = vpack.c.b16 %v3222, %v3218
    %v4119 = vpack.c.b16 %v3223, %v3219
    %v4120 = vpack.c.b16 %v3224, %v3220
    %v4121 = vpack.c.b16 %v3225, %v3221
    %v4122 = vpack.c.b16 %v3230, %v3226
    %v4123 = vpack.c.b16 %v3231, %v3227
    %v4124 = vpack.c.b16 %v3232, %v3228
    %v4125 = vpack.c.b16 %v3233, %v3229
    %v4126 = vpack.c.b16 %v3238, %v3234
    %v4127 = vpack.c.b16 %v3239, %v3235
    %v4128 = vpack.c.b16 %v3240, %v3236
    %v4129 = vpack.c.b16 %v3241, %v3237
    %v4130 = vpack.c.b16 %v3246, %v3242
    %v4131 = vpack.c.b16 %v3247, %v3243
    %v4132 = vpack.c.b16 %v3248, %v3244
    %v4133 = vpack.c.b16 %v3249, %v3245
    %v4134 = vpack.c.b16 %v3254, %v3250
    %v4135 = vpack.c.b16 %v3255, %v3251
    %v4136 = vpack.c.b16 %v3256, %v3252
    %v4137 = vpack.c.b16 %v3257, %v3253
    %v4138 = vpack.c.b16 %v3262, %v3258
    %v4139 = vpack.c.b16 %v3263, %v3259
    %v4140 = vpack.c.b16 %v3264, %v3260
    %v4141 = vpack.c.b16 %v3265, %v3261
    %v4142 = vpack.c.b16 %v3270, %v3266
    %v4143 = vpack.c.b16 %v3271, %v3267
    %v4144 = vpack.c.b16 %v3272, %v3268
    %v4145 = vpack.c.b16 %v3273, %v3269
    %v4146 = vpack.c.b16 %v3278, %v3274
    %v4147 = vpack.c.b16 %v3279, %v3275
    %v4148 = vpack.c.b16 %v3280, %v3276
    %v4149 = vpack.c.b16 %v3281, %v3277
    %v4150 = vpack.c.b16 %v3286, %v3282
    %v4151 = vpack.c.b16 %v3287, %v3283
    %v4152 = vpack.c.b16 %v3288, %v3284
    %v4153 = vpack.c.b16 %v3289, %v3285
    %v4154 = vpack.c.b16 %v3294, %v3290
    %v4155 = vpack.c.b16 %v3295, %v3291
    %v4156 = vpack.c.b16 %v3296, %v3292
    %v4157 = vpack.c.b16 %v3297, %v3293
    %v4158 = vpack.c.b16 %v3302, %v3298
    %v4159 = vpack.c.b16 %v3303, %v3299
    %v4160 = vpack.c.b16 %v3304, %v3300
    %v4161 = vpack.c.b16 %v3305, %v3301
    %v4162 = vpack.c.b16 %v3310, %v3306
    %v4163 = vpack.c.b16 %v3311, %v3307
    %v4164 = vpack.c.b16 %v3312, %v3308
    %v4165 = vpack.c.b16 %v3313, %v3309
    %v4166 = vpack.c.b16 %v3318, %v3314
    %v4167 = vpack.c.b16 %v3319, %v3315
    %v4168 = vpack.c.b16 %v3320, %v3316
    %v4169 = vpack.c.b16 %v3321, %v3317
    %v4170 = vpack.c.b16 %v3326, %v3322
    %v4171 = vpack.c.b16 %v3327, %v3323
    %v4172 = vpack.c.b16 %v3328, %v3324
    %v4173 = vpack.c.b16 %v3329, %v3325
    %v4174 = vpack.c.b16 %v3334, %v3330
    %v4175 = vpack.c.b16 %v3335, %v3331
    %v4176 = vpack.c.b16 %v3336, %v3332
    %v4177 = vpack.c.b16 %v3337, %v3333
    %v4178 = vpack.c.b16 %v3342, %v3338
    %v4179 = vpack.c.b16 %v3343, %v3339
    %v4180 = vpack.c.b16 %v3344, %v3340
    %v4181 = vpack.c.b16 %v3345, %v3341
    %v4182 = vpack.c.b16 %v3350, %v3346
    %v4183 = vpack.c.b16 %v3351, %v3347
    %v4184 = vpack.c.b16 %v3352, %v3348
    %v4185 = vpack.c.b16 %v3353, %v3349
    %v4186 = vpack.c.b16 %v3358, %v3354
    %v4187 = vpack.c.b16 %v3359, %v3355
    %v4188 = vpack.c.b16 %v3360, %v3356
    %v4189 = vpack.c.b16 %v3361, %v3357
    %v4190 = vpack.c.b16 %v3366, %v3362
    %v4191 = vpack.c.b16 %v3367, %v3363
    %v4192 = vpack.c.b16 %v3368, %v3364
    %v4193 = vpack.c.b16 %v3369, %v3365
    %v4194 = vpack.c.b16 %v3374, %v3370
    %v4195 = vpack.c.b16 %v3375, %v3371
    %v4196 = vpack.c.b16 %v3376, %v3372
    %v4197 = vpack.c.b16 %v3377, %v3373
    %v4198 = vpack.c.b16 %v3382, %v3378
    %v4199 = vpack.c.b16 %v3383, %v3379
    %v4200 = vpack.c.b16 %v3384, %v3380
    %v4201 = vpack.c.b16 %v3385, %v3381
    %v4202 = vpack.c.b16 %v3390, %v3386
    %v4203 = vpack.c.b16 %v3391, %v3387
    %v4204 = vpack.c.b16 %v3392, %v3388
    %v4205 = vpack.c.b16 %v3393, %v3389
    %v4206 = vpack.c.b16 %v3398, %v3394
    %v4207 = vpack.c.b16 %v3399, %v3395
    %v4208 = vpack.c.b16 %v3400, %v3396
    %v4209 = vpack.c.b16 %v3401, %v3397
    %v4210 = vpack.c.b16 %v3406, %v3402
    %v4211 = vpack.c.b16 %v3407, %v3403
    %v4212 = vpack.c.b16 %v3408, %v3404
    %v4213 = vpack.c.b16 %v3409, %v3405
    %v4214 = vpack.c.b16 %v3414, %v3410
    %v4215 = vpack.c.b16 %v3415, %v3411
    %v4216 = vpack.c.b16 %v3416, %v3412
    %v4217 = vpack.c.b16 %v3417, %v3413
    %v4218 = vpack.c.b16 %v3422, %v3418
    %v4219 = vpack.c.b16 %v3423, %v3419
    %v4220 = vpack.c.b16 %v3424, %v3420
    %v4221 = vpack.c.b16 %v3425, %v3421
    %v4222 = vpack.c.b16 %v3430, %v3426
    %v4223 = vpack.c.b16 %v3431, %v3427
    %v4224 = vpack.c.b16 %v3432, %v3428
    %v4225 = vpack.c.b16 %v3433, %v3429
    %v4226 = vpack.c.b16 %v3438, %v3434
    %v4227 = vpack.c.b16 %v3439, %v3435
    %v4228 = vpack.c.b16 %v3440, %v3436
    %v4229 = vpack.c.b16 %v3441, %v3437
    %v4230 = vpack.c.b16 %v3446, %v3442
    %v4231 = vpack.c.b16 %v3447, %v3443
    %v4232 = vpack.c.b16 %v3448, %v3444
    %v4233 = vpack.c.b16 %v3449, %v3445
    %v4234 = vpack.c.b16 %v3454, %v3450
    %v4235 = vpack.c.b16 %v3455, %v3451
    %v4236 = vpack.c.b16 %v3456, %v3452
    %v4237 = vpack.c.b16 %v3457, %v3453
    %v4238 = vpack.c.b16 %v3462, %v3458
    %v4239 = vpack.c.b16 %v3463, %v3459
    %v4240 = vpack.c.b16 %v3464, %v3460
    %v4241 = vpack.c.b16 %v3465, %v3461
    %v4242 = vpack.c.b16 %v3470, %v3466
    %v4243 = vpack.c.b16 %v3471, %v3467
    %v4244 = vpack.c.b16 %v3472, %v3468
    %v4245 = vpack.c.b16 %v3473, %v3469
    %v4246 = vpack.c.b16 %v3478, %v3474
    %v4247 = vpack.c.b16 %v3479, %v3475
    %v4248 = vpack.c.b16 %v3480, %v3476
    %v4249 = vpack.c.b16 %v3481, %v3477
    %5018 = vmatpush.bf16.msra.mxu0 %v3510
    %5019 = vmatpush.bf16.msra.mxu0 %v3506
    %5020 = vmatpush.bf16.msra.mxu0 %v3502
    %5021 = vmatpush.bf16.msra.mxu0 %v3498
    %5022 = vmatpush.bf16.msra.mxu0 %v3494
    %5023 = vmatpush.bf16.msra.mxu0 %v3490
    %5024 = vmatpush.bf16.msra.mxu0 %v3486
    %5025 = vmatpush.bf16.msra.mxu0 %v3482
    %5026 = vmatmul.bf16.gmra.mxu0 %v1130
    %v5027 = vpop.f32.mrf.mxu0
    %v5028 = vadd.f32 %v1050, %v5027
    %v5029 = vpop.f32.mrf.mxu0
    %v5030 = vadd.f32 %v1050, %v5029
    %5031 = vdwg.mxu0
    %5032 = vmatpush.bf16.msra.mxu0 %v3542
    %5033 = vmatpush.bf16.msra.mxu0 %v3538
    %5034 = vmatpush.bf16.msra.mxu0 %v3534
    %5035 = vmatpush.bf16.msra.mxu0 %v3530
    %5036 = vmatpush.bf16.msra.mxu0 %v3526
    %5037 = vmatpush.bf16.msra.mxu0 %v3522
    %5038 = vmatpush.bf16.msra.mxu0 %v3518
    %5039 = vmatpush.bf16.msra.mxu0 %v3514
    %5040 = vmatmul.bf16.gmra.mxu0 %v1131
    %v5041 = vpop.f32.mrf.mxu0
    %v5042 = vadd.f32 %v5028, %v5041
    %v5043 = vpop.f32.mrf.mxu0
    %v5044 = vadd.f32 %v5030, %v5043
    %5045 = vdwg.mxu0
    %5046 = vmatpush.bf16.msra.mxu0 %v3574
    %5047 = vmatpush.bf16.msra.mxu0 %v3570
    %5048 = vmatpush.bf16.msra.mxu0 %v3566
    %5049 = vmatpush.bf16.msra.mxu0 %v3562
    %5050 = vmatpush.bf16.msra.mxu0 %v3558
    %5051 = vmatpush.bf16.msra.mxu0 %v3554
    %5052 = vmatpush.bf16.msra.mxu0 %v3550
    %5053 = vmatpush.bf16.msra.mxu0 %v3546
    %5054 = vmatmul.bf16.gmra.mxu0 %v1132
    %v5055 = vpop.f32.mrf.mxu0
    %v5056 = vadd.f32 %v5042, %v5055
    %v5057 = vpop.f32.mrf.mxu0
    %v5058 = vadd.f32 %v5044, %v5057
    %5059 = vdwg.mxu0
    %5060 = vmatpush.bf16.msra.mxu0 %v3606
    %5061 = vmatpush.bf16.msra.mxu0 %v3602
    %5062 = vmatpush.bf16.msra.mxu0 %v3598
    %5063 = vmatpush.bf16.msra.mxu0 %v3594
    %5064 = vmatpush.bf16.msra.mxu0 %v3590
    %5065 = vmatpush.bf16.msra.mxu0 %v3586
    %5066 = vmatpush.bf16.msra.mxu0 %v3582
    %5067 = vmatpush.bf16.msra.mxu0 %v3578
    %5068 = vmatmul.bf16.gmra.mxu0 %v1133
    %v5069 = vpop.f32.mrf.mxu0
    %v5070 = vadd.f32 %v5056, %v5069
    %v5071 = vpop.f32.mrf.mxu0
    %v5072 = vadd.f32 %v5058, %v5071
    %5073 = vdwg.mxu0
    %5074 = vmatpush.bf16.msra.mxu0 %v3638
    %5075 = vmatpush.bf16.msra.mxu0 %v3634
    %5076 = vmatpush.bf16.msra.mxu0 %v3630
    %5077 = vmatpush.bf16.msra.mxu0 %v3626
    %5078 = vmatpush.bf16.msra.mxu0 %v3622
    %5079 = vmatpush.bf16.msra.mxu0 %v3618
    %5080 = vmatpush.bf16.msra.mxu0 %v3614
    %5081 = vmatpush.bf16.msra.mxu0 %v3610
    %5082 = vmatmul.bf16.gmra.mxu0 %v1134
    %v5083 = vpop.f32.mrf.mxu0
    %v5084 = vadd.f32 %v5070, %v5083
    %v5085 = vpop.f32.mrf.mxu0
    %v5086 = vadd.f32 %v5072, %v5085
    %5087 = vdwg.mxu0
    %5088 = vmatpush.bf16.msra.mxu0 %v3670
    %5089 = vmatpush.bf16.msra.mxu0 %v3666
    %5090 = vmatpush.bf16.msra.mxu0 %v3662
    %5091 = vmatpush.bf16.msra.mxu0 %v3658
    %5092 = vmatpush.bf16.msra.mxu0 %v3654
    %5093 = vmatpush.bf16.msra.mxu0 %v3650
    %5094 = vmatpush.bf16.msra.mxu0 %v3646
    %5095 = vmatpush.bf16.msra.mxu0 %v3642
    %5096 = vmatmul.bf16.gmra.mxu0 %v1135
    %v5097 = vpop.f32.mrf.mxu0
    %v5098 = vadd.f32 %v5084, %v5097
    %v5099 = vpop.f32.mrf.mxu0
    %v5100 = vadd.f32 %v5086, %v5099
    %5101 = vdwg.mxu0
    %5102 = vmatpush.bf16.msra.mxu0 %v3702
    %5103 = vmatpush.bf16.msra.mxu0 %v3698
    %5104 = vmatpush.bf16.msra.mxu0 %v3694
    %5105 = vmatpush.bf16.msra.mxu0 %v3690
    %5106 = vmatpush.bf16.msra.mxu0 %v3686
    %5107 = vmatpush.bf16.msra.mxu0 %v3682
    %5108 = vmatpush.bf16.msra.mxu0 %v3678
    %5109 = vmatpush.bf16.msra.mxu0 %v3674
    %5110 = vmatmul.bf16.gmra.mxu0 %v1136
    %v5111 = vpop.f32.mrf.mxu0
    %v5112 = vadd.f32 %v5098, %v5111
    %v5113 = vpop.f32.mrf.mxu0
    %v5114 = vadd.f32 %v5100, %v5113
    %5115 = vdwg.mxu0
    %5116 = vmatpush.bf16.msra.mxu0 %v3734
    %5117 = vmatpush.bf16.msra.mxu0 %v3730
    %5118 = vmatpush.bf16.msra.mxu0 %v3726
    %5119 = vmatpush.bf16.msra.mxu0 %v3722
    %5120 = vmatpush.bf16.msra.mxu0 %v3718
    %5121 = vmatpush.bf16.msra.mxu0 %v3714
    %5122 = vmatpush.bf16.msra.mxu0 %v3710
    %5123 = vmatpush.bf16.msra.mxu0 %v3706
    %5124 = vmatmul.bf16.gmra.mxu0 %v1137
    %v5125 = vpop.f32.mrf.mxu0
    %v5126 = vadd.f32 %v5112, %v5125
    %v5127 = vpop.f32.mrf.mxu0
    %v5128 = vadd.f32 %v5114, %v5127
    %5129 = vdwg.mxu0
    %5130 = vmatpush.bf16.msra.mxu0 %v3766
    %5131 = vmatpush.bf16.msra.mxu0 %v3762
    %5132 = vmatpush.bf16.msra.mxu0 %v3758
    %5133 = vmatpush.bf16.msra.mxu0 %v3754
    %5134 = vmatpush.bf16.msra.mxu0 %v3750
    %5135 = vmatpush.bf16.msra.mxu0 %v3746
    %5136 = vmatpush.bf16.msra.mxu0 %v3742
    %5137 = vmatpush.bf16.msra.mxu0 %v3738
    %5138 = vmatmul.bf16.gmra.mxu0 %v1138
    %v5139 = vpop.f32.mrf.mxu0
    %v5140 = vadd.f32 %v5126, %v5139
    %v5141 = vpop.f32.mrf.mxu0
    %v5142 = vadd.f32 %v5128, %v5141
    %5143 = vdwg.mxu0
    %5144 = vmatpush.bf16.msra.mxu0 %v3798
    %5145 = vmatpush.bf16.msra.mxu0 %v3794
    %5146 = vmatpush.bf16.msra.mxu0 %v3790
    %5147 = vmatpush.bf16.msra.mxu0 %v3786
    %5148 = vmatpush.bf16.msra.mxu0 %v3782
    %5149 = vmatpush.bf16.msra.mxu0 %v3778
    %5150 = vmatpush.bf16.msra.mxu0 %v3774
    %5151 = vmatpush.bf16.msra.mxu0 %v3770
    %5152 = vmatmul.bf16.gmra.mxu0 %v1139
    %v5153 = vpop.f32.mrf.mxu0
    %v5154 = vadd.f32 %v5140, %v5153
    %v5155 = vpop.f32.mrf.mxu0
    %v5156 = vadd.f32 %v5142, %v5155
    %5157 = vdwg.mxu0
    %5158 = vmatpush.bf16.msra.mxu0 %v3830
    %5159 = vmatpush.bf16.msra.mxu0 %v3826
    %5160 = vmatpush.bf16.msra.mxu0 %v3822
    %5161 = vmatpush.bf16.msra.mxu0 %v3818
    %5162 = vmatpush.bf16.msra.mxu0 %v3814
    %5163 = vmatpush.bf16.msra.mxu0 %v3810
    %5164 = vmatpush.bf16.msra.mxu0 %v3806
    %5165 = vmatpush.bf16.msra.mxu0 %v3802
    %5166 = vmatmul.bf16.gmra.mxu0 %v1140
    %v5167 = vpop.f32.mrf.mxu0
    %v5168 = vadd.f32 %v5154, %v5167
    %v5169 = vpop.f32.mrf.mxu0
    %v5170 = vadd.f32 %v5156, %v5169
    %5171 = vdwg.mxu0
    %5172 = vmatpush.bf16.msra.mxu0 %v3862
    %5173 = vmatpush.bf16.msra.mxu0 %v3858
    %5174 = vmatpush.bf16.msra.mxu0 %v3854
    %5175 = vmatpush.bf16.msra.mxu0 %v3850
    %5176 = vmatpush.bf16.msra.mxu0 %v3846
    %5177 = vmatpush.bf16.msra.mxu0 %v3842
    %5178 = vmatpush.bf16.msra.mxu0 %v3838
    %5179 = vmatpush.bf16.msra.mxu0 %v3834
    %5180 = vmatmul.bf16.gmra.mxu0 %v1141
    %v5181 = vpop.f32.mrf.mxu0
    %v5182 = vadd.f32 %v5168, %v5181
    %v5183 = vpop.f32.mrf.mxu0
    %v5184 = vadd.f32 %v5170, %v5183
    %5185 = vdwg.mxu0
    %5186 = vmatpush.bf16.msra.mxu0 %v3894
    %5187 = vmatpush.bf16.msra.mxu0 %v3890
    %5188 = vmatpush.bf16.msra.mxu0 %v3886
    %5189 = vmatpush.bf16.msra.mxu0 %v3882
    %5190 = vmatpush.bf16.msra.mxu0 %v3878
    %5191 = vmatpush.bf16.msra.mxu0 %v3874
    %5192 = vmatpush.bf16.msra.mxu0 %v3870
    %5193 = vmatpush.bf16.msra.mxu0 %v3866
    %5194 = vmatmul.bf16.gmra.mxu0 %v1142
    %v5195 = vpop.f32.mrf.mxu0
    %v5196 = vadd.f32 %v5182, %v5195
    %v5197 = vpop.f32.mrf.mxu0
    %v5198 = vadd.f32 %v5184, %v5197
    %5199 = vdwg.mxu0
    %5200 = vmatpush.bf16.msra.mxu0 %v3926
    %5201 = vmatpush.bf16.msra.mxu0 %v3922
    %5202 = vmatpush.bf16.msra.mxu0 %v3918
    %5203 = vmatpush.bf16.msra.mxu0 %v3914
    %5204 = vmatpush.bf16.msra.mxu0 %v3910
    %5205 = vmatpush.bf16.msra.mxu0 %v3906
    %5206 = vmatpush.bf16.msra.mxu0 %v3902
    %5207 = vmatpush.bf16.msra.mxu0 %v3898
    %5208 = vmatmul.bf16.gmra.mxu0 %v1143
    %v5209 = vpop.f32.mrf.mxu0
    %v5210 = vadd.f32 %v5196, %v5209
    %v5211 = vpop.f32.mrf.mxu0
    %v5212 = vadd.f32 %v5198, %v5211
    %5213 = vdwg.mxu0
    %5214 = vmatpush.bf16.msra.mxu0 %v3958
    %5215 = vmatpush.bf16.msra.mxu0 %v3954
    %5216 = vmatpush.bf16.msra.mxu0 %v3950
    %5217 = vmatpush.bf16.msra.mxu0 %v3946
    %5218 = vmatpush.bf16.msra.mxu0 %v3942
    %5219 = vmatpush.bf16.msra.mxu0 %v3938
    %5220 = vmatpush.bf16.msra.mxu0 %v3934
    %5221 = vmatpush.bf16.msra.mxu0 %v3930
    %5222 = vmatmul.bf16.gmra.mxu0 %v1144
    %v5223 = vpop.f32.mrf.mxu0
    %v5224 = vadd.f32 %v5210, %v5223
    %v5225 = vpop.f32.mrf.mxu0
    %v5226 = vadd.f32 %v5212, %v5225
    %5227 = vdwg.mxu0
    %5228 = vmatpush.bf16.msra.mxu0 %v3990
    %5229 = vmatpush.bf16.msra.mxu0 %v3986
    %5230 = vmatpush.bf16.msra.mxu0 %v3982
    %5231 = vmatpush.bf16.msra.mxu0 %v3978
    %5232 = vmatpush.bf16.msra.mxu0 %v3974
    %5233 = vmatpush.bf16.msra.mxu0 %v3970
    %5234 = vmatpush.bf16.msra.mxu0 %v3966
    %5235 = vmatpush.bf16.msra.mxu0 %v3962
    %5236 = vmatmul.bf16.gmra.mxu0 %v1145
    %v5237 = vpop.f32.mrf.mxu0
    %v5238 = vadd.f32 %v5224, %v5237
    %v5239 = vpop.f32.mrf.mxu0
    %v5240 = vadd.f32 %v5226, %v5239
    %5241 = vdwg.mxu0
    %5242 = vmatpush.bf16.msra.mxu0 %v4022
    %5243 = vmatpush.bf16.msra.mxu0 %v4018
    %5244 = vmatpush.bf16.msra.mxu0 %v4014
    %5245 = vmatpush.bf16.msra.mxu0 %v4010
    %5246 = vmatpush.bf16.msra.mxu0 %v4006
    %5247 = vmatpush.bf16.msra.mxu0 %v4002
    %5248 = vmatpush.bf16.msra.mxu0 %v3998
    %5249 = vmatpush.bf16.msra.mxu0 %v3994
    %5250 = vmatmul.bf16.gmra.mxu0 %v1146
    %v5251 = vpop.f32.mrf.mxu0
    %v5252 = vadd.f32 %v5238, %v5251
    %v5253 = vpop.f32.mrf.mxu0
    %v5254 = vadd.f32 %v5240, %v5253
    %5255 = vdwg.mxu0
    %5256 = vmatpush.bf16.msra.mxu0 %v4054
    %5257 = vmatpush.bf16.msra.mxu0 %v4050
    %5258 = vmatpush.bf16.msra.mxu0 %v4046
    %5259 = vmatpush.bf16.msra.mxu0 %v4042
    %5260 = vmatpush.bf16.msra.mxu0 %v4038
    %5261 = vmatpush.bf16.msra.mxu0 %v4034
    %5262 = vmatpush.bf16.msra.mxu0 %v4030
    %5263 = vmatpush.bf16.msra.mxu0 %v4026
    %5264 = vmatmul.bf16.gmra.mxu0 %v1147
    %v5265 = vpop.f32.mrf.mxu0
    %v5266 = vadd.f32 %v5252, %v5265
    %v5267 = vpop.f32.mrf.mxu0
    %v5268 = vadd.f32 %v5254, %v5267
    %5269 = vdwg.mxu0
    %5270 = vmatpush.bf16.msra.mxu0 %v4086
    %5271 = vmatpush.bf16.msra.mxu0 %v4082
    %5272 = vmatpush.bf16.msra.mxu0 %v4078
    %5273 = vmatpush.bf16.msra.mxu0 %v4074
    %5274 = vmatpush.bf16.msra.mxu0 %v4070
    %5275 = vmatpush.bf16.msra.mxu0 %v4066
    %5276 = vmatpush.bf16.msra.mxu0 %v4062
    %5277 = vmatpush.bf16.msra.mxu0 %v4058
    %5278 = vmatmul.bf16.gmra.mxu0 %v1148
    %v5279 = vpop.f32.mrf.mxu0
    %v5280 = vadd.f32 %v5266, %v5279
    %v5281 = vpop.f32.mrf.mxu0
    %v5282 = vadd.f32 %v5268, %v5281
    %5283 = vdwg.mxu0
    %5284 = vmatpush.bf16.msra.mxu0 %v4118
    %5285 = vmatpush.bf16.msra.mxu0 %v4114
    %5286 = vmatpush.bf16.msra.mxu0 %v4110
    %5287 = vmatpush.bf16.msra.mxu0 %v4106
    %5288 = vmatpush.bf16.msra.mxu0 %v4102
    %5289 = vmatpush.bf16.msra.mxu0 %v4098
    %5290 = vmatpush.bf16.msra.mxu0 %v4094
    %5291 = vmatpush.bf16.msra.mxu0 %v4090
    %5292 = vmatmul.bf16.gmra.mxu0 %v1149
    %v5293 = vpop.f32.mrf.mxu0
    %v5294 = vadd.f32 %v5280, %v5293
    %v5295 = vpop.f32.mrf.mxu0
    %v5296 = vadd.f32 %v5282, %v5295
    %5297 = vdwg.mxu0
    %5298 = vmatpush.bf16.msra.mxu0 %v4150
    %5299 = vmatpush.bf16.msra.mxu0 %v4146
    %5300 = vmatpush.bf16.msra.mxu0 %v4142
    %5301 = vmatpush.bf16.msra.mxu0 %v4138
    %5302 = vmatpush.bf16.msra.mxu0 %v4134
    %5303 = vmatpush.bf16.msra.mxu0 %v4130
    %5304 = vmatpush.bf16.msra.mxu0 %v4126
    %5305 = vmatpush.bf16.msra.mxu0 %v4122
    %5306 = vmatmul.bf16.gmra.mxu0 %v1150
    %v5307 = vpop.f32.mrf.mxu0
    %v5308 = vadd.f32 %v5294, %v5307
    %v5309 = vpop.f32.mrf.mxu0
    %v5310 = vadd.f32 %v5296, %v5309
    %5311 = vdwg.mxu0
    %5312 = vmatpush.bf16.msra.mxu0 %v4182
    %5313 = vmatpush.bf16.msra.mxu0 %v4178
    %5314 = vmatpush.bf16.msra.mxu0 %v4174
    %5315 = vmatpush.bf16.msra.mxu0 %v4170
    %5316 = vmatpush.bf16.msra.mxu0 %v4166
    %5317 = vmatpush.bf16.msra.mxu0 %v4162
    %5318 = vmatpush.bf16.msra.mxu0 %v4158
    %5319 = vmatpush.bf16.msra.mxu0 %v4154
    %5320 = vmatmul.bf16.gmra.mxu0 %v1151
    %v5321 = vpop.f32.mrf.mxu0
    %v5322 = vadd.f32 %v5308, %v5321
    %v5323 = vpop.f32.mrf.mxu0
    %v5324 = vadd.f32 %v5310, %v5323
    %5325 = vdwg.mxu0
    %5326 = vmatpush.bf16.msra.mxu0 %v4214
    %5327 = vmatpush.bf16.msra.mxu0 %v4210
    %5328 = vmatpush.bf16.msra.mxu0 %v4206
    %5329 = vmatpush.bf16.msra.mxu0 %v4202
    %5330 = vmatpush.bf16.msra.mxu0 %v4198
    %5331 = vmatpush.bf16.msra.mxu0 %v4194
    %5332 = vmatpush.bf16.msra.mxu0 %v4190
    %5333 = vmatpush.bf16.msra.mxu0 %v4186
    %5334 = vmatmul.bf16.gmra.mxu0 %v1152
    %v5335 = vpop.f32.mrf.mxu0
    %v5336 = vadd.f32 %v5322, %v5335
    %v5337 = vpop.f32.mrf.mxu0
    %v5338 = vadd.f32 %v5324, %v5337
    %5339 = vdwg.mxu0
    %5340 = vmatpush.bf16.msra.mxu0 %v4246
    %5341 = vmatpush.bf16.msra.mxu0 %v4242
    %5342 = vmatpush.bf16.msra.mxu0 %v4238
    %5343 = vmatpush.bf16.msra.mxu0 %v4234
    %5344 = vmatpush.bf16.msra.mxu0 %v4230
    %5345 = vmatpush.bf16.msra.mxu0 %v4226
    %5346 = vmatpush.bf16.msra.mxu0 %v4222
    %5347 = vmatpush.bf16.msra.mxu0 %v4218
    %5348 = vmatmul.bf16.gmra.mxu0 %v1153
    %v5349 = vpop.f32.mrf.mxu0
    %v5350 = vadd.f32 %v5336, %v5349
    %v5351 = vpop.f32.mrf.mxu0
    %v5352 = vadd.f32 %v5338, %v5351
    %5353 = vdwg.mxu0
    %5354 = vmatpush.bf16.msra.mxu0 %v3511
    %5355 = vmatpush.bf16.msra.mxu0 %v3507
    %5356 = vmatpush.bf16.msra.mxu0 %v3503
    %5357 = vmatpush.bf16.msra.mxu0 %v3499
    %5358 = vmatpush.bf16.msra.mxu0 %v3495
    %5359 = vmatpush.bf16.msra.mxu0 %v3491
    %5360 = vmatpush.bf16.msra.mxu0 %v3487
    %5361 = vmatpush.bf16.msra.mxu0 %v3483
    %5362 = vmatmul.bf16.gmra.mxu0 %v1130
    %v5363 = vpop.f32.mrf.mxu0
    %v5364 = vadd.f32 %v1051, %v5363
    %v5365 = vpop.f32.mrf.mxu0
    %v5366 = vadd.f32 %v1051, %v5365
    %5367 = vdwg.mxu0
    %5368 = vmatpush.bf16.msra.mxu0 %v3543
    %5369 = vmatpush.bf16.msra.mxu0 %v3539
    %5370 = vmatpush.bf16.msra.mxu0 %v3535
    %5371 = vmatpush.bf16.msra.mxu0 %v3531
    %5372 = vmatpush.bf16.msra.mxu0 %v3527
    %5373 = vmatpush.bf16.msra.mxu0 %v3523
    %5374 = vmatpush.bf16.msra.mxu0 %v3519
    %5375 = vmatpush.bf16.msra.mxu0 %v3515
    %5376 = vmatmul.bf16.gmra.mxu0 %v1131
    %v5377 = vpop.f32.mrf.mxu0
    %v5378 = vadd.f32 %v5364, %v5377
    %v5379 = vpop.f32.mrf.mxu0
    %v5380 = vadd.f32 %v5366, %v5379
    %5381 = vdwg.mxu0
    %5382 = vmatpush.bf16.msra.mxu0 %v3575
    %5383 = vmatpush.bf16.msra.mxu0 %v3571
    %5384 = vmatpush.bf16.msra.mxu0 %v3567
    %5385 = vmatpush.bf16.msra.mxu0 %v3563
    %5386 = vmatpush.bf16.msra.mxu0 %v3559
    %5387 = vmatpush.bf16.msra.mxu0 %v3555
    %5388 = vmatpush.bf16.msra.mxu0 %v3551
    %5389 = vmatpush.bf16.msra.mxu0 %v3547
    %5390 = vmatmul.bf16.gmra.mxu0 %v1132
    %v5391 = vpop.f32.mrf.mxu0
    %v5392 = vadd.f32 %v5378, %v5391
    %v5393 = vpop.f32.mrf.mxu0
    %v5394 = vadd.f32 %v5380, %v5393
    %5395 = vdwg.mxu0
    %5396 = vmatpush.bf16.msra.mxu0 %v3607
    %5397 = vmatpush.bf16.msra.mxu0 %v3603
    %5398 = vmatpush.bf16.msra.mxu0 %v3599
    %5399 = vmatpush.bf16.msra.mxu0 %v3595
    %5400 = vmatpush.bf16.msra.mxu0 %v3591
    %5401 = vmatpush.bf16.msra.mxu0 %v3587
    %5402 = vmatpush.bf16.msra.mxu0 %v3583
    %5403 = vmatpush.bf16.msra.mxu0 %v3579
    %5404 = vmatmul.bf16.gmra.mxu0 %v1133
    %v5405 = vpop.f32.mrf.mxu0
    %v5406 = vadd.f32 %v5392, %v5405
    %v5407 = vpop.f32.mrf.mxu0
    %v5408 = vadd.f32 %v5394, %v5407
    %5409 = vdwg.mxu0
    %5410 = vmatpush.bf16.msra.mxu0 %v3639
    %5411 = vmatpush.bf16.msra.mxu0 %v3635
    %5412 = vmatpush.bf16.msra.mxu0 %v3631
    %5413 = vmatpush.bf16.msra.mxu0 %v3627
    %5414 = vmatpush.bf16.msra.mxu0 %v3623
    %5415 = vmatpush.bf16.msra.mxu0 %v3619
    %5416 = vmatpush.bf16.msra.mxu0 %v3615
    %5417 = vmatpush.bf16.msra.mxu0 %v3611
    %5418 = vmatmul.bf16.gmra.mxu0 %v1134
    %v5419 = vpop.f32.mrf.mxu0
    %v5420 = vadd.f32 %v5406, %v5419
    %v5421 = vpop.f32.mrf.mxu0
    %v5422 = vadd.f32 %v5408, %v5421
    %5423 = vdwg.mxu0
    %5424 = vmatpush.bf16.msra.mxu0 %v3671
    %5425 = vmatpush.bf16.msra.mxu0 %v3667
    %5426 = vmatpush.bf16.msra.mxu0 %v3663
    %5427 = vmatpush.bf16.msra.mxu0 %v3659
    %5428 = vmatpush.bf16.msra.mxu0 %v3655
    %5429 = vmatpush.bf16.msra.mxu0 %v3651
    %5430 = vmatpush.bf16.msra.mxu0 %v3647
    %5431 = vmatpush.bf16.msra.mxu0 %v3643
    %5432 = vmatmul.bf16.gmra.mxu0 %v1135
    %v5433 = vpop.f32.mrf.mxu0
    %v5434 = vadd.f32 %v5420, %v5433
    %v5435 = vpop.f32.mrf.mxu0
    %v5436 = vadd.f32 %v5422, %v5435
    %5437 = vdwg.mxu0
    %5438 = vmatpush.bf16.msra.mxu0 %v3703
    %5439 = vmatpush.bf16.msra.mxu0 %v3699
    %5440 = vmatpush.bf16.msra.mxu0 %v3695
    %5441 = vmatpush.bf16.msra.mxu0 %v3691
    %5442 = vmatpush.bf16.msra.mxu0 %v3687
    %5443 = vmatpush.bf16.msra.mxu0 %v3683
    %5444 = vmatpush.bf16.msra.mxu0 %v3679
    %5445 = vmatpush.bf16.msra.mxu0 %v3675
    %5446 = vmatmul.bf16.gmra.mxu0 %v1136
    %v5447 = vpop.f32.mrf.mxu0
    %v5448 = vadd.f32 %v5434, %v5447
    %v5449 = vpop.f32.mrf.mxu0
    %v5450 = vadd.f32 %v5436, %v5449
    %5451 = vdwg.mxu0
    %5452 = vmatpush.bf16.msra.mxu0 %v3735
    %5453 = vmatpush.bf16.msra.mxu0 %v3731
    %5454 = vmatpush.bf16.msra.mxu0 %v3727
    %5455 = vmatpush.bf16.msra.mxu0 %v3723
    %5456 = vmatpush.bf16.msra.mxu0 %v3719
    %5457 = vmatpush.bf16.msra.mxu0 %v3715
    %5458 = vmatpush.bf16.msra.mxu0 %v3711
    %5459 = vmatpush.bf16.msra.mxu0 %v3707
    %5460 = vmatmul.bf16.gmra.mxu0 %v1137
    %v5461 = vpop.f32.mrf.mxu0
    %v5462 = vadd.f32 %v5448, %v5461
    %v5463 = vpop.f32.mrf.mxu0
    %v5464 = vadd.f32 %v5450, %v5463
    %5465 = vdwg.mxu0
    %5466 = vmatpush.bf16.msra.mxu0 %v3767
    %5467 = vmatpush.bf16.msra.mxu0 %v3763
    %5468 = vmatpush.bf16.msra.mxu0 %v3759
    %5469 = vmatpush.bf16.msra.mxu0 %v3755
    %5470 = vmatpush.bf16.msra.mxu0 %v3751
    %5471 = vmatpush.bf16.msra.mxu0 %v3747
    %5472 = vmatpush.bf16.msra.mxu0 %v3743
    %5473 = vmatpush.bf16.msra.mxu0 %v3739
    %5474 = vmatmul.bf16.gmra.mxu0 %v1138
    %v5475 = vpop.f32.mrf.mxu0
    %v5476 = vadd.f32 %v5462, %v5475
    %v5477 = vpop.f32.mrf.mxu0
    %v5478 = vadd.f32 %v5464, %v5477
    %5479 = vdwg.mxu0
    %5480 = vmatpush.bf16.msra.mxu0 %v3799
    %5481 = vmatpush.bf16.msra.mxu0 %v3795
    %5482 = vmatpush.bf16.msra.mxu0 %v3791
    %5483 = vmatpush.bf16.msra.mxu0 %v3787
    %5484 = vmatpush.bf16.msra.mxu0 %v3783
    %5485 = vmatpush.bf16.msra.mxu0 %v3779
    %5486 = vmatpush.bf16.msra.mxu0 %v3775
    %5487 = vmatpush.bf16.msra.mxu0 %v3771
    %5488 = vmatmul.bf16.gmra.mxu0 %v1139
    %v5489 = vpop.f32.mrf.mxu0
    %v5490 = vadd.f32 %v5476, %v5489
    %v5491 = vpop.f32.mrf.mxu0
    %v5492 = vadd.f32 %v5478, %v5491
    %5493 = vdwg.mxu0
    %5494 = vmatpush.bf16.msra.mxu0 %v3831
    %5495 = vmatpush.bf16.msra.mxu0 %v3827
    %5496 = vmatpush.bf16.msra.mxu0 %v3823
    %5497 = vmatpush.bf16.msra.mxu0 %v3819
    %5498 = vmatpush.bf16.msra.mxu0 %v3815
    %5499 = vmatpush.bf16.msra.mxu0 %v3811
    %5500 = vmatpush.bf16.msra.mxu0 %v3807
    %5501 = vmatpush.bf16.msra.mxu0 %v3803
    %5502 = vmatmul.bf16.gmra.mxu0 %v1140
    %v5503 = vpop.f32.mrf.mxu0
    %v5504 = vadd.f32 %v5490, %v5503
    %v5505 = vpop.f32.mrf.mxu0
    %v5506 = vadd.f32 %v5492, %v5505
    %5507 = vdwg.mxu0
    %5508 = vmatpush.bf16.msra.mxu0 %v3863
    %5509 = vmatpush.bf16.msra.mxu0 %v3859
    %5510 = vmatpush.bf16.msra.mxu0 %v3855
    %5511 = vmatpush.bf16.msra.mxu0 %v3851
    %5512 = vmatpush.bf16.msra.mxu0 %v3847
    %5513 = vmatpush.bf16.msra.mxu0 %v3843
    %5514 = vmatpush.bf16.msra.mxu0 %v3839
    %5515 = vmatpush.bf16.msra.mxu0 %v3835
    %5516 = vmatmul.bf16.gmra.mxu0 %v1141
    %v5517 = vpop.f32.mrf.mxu0
    %v5518 = vadd.f32 %v5504, %v5517
    %v5519 = vpop.f32.mrf.mxu0
    %v5520 = vadd.f32 %v5506, %v5519
    %5521 = vdwg.mxu0
    %5522 = vmatpush.bf16.msra.mxu0 %v3895
    %5523 = vmatpush.bf16.msra.mxu0 %v3891
    %5524 = vmatpush.bf16.msra.mxu0 %v3887
    %5525 = vmatpush.bf16.msra.mxu0 %v3883
    %5526 = vmatpush.bf16.msra.mxu0 %v3879
    %5527 = vmatpush.bf16.msra.mxu0 %v3875
    %5528 = vmatpush.bf16.msra.mxu0 %v3871
    %5529 = vmatpush.bf16.msra.mxu0 %v3867
    %5530 = vmatmul.bf16.gmra.mxu0 %v1142
    %v5531 = vpop.f32.mrf.mxu0
    %v5532 = vadd.f32 %v5518, %v5531
    %v5533 = vpop.f32.mrf.mxu0
    %v5534 = vadd.f32 %v5520, %v5533
    %5535 = vdwg.mxu0
    %5536 = vmatpush.bf16.msra.mxu0 %v3927
    %5537 = vmatpush.bf16.msra.mxu0 %v3923
    %5538 = vmatpush.bf16.msra.mxu0 %v3919
    %5539 = vmatpush.bf16.msra.mxu0 %v3915
    %5540 = vmatpush.bf16.msra.mxu0 %v3911
    %5541 = vmatpush.bf16.msra.mxu0 %v3907
    %5542 = vmatpush.bf16.msra.mxu0 %v3903
    %5543 = vmatpush.bf16.msra.mxu0 %v3899
    %5544 = vmatmul.bf16.gmra.mxu0 %v1143
    %v5545 = vpop.f32.mrf.mxu0
    %v5546 = vadd.f32 %v5532, %v5545
    %v5547 = vpop.f32.mrf.mxu0
    %v5548 = vadd.f32 %v5534, %v5547
    %5549 = vdwg.mxu0
    %5550 = vmatpush.bf16.msra.mxu0 %v3959
    %5551 = vmatpush.bf16.msra.mxu0 %v3955
    %5552 = vmatpush.bf16.msra.mxu0 %v3951
    %5553 = vmatpush.bf16.msra.mxu0 %v3947
    %5554 = vmatpush.bf16.msra.mxu0 %v3943
    %5555 = vmatpush.bf16.msra.mxu0 %v3939
    %5556 = vmatpush.bf16.msra.mxu0 %v3935
    %5557 = vmatpush.bf16.msra.mxu0 %v3931
    %5558 = vmatmul.bf16.gmra.mxu0 %v1144
    %v5559 = vpop.f32.mrf.mxu0
    %v5560 = vadd.f32 %v5546, %v5559
    %v5561 = vpop.f32.mrf.mxu0
    %v5562 = vadd.f32 %v5548, %v5561
    %5563 = vdwg.mxu0
    %5564 = vmatpush.bf16.msra.mxu0 %v3991
    %5565 = vmatpush.bf16.msra.mxu0 %v3987
    %5566 = vmatpush.bf16.msra.mxu0 %v3983
    %5567 = vmatpush.bf16.msra.mxu0 %v3979
    %5568 = vmatpush.bf16.msra.mxu0 %v3975
    %5569 = vmatpush.bf16.msra.mxu0 %v3971
    %5570 = vmatpush.bf16.msra.mxu0 %v3967
    %5571 = vmatpush.bf16.msra.mxu0 %v3963
    %5572 = vmatmul.bf16.gmra.mxu0 %v1145
    %v5573 = vpop.f32.mrf.mxu0
    %v5574 = vadd.f32 %v5560, %v5573
    %v5575 = vpop.f32.mrf.mxu0
    %v5576 = vadd.f32 %v5562, %v5575
    %5577 = vdwg.mxu0
    %5578 = vmatpush.bf16.msra.mxu0 %v4023
    %5579 = vmatpush.bf16.msra.mxu0 %v4019
    %5580 = vmatpush.bf16.msra.mxu0 %v4015
    %5581 = vmatpush.bf16.msra.mxu0 %v4011
    %5582 = vmatpush.bf16.msra.mxu0 %v4007
    %5583 = vmatpush.bf16.msra.mxu0 %v4003
    %5584 = vmatpush.bf16.msra.mxu0 %v3999
    %5585 = vmatpush.bf16.msra.mxu0 %v3995
    %5586 = vmatmul.bf16.gmra.mxu0 %v1146
    %v5587 = vpop.f32.mrf.mxu0
    %v5588 = vadd.f32 %v5574, %v5587
    %v5589 = vpop.f32.mrf.mxu0
    %v5590 = vadd.f32 %v5576, %v5589
    %5591 = vdwg.mxu0
    %5592 = vmatpush.bf16.msra.mxu0 %v4055
    %5593 = vmatpush.bf16.msra.mxu0 %v4051
    %5594 = vmatpush.bf16.msra.mxu0 %v4047
    %5595 = vmatpush.bf16.msra.mxu0 %v4043
    %5596 = vmatpush.bf16.msra.mxu0 %v4039
    %5597 = vmatpush.bf16.msra.mxu0 %v4035
    %5598 = vmatpush.bf16.msra.mxu0 %v4031
    %5599 = vmatpush.bf16.msra.mxu0 %v4027
    %5600 = vmatmul.bf16.gmra.mxu0 %v1147
    %v5601 = vpop.f32.mrf.mxu0
    %v5602 = vadd.f32 %v5588, %v5601
    %v5603 = vpop.f32.mrf.mxu0
    %v5604 = vadd.f32 %v5590, %v5603
    %5605 = vdwg.mxu0
    %5606 = vmatpush.bf16.msra.mxu0 %v4087
    %5607 = vmatpush.bf16.msra.mxu0 %v4083
    %5608 = vmatpush.bf16.msra.mxu0 %v4079
    %5609 = vmatpush.bf16.msra.mxu0 %v4075
    %5610 = vmatpush.bf16.msra.mxu0 %v4071
    %5611 = vmatpush.bf16.msra.mxu0 %v4067
    %5612 = vmatpush.bf16.msra.mxu0 %v4063
    %5613 = vmatpush.bf16.msra.mxu0 %v4059
    %5614 = vmatmul.bf16.gmra.mxu0 %v1148
    %v5615 = vpop.f32.mrf.mxu0
    %v5616 = vadd.f32 %v5602, %v5615
    %v5617 = vpop.f32.mrf.mxu0
    %v5618 = vadd.f32 %v5604, %v5617
    %5619 = vdwg.mxu0
    %5620 = vmatpush.bf16.msra.mxu0 %v4119
    %5621 = vmatpush.bf16.msra.mxu0 %v4115
    %5622 = vmatpush.bf16.msra.mxu0 %v4111
    %5623 = vmatpush.bf16.msra.mxu0 %v4107
    %5624 = vmatpush.bf16.msra.mxu0 %v4103
    %5625 = vmatpush.bf16.msra.mxu0 %v4099
    %5626 = vmatpush.bf16.msra.mxu0 %v4095
    %5627 = vmatpush.bf16.msra.mxu0 %v4091
    %5628 = vmatmul.bf16.gmra.mxu0 %v1149
    %v5629 = vpop.f32.mrf.mxu0
    %v5630 = vadd.f32 %v5616, %v5629
    %v5631 = vpop.f32.mrf.mxu0
    %v5632 = vadd.f32 %v5618, %v5631
    %5633 = vdwg.mxu0
    %5634 = vmatpush.bf16.msra.mxu0 %v4151
    %5635 = vmatpush.bf16.msra.mxu0 %v4147
    %5636 = vmatpush.bf16.msra.mxu0 %v4143
    %5637 = vmatpush.bf16.msra.mxu0 %v4139
    %5638 = vmatpush.bf16.msra.mxu0 %v4135
    %5639 = vmatpush.bf16.msra.mxu0 %v4131
    %5640 = vmatpush.bf16.msra.mxu0 %v4127
    %5641 = vmatpush.bf16.msra.mxu0 %v4123
    %5642 = vmatmul.bf16.gmra.mxu0 %v1150
    %v5643 = vpop.f32.mrf.mxu0
    %v5644 = vadd.f32 %v5630, %v5643
    %v5645 = vpop.f32.mrf.mxu0
    %v5646 = vadd.f32 %v5632, %v5645
    %5647 = vdwg.mxu0
    %5648 = vmatpush.bf16.msra.mxu0 %v4183
    %5649 = vmatpush.bf16.msra.mxu0 %v4179
    %5650 = vmatpush.bf16.msra.mxu0 %v4175
    %5651 = vmatpush.bf16.msra.mxu0 %v4171
    %5652 = vmatpush.bf16.msra.mxu0 %v4167
    %5653 = vmatpush.bf16.msra.mxu0 %v4163
    %5654 = vmatpush.bf16.msra.mxu0 %v4159
    %5655 = vmatpush.bf16.msra.mxu0 %v4155
    %5656 = vmatmul.bf16.gmra.mxu0 %v1151
    %v5657 = vpop.f32.mrf.mxu0
    %v5658 = vadd.f32 %v5644, %v5657
    %v5659 = vpop.f32.mrf.mxu0
    %v5660 = vadd.f32 %v5646, %v5659
    %5661 = vdwg.mxu0
    %5662 = vmatpush.bf16.msra.mxu0 %v4215
    %5663 = vmatpush.bf16.msra.mxu0 %v4211
    %5664 = vmatpush.bf16.msra.mxu0 %v4207
    %5665 = vmatpush.bf16.msra.mxu0 %v4203
    %5666 = vmatpush.bf16.msra.mxu0 %v4199
    %5667 = vmatpush.bf16.msra.mxu0 %v4195
    %5668 = vmatpush.bf16.msra.mxu0 %v4191
    %5669 = vmatpush.bf16.msra.mxu0 %v4187
    %5670 = vmatmul.bf16.gmra.mxu0 %v1152
    %v5671 = vpop.f32.mrf.mxu0
    %v5672 = vadd.f32 %v5658, %v5671
    %v5673 = vpop.f32.mrf.mxu0
    %v5674 = vadd.f32 %v5660, %v5673
    %5675 = vdwg.mxu0
    %5676 = vmatpush.bf16.msra.mxu0 %v4247
    %5677 = vmatpush.bf16.msra.mxu0 %v4243
    %5678 = vmatpush.bf16.msra.mxu0 %v4239
    %5679 = vmatpush.bf16.msra.mxu0 %v4235
    %5680 = vmatpush.bf16.msra.mxu0 %v4231
    %5681 = vmatpush.bf16.msra.mxu0 %v4227
    %5682 = vmatpush.bf16.msra.mxu0 %v4223
    %5683 = vmatpush.bf16.msra.mxu0 %v4219
    %5684 = vmatmul.bf16.gmra.mxu0 %v1153
    %v5685 = vpop.f32.mrf.mxu0
    %v5686 = vadd.f32 %v5672, %v5685
    %v5687 = vpop.f32.mrf.mxu0
    %v5688 = vadd.f32 %v5674, %v5687
    %5689 = vdwg.mxu0
    %5690 = vmatpush.bf16.msra.mxu0 %v3512
    %5691 = vmatpush.bf16.msra.mxu0 %v3508
    %5692 = vmatpush.bf16.msra.mxu0 %v3504
    %5693 = vmatpush.bf16.msra.mxu0 %v3500
    %5694 = vmatpush.bf16.msra.mxu0 %v3496
    %5695 = vmatpush.bf16.msra.mxu0 %v3492
    %5696 = vmatpush.bf16.msra.mxu0 %v3488
    %5697 = vmatpush.bf16.msra.mxu0 %v3484
    %5698 = vmatmul.bf16.gmra.mxu0 %v1130
    %v5699 = vpop.f32.mrf.mxu0
    %v5700 = vadd.f32 %v1052, %v5699
    %v5701 = vpop.f32.mrf.mxu0
    %v5702 = vadd.f32 %v1052, %v5701
    %5703 = vdwg.mxu0
    %5704 = vmatpush.bf16.msra.mxu0 %v3544
    %5705 = vmatpush.bf16.msra.mxu0 %v3540
    %5706 = vmatpush.bf16.msra.mxu0 %v3536
    %5707 = vmatpush.bf16.msra.mxu0 %v3532
    %5708 = vmatpush.bf16.msra.mxu0 %v3528
    %5709 = vmatpush.bf16.msra.mxu0 %v3524
    %5710 = vmatpush.bf16.msra.mxu0 %v3520
    %5711 = vmatpush.bf16.msra.mxu0 %v3516
    %5712 = vmatmul.bf16.gmra.mxu0 %v1131
    %v5713 = vpop.f32.mrf.mxu0
    %v5714 = vadd.f32 %v5700, %v5713
    %v5715 = vpop.f32.mrf.mxu0
    %v5716 = vadd.f32 %v5702, %v5715
    %5717 = vdwg.mxu0
    %5718 = vmatpush.bf16.msra.mxu0 %v3576
    %5719 = vmatpush.bf16.msra.mxu0 %v3572
    %5720 = vmatpush.bf16.msra.mxu0 %v3568
    %5721 = vmatpush.bf16.msra.mxu0 %v3564
    %5722 = vmatpush.bf16.msra.mxu0 %v3560
    %5723 = vmatpush.bf16.msra.mxu0 %v3556
    %5724 = vmatpush.bf16.msra.mxu0 %v3552
    %5725 = vmatpush.bf16.msra.mxu0 %v3548
    %5726 = vmatmul.bf16.gmra.mxu0 %v1132
    %v5727 = vpop.f32.mrf.mxu0
    %v5728 = vadd.f32 %v5714, %v5727
    %v5729 = vpop.f32.mrf.mxu0
    %v5730 = vadd.f32 %v5716, %v5729
    %5731 = vdwg.mxu0
    %5732 = vmatpush.bf16.msra.mxu0 %v3608
    %5733 = vmatpush.bf16.msra.mxu0 %v3604
    %5734 = vmatpush.bf16.msra.mxu0 %v3600
    %5735 = vmatpush.bf16.msra.mxu0 %v3596
    %5736 = vmatpush.bf16.msra.mxu0 %v3592
    %5737 = vmatpush.bf16.msra.mxu0 %v3588
    %5738 = vmatpush.bf16.msra.mxu0 %v3584
    %5739 = vmatpush.bf16.msra.mxu0 %v3580
    %5740 = vmatmul.bf16.gmra.mxu0 %v1133
    %v5741 = vpop.f32.mrf.mxu0
    %v5742 = vadd.f32 %v5728, %v5741
    %v5743 = vpop.f32.mrf.mxu0
    %v5744 = vadd.f32 %v5730, %v5743
    %5745 = vdwg.mxu0
    %5746 = vmatpush.bf16.msra.mxu0 %v3640
    %5747 = vmatpush.bf16.msra.mxu0 %v3636
    %5748 = vmatpush.bf16.msra.mxu0 %v3632
    %5749 = vmatpush.bf16.msra.mxu0 %v3628
    %5750 = vmatpush.bf16.msra.mxu0 %v3624
    %5751 = vmatpush.bf16.msra.mxu0 %v3620
    %5752 = vmatpush.bf16.msra.mxu0 %v3616
    %5753 = vmatpush.bf16.msra.mxu0 %v3612
    %5754 = vmatmul.bf16.gmra.mxu0 %v1134
    %v5755 = vpop.f32.mrf.mxu0
    %v5756 = vadd.f32 %v5742, %v5755
    %v5757 = vpop.f32.mrf.mxu0
    %v5758 = vadd.f32 %v5744, %v5757
    %5759 = vdwg.mxu0
    %5760 = vmatpush.bf16.msra.mxu0 %v3672
    %5761 = vmatpush.bf16.msra.mxu0 %v3668
    %5762 = vmatpush.bf16.msra.mxu0 %v3664
    %5763 = vmatpush.bf16.msra.mxu0 %v3660
    %5764 = vmatpush.bf16.msra.mxu0 %v3656
    %5765 = vmatpush.bf16.msra.mxu0 %v3652
    %5766 = vmatpush.bf16.msra.mxu0 %v3648
    %5767 = vmatpush.bf16.msra.mxu0 %v3644
    %5768 = vmatmul.bf16.gmra.mxu0 %v1135
    %v5769 = vpop.f32.mrf.mxu0
    %v5770 = vadd.f32 %v5756, %v5769
    %v5771 = vpop.f32.mrf.mxu0
    %v5772 = vadd.f32 %v5758, %v5771
    %5773 = vdwg.mxu0
    %5774 = vmatpush.bf16.msra.mxu0 %v3704
    %5775 = vmatpush.bf16.msra.mxu0 %v3700
    %5776 = vmatpush.bf16.msra.mxu0 %v3696
    %5777 = vmatpush.bf16.msra.mxu0 %v3692
    %5778 = vmatpush.bf16.msra.mxu0 %v3688
    %5779 = vmatpush.bf16.msra.mxu0 %v3684
    %5780 = vmatpush.bf16.msra.mxu0 %v3680
    %5781 = vmatpush.bf16.msra.mxu0 %v3676
    %5782 = vmatmul.bf16.gmra.mxu0 %v1136
    %v5783 = vpop.f32.mrf.mxu0
    %v5784 = vadd.f32 %v5770, %v5783
    %v5785 = vpop.f32.mrf.mxu0
    %v5786 = vadd.f32 %v5772, %v5785
    %5787 = vdwg.mxu0
    %5788 = vmatpush.bf16.msra.mxu0 %v3736
    %5789 = vmatpush.bf16.msra.mxu0 %v3732
    %5790 = vmatpush.bf16.msra.mxu0 %v3728
    %5791 = vmatpush.bf16.msra.mxu0 %v3724
    %5792 = vmatpush.bf16.msra.mxu0 %v3720
    %5793 = vmatpush.bf16.msra.mxu0 %v3716
    %5794 = vmatpush.bf16.msra.mxu0 %v3712
    %5795 = vmatpush.bf16.msra.mxu0 %v3708
    %5796 = vmatmul.bf16.gmra.mxu0 %v1137
    %v5797 = vpop.f32.mrf.mxu0
    %v5798 = vadd.f32 %v5784, %v5797
    %v5799 = vpop.f32.mrf.mxu0
    %v5800 = vadd.f32 %v5786, %v5799
    %5801 = vdwg.mxu0
    %5802 = vmatpush.bf16.msra.mxu0 %v3768
    %5803 = vmatpush.bf16.msra.mxu0 %v3764
    %5804 = vmatpush.bf16.msra.mxu0 %v3760
    %5805 = vmatpush.bf16.msra.mxu0 %v3756
    %5806 = vmatpush.bf16.msra.mxu0 %v3752
    %5807 = vmatpush.bf16.msra.mxu0 %v3748
    %5808 = vmatpush.bf16.msra.mxu0 %v3744
    %5809 = vmatpush.bf16.msra.mxu0 %v3740
    %5810 = vmatmul.bf16.gmra.mxu0 %v1138
    %v5811 = vpop.f32.mrf.mxu0
    %v5812 = vadd.f32 %v5798, %v5811
    %v5813 = vpop.f32.mrf.mxu0
    %v5814 = vadd.f32 %v5800, %v5813
    %5815 = vdwg.mxu0
    %5816 = vmatpush.bf16.msra.mxu0 %v3800
    %5817 = vmatpush.bf16.msra.mxu0 %v3796
    %5818 = vmatpush.bf16.msra.mxu0 %v3792
    %5819 = vmatpush.bf16.msra.mxu0 %v3788
    %5820 = vmatpush.bf16.msra.mxu0 %v3784
    %5821 = vmatpush.bf16.msra.mxu0 %v3780
    %5822 = vmatpush.bf16.msra.mxu0 %v3776
    %5823 = vmatpush.bf16.msra.mxu0 %v3772
    %5824 = vmatmul.bf16.gmra.mxu0 %v1139
    %v5825 = vpop.f32.mrf.mxu0
    %v5826 = vadd.f32 %v5812, %v5825
    %v5827 = vpop.f32.mrf.mxu0
    %v5828 = vadd.f32 %v5814, %v5827
    %5829 = vdwg.mxu0
    %5830 = vmatpush.bf16.msra.mxu0 %v3832
    %5831 = vmatpush.bf16.msra.mxu0 %v3828
    %5832 = vmatpush.bf16.msra.mxu0 %v3824
    %5833 = vmatpush.bf16.msra.mxu0 %v3820
    %5834 = vmatpush.bf16.msra.mxu0 %v3816
    %5835 = vmatpush.bf16.msra.mxu0 %v3812
    %5836 = vmatpush.bf16.msra.mxu0 %v3808
    %5837 = vmatpush.bf16.msra.mxu0 %v3804
    %5838 = vmatmul.bf16.gmra.mxu0 %v1140
    %v5839 = vpop.f32.mrf.mxu0
    %v5840 = vadd.f32 %v5826, %v5839
    %v5841 = vpop.f32.mrf.mxu0
    %v5842 = vadd.f32 %v5828, %v5841
    %5843 = vdwg.mxu0
    %5844 = vmatpush.bf16.msra.mxu0 %v3864
    %5845 = vmatpush.bf16.msra.mxu0 %v3860
    %5846 = vmatpush.bf16.msra.mxu0 %v3856
    %5847 = vmatpush.bf16.msra.mxu0 %v3852
    %5848 = vmatpush.bf16.msra.mxu0 %v3848
    %5849 = vmatpush.bf16.msra.mxu0 %v3844
    %5850 = vmatpush.bf16.msra.mxu0 %v3840
    %5851 = vmatpush.bf16.msra.mxu0 %v3836
    %5852 = vmatmul.bf16.gmra.mxu0 %v1141
    %v5853 = vpop.f32.mrf.mxu0
    %v5854 = vadd.f32 %v5840, %v5853
    %v5855 = vpop.f32.mrf.mxu0
    %v5856 = vadd.f32 %v5842, %v5855
    %5857 = vdwg.mxu0
    %5858 = vmatpush.bf16.msra.mxu0 %v3896
    %5859 = vmatpush.bf16.msra.mxu0 %v3892
    %5860 = vmatpush.bf16.msra.mxu0 %v3888
    %5861 = vmatpush.bf16.msra.mxu0 %v3884
    %5862 = vmatpush.bf16.msra.mxu0 %v3880
    %5863 = vmatpush.bf16.msra.mxu0 %v3876
    %5864 = vmatpush.bf16.msra.mxu0 %v3872
    %5865 = vmatpush.bf16.msra.mxu0 %v3868
    %5866 = vmatmul.bf16.gmra.mxu0 %v1142
    %v5867 = vpop.f32.mrf.mxu0
    %v5868 = vadd.f32 %v5854, %v5867
    %v5869 = vpop.f32.mrf.mxu0
    %v5870 = vadd.f32 %v5856, %v5869
    %5871 = vdwg.mxu0
    %5872 = vmatpush.bf16.msra.mxu0 %v3928
    %5873 = vmatpush.bf16.msra.mxu0 %v3924
    %5874 = vmatpush.bf16.msra.mxu0 %v3920
    %5875 = vmatpush.bf16.msra.mxu0 %v3916
    %5876 = vmatpush.bf16.msra.mxu0 %v3912
    %5877 = vmatpush.bf16.msra.mxu0 %v3908
    %5878 = vmatpush.bf16.msra.mxu0 %v3904
    %5879 = vmatpush.bf16.msra.mxu0 %v3900
    %5880 = vmatmul.bf16.gmra.mxu0 %v1143
    %v5881 = vpop.f32.mrf.mxu0
    %v5882 = vadd.f32 %v5868, %v5881
    %v5883 = vpop.f32.mrf.mxu0
    %v5884 = vadd.f32 %v5870, %v5883
    %5885 = vdwg.mxu0
    %5886 = vmatpush.bf16.msra.mxu0 %v3960
    %5887 = vmatpush.bf16.msra.mxu0 %v3956
    %5888 = vmatpush.bf16.msra.mxu0 %v3952
    %5889 = vmatpush.bf16.msra.mxu0 %v3948
    %5890 = vmatpush.bf16.msra.mxu0 %v3944
    %5891 = vmatpush.bf16.msra.mxu0 %v3940
    %5892 = vmatpush.bf16.msra.mxu0 %v3936
    %5893 = vmatpush.bf16.msra.mxu0 %v3932
    %5894 = vmatmul.bf16.gmra.mxu0 %v1144
    %v5895 = vpop.f32.mrf.mxu0
    %v5896 = vadd.f32 %v5882, %v5895
    %v5897 = vpop.f32.mrf.mxu0
    %v5898 = vadd.f32 %v5884, %v5897
    %5899 = vdwg.mxu0
    %5900 = vmatpush.bf16.msra.mxu0 %v3992
    %5901 = vmatpush.bf16.msra.mxu0 %v3988
    %5902 = vmatpush.bf16.msra.mxu0 %v3984
    %5903 = vmatpush.bf16.msra.mxu0 %v3980
    %5904 = vmatpush.bf16.msra.mxu0 %v3976
    %5905 = vmatpush.bf16.msra.mxu0 %v3972
    %5906 = vmatpush.bf16.msra.mxu0 %v3968
    %5907 = vmatpush.bf16.msra.mxu0 %v3964
    %5908 = vmatmul.bf16.gmra.mxu0 %v1145
    %v5909 = vpop.f32.mrf.mxu0
    %v5910 = vadd.f32 %v5896, %v5909
    %v5911 = vpop.f32.mrf.mxu0
    %v5912 = vadd.f32 %v5898, %v5911
    %5913 = vdwg.mxu0
    %5914 = vmatpush.bf16.msra.mxu0 %v4024
    %5915 = vmatpush.bf16.msra.mxu0 %v4020
    %5916 = vmatpush.bf16.msra.mxu0 %v4016
    %5917 = vmatpush.bf16.msra.mxu0 %v4012
    %5918 = vmatpush.bf16.msra.mxu0 %v4008
    %5919 = vmatpush.bf16.msra.mxu0 %v4004
    %5920 = vmatpush.bf16.msra.mxu0 %v4000
    %5921 = vmatpush.bf16.msra.mxu0 %v3996
    %5922 = vmatmul.bf16.gmra.mxu0 %v1146
    %v5923 = vpop.f32.mrf.mxu0
    %v5924 = vadd.f32 %v5910, %v5923
    %v5925 = vpop.f32.mrf.mxu0
    %v5926 = vadd.f32 %v5912, %v5925
    %5927 = vdwg.mxu0
    %5928 = vmatpush.bf16.msra.mxu0 %v4056
    %5929 = vmatpush.bf16.msra.mxu0 %v4052
    %5930 = vmatpush.bf16.msra.mxu0 %v4048
    %5931 = vmatpush.bf16.msra.mxu0 %v4044
    %5932 = vmatpush.bf16.msra.mxu0 %v4040
    %5933 = vmatpush.bf16.msra.mxu0 %v4036
    %5934 = vmatpush.bf16.msra.mxu0 %v4032
    %5935 = vmatpush.bf16.msra.mxu0 %v4028
    %5936 = vmatmul.bf16.gmra.mxu0 %v1147
    %v5937 = vpop.f32.mrf.mxu0
    %v5938 = vadd.f32 %v5924, %v5937
    %v5939 = vpop.f32.mrf.mxu0
    %v5940 = vadd.f32 %v5926, %v5939
    %5941 = vdwg.mxu0
    %5942 = vmatpush.bf16.msra.mxu0 %v4088
    %5943 = vmatpush.bf16.msra.mxu0 %v4084
    %5944 = vmatpush.bf16.msra.mxu0 %v4080
    %5945 = vmatpush.bf16.msra.mxu0 %v4076
    %5946 = vmatpush.bf16.msra.mxu0 %v4072
    %5947 = vmatpush.bf16.msra.mxu0 %v4068
    %5948 = vmatpush.bf16.msra.mxu0 %v4064
    %5949 = vmatpush.bf16.msra.mxu0 %v4060
    %5950 = vmatmul.bf16.gmra.mxu0 %v1148
    %v5951 = vpop.f32.mrf.mxu0
    %v5952 = vadd.f32 %v5938, %v5951
    %v5953 = vpop.f32.mrf.mxu0
    %v5954 = vadd.f32 %v5940, %v5953
    %5955 = vdwg.mxu0
    %5956 = vmatpush.bf16.msra.mxu0 %v4120
    %5957 = vmatpush.bf16.msra.mxu0 %v4116
    %5958 = vmatpush.bf16.msra.mxu0 %v4112
    %5959 = vmatpush.bf16.msra.mxu0 %v4108
    %5960 = vmatpush.bf16.msra.mxu0 %v4104
    %5961 = vmatpush.bf16.msra.mxu0 %v4100
    %5962 = vmatpush.bf16.msra.mxu0 %v4096
    %5963 = vmatpush.bf16.msra.mxu0 %v4092
    %5964 = vmatmul.bf16.gmra.mxu0 %v1149
    %v5965 = vpop.f32.mrf.mxu0
    %v5966 = vadd.f32 %v5952, %v5965
    %v5967 = vpop.f32.mrf.mxu0
    %v5968 = vadd.f32 %v5954, %v5967
    %5969 = vdwg.mxu0
    %5970 = vmatpush.bf16.msra.mxu0 %v4152
    %5971 = vmatpush.bf16.msra.mxu0 %v4148
    %5972 = vmatpush.bf16.msra.mxu0 %v4144
    %5973 = vmatpush.bf16.msra.mxu0 %v4140
    %5974 = vmatpush.bf16.msra.mxu0 %v4136
    %5975 = vmatpush.bf16.msra.mxu0 %v4132
    %5976 = vmatpush.bf16.msra.mxu0 %v4128
    %5977 = vmatpush.bf16.msra.mxu0 %v4124
    %5978 = vmatmul.bf16.gmra.mxu0 %v1150
    %v5979 = vpop.f32.mrf.mxu0
    %v5980 = vadd.f32 %v5966, %v5979
    %v5981 = vpop.f32.mrf.mxu0
    %v5982 = vadd.f32 %v5968, %v5981
    %5983 = vdwg.mxu0
    %5984 = vmatpush.bf16.msra.mxu0 %v4184
    %5985 = vmatpush.bf16.msra.mxu0 %v4180
    %5986 = vmatpush.bf16.msra.mxu0 %v4176
    %5987 = vmatpush.bf16.msra.mxu0 %v4172
    %5988 = vmatpush.bf16.msra.mxu0 %v4168
    %5989 = vmatpush.bf16.msra.mxu0 %v4164
    %5990 = vmatpush.bf16.msra.mxu0 %v4160
    %5991 = vmatpush.bf16.msra.mxu0 %v4156
    %5992 = vmatmul.bf16.gmra.mxu0 %v1151
    %v5993 = vpop.f32.mrf.mxu0
    %v5994 = vadd.f32 %v5980, %v5993
    %v5995 = vpop.f32.mrf.mxu0
    %v5996 = vadd.f32 %v5982, %v5995
    %5997 = vdwg.mxu0
    %5998 = vmatpush.bf16.msra.mxu0 %v4216
    %5999 = vmatpush.bf16.msra.mxu0 %v4212
    %6000 = vmatpush.bf16.msra.mxu0 %v4208
    %6001 = vmatpush.bf16.msra.mxu0 %v4204
    %6002 = vmatpush.bf16.msra.mxu0 %v4200
    %6003 = vmatpush.bf16.msra.mxu0 %v4196
    %6004 = vmatpush.bf16.msra.mxu0 %v4192
    %6005 = vmatpush.bf16.msra.mxu0 %v4188
    %6006 = vmatmul.bf16.gmra.mxu0 %v1152
    %v6007 = vpop.f32.mrf.mxu0
    %v6008 = vadd.f32 %v5994, %v6007
    %v6009 = vpop.f32.mrf.mxu0
    %v6010 = vadd.f32 %v5996, %v6009
    %6011 = vdwg.mxu0
    %6012 = vmatpush.bf16.msra.mxu0 %v4248
    %6013 = vmatpush.bf16.msra.mxu0 %v4244
    %6014 = vmatpush.bf16.msra.mxu0 %v4240
    %6015 = vmatpush.bf16.msra.mxu0 %v4236
    %6016 = vmatpush.bf16.msra.mxu0 %v4232
    %6017 = vmatpush.bf16.msra.mxu0 %v4228
    %6018 = vmatpush.bf16.msra.mxu0 %v4224
    %6019 = vmatpush.bf16.msra.mxu0 %v4220
    %6020 = vmatmul.bf16.gmra.mxu0 %v1153
    %v6021 = vpop.f32.mrf.mxu0
    %v6022 = vadd.f32 %v6008, %v6021
    %v6023 = vpop.f32.mrf.mxu0
    %v6024 = vadd.f32 %v6010, %v6023
    %6025 = vdwg.mxu0
    %6026 = vmatpush.bf16.msra.mxu0 %v3513
    %6027 = vmatpush.bf16.msra.mxu0 %v3509
    %6028 = vmatpush.bf16.msra.mxu0 %v3505
    %6029 = vmatpush.bf16.msra.mxu0 %v3501
    %6030 = vmatpush.bf16.msra.mxu0 %v3497
    %6031 = vmatpush.bf16.msra.mxu0 %v3493
    %6032 = vmatpush.bf16.msra.mxu0 %v3489
    %6033 = vmatpush.bf16.msra.mxu0 %v3485
    %6034 = vmatmul.bf16.gmra.mxu0 %v1130
    %v6035 = vpop.f32.mrf.mxu0
    %v6036 = vadd.f32 %v1053, %v6035
    %v6037 = vpop.f32.mrf.mxu0
    %v6038 = vadd.f32 %v1053, %v6037
    %6039 = vdwg.mxu0
    %6040 = vmatpush.bf16.msra.mxu0 %v3545
    %6041 = vmatpush.bf16.msra.mxu0 %v3541
    %6042 = vmatpush.bf16.msra.mxu0 %v3537
    %6043 = vmatpush.bf16.msra.mxu0 %v3533
    %6044 = vmatpush.bf16.msra.mxu0 %v3529
    %6045 = vmatpush.bf16.msra.mxu0 %v3525
    %6046 = vmatpush.bf16.msra.mxu0 %v3521
    %6047 = vmatpush.bf16.msra.mxu0 %v3517
    %6048 = vmatmul.bf16.gmra.mxu0 %v1131
    %v6049 = vpop.f32.mrf.mxu0
    %v6050 = vadd.f32 %v6036, %v6049
    %v6051 = vpop.f32.mrf.mxu0
    %v6052 = vadd.f32 %v6038, %v6051
    %6053 = vdwg.mxu0
    %6054 = vmatpush.bf16.msra.mxu0 %v3577
    %6055 = vmatpush.bf16.msra.mxu0 %v3573
    %6056 = vmatpush.bf16.msra.mxu0 %v3569
    %6057 = vmatpush.bf16.msra.mxu0 %v3565
    %6058 = vmatpush.bf16.msra.mxu0 %v3561
    %6059 = vmatpush.bf16.msra.mxu0 %v3557
    %6060 = vmatpush.bf16.msra.mxu0 %v3553
    %6061 = vmatpush.bf16.msra.mxu0 %v3549
    %6062 = vmatmul.bf16.gmra.mxu0 %v1132
    %v6063 = vpop.f32.mrf.mxu0
    %v6064 = vadd.f32 %v6050, %v6063
    %v6065 = vpop.f32.mrf.mxu0
    %v6066 = vadd.f32 %v6052, %v6065
    %6067 = vdwg.mxu0
    %6068 = vmatpush.bf16.msra.mxu0 %v3609
    %6069 = vmatpush.bf16.msra.mxu0 %v3605
    %6070 = vmatpush.bf16.msra.mxu0 %v3601
    %6071 = vmatpush.bf16.msra.mxu0 %v3597
    %6072 = vmatpush.bf16.msra.mxu0 %v3593
    %6073 = vmatpush.bf16.msra.mxu0 %v3589
    %6074 = vmatpush.bf16.msra.mxu0 %v3585
    %6075 = vmatpush.bf16.msra.mxu0 %v3581
    %6076 = vmatmul.bf16.gmra.mxu0 %v1133
    %v6077 = vpop.f32.mrf.mxu0
    %v6078 = vadd.f32 %v6064, %v6077
    %v6079 = vpop.f32.mrf.mxu0
    %v6080 = vadd.f32 %v6066, %v6079
    %6081 = vdwg.mxu0
    %6082 = vmatpush.bf16.msra.mxu0 %v3641
    %6083 = vmatpush.bf16.msra.mxu0 %v3637
    %6084 = vmatpush.bf16.msra.mxu0 %v3633
    %6085 = vmatpush.bf16.msra.mxu0 %v3629
    %6086 = vmatpush.bf16.msra.mxu0 %v3625
    %6087 = vmatpush.bf16.msra.mxu0 %v3621
    %6088 = vmatpush.bf16.msra.mxu0 %v3617
    %6089 = vmatpush.bf16.msra.mxu0 %v3613
    %6090 = vmatmul.bf16.gmra.mxu0 %v1134
    %v6091 = vpop.f32.mrf.mxu0
    %v6092 = vadd.f32 %v6078, %v6091
    %v6093 = vpop.f32.mrf.mxu0
    %v6094 = vadd.f32 %v6080, %v6093
    %6095 = vdwg.mxu0
    %6096 = vmatpush.bf16.msra.mxu0 %v3673
    %6097 = vmatpush.bf16.msra.mxu0 %v3669
    %6098 = vmatpush.bf16.msra.mxu0 %v3665
    %6099 = vmatpush.bf16.msra.mxu0 %v3661
    %6100 = vmatpush.bf16.msra.mxu0 %v3657
    %6101 = vmatpush.bf16.msra.mxu0 %v3653
    %6102 = vmatpush.bf16.msra.mxu0 %v3649
    %6103 = vmatpush.bf16.msra.mxu0 %v3645
    %6104 = vmatmul.bf16.gmra.mxu0 %v1135
    %v6105 = vpop.f32.mrf.mxu0
    %v6106 = vadd.f32 %v6092, %v6105
    %v6107 = vpop.f32.mrf.mxu0
    %v6108 = vadd.f32 %v6094, %v6107
    %6109 = vdwg.mxu0
    %6110 = vmatpush.bf16.msra.mxu0 %v3705
    %6111 = vmatpush.bf16.msra.mxu0 %v3701
    %6112 = vmatpush.bf16.msra.mxu0 %v3697
    %6113 = vmatpush.bf16.msra.mxu0 %v3693
    %6114 = vmatpush.bf16.msra.mxu0 %v3689
    %6115 = vmatpush.bf16.msra.mxu0 %v3685
    %6116 = vmatpush.bf16.msra.mxu0 %v3681
    %6117 = vmatpush.bf16.msra.mxu0 %v3677
    %6118 = vmatmul.bf16.gmra.mxu0 %v1136
    %v6119 = vpop.f32.mrf.mxu0
    %v6120 = vadd.f32 %v6106, %v6119
    %v6121 = vpop.f32.mrf.mxu0
    %v6122 = vadd.f32 %v6108, %v6121
    %6123 = vdwg.mxu0
    %6124 = vmatpush.bf16.msra.mxu0 %v3737
    %6125 = vmatpush.bf16.msra.mxu0 %v3733
    %6126 = vmatpush.bf16.msra.mxu0 %v3729
    %6127 = vmatpush.bf16.msra.mxu0 %v3725
    %6128 = vmatpush.bf16.msra.mxu0 %v3721
    %6129 = vmatpush.bf16.msra.mxu0 %v3717
    %6130 = vmatpush.bf16.msra.mxu0 %v3713
    %6131 = vmatpush.bf16.msra.mxu0 %v3709
    %6132 = vmatmul.bf16.gmra.mxu0 %v1137
    %v6133 = vpop.f32.mrf.mxu0
    %v6134 = vadd.f32 %v6120, %v6133
    %v6135 = vpop.f32.mrf.mxu0
    %v6136 = vadd.f32 %v6122, %v6135
    %6137 = vdwg.mxu0
    %6138 = vmatpush.bf16.msra.mxu0 %v3769
    %6139 = vmatpush.bf16.msra.mxu0 %v3765
    %6140 = vmatpush.bf16.msra.mxu0 %v3761
    %6141 = vmatpush.bf16.msra.mxu0 %v3757
    %6142 = vmatpush.bf16.msra.mxu0 %v3753
    %6143 = vmatpush.bf16.msra.mxu0 %v3749
    %6144 = vmatpush.bf16.msra.mxu0 %v3745
    %6145 = vmatpush.bf16.msra.mxu0 %v3741
    %6146 = vmatmul.bf16.gmra.mxu0 %v1138
    %v6147 = vpop.f32.mrf.mxu0
    %v6148 = vadd.f32 %v6134, %v6147
    %v6149 = vpop.f32.mrf.mxu0
    %v6150 = vadd.f32 %v6136, %v6149
    %6151 = vdwg.mxu0
    %6152 = vmatpush.bf16.msra.mxu0 %v3801
    %6153 = vmatpush.bf16.msra.mxu0 %v3797
    %6154 = vmatpush.bf16.msra.mxu0 %v3793
    %6155 = vmatpush.bf16.msra.mxu0 %v3789
    %6156 = vmatpush.bf16.msra.mxu0 %v3785
    %6157 = vmatpush.bf16.msra.mxu0 %v3781
    %6158 = vmatpush.bf16.msra.mxu0 %v3777
    %6159 = vmatpush.bf16.msra.mxu0 %v3773
    %6160 = vmatmul.bf16.gmra.mxu0 %v1139
    %v6161 = vpop.f32.mrf.mxu0
    %v6162 = vadd.f32 %v6148, %v6161
    %v6163 = vpop.f32.mrf.mxu0
    %v6164 = vadd.f32 %v6150, %v6163
    %6165 = vdwg.mxu0
    %6166 = vmatpush.bf16.msra.mxu0 %v3833
    %6167 = vmatpush.bf16.msra.mxu0 %v3829
    %6168 = vmatpush.bf16.msra.mxu0 %v3825
    %6169 = vmatpush.bf16.msra.mxu0 %v3821
    %6170 = vmatpush.bf16.msra.mxu0 %v3817
    %6171 = vmatpush.bf16.msra.mxu0 %v3813
    %6172 = vmatpush.bf16.msra.mxu0 %v3809
    %6173 = vmatpush.bf16.msra.mxu0 %v3805
    %6174 = vmatmul.bf16.gmra.mxu0 %v1140
    %v6175 = vpop.f32.mrf.mxu0
    %v6176 = vadd.f32 %v6162, %v6175
    %v6177 = vpop.f32.mrf.mxu0
    %v6178 = vadd.f32 %v6164, %v6177
    %6179 = vdwg.mxu0
    %6180 = vmatpush.bf16.msra.mxu0 %v3865
    %6181 = vmatpush.bf16.msra.mxu0 %v3861
    %6182 = vmatpush.bf16.msra.mxu0 %v3857
    %6183 = vmatpush.bf16.msra.mxu0 %v3853
    %6184 = vmatpush.bf16.msra.mxu0 %v3849
    %6185 = vmatpush.bf16.msra.mxu0 %v3845
    %6186 = vmatpush.bf16.msra.mxu0 %v3841
    %6187 = vmatpush.bf16.msra.mxu0 %v3837
    %6188 = vmatmul.bf16.gmra.mxu0 %v1141
    %v6189 = vpop.f32.mrf.mxu0
    %v6190 = vadd.f32 %v6176, %v6189
    %v6191 = vpop.f32.mrf.mxu0
    %v6192 = vadd.f32 %v6178, %v6191
    %6193 = vdwg.mxu0
    %6194 = vmatpush.bf16.msra.mxu0 %v3897
    %6195 = vmatpush.bf16.msra.mxu0 %v3893
    %6196 = vmatpush.bf16.msra.mxu0 %v3889
    %6197 = vmatpush.bf16.msra.mxu0 %v3885
    %6198 = vmatpush.bf16.msra.mxu0 %v3881
    %6199 = vmatpush.bf16.msra.mxu0 %v3877
    %6200 = vmatpush.bf16.msra.mxu0 %v3873
    %6201 = vmatpush.bf16.msra.mxu0 %v3869
    %6202 = vmatmul.bf16.gmra.mxu0 %v1142
    %v6203 = vpop.f32.mrf.mxu0
    %v6204 = vadd.f32 %v6190, %v6203
    %v6205 = vpop.f32.mrf.mxu0
    %v6206 = vadd.f32 %v6192, %v6205
    %6207 = vdwg.mxu0
    %6208 = vmatpush.bf16.msra.mxu0 %v3929
    %6209 = vmatpush.bf16.msra.mxu0 %v3925
    %6210 = vmatpush.bf16.msra.mxu0 %v3921
    %6211 = vmatpush.bf16.msra.mxu0 %v3917
    %6212 = vmatpush.bf16.msra.mxu0 %v3913
    %6213 = vmatpush.bf16.msra.mxu0 %v3909
    %6214 = vmatpush.bf16.msra.mxu0 %v3905
    %6215 = vmatpush.bf16.msra.mxu0 %v3901
    %6216 = vmatmul.bf16.gmra.mxu0 %v1143
    %v6217 = vpop.f32.mrf.mxu0
    %v6218 = vadd.f32 %v6204, %v6217
    %v6219 = vpop.f32.mrf.mxu0
    %v6220 = vadd.f32 %v6206, %v6219
    %6221 = vdwg.mxu0
    %6222 = vmatpush.bf16.msra.mxu0 %v3961
    %6223 = vmatpush.bf16.msra.mxu0 %v3957
    %6224 = vmatpush.bf16.msra.mxu0 %v3953
    %6225 = vmatpush.bf16.msra.mxu0 %v3949
    %6226 = vmatpush.bf16.msra.mxu0 %v3945
    %6227 = vmatpush.bf16.msra.mxu0 %v3941
    %6228 = vmatpush.bf16.msra.mxu0 %v3937
    %6229 = vmatpush.bf16.msra.mxu0 %v3933
    %6230 = vmatmul.bf16.gmra.mxu0 %v1144
    %v6231 = vpop.f32.mrf.mxu0
    %v6232 = vadd.f32 %v6218, %v6231
    %v6233 = vpop.f32.mrf.mxu0
    %v6234 = vadd.f32 %v6220, %v6233
    %6235 = vdwg.mxu0
    %6236 = vmatpush.bf16.msra.mxu0 %v3993
    %6237 = vmatpush.bf16.msra.mxu0 %v3989
    %6238 = vmatpush.bf16.msra.mxu0 %v3985
    %6239 = vmatpush.bf16.msra.mxu0 %v3981
    %6240 = vmatpush.bf16.msra.mxu0 %v3977
    %6241 = vmatpush.bf16.msra.mxu0 %v3973
    %6242 = vmatpush.bf16.msra.mxu0 %v3969
    %6243 = vmatpush.bf16.msra.mxu0 %v3965
    %6244 = vmatmul.bf16.gmra.mxu0 %v1145
    %v6245 = vpop.f32.mrf.mxu0
    %v6246 = vadd.f32 %v6232, %v6245
    %v6247 = vpop.f32.mrf.mxu0
    %v6248 = vadd.f32 %v6234, %v6247
    %6249 = vdwg.mxu0
    %6250 = vmatpush.bf16.msra.mxu0 %v4025
    %6251 = vmatpush.bf16.msra.mxu0 %v4021
    %6252 = vmatpush.bf16.msra.mxu0 %v4017
    %6253 = vmatpush.bf16.msra.mxu0 %v4013
    %6254 = vmatpush.bf16.msra.mxu0 %v4009
    %6255 = vmatpush.bf16.msra.mxu0 %v4005
    %6256 = vmatpush.bf16.msra.mxu0 %v4001
    %6257 = vmatpush.bf16.msra.mxu0 %v3997
    %6258 = vmatmul.bf16.gmra.mxu0 %v1146
    %v6259 = vpop.f32.mrf.mxu0
    %v6260 = vadd.f32 %v6246, %v6259
    %v6261 = vpop.f32.mrf.mxu0
    %v6262 = vadd.f32 %v6248, %v6261
    %6263 = vdwg.mxu0
    %6264 = vmatpush.bf16.msra.mxu0 %v4057
    %6265 = vmatpush.bf16.msra.mxu0 %v4053
    %6266 = vmatpush.bf16.msra.mxu0 %v4049
    %6267 = vmatpush.bf16.msra.mxu0 %v4045
    %6268 = vmatpush.bf16.msra.mxu0 %v4041
    %6269 = vmatpush.bf16.msra.mxu0 %v4037
    %6270 = vmatpush.bf16.msra.mxu0 %v4033
    %6271 = vmatpush.bf16.msra.mxu0 %v4029
    %6272 = vmatmul.bf16.gmra.mxu0 %v1147
    %v6273 = vpop.f32.mrf.mxu0
    %v6274 = vadd.f32 %v6260, %v6273
    %v6275 = vpop.f32.mrf.mxu0
    %v6276 = vadd.f32 %v6262, %v6275
    %6277 = vdwg.mxu0
    %6278 = vmatpush.bf16.msra.mxu0 %v4089
    %6279 = vmatpush.bf16.msra.mxu0 %v4085
    %6280 = vmatpush.bf16.msra.mxu0 %v4081
    %6281 = vmatpush.bf16.msra.mxu0 %v4077
    %6282 = vmatpush.bf16.msra.mxu0 %v4073
    %6283 = vmatpush.bf16.msra.mxu0 %v4069
    %6284 = vmatpush.bf16.msra.mxu0 %v4065
    %6285 = vmatpush.bf16.msra.mxu0 %v4061
    %6286 = vmatmul.bf16.gmra.mxu0 %v1148
    %v6287 = vpop.f32.mrf.mxu0
    %v6288 = vadd.f32 %v6274, %v6287
    %v6289 = vpop.f32.mrf.mxu0
    %v6290 = vadd.f32 %v6276, %v6289
    %6291 = vdwg.mxu0
    %6292 = vmatpush.bf16.msra.mxu0 %v4121
    %6293 = vmatpush.bf16.msra.mxu0 %v4117
    %6294 = vmatpush.bf16.msra.mxu0 %v4113
    %6295 = vmatpush.bf16.msra.mxu0 %v4109
    %6296 = vmatpush.bf16.msra.mxu0 %v4105
    %6297 = vmatpush.bf16.msra.mxu0 %v4101
    %6298 = vmatpush.bf16.msra.mxu0 %v4097
    %6299 = vmatpush.bf16.msra.mxu0 %v4093
    %6300 = vmatmul.bf16.gmra.mxu0 %v1149
    %v6301 = vpop.f32.mrf.mxu0
    %v6302 = vadd.f32 %v6288, %v6301
    %v6303 = vpop.f32.mrf.mxu0
    %v6304 = vadd.f32 %v6290, %v6303
    %6305 = vdwg.mxu0
    %6306 = vmatpush.bf16.msra.mxu0 %v4153
    %6307 = vmatpush.bf16.msra.mxu0 %v4149
    %6308 = vmatpush.bf16.msra.mxu0 %v4145
    %6309 = vmatpush.bf16.msra.mxu0 %v4141
    %6310 = vmatpush.bf16.msra.mxu0 %v4137
    %6311 = vmatpush.bf16.msra.mxu0 %v4133
    %6312 = vmatpush.bf16.msra.mxu0 %v4129
    %6313 = vmatpush.bf16.msra.mxu0 %v4125
    %6314 = vmatmul.bf16.gmra.mxu0 %v1150
    %v6315 = vpop.f32.mrf.mxu0
    %v6316 = vadd.f32 %v6302, %v6315
    %v6317 = vpop.f32.mrf.mxu0
    %v6318 = vadd.f32 %v6304, %v6317
    %6319 = vdwg.mxu0
    %6320 = vmatpush.bf16.msra.mxu0 %v4185
    %6321 = vmatpush.bf16.msra.mxu0 %v4181
    %6322 = vmatpush.bf16.msra.mxu0 %v4177
    %6323 = vmatpush.bf16.msra.mxu0 %v4173
    %6324 = vmatpush.bf16.msra.mxu0 %v4169
    %6325 = vmatpush.bf16.msra.mxu0 %v4165
    %6326 = vmatpush.bf16.msra.mxu0 %v4161
    %6327 = vmatpush.bf16.msra.mxu0 %v4157
    %6328 = vmatmul.bf16.gmra.mxu0 %v1151
    %v6329 = vpop.f32.mrf.mxu0
    %v6330 = vadd.f32 %v6316, %v6329
    %v6331 = vpop.f32.mrf.mxu0
    %v6332 = vadd.f32 %v6318, %v6331
    %6333 = vdwg.mxu0
    %6334 = vmatpush.bf16.msra.mxu0 %v4217
    %6335 = vmatpush.bf16.msra.mxu0 %v4213
    %6336 = vmatpush.bf16.msra.mxu0 %v4209
    %6337 = vmatpush.bf16.msra.mxu0 %v4205
    %6338 = vmatpush.bf16.msra.mxu0 %v4201
    %6339 = vmatpush.bf16.msra.mxu0 %v4197
    %6340 = vmatpush.bf16.msra.mxu0 %v4193
    %6341 = vmatpush.bf16.msra.mxu0 %v4189
    %6342 = vmatmul.bf16.gmra.mxu0 %v1152
    %v6343 = vpop.f32.mrf.mxu0
    %v6344 = vadd.f32 %v6330, %v6343
    %v6345 = vpop.f32.mrf.mxu0
    %v6346 = vadd.f32 %v6332, %v6345
    %6347 = vdwg.mxu0
    %6348 = vmatpush.bf16.msra.mxu0 %v4249
    %6349 = vmatpush.bf16.msra.mxu0 %v4245
    %6350 = vmatpush.bf16.msra.mxu0 %v4241
    %6351 = vmatpush.bf16.msra.mxu0 %v4237
    %6352 = vmatpush.bf16.msra.mxu0 %v4233
    %6353 = vmatpush.bf16.msra.mxu0 %v4229
    %6354 = vmatpush.bf16.msra.mxu0 %v4225
    %6355 = vmatpush.bf16.msra.mxu0 %v4221
    %6356 = vmatmul.bf16.gmra.mxu0 %v1153
    %v6357 = vpop.f32.mrf.mxu0
    %v6358 = vadd.f32 %v6344, %v6357
    %v6359 = vpop.f32.mrf.mxu0
    %v6360 = vadd.f32 %v6346, %v6359
    %6361 = vdwg.mxu0
    %v6362 = vmax.f32 %v5350, 0.0
    %v6363 = vmax.f32 %v5686, 0.0
    %v6364 = vmax.f32 %v6022, 0.0
    %v6365 = vmax.f32 %v6358, 0.0
    %v6366 = vmax.f32 %v5352, 0.0
    %v6367 = vmax.f32 %v5688, 0.0
    %v6368 = vmax.f32 %v6024, 0.0
    %v6369 = vmax.f32 %v6360, 0.0
    %v6370 = vpack.c.bf16 %v6366, %v6362
    %v6371 = vpack.c.bf16 %v6367, %v6363
    %v6372 = vpack.c.bf16 %v6368, %v6364
    %v6373 = vpack.c.bf16 %v6369, %v6365
    %v6374 = vld [vmem:[#allocation10] sm:$0xff]
    %v6375 = vld [vmem:[#allocation10 + $0x8] sm:$0xff]
    %v6376 = vld [vmem:[#allocation10 + $0x10] sm:$0xff]
    %v6377 = vld [vmem:[#allocation10 + $0x18] sm:$0xff]
    %v6378 = vld [vmem:[#allocation10 + $0x20] sm:$0xff]
    %v6379 = vld [vmem:[#allocation10 + $0x28] sm:$0xff]
    %v6380 = vld [vmem:[#allocation10 + $0x30] sm:$0xff]
    %v6381 = vld [vmem:[#allocation10 + $0x38] sm:$0xff]
    %v6382 = vld [vmem:[#allocation10 + $0x40] sm:$0xff]
    %v6383 = vld [vmem:[#allocation10 + $0x48] sm:$0xff]
    %v6384 = vld [vmem:[#allocation10 + $0x50] sm:$0xff]
    %v6385 = vld [vmem:[#allocation10 + $0x58] sm:$0xff]
    %v6386 = vld [vmem:[#allocation10 + $0x60] sm:$0xff]
    %v6387 = vld [vmem:[#allocation10 + $0x68] sm:$0xff]
    %v6388 = vld [vmem:[#allocation10 + $0x70] sm:$0xff]
    %v6389 = vld [vmem:[#allocation10 + $0x78] sm:$0xff]
    %v6390 = vld [vmem:[#allocation10 + $0x80] sm:$0xff]
    %v6391 = vld [vmem:[#allocation10 + $0x88] sm:$0xff]
    %v6392 = vld [vmem:[#allocation10 + $0x90] sm:$0xff]
    %v6393 = vld [vmem:[#allocation10 + $0x98] sm:$0xff]
    %v6394 = vld [vmem:[#allocation10 + $0xa0] sm:$0xff]
    %v6395 = vld [vmem:[#allocation10 + $0xa8] sm:$0xff]
    %v6396 = vld [vmem:[#allocation10 + $0xb0] sm:$0xff]
    %v6397 = vld [vmem:[#allocation10 + $0xb8] sm:$0xff]
    %v6398 = vld [vmem:[#allocation10 + $0xc0] sm:$0xff]
    %v6399 = vld [vmem:[#allocation10 + $0xc8] sm:$0xff]
    %v6400 = vld [vmem:[#allocation10 + $0xd0] sm:$0xff]
    %v6401 = vld [vmem:[#allocation10 + $0xd8] sm:$0xff]
    %v6402 = vld [vmem:[#allocation10 + $0xe0] sm:$0xff]
    %v6403 = vld [vmem:[#allocation10 + $0xe8] sm:$0xff]
    %v6404 = vld [vmem:[#allocation10 + $0xf0] sm:$0xff]
    %v6405 = vld [vmem:[#allocation10 + $0xf8] sm:$0xff]
    %v6406 = vld [vmem:[#allocation10 + $0x100] sm:$0xff]
    %v6407 = vld [vmem:[#allocation10 + $0x108] sm:$0xff]
    %v6408 = vld [vmem:[#allocation10 + $0x110] sm:$0xff]
    %v6409 = vld [vmem:[#allocation10 + $0x118] sm:$0xff]
    %v6410 = vld [vmem:[#allocation10 + $0x120] sm:$0xff]
    %v6411 = vld [vmem:[#allocation10 + $0x128] sm:$0xff]
    %v6412 = vld [vmem:[#allocation10 + $0x130] sm:$0xff]
    %v6413 = vld [vmem:[#allocation10 + $0x138] sm:$0xff]
    %v6414 = vld [vmem:[#allocation10 + $0x140] sm:$0xff]
    %v6415 = vld [vmem:[#allocation10 + $0x148] sm:$0xff]
    %v6416 = vld [vmem:[#allocation10 + $0x150] sm:$0xff]
    %v6417 = vld [vmem:[#allocation10 + $0x158] sm:$0xff]
    %v6418 = vld [vmem:[#allocation10 + $0x160] sm:$0xff]
    %v6419 = vld [vmem:[#allocation10 + $0x168] sm:$0xff]
    %v6420 = vld [vmem:[#allocation10 + $0x170] sm:$0xff]
    %v6421 = vld [vmem:[#allocation10 + $0x178] sm:$0xff]
    %v6422 = vld [vmem:[#allocation10 + $0x180] sm:$0xff]
    %v6423 = vld [vmem:[#allocation10 + $0x188] sm:$0xff]
    %v6424 = vld [vmem:[#allocation10 + $0x190] sm:$0xff]
    %v6425 = vld [vmem:[#allocation10 + $0x198] sm:$0xff]
    %v6426 = vld [vmem:[#allocation10 + $0x1a0] sm:$0xff]
    %v6427 = vld [vmem:[#allocation10 + $0x1a8] sm:$0xff]
    %v6428 = vld [vmem:[#allocation10 + $0x1b0] sm:$0xff]
    %v6429 = vld [vmem:[#allocation10 + $0x1b8] sm:$0xff]
    %v6430 = vld [vmem:[#allocation10 + $0x1c0] sm:$0xff]
    %v6431 = vld [vmem:[#allocation10 + $0x1c8] sm:$0xff]
    %v6432 = vld [vmem:[#allocation10 + $0x1d0] sm:$0xff]
    %v6433 = vld [vmem:[#allocation10 + $0x1d8] sm:$0xff]
    %v6434 = vld [vmem:[#allocation10 + $0x1e0] sm:$0xff]
    %v6435 = vld [vmem:[#allocation10 + $0x1e8] sm:$0xff]
    %v6436 = vld [vmem:[#allocation10 + $0x1f0] sm:$0xff]
    %v6437 = vld [vmem:[#allocation10 + $0x1f8] sm:$0xff]
    %v6438 = vld [vmem:[#allocation10 + $0x200] sm:$0xff]
    %v6439 = vld [vmem:[#allocation10 + $0x208] sm:$0xff]
    %v6440 = vld [vmem:[#allocation10 + $0x210] sm:$0xff]
    %v6441 = vld [vmem:[#allocation10 + $0x218] sm:$0xff]
    %v6442 = vld [vmem:[#allocation10 + $0x220] sm:$0xff]
    %v6443 = vld [vmem:[#allocation10 + $0x228] sm:$0xff]
    %v6444 = vld [vmem:[#allocation10 + $0x230] sm:$0xff]
    %v6445 = vld [vmem:[#allocation10 + $0x238] sm:$0xff]
    %v6446 = vld [vmem:[#allocation10 + $0x240] sm:$0xff]
    %v6447 = vld [vmem:[#allocation10 + $0x248] sm:$0xff]
    %v6448 = vld [vmem:[#allocation10 + $0x250] sm:$0xff]
    %v6449 = vld [vmem:[#allocation10 + $0x258] sm:$0xff]
    %v6450 = vld [vmem:[#allocation10 + $0x260] sm:$0xff]
    %v6451 = vld [vmem:[#allocation10 + $0x268] sm:$0xff]
    %v6452 = vld [vmem:[#allocation10 + $0x270] sm:$0xff]
    %v6453 = vld [vmem:[#allocation10 + $0x278] sm:$0xff]
    %v6454 = vld [vmem:[#allocation10 + $0x280] sm:$0xff]
    %v6455 = vld [vmem:[#allocation10 + $0x288] sm:$0xff]
    %v6456 = vld [vmem:[#allocation10 + $0x290] sm:$0xff]
    %v6457 = vld [vmem:[#allocation10 + $0x298] sm:$0xff]
    %v6458 = vld [vmem:[#allocation10 + $0x2a0] sm:$0xff]
    %v6459 = vld [vmem:[#allocation10 + $0x2a8] sm:$0xff]
    %v6460 = vld [vmem:[#allocation10 + $0x2b0] sm:$0xff]
    %v6461 = vld [vmem:[#allocation10 + $0x2b8] sm:$0xff]
    %v6462 = vld [vmem:[#allocation10 + $0x2c0] sm:$0xff]
    %v6463 = vld [vmem:[#allocation10 + $0x2c8] sm:$0xff]
    %v6464 = vld [vmem:[#allocation10 + $0x2d0] sm:$0xff]
    %v6465 = vld [vmem:[#allocation10 + $0x2d8] sm:$0xff]
    %v6466 = vld [vmem:[#allocation10 + $0x2e0] sm:$0xff]
    %v6467 = vld [vmem:[#allocation10 + $0x2e8] sm:$0xff]
    %v6468 = vld [vmem:[#allocation10 + $0x2f0] sm:$0xff]
    %v6469 = vld [vmem:[#allocation10 + $0x2f8] sm:$0xff]
    %v6470 = vld [vmem:[#allocation10 + $0x300] sm:$0xff]
    %v6471 = vld [vmem:[#allocation10 + $0x308] sm:$0xff]
    %v6472 = vld [vmem:[#allocation10 + $0x310] sm:$0xff]
    %v6473 = vld [vmem:[#allocation10 + $0x318] sm:$0xff]
    %v6474 = vld [vmem:[#allocation10 + $0x320] sm:$0xff]
    %v6475 = vld [vmem:[#allocation10 + $0x328] sm:$0xff]
    %v6476 = vld [vmem:[#allocation10 + $0x330] sm:$0xff]
    %v6477 = vld [vmem:[#allocation10 + $0x338] sm:$0xff]
    %v6478 = vld [vmem:[#allocation10 + $0x340] sm:$0xff]
    %v6479 = vld [vmem:[#allocation10 + $0x348] sm:$0xff]
    %v6480 = vld [vmem:[#allocation10 + $0x350] sm:$0xff]
    %v6481 = vld [vmem:[#allocation10 + $0x358] sm:$0xff]
    %v6482 = vld [vmem:[#allocation10 + $0x360] sm:$0xff]
    %v6483 = vld [vmem:[#allocation10 + $0x368] sm:$0xff]
    %v6484 = vld [vmem:[#allocation10 + $0x370] sm:$0xff]
    %v6485 = vld [vmem:[#allocation10 + $0x378] sm:$0xff]
    %v6486 = vld [vmem:[#allocation10 + $0x380] sm:$0xff]
    %v6487 = vld [vmem:[#allocation10 + $0x388] sm:$0xff]
    %v6488 = vld [vmem:[#allocation10 + $0x390] sm:$0xff]
    %v6489 = vld [vmem:[#allocation10 + $0x398] sm:$0xff]
    %v6490 = vld [vmem:[#allocation10 + $0x3a0] sm:$0xff]
    %v6491 = vld [vmem:[#allocation10 + $0x3a8] sm:$0xff]
    %v6492 = vld [vmem:[#allocation10 + $0x3b0] sm:$0xff]
    %v6493 = vld [vmem:[#allocation10 + $0x3b8] sm:$0xff]
    %v6494 = vld [vmem:[#allocation10 + $0x3c0] sm:$0xff]
    %v6495 = vld [vmem:[#allocation10 + $0x3c8] sm:$0xff]
    %v6496 = vld [vmem:[#allocation10 + $0x3d0] sm:$0xff]
    %v6497 = vld [vmem:[#allocation10 + $0x3d8] sm:$0xff]
    %v6498 = vld [vmem:[#allocation10 + $0x3e0] sm:$0xff]
    %v6499 = vld [vmem:[#allocation10 + $0x3e8] sm:$0xff]
    %v6500 = vld [vmem:[#allocation10 + $0x3f0] sm:$0xff]
    %v6501 = vld [vmem:[#allocation10 + $0x3f8] sm:$0xff]
    %v6502 = vld [vmem:[#allocation11] sm:$0xf]
    %v6504 = vperm.slane %v6502, 0
    %v6505 = vperm.slane %v6502, 1
    %v6506 = vperm.slane %v6502, 2
    %v6507 = vperm.slane %v6502, 3
    %v6640 = vunpack.c.l.b16 %v6374
    %v6641 = vunpack.c.h.b16 %v6374
    %v6642 = vunpack.c.l.b16 %v6375
    %v6643 = vunpack.c.h.b16 %v6375
    %v6644 = vunpack.c.l.b16 %v6376
    %v6645 = vunpack.c.h.b16 %v6376
    %v6646 = vunpack.c.l.b16 %v6377
    %v6647 = vunpack.c.h.b16 %v6377
    %v6648 = vunpack.c.l.b16 %v6378
    %v6649 = vunpack.c.h.b16 %v6378
    %v6650 = vunpack.c.l.b16 %v6379
    %v6651 = vunpack.c.h.b16 %v6379
    %v6652 = vunpack.c.l.b16 %v6380
    %v6653 = vunpack.c.h.b16 %v6380
    %v6654 = vunpack.c.l.b16 %v6381
    %v6655 = vunpack.c.h.b16 %v6381
    %v6656 = vunpack.c.l.b16 %v6382
    %v6657 = vunpack.c.h.b16 %v6382
    %v6658 = vunpack.c.l.b16 %v6383
    %v6659 = vunpack.c.h.b16 %v6383
    %v6660 = vunpack.c.l.b16 %v6384
    %v6661 = vunpack.c.h.b16 %v6384
    %v6662 = vunpack.c.l.b16 %v6385
    %v6663 = vunpack.c.h.b16 %v6385
    %v6664 = vunpack.c.l.b16 %v6386
    %v6665 = vunpack.c.h.b16 %v6386
    %v6666 = vunpack.c.l.b16 %v6387
    %v6667 = vunpack.c.h.b16 %v6387
    %v6668 = vunpack.c.l.b16 %v6388
    %v6669 = vunpack.c.h.b16 %v6388
    %v6670 = vunpack.c.l.b16 %v6389
    %v6671 = vunpack.c.h.b16 %v6389
    %v6672 = vunpack.c.l.b16 %v6390
    %v6673 = vunpack.c.h.b16 %v6390
    %v6674 = vunpack.c.l.b16 %v6391
    %v6675 = vunpack.c.h.b16 %v6391
    %v6676 = vunpack.c.l.b16 %v6392
    %v6677 = vunpack.c.h.b16 %v6392
    %v6678 = vunpack.c.l.b16 %v6393
    %v6679 = vunpack.c.h.b16 %v6393
    %v6680 = vunpack.c.l.b16 %v6394
    %v6681 = vunpack.c.h.b16 %v6394
    %v6682 = vunpack.c.l.b16 %v6395
    %v6683 = vunpack.c.h.b16 %v6395
    %v6684 = vunpack.c.l.b16 %v6396
    %v6685 = vunpack.c.h.b16 %v6396
    %v6686 = vunpack.c.l.b16 %v6397
    %v6687 = vunpack.c.h.b16 %v6397
    %v6688 = vunpack.c.l.b16 %v6398
    %v6689 = vunpack.c.h.b16 %v6398
    %v6690 = vunpack.c.l.b16 %v6399
    %v6691 = vunpack.c.h.b16 %v6399
    %v6692 = vunpack.c.l.b16 %v6400
    %v6693 = vunpack.c.h.b16 %v6400
    %v6694 = vunpack.c.l.b16 %v6401
    %v6695 = vunpack.c.h.b16 %v6401
    %v6696 = vunpack.c.l.b16 %v6402
    %v6697 = vunpack.c.h.b16 %v6402
    %v6698 = vunpack.c.l.b16 %v6403
    %v6699 = vunpack.c.h.b16 %v6403
    %v6700 = vunpack.c.l.b16 %v6404
    %v6701 = vunpack.c.h.b16 %v6404
    %v6702 = vunpack.c.l.b16 %v6405
    %v6703 = vunpack.c.h.b16 %v6405
    %v6704 = vunpack.c.l.b16 %v6406
    %v6705 = vunpack.c.h.b16 %v6406
    %v6706 = vunpack.c.l.b16 %v6407
    %v6707 = vunpack.c.h.b16 %v6407
    %v6708 = vunpack.c.l.b16 %v6408
    %v6709 = vunpack.c.h.b16 %v6408
    %v6710 = vunpack.c.l.b16 %v6409
    %v6711 = vunpack.c.h.b16 %v6409
    %v6712 = vunpack.c.l.b16 %v6410
    %v6713 = vunpack.c.h.b16 %v6410
    %v6714 = vunpack.c.l.b16 %v6411
    %v6715 = vunpack.c.h.b16 %v6411
    %v6716 = vunpack.c.l.b16 %v6412
    %v6717 = vunpack.c.h.b16 %v6412
    %v6718 = vunpack.c.l.b16 %v6413
    %v6719 = vunpack.c.h.b16 %v6413
    %v6720 = vunpack.c.l.b16 %v6414
    %v6721 = vunpack.c.h.b16 %v6414
    %v6722 = vunpack.c.l.b16 %v6415
    %v6723 = vunpack.c.h.b16 %v6415
    %v6724 = vunpack.c.l.b16 %v6416
    %v6725 = vunpack.c.h.b16 %v6416
    %v6726 = vunpack.c.l.b16 %v6417
    %v6727 = vunpack.c.h.b16 %v6417
    %v6728 = vunpack.c.l.b16 %v6418
    %v6729 = vunpack.c.h.b16 %v6418
    %v6730 = vunpack.c.l.b16 %v6419
    %v6731 = vunpack.c.h.b16 %v6419
    %v6732 = vunpack.c.l.b16 %v6420
    %v6733 = vunpack.c.h.b16 %v6420
    %v6734 = vunpack.c.l.b16 %v6421
    %v6735 = vunpack.c.h.b16 %v6421
    %v6736 = vunpack.c.l.b16 %v6422
    %v6737 = vunpack.c.h.b16 %v6422
    %v6738 = vunpack.c.l.b16 %v6423
    %v6739 = vunpack.c.h.b16 %v6423
    %v6740 = vunpack.c.l.b16 %v6424
    %v6741 = vunpack.c.h.b16 %v6424
    %v6742 = vunpack.c.l.b16 %v6425
    %v6743 = vunpack.c.h.b16 %v6425
    %v6744 = vunpack.c.l.b16 %v6426
    %v6745 = vunpack.c.h.b16 %v6426
    %v6746 = vunpack.c.l.b16 %v6427
    %v6747 = vunpack.c.h.b16 %v6427
    %v6748 = vunpack.c.l.b16 %v6428
    %v6749 = vunpack.c.h.b16 %v6428
    %v6750 = vunpack.c.l.b16 %v6429
    %v6751 = vunpack.c.h.b16 %v6429
    %v6752 = vunpack.c.l.b16 %v6430
    %v6753 = vunpack.c.h.b16 %v6430
    %v6754 = vunpack.c.l.b16 %v6431
    %v6755 = vunpack.c.h.b16 %v6431
    %v6756 = vunpack.c.l.b16 %v6432
    %v6757 = vunpack.c.h.b16 %v6432
    %v6758 = vunpack.c.l.b16 %v6433
    %v6759 = vunpack.c.h.b16 %v6433
    %v6760 = vunpack.c.l.b16 %v6434
    %v6761 = vunpack.c.h.b16 %v6434
    %v6762 = vunpack.c.l.b16 %v6435
    %v6763 = vunpack.c.h.b16 %v6435
    %v6764 = vunpack.c.l.b16 %v6436
    %v6765 = vunpack.c.h.b16 %v6436
    %v6766 = vunpack.c.l.b16 %v6437
    %v6767 = vunpack.c.h.b16 %v6437
    %v6768 = vunpack.c.l.b16 %v6438
    %v6769 = vunpack.c.h.b16 %v6438
    %v6770 = vunpack.c.l.b16 %v6439
    %v6771 = vunpack.c.h.b16 %v6439
    %v6772 = vunpack.c.l.b16 %v6440
    %v6773 = vunpack.c.h.b16 %v6440
    %v6774 = vunpack.c.l.b16 %v6441
    %v6775 = vunpack.c.h.b16 %v6441
    %v6776 = vunpack.c.l.b16 %v6442
    %v6777 = vunpack.c.h.b16 %v6442
    %v6778 = vunpack.c.l.b16 %v6443
    %v6779 = vunpack.c.h.b16 %v6443
    %v6780 = vunpack.c.l.b16 %v6444
    %v6781 = vunpack.c.h.b16 %v6444
    %v6782 = vunpack.c.l.b16 %v6445
    %v6783 = vunpack.c.h.b16 %v6445
    %v6784 = vunpack.c.l.b16 %v6446
    %v6785 = vunpack.c.h.b16 %v6446
    %v6786 = vunpack.c.l.b16 %v6447
    %v6787 = vunpack.c.h.b16 %v6447
    %v6788 = vunpack.c.l.b16 %v6448
    %v6789 = vunpack.c.h.b16 %v6448
    %v6790 = vunpack.c.l.b16 %v6449
    %v6791 = vunpack.c.h.b16 %v6449
    %v6792 = vunpack.c.l.b16 %v6450
    %v6793 = vunpack.c.h.b16 %v6450
    %v6794 = vunpack.c.l.b16 %v6451
    %v6795 = vunpack.c.h.b16 %v6451
    %v6796 = vunpack.c.l.b16 %v6452
    %v6797 = vunpack.c.h.b16 %v6452
    %v6798 = vunpack.c.l.b16 %v6453
    %v6799 = vunpack.c.h.b16 %v6453
    %v6800 = vunpack.c.l.b16 %v6454
    %v6801 = vunpack.c.h.b16 %v6454
    %v6802 = vunpack.c.l.b16 %v6455
    %v6803 = vunpack.c.h.b16 %v6455
    %v6804 = vunpack.c.l.b16 %v6456
    %v6805 = vunpack.c.h.b16 %v6456
    %v6806 = vunpack.c.l.b16 %v6457
    %v6807 = vunpack.c.h.b16 %v6457
    %v6808 = vunpack.c.l.b16 %v6458
    %v6809 = vunpack.c.h.b16 %v6458
    %v6810 = vunpack.c.l.b16 %v6459
    %v6811 = vunpack.c.h.b16 %v6459
    %v6812 = vunpack.c.l.b16 %v6460
    %v6813 = vunpack.c.h.b16 %v6460
    %v6814 = vunpack.c.l.b16 %v6461
    %v6815 = vunpack.c.h.b16 %v6461
    %v6816 = vunpack.c.l.b16 %v6462
    %v6817 = vunpack.c.h.b16 %v6462
    %v6818 = vunpack.c.l.b16 %v6463
    %v6819 = vunpack.c.h.b16 %v6463
    %v6820 = vunpack.c.l.b16 %v6464
    %v6821 = vunpack.c.h.b16 %v6464
    %v6822 = vunpack.c.l.b16 %v6465
    %v6823 = vunpack.c.h.b16 %v6465
    %v6824 = vunpack.c.l.b16 %v6466
    %v6825 = vunpack.c.h.b16 %v6466
    %v6826 = vunpack.c.l.b16 %v6467
    %v6827 = vunpack.c.h.b16 %v6467
    %v6828 = vunpack.c.l.b16 %v6468
    %v6829 = vunpack.c.h.b16 %v6468
    %v6830 = vunpack.c.l.b16 %v6469
    %v6831 = vunpack.c.h.b16 %v6469
    %v6832 = vunpack.c.l.b16 %v6470
    %v6833 = vunpack.c.h.b16 %v6470
    %v6834 = vunpack.c.l.b16 %v6471
    %v6835 = vunpack.c.h.b16 %v6471
    %v6836 = vunpack.c.l.b16 %v6472
    %v6837 = vunpack.c.h.b16 %v6472
    %v6838 = vunpack.c.l.b16 %v6473
    %v6839 = vunpack.c.h.b16 %v6473
    %v6840 = vunpack.c.l.b16 %v6474
    %v6841 = vunpack.c.h.b16 %v6474
    %v6842 = vunpack.c.l.b16 %v6475
    %v6843 = vunpack.c.h.b16 %v6475
    %v6844 = vunpack.c.l.b16 %v6476
    %v6845 = vunpack.c.h.b16 %v6476
    %v6846 = vunpack.c.l.b16 %v6477
    %v6847 = vunpack.c.h.b16 %v6477
    %v6848 = vunpack.c.l.b16 %v6478
    %v6849 = vunpack.c.h.b16 %v6478
    %v6850 = vunpack.c.l.b16 %v6479
    %v6851 = vunpack.c.h.b16 %v6479
    %v6852 = vunpack.c.l.b16 %v6480
    %v6853 = vunpack.c.h.b16 %v6480
    %v6854 = vunpack.c.l.b16 %v6481
    %v6855 = vunpack.c.h.b16 %v6481
    %v6856 = vunpack.c.l.b16 %v6482
    %v6857 = vunpack.c.h.b16 %v6482
    %v6858 = vunpack.c.l.b16 %v6483
    %v6859 = vunpack.c.h.b16 %v6483
    %v6860 = vunpack.c.l.b16 %v6484
    %v6861 = vunpack.c.h.b16 %v6484
    %v6862 = vunpack.c.l.b16 %v6485
    %v6863 = vunpack.c.h.b16 %v6485
    %v6864 = vunpack.c.l.b16 %v6486
    %v6865 = vunpack.c.h.b16 %v6486
    %v6866 = vunpack.c.l.b16 %v6487
    %v6867 = vunpack.c.h.b16 %v6487
    %v6868 = vunpack.c.l.b16 %v6488
    %v6869 = vunpack.c.h.b16 %v6488
    %v6870 = vunpack.c.l.b16 %v6489
    %v6871 = vunpack.c.h.b16 %v6489
    %v6872 = vunpack.c.l.b16 %v6490
    %v6873 = vunpack.c.h.b16 %v6490
    %v6874 = vunpack.c.l.b16 %v6491
    %v6875 = vunpack.c.h.b16 %v6491
    %v6876 = vunpack.c.l.b16 %v6492
    %v6877 = vunpack.c.h.b16 %v6492
    %v6878 = vunpack.c.l.b16 %v6493
    %v6879 = vunpack.c.h.b16 %v6493
    %v6880 = vunpack.c.l.b16 %v6494
    %v6881 = vunpack.c.h.b16 %v6494
    %v6882 = vunpack.c.l.b16 %v6495
    %v6883 = vunpack.c.h.b16 %v6495
    %v6884 = vunpack.c.l.b16 %v6496
    %v6885 = vunpack.c.h.b16 %v6496
    %v6886 = vunpack.c.l.b16 %v6497
    %v6887 = vunpack.c.h.b16 %v6497
    %v6888 = vunpack.c.l.b16 %v6498
    %v6889 = vunpack.c.h.b16 %v6498
    %v6890 = vunpack.c.l.b16 %v6499
    %v6891 = vunpack.c.h.b16 %v6499
    %v6892 = vunpack.c.l.b16 %v6500
    %v6893 = vunpack.c.h.b16 %v6500
    %v6894 = vunpack.c.l.b16 %v6501
    %v6895 = vunpack.c.h.b16 %v6501
    %v6896 = vpack.c.b16 %v6644, %v6640
    %v6897 = vpack.c.b16 %v6645, %v6641
    %v6898 = vpack.c.b16 %v6646, %v6642
    %v6899 = vpack.c.b16 %v6647, %v6643
    %v6900 = vpack.c.b16 %v6652, %v6648
    %v6901 = vpack.c.b16 %v6653, %v6649
    %v6902 = vpack.c.b16 %v6654, %v6650
    %v6903 = vpack.c.b16 %v6655, %v6651
    %v6904 = vpack.c.b16 %v6660, %v6656
    %v6905 = vpack.c.b16 %v6661, %v6657
    %v6906 = vpack.c.b16 %v6662, %v6658
    %v6907 = vpack.c.b16 %v6663, %v6659
    %v6908 = vpack.c.b16 %v6668, %v6664
    %v6909 = vpack.c.b16 %v6669, %v6665
    %v6910 = vpack.c.b16 %v6670, %v6666
    %v6911 = vpack.c.b16 %v6671, %v6667
    %v6912 = vpack.c.b16 %v6676, %v6672
    %v6913 = vpack.c.b16 %v6677, %v6673
    %v6914 = vpack.c.b16 %v6678, %v6674
    %v6915 = vpack.c.b16 %v6679, %v6675
    %v6916 = vpack.c.b16 %v6684, %v6680
    %v6917 = vpack.c.b16 %v6685, %v6681
    %v6918 = vpack.c.b16 %v6686, %v6682
    %v6919 = vpack.c.b16 %v6687, %v6683
    %v6920 = vpack.c.b16 %v6692, %v6688
    %v6921 = vpack.c.b16 %v6693, %v6689
    %v6922 = vpack.c.b16 %v6694, %v6690
    %v6923 = vpack.c.b16 %v6695, %v6691
    %v6924 = vpack.c.b16 %v6700, %v6696
    %v6925 = vpack.c.b16 %v6701, %v6697
    %v6926 = vpack.c.b16 %v6702, %v6698
    %v6927 = vpack.c.b16 %v6703, %v6699
    %v6928 = vpack.c.b16 %v6708, %v6704
    %v6929 = vpack.c.b16 %v6709, %v6705
    %v6930 = vpack.c.b16 %v6710, %v6706
    %v6931 = vpack.c.b16 %v6711, %v6707
    %v6932 = vpack.c.b16 %v6716, %v6712
    %v6933 = vpack.c.b16 %v6717, %v6713
    %v6934 = vpack.c.b16 %v6718, %v6714
    %v6935 = vpack.c.b16 %v6719, %v6715
    %v6936 = vpack.c.b16 %v6724, %v6720
    %v6937 = vpack.c.b16 %v6725, %v6721
    %v6938 = vpack.c.b16 %v6726, %v6722
    %v6939 = vpack.c.b16 %v6727, %v6723
    %v6940 = vpack.c.b16 %v6732, %v6728
    %v6941 = vpack.c.b16 %v6733, %v6729
    %v6942 = vpack.c.b16 %v6734, %v6730
    %v6943 = vpack.c.b16 %v6735, %v6731
    %v6944 = vpack.c.b16 %v6740, %v6736
    %v6945 = vpack.c.b16 %v6741, %v6737
    %v6946 = vpack.c.b16 %v6742, %v6738
    %v6947 = vpack.c.b16 %v6743, %v6739
    %v6948 = vpack.c.b16 %v6748, %v6744
    %v6949 = vpack.c.b16 %v6749, %v6745
    %v6950 = vpack.c.b16 %v6750, %v6746
    %v6951 = vpack.c.b16 %v6751, %v6747
    %v6952 = vpack.c.b16 %v6756, %v6752
    %v6953 = vpack.c.b16 %v6757, %v6753
    %v6954 = vpack.c.b16 %v6758, %v6754
    %v6955 = vpack.c.b16 %v6759, %v6755
    %v6956 = vpack.c.b16 %v6764, %v6760
    %v6957 = vpack.c.b16 %v6765, %v6761
    %v6958 = vpack.c.b16 %v6766, %v6762
    %v6959 = vpack.c.b16 %v6767, %v6763
    %v6960 = vpack.c.b16 %v6772, %v6768
    %v6961 = vpack.c.b16 %v6773, %v6769
    %v6962 = vpack.c.b16 %v6774, %v6770
    %v6963 = vpack.c.b16 %v6775, %v6771
    %v6964 = vpack.c.b16 %v6780, %v6776
    %v6965 = vpack.c.b16 %v6781, %v6777
    %v6966 = vpack.c.b16 %v6782, %v6778
    %v6967 = vpack.c.b16 %v6783, %v6779
    %v6968 = vpack.c.b16 %v6788, %v6784
    %v6969 = vpack.c.b16 %v6789, %v6785
    %v6970 = vpack.c.b16 %v6790, %v6786
    %v6971 = vpack.c.b16 %v6791, %v6787
    %v6972 = vpack.c.b16 %v6796, %v6792
    %v6973 = vpack.c.b16 %v6797, %v6793
    %v6974 = vpack.c.b16 %v6798, %v6794
    %v6975 = vpack.c.b16 %v6799, %v6795
    %v6976 = vpack.c.b16 %v6804, %v6800
    %v6977 = vpack.c.b16 %v6805, %v6801
    %v6978 = vpack.c.b16 %v6806, %v6802
    %v6979 = vpack.c.b16 %v6807, %v6803
    %v6980 = vpack.c.b16 %v6812, %v6808
    %v6981 = vpack.c.b16 %v6813, %v6809
    %v6982 = vpack.c.b16 %v6814, %v6810
    %v6983 = vpack.c.b16 %v6815, %v6811
    %v6984 = vpack.c.b16 %v6820, %v6816
    %v6985 = vpack.c.b16 %v6821, %v6817
    %v6986 = vpack.c.b16 %v6822, %v6818
    %v6987 = vpack.c.b16 %v6823, %v6819
    %v6988 = vpack.c.b16 %v6828, %v6824
    %v6989 = vpack.c.b16 %v6829, %v6825
    %v6990 = vpack.c.b16 %v6830, %v6826
    %v6991 = vpack.c.b16 %v6831, %v6827
    %v6992 = vpack.c.b16 %v6836, %v6832
    %v6993 = vpack.c.b16 %v6837, %v6833
    %v6994 = vpack.c.b16 %v6838, %v6834
    %v6995 = vpack.c.b16 %v6839, %v6835
    %v6996 = vpack.c.b16 %v6844, %v6840
    %v6997 = vpack.c.b16 %v6845, %v6841
    %v6998 = vpack.c.b16 %v6846, %v6842
    %v6999 = vpack.c.b16 %v6847, %v6843
    %v7000 = vpack.c.b16 %v6852, %v6848
    %v7001 = vpack.c.b16 %v6853, %v6849
    %v7002 = vpack.c.b16 %v6854, %v6850
    %v7003 = vpack.c.b16 %v6855, %v6851
    %v7004 = vpack.c.b16 %v6860, %v6856
    %v7005 = vpack.c.b16 %v6861, %v6857
    %v7006 = vpack.c.b16 %v6862, %v6858
    %v7007 = vpack.c.b16 %v6863, %v6859
    %v7008 = vpack.c.b16 %v6868, %v6864
    %v7009 = vpack.c.b16 %v6869, %v6865
    %v7010 = vpack.c.b16 %v6870, %v6866
    %v7011 = vpack.c.b16 %v6871, %v6867
    %v7012 = vpack.c.b16 %v6876, %v6872
    %v7013 = vpack.c.b16 %v6877, %v6873
    %v7014 = vpack.c.b16 %v6878, %v6874
    %v7015 = vpack.c.b16 %v6879, %v6875
    %v7016 = vpack.c.b16 %v6884, %v6880
    %v7017 = vpack.c.b16 %v6885, %v6881
    %v7018 = vpack.c.b16 %v6886, %v6882
    %v7019 = vpack.c.b16 %v6887, %v6883
    %v7020 = vpack.c.b16 %v6892, %v6888
    %v7021 = vpack.c.b16 %v6893, %v6889
    %v7022 = vpack.c.b16 %v6894, %v6890
    %v7023 = vpack.c.b16 %v6895, %v6891
    %7152 = vmatpush.bf16.msra.mxu0 %v6924
    %7153 = vmatpush.bf16.msra.mxu0 %v6920
    %7154 = vmatpush.bf16.msra.mxu0 %v6916
    %7155 = vmatpush.bf16.msra.mxu0 %v6912
    %7156 = vmatpush.bf16.msra.mxu0 %v6908
    %7157 = vmatpush.bf16.msra.mxu0 %v6904
    %7158 = vmatpush.bf16.msra.mxu0 %v6900
    %7159 = vmatpush.bf16.msra.mxu0 %v6896
    %7160 = vmatmul.bf16.gmra.mxu0 %v6370
    %v7161 = vpop.f32.mrf.mxu0
    %v7162 = vadd.f32 %v6504, %v7161
    %v7163 = vpop.f32.mrf.mxu0
    %v7164 = vadd.f32 %v6504, %v7163
    %7165 = vdwg.mxu0
    %7166 = vmatpush.bf16.msra.mxu0 %v6956
    %7167 = vmatpush.bf16.msra.mxu0 %v6952
    %7168 = vmatpush.bf16.msra.mxu0 %v6948
    %7169 = vmatpush.bf16.msra.mxu0 %v6944
    %7170 = vmatpush.bf16.msra.mxu0 %v6940
    %7171 = vmatpush.bf16.msra.mxu0 %v6936
    %7172 = vmatpush.bf16.msra.mxu0 %v6932
    %7173 = vmatpush.bf16.msra.mxu0 %v6928
    %7174 = vmatmul.bf16.gmra.mxu0 %v6371
    %v7175 = vpop.f32.mrf.mxu0
    %v7176 = vadd.f32 %v7162, %v7175
    %v7177 = vpop.f32.mrf.mxu0
    %v7178 = vadd.f32 %v7164, %v7177
    %7179 = vdwg.mxu0
    %7180 = vmatpush.bf16.msra.mxu0 %v6988
    %7181 = vmatpush.bf16.msra.mxu0 %v6984
    %7182 = vmatpush.bf16.msra.mxu0 %v6980
    %7183 = vmatpush.bf16.msra.mxu0 %v6976
    %7184 = vmatpush.bf16.msra.mxu0 %v6972
    %7185 = vmatpush.bf16.msra.mxu0 %v6968
    %7186 = vmatpush.bf16.msra.mxu0 %v6964
    %7187 = vmatpush.bf16.msra.mxu0 %v6960
    %7188 = vmatmul.bf16.gmra.mxu0 %v6372
    %v7189 = vpop.f32.mrf.mxu0
    %v7190 = vadd.f32 %v7176, %v7189
    %v7191 = vpop.f32.mrf.mxu0
    %v7192 = vadd.f32 %v7178, %v7191
    %7193 = vdwg.mxu0
    %7194 = vmatpush.bf16.msra.mxu0 %v7020
    %7195 = vmatpush.bf16.msra.mxu0 %v7016
    %7196 = vmatpush.bf16.msra.mxu0 %v7012
    %7197 = vmatpush.bf16.msra.mxu0 %v7008
    %7198 = vmatpush.bf16.msra.mxu0 %v7004
    %7199 = vmatpush.bf16.msra.mxu0 %v7000
    %7200 = vmatpush.bf16.msra.mxu0 %v6996
    %7201 = vmatpush.bf16.msra.mxu0 %v6992
    %7202 = vmatmul.bf16.gmra.mxu0 %v6373
    %v7203 = vpop.f32.mrf.mxu0
    %v7204 = vadd.f32 %v7190, %v7203
    %v7205 = vpop.f32.mrf.mxu0
    %v7206 = vadd.f32 %v7192, %v7205
    %7207 = vdwg.mxu0
    %7208 = vmatpush.bf16.msra.mxu0 %v6925
    %7209 = vmatpush.bf16.msra.mxu0 %v6921
    %7210 = vmatpush.bf16.msra.mxu0 %v6917
    %7211 = vmatpush.bf16.msra.mxu0 %v6913
    %7212 = vmatpush.bf16.msra.mxu0 %v6909
    %7213 = vmatpush.bf16.msra.mxu0 %v6905
    %7214 = vmatpush.bf16.msra.mxu0 %v6901
    %7215 = vmatpush.bf16.msra.mxu0 %v6897
    %7216 = vmatmul.bf16.gmra.mxu0 %v6370
    %v7217 = vpop.f32.mrf.mxu0
    %v7218 = vadd.f32 %v6505, %v7217
    %v7219 = vpop.f32.mrf.mxu0
    %v7220 = vadd.f32 %v6505, %v7219
    %7221 = vdwg.mxu0
    %7222 = vmatpush.bf16.msra.mxu0 %v6957
    %7223 = vmatpush.bf16.msra.mxu0 %v6953
    %7224 = vmatpush.bf16.msra.mxu0 %v6949
    %7225 = vmatpush.bf16.msra.mxu0 %v6945
    %7226 = vmatpush.bf16.msra.mxu0 %v6941
    %7227 = vmatpush.bf16.msra.mxu0 %v6937
    %7228 = vmatpush.bf16.msra.mxu0 %v6933
    %7229 = vmatpush.bf16.msra.mxu0 %v6929
    %7230 = vmatmul.bf16.gmra.mxu0 %v6371
    %v7231 = vpop.f32.mrf.mxu0
    %v7232 = vadd.f32 %v7218, %v7231
    %v7233 = vpop.f32.mrf.mxu0
    %v7234 = vadd.f32 %v7220, %v7233
    %7235 = vdwg.mxu0
    %7236 = vmatpush.bf16.msra.mxu0 %v6989
    %7237 = vmatpush.bf16.msra.mxu0 %v6985
    %7238 = vmatpush.bf16.msra.mxu0 %v6981
    %7239 = vmatpush.bf16.msra.mxu0 %v6977
    %7240 = vmatpush.bf16.msra.mxu0 %v6973
    %7241 = vmatpush.bf16.msra.mxu0 %v6969
    %7242 = vmatpush.bf16.msra.mxu0 %v6965
    %7243 = vmatpush.bf16.msra.mxu0 %v6961
    %7244 = vmatmul.bf16.gmra.mxu0 %v6372
    %v7245 = vpop.f32.mrf.mxu0
    %v7246 = vadd.f32 %v7232, %v7245
    %v7247 = vpop.f32.mrf.mxu0
    %v7248 = vadd.f32 %v7234, %v7247
    %7249 = vdwg.mxu0
    %7250 = vmatpush.bf16.msra.mxu0 %v7021
    %7251 = vmatpush.bf16.msra.mxu0 %v7017
    %7252 = vmatpush.bf16.msra.mxu0 %v7013
    %7253 = vmatpush.bf16.msra.mxu0 %v7009
    %7254 = vmatpush.bf16.msra.mxu0 %v7005
    %7255 = vmatpush.bf16.msra.mxu0 %v7001
    %7256 = vmatpush.bf16.msra.mxu0 %v6997
    %7257 = vmatpush.bf16.msra.mxu0 %v6993
    %7258 = vmatmul.bf16.gmra.mxu0 %v6373
    %v7259 = vpop.f32.mrf.mxu0
    %v7260 = vadd.f32 %v7246, %v7259
    %v7261 = vpop.f32.mrf.mxu0
    %v7262 = vadd.f32 %v7248, %v7261
    %7263 = vdwg.mxu0
    %7264 = vmatpush.bf16.msra.mxu0 %v6926
    %7265 = vmatpush.bf16.msra.mxu0 %v6922
    %7266 = vmatpush.bf16.msra.mxu0 %v6918
    %7267 = vmatpush.bf16.msra.mxu0 %v6914
    %7268 = vmatpush.bf16.msra.mxu0 %v6910
    %7269 = vmatpush.bf16.msra.mxu0 %v6906
    %7270 = vmatpush.bf16.msra.mxu0 %v6902
    %7271 = vmatpush.bf16.msra.mxu0 %v6898
    %7272 = vmatmul.bf16.gmra.mxu0 %v6370
    %v7273 = vpop.f32.mrf.mxu0
    %v7274 = vadd.f32 %v6506, %v7273
    %v7275 = vpop.f32.mrf.mxu0
    %v7276 = vadd.f32 %v6506, %v7275
    %7277 = vdwg.mxu0
    %7278 = vmatpush.bf16.msra.mxu0 %v6958
    %7279 = vmatpush.bf16.msra.mxu0 %v6954
    %7280 = vmatpush.bf16.msra.mxu0 %v6950
    %7281 = vmatpush.bf16.msra.mxu0 %v6946
    %7282 = vmatpush.bf16.msra.mxu0 %v6942
    %7283 = vmatpush.bf16.msra.mxu0 %v6938
    %7284 = vmatpush.bf16.msra.mxu0 %v6934
    %7285 = vmatpush.bf16.msra.mxu0 %v6930
    %7286 = vmatmul.bf16.gmra.mxu0 %v6371
    %v7287 = vpop.f32.mrf.mxu0
    %v7288 = vadd.f32 %v7274, %v7287
    %v7289 = vpop.f32.mrf.mxu0
    %v7290 = vadd.f32 %v7276, %v7289
    %7291 = vdwg.mxu0
    %7292 = vmatpush.bf16.msra.mxu0 %v6990
    %7293 = vmatpush.bf16.msra.mxu0 %v6986
    %7294 = vmatpush.bf16.msra.mxu0 %v6982
    %7295 = vmatpush.bf16.msra.mxu0 %v6978
    %7296 = vmatpush.bf16.msra.mxu0 %v6974
    %7297 = vmatpush.bf16.msra.mxu0 %v6970
    %7298 = vmatpush.bf16.msra.mxu0 %v6966
    %7299 = vmatpush.bf16.msra.mxu0 %v6962
    %7300 = vmatmul.bf16.gmra.mxu0 %v6372
    %v7301 = vpop.f32.mrf.mxu0
    %v7302 = vadd.f32 %v7288, %v7301
    %v7303 = vpop.f32.mrf.mxu0
    %v7304 = vadd.f32 %v7290, %v7303
    %7305 = vdwg.mxu0
    %7306 = vmatpush.bf16.msra.mxu0 %v7022
    %7307 = vmatpush.bf16.msra.mxu0 %v7018
    %7308 = vmatpush.bf16.msra.mxu0 %v7014
    %7309 = vmatpush.bf16.msra.mxu0 %v7010
    %7310 = vmatpush.bf16.msra.mxu0 %v7006
    %7311 = vmatpush.bf16.msra.mxu0 %v7002
    %7312 = vmatpush.bf16.msra.mxu0 %v6998
    %7313 = vmatpush.bf16.msra.mxu0 %v6994
    %7314 = vmatmul.bf16.gmra.mxu0 %v6373
    %v7315 = vpop.f32.mrf.mxu0
    %v7316 = vadd.f32 %v7302, %v7315
    %v7317 = vpop.f32.mrf.mxu0
    %v7318 = vadd.f32 %v7304, %v7317
    %7319 = vdwg.mxu0
    %7320 = vmatpush.bf16.msra.mxu0 %v6927
    %7321 = vmatpush.bf16.msra.mxu0 %v6923
    %7322 = vmatpush.bf16.msra.mxu0 %v6919
    %7323 = vmatpush.bf16.msra.mxu0 %v6915
    %7324 = vmatpush.bf16.msra.mxu0 %v6911
    %7325 = vmatpush.bf16.msra.mxu0 %v6907
    %7326 = vmatpush.bf16.msra.mxu0 %v6903
    %7327 = vmatpush.bf16.msra.mxu0 %v6899
    %7328 = vmatmul.bf16.gmra.mxu0 %v6370
    %v7329 = vpop.f32.mrf.mxu0
    %v7330 = vadd.f32 %v6507, %v7329
    %v7331 = vpop.f32.mrf.mxu0
    %v7332 = vadd.f32 %v6507, %v7331
    %7333 = vdwg.mxu0
    %7334 = vmatpush.bf16.msra.mxu0 %v6959
    %7335 = vmatpush.bf16.msra.mxu0 %v6955
    %7336 = vmatpush.bf16.msra.mxu0 %v6951
    %7337 = vmatpush.bf16.msra.mxu0 %v6947
    %7338 = vmatpush.bf16.msra.mxu0 %v6943
    %7339 = vmatpush.bf16.msra.mxu0 %v6939
    %7340 = vmatpush.bf16.msra.mxu0 %v6935
    %7341 = vmatpush.bf16.msra.mxu0 %v6931
    %7342 = vmatmul.bf16.gmra.mxu0 %v6371
    %v7343 = vpop.f32.mrf.mxu0
    %v7344 = vadd.f32 %v7330, %v7343
    %v7345 = vpop.f32.mrf.mxu0
    %v7346 = vadd.f32 %v7332, %v7345
    %7347 = vdwg.mxu0
    %7348 = vmatpush.bf16.msra.mxu0 %v6991
    %7349 = vmatpush.bf16.msra.mxu0 %v6987
    %7350 = vmatpush.bf16.msra.mxu0 %v6983
    %7351 = vmatpush.bf16.msra.mxu0 %v6979
    %7352 = vmatpush.bf16.msra.mxu0 %v6975
    %7353 = vmatpush.bf16.msra.mxu0 %v6971
    %7354 = vmatpush.bf16.msra.mxu0 %v6967
    %7355 = vmatpush.bf16.msra.mxu0 %v6963
    %7356 = vmatmul.bf16.gmra.mxu0 %v6372
    %v7357 = vpop.f32.mrf.mxu0
    %v7358 = vadd.f32 %v7344, %v7357
    %v7359 = vpop.f32.mrf.mxu0
    %v7360 = vadd.f32 %v7346, %v7359
    %7361 = vdwg.mxu0
    %7362 = vmatpush.bf16.msra.mxu0 %v7023
    %7363 = vmatpush.bf16.msra.mxu0 %v7019
    %7364 = vmatpush.bf16.msra.mxu0 %v7015
    %7365 = vmatpush.bf16.msra.mxu0 %v7011
    %7366 = vmatpush.bf16.msra.mxu0 %v7007
    %7367 = vmatpush.bf16.msra.mxu0 %v7003
    %7368 = vmatpush.bf16.msra.mxu0 %v6999
    %7369 = vmatpush.bf16.msra.mxu0 %v6995
    %7370 = vmatmul.bf16.gmra.mxu0 %v6373
    %v7371 = vpop.f32.mrf.mxu0
    %v7372 = vadd.f32 %v7358, %v7371
    %v7373 = vpop.f32.mrf.mxu0
    %v7374 = vadd.f32 %v7360, %v7373
    %7375 = vdwg.mxu0
    %v7376 = vmax.f32 %v7204, 0.0
    %v7377 = vmax.f32 %v7260, 0.0
    %v7378 = vmax.f32 %v7316, 0.0
    %v7379 = vmax.f32 %v7372, 0.0
    %v7380 = vmax.f32 %v7206, 0.0
    %v7381 = vmax.f32 %v7262, 0.0
    %v7382 = vmax.f32 %v7318, 0.0
    %v7383 = vmax.f32 %v7374, 0.0
    %v7384 = vpack.c.bf16 %v7380, %v7376
    %v7385 = vpack.c.bf16 %v7381, %v7377
    %v7386 = vpack.c.bf16 %v7382, %v7378
    %v7387 = vpack.c.bf16 %v7383, %v7379
    %s7388 = scalar_lea.vmem [#allocation10], 1024
    %v7389 = vld [vmem:[%s7388] sm:$0xff]
    %v7390 = vld [vmem:[%s7388 + $0x8] sm:$0xff]
    %v7391 = vld [vmem:[%s7388 + $0x10] sm:$0xff]
    %v7392 = vld [vmem:[%s7388 + $0x18] sm:$0xff]
    %v7393 = vld [vmem:[%s7388 + $0x20] sm:$0xff]
    %v7394 = vld [vmem:[%s7388 + $0x28] sm:$0xff]
    %v7395 = vld [vmem:[%s7388 + $0x30] sm:$0xff]
    %v7396 = vld [vmem:[%s7388 + $0x38] sm:$0xff]
    %v7397 = vld [vmem:[%s7388 + $0x40] sm:$0xff]
    %v7398 = vld [vmem:[%s7388 + $0x48] sm:$0xff]
    %v7399 = vld [vmem:[%s7388 + $0x50] sm:$0xff]
    %v7400 = vld [vmem:[%s7388 + $0x58] sm:$0xff]
    %v7401 = vld [vmem:[%s7388 + $0x60] sm:$0xff]
    %v7402 = vld [vmem:[%s7388 + $0x68] sm:$0xff]
    %v7403 = vld [vmem:[%s7388 + $0x70] sm:$0xff]
    %v7404 = vld [vmem:[%s7388 + $0x78] sm:$0xff]
    %v7405 = vld [vmem:[%s7388 + $0x80] sm:$0xff]
    %v7406 = vld [vmem:[%s7388 + $0x88] sm:$0xff]
    %v7407 = vld [vmem:[%s7388 + $0x90] sm:$0xff]
    %v7408 = vld [vmem:[%s7388 + $0x98] sm:$0xff]
    %v7409 = vld [vmem:[%s7388 + $0xa0] sm:$0xff]
    %v7410 = vld [vmem:[%s7388 + $0xa8] sm:$0xff]
    %v7411 = vld [vmem:[%s7388 + $0xb0] sm:$0xff]
    %v7412 = vld [vmem:[%s7388 + $0xb8] sm:$0xff]
    %v7413 = vld [vmem:[%s7388 + $0xc0] sm:$0xff]
    %v7414 = vld [vmem:[%s7388 + $0xc8] sm:$0xff]
    %v7415 = vld [vmem:[%s7388 + $0xd0] sm:$0xff]
    %v7416 = vld [vmem:[%s7388 + $0xd8] sm:$0xff]
    %v7417 = vld [vmem:[%s7388 + $0xe0] sm:$0xff]
    %v7418 = vld [vmem:[%s7388 + $0xe8] sm:$0xff]
    %v7419 = vld [vmem:[%s7388 + $0xf0] sm:$0xff]
    %v7420 = vld [vmem:[%s7388 + $0xf8] sm:$0xff]
    %v7421 = vld [vmem:[%s7388 + $0x100] sm:$0xff]
    %v7422 = vld [vmem:[%s7388 + $0x108] sm:$0xff]
    %v7423 = vld [vmem:[%s7388 + $0x110] sm:$0xff]
    %v7424 = vld [vmem:[%s7388 + $0x118] sm:$0xff]
    %v7425 = vld [vmem:[%s7388 + $0x120] sm:$0xff]
    %v7426 = vld [vmem:[%s7388 + $0x128] sm:$0xff]
    %v7427 = vld [vmem:[%s7388 + $0x130] sm:$0xff]
    %v7428 = vld [vmem:[%s7388 + $0x138] sm:$0xff]
    %v7429 = vld [vmem:[%s7388 + $0x140] sm:$0xff]
    %v7430 = vld [vmem:[%s7388 + $0x148] sm:$0xff]
    %v7431 = vld [vmem:[%s7388 + $0x150] sm:$0xff]
    %v7432 = vld [vmem:[%s7388 + $0x158] sm:$0xff]
    %v7433 = vld [vmem:[%s7388 + $0x160] sm:$0xff]
    %v7434 = vld [vmem:[%s7388 + $0x168] sm:$0xff]
    %v7435 = vld [vmem:[%s7388 + $0x170] sm:$0xff]
    %v7436 = vld [vmem:[%s7388 + $0x178] sm:$0xff]
    %v7437 = vld [vmem:[%s7388 + $0x180] sm:$0xff]
    %v7438 = vld [vmem:[%s7388 + $0x188] sm:$0xff]
    %v7439 = vld [vmem:[%s7388 + $0x190] sm:$0xff]
    %v7440 = vld [vmem:[%s7388 + $0x198] sm:$0xff]
    %v7441 = vld [vmem:[%s7388 + $0x1a0] sm:$0xff]
    %v7442 = vld [vmem:[%s7388 + $0x1a8] sm:$0xff]
    %v7443 = vld [vmem:[%s7388 + $0x1b0] sm:$0xff]
    %v7444 = vld [vmem:[%s7388 + $0x1b8] sm:$0xff]
    %v7445 = vld [vmem:[%s7388 + $0x1c0] sm:$0xff]
    %v7446 = vld [vmem:[%s7388 + $0x1c8] sm:$0xff]
    %v7447 = vld [vmem:[%s7388 + $0x1d0] sm:$0xff]
    %v7448 = vld [vmem:[%s7388 + $0x1d8] sm:$0xff]
    %v7449 = vld [vmem:[%s7388 + $0x1e0] sm:$0xff]
    %v7450 = vld [vmem:[%s7388 + $0x1e8] sm:$0xff]
    %v7451 = vld [vmem:[%s7388 + $0x1f0] sm:$0xff]
    %v7452 = vld [vmem:[%s7388 + $0x1f8] sm:$0xff]
    %v7453 = vld [vmem:[%s7388 + $0x200] sm:$0xff]
    %v7454 = vld [vmem:[%s7388 + $0x208] sm:$0xff]
    %v7455 = vld [vmem:[%s7388 + $0x210] sm:$0xff]
    %v7456 = vld [vmem:[%s7388 + $0x218] sm:$0xff]
    %v7457 = vld [vmem:[%s7388 + $0x220] sm:$0xff]
    %v7458 = vld [vmem:[%s7388 + $0x228] sm:$0xff]
    %v7459 = vld [vmem:[%s7388 + $0x230] sm:$0xff]
    %v7460 = vld [vmem:[%s7388 + $0x238] sm:$0xff]
    %v7461 = vld [vmem:[%s7388 + $0x240] sm:$0xff]
    %v7462 = vld [vmem:[%s7388 + $0x248] sm:$0xff]
    %v7463 = vld [vmem:[%s7388 + $0x250] sm:$0xff]
    %v7464 = vld [vmem:[%s7388 + $0x258] sm:$0xff]
    %v7465 = vld [vmem:[%s7388 + $0x260] sm:$0xff]
    %v7466 = vld [vmem:[%s7388 + $0x268] sm:$0xff]
    %v7467 = vld [vmem:[%s7388 + $0x270] sm:$0xff]
    %v7468 = vld [vmem:[%s7388 + $0x278] sm:$0xff]
    %v7469 = vld [vmem:[%s7388 + $0x280] sm:$0xff]
    %v7470 = vld [vmem:[%s7388 + $0x288] sm:$0xff]
    %v7471 = vld [vmem:[%s7388 + $0x290] sm:$0xff]
    %v7472 = vld [vmem:[%s7388 + $0x298] sm:$0xff]
    %v7473 = vld [vmem:[%s7388 + $0x2a0] sm:$0xff]
    %v7474 = vld [vmem:[%s7388 + $0x2a8] sm:$0xff]
    %v7475 = vld [vmem:[%s7388 + $0x2b0] sm:$0xff]
    %v7476 = vld [vmem:[%s7388 + $0x2b8] sm:$0xff]
    %v7477 = vld [vmem:[%s7388 + $0x2c0] sm:$0xff]
    %v7478 = vld [vmem:[%s7388 + $0x2c8] sm:$0xff]
    %v7479 = vld [vmem:[%s7388 + $0x2d0] sm:$0xff]
    %v7480 = vld [vmem:[%s7388 + $0x2d8] sm:$0xff]
    %v7481 = vld [vmem:[%s7388 + $0x2e0] sm:$0xff]
    %v7482 = vld [vmem:[%s7388 + $0x2e8] sm:$0xff]
    %v7483 = vld [vmem:[%s7388 + $0x2f0] sm:$0xff]
    %v7484 = vld [vmem:[%s7388 + $0x2f8] sm:$0xff]
    %v7485 = vld [vmem:[%s7388 + $0x300] sm:$0xff]
    %v7486 = vld [vmem:[%s7388 + $0x308] sm:$0xff]
    %v7487 = vld [vmem:[%s7388 + $0x310] sm:$0xff]
    %v7488 = vld [vmem:[%s7388 + $0x318] sm:$0xff]
    %v7489 = vld [vmem:[%s7388 + $0x320] sm:$0xff]
    %v7490 = vld [vmem:[%s7388 + $0x328] sm:$0xff]
    %v7491 = vld [vmem:[%s7388 + $0x330] sm:$0xff]
    %v7492 = vld [vmem:[%s7388 + $0x338] sm:$0xff]
    %v7493 = vld [vmem:[%s7388 + $0x340] sm:$0xff]
    %v7494 = vld [vmem:[%s7388 + $0x348] sm:$0xff]
    %v7495 = vld [vmem:[%s7388 + $0x350] sm:$0xff]
    %v7496 = vld [vmem:[%s7388 + $0x358] sm:$0xff]
    %v7497 = vld [vmem:[%s7388 + $0x360] sm:$0xff]
    %v7498 = vld [vmem:[%s7388 + $0x368] sm:$0xff]
    %v7499 = vld [vmem:[%s7388 + $0x370] sm:$0xff]
    %v7500 = vld [vmem:[%s7388 + $0x378] sm:$0xff]
    %v7501 = vld [vmem:[%s7388 + $0x380] sm:$0xff]
    %v7502 = vld [vmem:[%s7388 + $0x388] sm:$0xff]
    %v7503 = vld [vmem:[%s7388 + $0x390] sm:$0xff]
    %v7504 = vld [vmem:[%s7388 + $0x398] sm:$0xff]
    %v7505 = vld [vmem:[%s7388 + $0x3a0] sm:$0xff]
    %v7506 = vld [vmem:[%s7388 + $0x3a8] sm:$0xff]
    %v7507 = vld [vmem:[%s7388 + $0x3b0] sm:$0xff]
    %v7508 = vld [vmem:[%s7388 + $0x3b8] sm:$0xff]
    %v7509 = vld [vmem:[%s7388 + $0x3c0] sm:$0xff]
    %v7510 = vld [vmem:[%s7388 + $0x3c8] sm:$0xff]
    %v7511 = vld [vmem:[%s7388 + $0x3d0] sm:$0xff]
    %v7512 = vld [vmem:[%s7388 + $0x3d8] sm:$0xff]
    %v7513 = vld [vmem:[%s7388 + $0x3e0] sm:$0xff]
    %v7514 = vld [vmem:[%s7388 + $0x3e8] sm:$0xff]
    %v7515 = vld [vmem:[%s7388 + $0x3f0] sm:$0xff]
    %v7516 = vld [vmem:[%s7388 + $0x3f8] sm:$0xff]
    %s7517 = scalar_lea.vmem [#allocation11], 4
    %v7518 = vld [vmem:[%s7517] sm:$0xf]
    %v7520 = vperm.slane %v7518, 0
    %v7521 = vperm.slane %v7518, 1
    %v7522 = vperm.slane %v7518, 2
    %v7523 = vperm.slane %v7518, 3
    %v7656 = vunpack.c.l.b16 %v7389
    %v7657 = vunpack.c.h.b16 %v7389
    %v7658 = vunpack.c.l.b16 %v7390
    %v7659 = vunpack.c.h.b16 %v7390
    %v7660 = vunpack.c.l.b16 %v7391
    %v7661 = vunpack.c.h.b16 %v7391
    %v7662 = vunpack.c.l.b16 %v7392
    %v7663 = vunpack.c.h.b16 %v7392
    %v7664 = vunpack.c.l.b16 %v7393
    %v7665 = vunpack.c.h.b16 %v7393
    %v7666 = vunpack.c.l.b16 %v7394
    %v7667 = vunpack.c.h.b16 %v7394
    %v7668 = vunpack.c.l.b16 %v7395
    %v7669 = vunpack.c.h.b16 %v7395
    %v7670 = vunpack.c.l.b16 %v7396
    %v7671 = vunpack.c.h.b16 %v7396
    %v7672 = vunpack.c.l.b16 %v7397
    %v7673 = vunpack.c.h.b16 %v7397
    %v7674 = vunpack.c.l.b16 %v7398
    %v7675 = vunpack.c.h.b16 %v7398
    %v7676 = vunpack.c.l.b16 %v7399
    %v7677 = vunpack.c.h.b16 %v7399
    %v7678 = vunpack.c.l.b16 %v7400
    %v7679 = vunpack.c.h.b16 %v7400
    %v7680 = vunpack.c.l.b16 %v7401
    %v7681 = vunpack.c.h.b16 %v7401
    %v7682 = vunpack.c.l.b16 %v7402
    %v7683 = vunpack.c.h.b16 %v7402
    %v7684 = vunpack.c.l.b16 %v7403
    %v7685 = vunpack.c.h.b16 %v7403
    %v7686 = vunpack.c.l.b16 %v7404
    %v7687 = vunpack.c.h.b16 %v7404
    %v7688 = vunpack.c.l.b16 %v7405
    %v7689 = vunpack.c.h.b16 %v7405
    %v7690 = vunpack.c.l.b16 %v7406
    %v7691 = vunpack.c.h.b16 %v7406
    %v7692 = vunpack.c.l.b16 %v7407
    %v7693 = vunpack.c.h.b16 %v7407
    %v7694 = vunpack.c.l.b16 %v7408
    %v7695 = vunpack.c.h.b16 %v7408
    %v7696 = vunpack.c.l.b16 %v7409
    %v7697 = vunpack.c.h.b16 %v7409
    %v7698 = vunpack.c.l.b16 %v7410
    %v7699 = vunpack.c.h.b16 %v7410
    %v7700 = vunpack.c.l.b16 %v7411
    %v7701 = vunpack.c.h.b16 %v7411
    %v7702 = vunpack.c.l.b16 %v7412
    %v7703 = vunpack.c.h.b16 %v7412
    %v7704 = vunpack.c.l.b16 %v7413
    %v7705 = vunpack.c.h.b16 %v7413
    %v7706 = vunpack.c.l.b16 %v7414
    %v7707 = vunpack.c.h.b16 %v7414
    %v7708 = vunpack.c.l.b16 %v7415
    %v7709 = vunpack.c.h.b16 %v7415
    %v7710 = vunpack.c.l.b16 %v7416
    %v7711 = vunpack.c.h.b16 %v7416
    %v7712 = vunpack.c.l.b16 %v7417
    %v7713 = vunpack.c.h.b16 %v7417
    %v7714 = vunpack.c.l.b16 %v7418
    %v7715 = vunpack.c.h.b16 %v7418
    %v7716 = vunpack.c.l.b16 %v7419
    %v7717 = vunpack.c.h.b16 %v7419
    %v7718 = vunpack.c.l.b16 %v7420
    %v7719 = vunpack.c.h.b16 %v7420
    %v7720 = vunpack.c.l.b16 %v7421
    %v7721 = vunpack.c.h.b16 %v7421
    %v7722 = vunpack.c.l.b16 %v7422
    %v7723 = vunpack.c.h.b16 %v7422
    %v7724 = vunpack.c.l.b16 %v7423
    %v7725 = vunpack.c.h.b16 %v7423
    %v7726 = vunpack.c.l.b16 %v7424
    %v7727 = vunpack.c.h.b16 %v7424
    %v7728 = vunpack.c.l.b16 %v7425
    %v7729 = vunpack.c.h.b16 %v7425
    %v7730 = vunpack.c.l.b16 %v7426
    %v7731 = vunpack.c.h.b16 %v7426
    %v7732 = vunpack.c.l.b16 %v7427
    %v7733 = vunpack.c.h.b16 %v7427
    %v7734 = vunpack.c.l.b16 %v7428
    %v7735 = vunpack.c.h.b16 %v7428
    %v7736 = vunpack.c.l.b16 %v7429
    %v7737 = vunpack.c.h.b16 %v7429
    %v7738 = vunpack.c.l.b16 %v7430
    %v7739 = vunpack.c.h.b16 %v7430
    %v7740 = vunpack.c.l.b16 %v7431
    %v7741 = vunpack.c.h.b16 %v7431
    %v7742 = vunpack.c.l.b16 %v7432
    %v7743 = vunpack.c.h.b16 %v7432
    %v7744 = vunpack.c.l.b16 %v7433
    %v7745 = vunpack.c.h.b16 %v7433
    %v7746 = vunpack.c.l.b16 %v7434
    %v7747 = vunpack.c.h.b16 %v7434
    %v7748 = vunpack.c.l.b16 %v7435
    %v7749 = vunpack.c.h.b16 %v7435
    %v7750 = vunpack.c.l.b16 %v7436
    %v7751 = vunpack.c.h.b16 %v7436
    %v7752 = vunpack.c.l.b16 %v7437
    %v7753 = vunpack.c.h.b16 %v7437
    %v7754 = vunpack.c.l.b16 %v7438
    %v7755 = vunpack.c.h.b16 %v7438
    %v7756 = vunpack.c.l.b16 %v7439
    %v7757 = vunpack.c.h.b16 %v7439
    %v7758 = vunpack.c.l.b16 %v7440
    %v7759 = vunpack.c.h.b16 %v7440
    %v7760 = vunpack.c.l.b16 %v7441
    %v7761 = vunpack.c.h.b16 %v7441
    %v7762 = vunpack.c.l.b16 %v7442
    %v7763 = vunpack.c.h.b16 %v7442
    %v7764 = vunpack.c.l.b16 %v7443
    %v7765 = vunpack.c.h.b16 %v7443
    %v7766 = vunpack.c.l.b16 %v7444
    %v7767 = vunpack.c.h.b16 %v7444
    %v7768 = vunpack.c.l.b16 %v7445
    %v7769 = vunpack.c.h.b16 %v7445
    %v7770 = vunpack.c.l.b16 %v7446
    %v7771 = vunpack.c.h.b16 %v7446
    %v7772 = vunpack.c.l.b16 %v7447
    %v7773 = vunpack.c.h.b16 %v7447
    %v7774 = vunpack.c.l.b16 %v7448
    %v7775 = vunpack.c.h.b16 %v7448
    %v7776 = vunpack.c.l.b16 %v7449
    %v7777 = vunpack.c.h.b16 %v7449
    %v7778 = vunpack.c.l.b16 %v7450
    %v7779 = vunpack.c.h.b16 %v7450
    %v7780 = vunpack.c.l.b16 %v7451
    %v7781 = vunpack.c.h.b16 %v7451
    %v7782 = vunpack.c.l.b16 %v7452
    %v7783 = vunpack.c.h.b16 %v7452
    %v7784 = vunpack.c.l.b16 %v7453
    %v7785 = vunpack.c.h.b16 %v7453
    %v7786 = vunpack.c.l.b16 %v7454
    %v7787 = vunpack.c.h.b16 %v7454
    %v7788 = vunpack.c.l.b16 %v7455
    %v7789 = vunpack.c.h.b16 %v7455
    %v7790 = vunpack.c.l.b16 %v7456
    %v7791 = vunpack.c.h.b16 %v7456
    %v7792 = vunpack.c.l.b16 %v7457
    %v7793 = vunpack.c.h.b16 %v7457
    %v7794 = vunpack.c.l.b16 %v7458
    %v7795 = vunpack.c.h.b16 %v7458
    %v7796 = vunpack.c.l.b16 %v7459
    %v7797 = vunpack.c.h.b16 %v7459
    %v7798 = vunpack.c.l.b16 %v7460
    %v7799 = vunpack.c.h.b16 %v7460
    %v7800 = vunpack.c.l.b16 %v7461
    %v7801 = vunpack.c.h.b16 %v7461
    %v7802 = vunpack.c.l.b16 %v7462
    %v7803 = vunpack.c.h.b16 %v7462
    %v7804 = vunpack.c.l.b16 %v7463
    %v7805 = vunpack.c.h.b16 %v7463
    %v7806 = vunpack.c.l.b16 %v7464
    %v7807 = vunpack.c.h.b16 %v7464
    %v7808 = vunpack.c.l.b16 %v7465
    %v7809 = vunpack.c.h.b16 %v7465
    %v7810 = vunpack.c.l.b16 %v7466
    %v7811 = vunpack.c.h.b16 %v7466
    %v7812 = vunpack.c.l.b16 %v7467
    %v7813 = vunpack.c.h.b16 %v7467
    %v7814 = vunpack.c.l.b16 %v7468
    %v7815 = vunpack.c.h.b16 %v7468
    %v7816 = vunpack.c.l.b16 %v7469
    %v7817 = vunpack.c.h.b16 %v7469
    %v7818 = vunpack.c.l.b16 %v7470
    %v7819 = vunpack.c.h.b16 %v7470
    %v7820 = vunpack.c.l.b16 %v7471
    %v7821 = vunpack.c.h.b16 %v7471
    %v7822 = vunpack.c.l.b16 %v7472
    %v7823 = vunpack.c.h.b16 %v7472
    %v7824 = vunpack.c.l.b16 %v7473
    %v7825 = vunpack.c.h.b16 %v7473
    %v7826 = vunpack.c.l.b16 %v7474
    %v7827 = vunpack.c.h.b16 %v7474
    %v7828 = vunpack.c.l.b16 %v7475
    %v7829 = vunpack.c.h.b16 %v7475
    %v7830 = vunpack.c.l.b16 %v7476
    %v7831 = vunpack.c.h.b16 %v7476
    %v7832 = vunpack.c.l.b16 %v7477
    %v7833 = vunpack.c.h.b16 %v7477
    %v7834 = vunpack.c.l.b16 %v7478
    %v7835 = vunpack.c.h.b16 %v7478
    %v7836 = vunpack.c.l.b16 %v7479
    %v7837 = vunpack.c.h.b16 %v7479
    %v7838 = vunpack.c.l.b16 %v7480
    %v7839 = vunpack.c.h.b16 %v7480
    %v7840 = vunpack.c.l.b16 %v7481
    %v7841 = vunpack.c.h.b16 %v7481
    %v7842 = vunpack.c.l.b16 %v7482
    %v7843 = vunpack.c.h.b16 %v7482
    %v7844 = vunpack.c.l.b16 %v7483
    %v7845 = vunpack.c.h.b16 %v7483
    %v7846 = vunpack.c.l.b16 %v7484
    %v7847 = vunpack.c.h.b16 %v7484
    %v7848 = vunpack.c.l.b16 %v7485
    %v7849 = vunpack.c.h.b16 %v7485
    %v7850 = vunpack.c.l.b16 %v7486
    %v7851 = vunpack.c.h.b16 %v7486
    %v7852 = vunpack.c.l.b16 %v7487
    %v7853 = vunpack.c.h.b16 %v7487
    %v7854 = vunpack.c.l.b16 %v7488
    %v7855 = vunpack.c.h.b16 %v7488
    %v7856 = vunpack.c.l.b16 %v7489
    %v7857 = vunpack.c.h.b16 %v7489
    %v7858 = vunpack.c.l.b16 %v7490
    %v7859 = vunpack.c.h.b16 %v7490
    %v7860 = vunpack.c.l.b16 %v7491
    %v7861 = vunpack.c.h.b16 %v7491
    %v7862 = vunpack.c.l.b16 %v7492
    %v7863 = vunpack.c.h.b16 %v7492
    %v7864 = vunpack.c.l.b16 %v7493
    %v7865 = vunpack.c.h.b16 %v7493
    %v7866 = vunpack.c.l.b16 %v7494
    %v7867 = vunpack.c.h.b16 %v7494
    %v7868 = vunpack.c.l.b16 %v7495
    %v7869 = vunpack.c.h.b16 %v7495
    %v7870 = vunpack.c.l.b16 %v7496
    %v7871 = vunpack.c.h.b16 %v7496
    %v7872 = vunpack.c.l.b16 %v7497
    %v7873 = vunpack.c.h.b16 %v7497
    %v7874 = vunpack.c.l.b16 %v7498
    %v7875 = vunpack.c.h.b16 %v7498
    %v7876 = vunpack.c.l.b16 %v7499
    %v7877 = vunpack.c.h.b16 %v7499
    %v7878 = vunpack.c.l.b16 %v7500
    %v7879 = vunpack.c.h.b16 %v7500
    %v7880 = vunpack.c.l.b16 %v7501
    %v7881 = vunpack.c.h.b16 %v7501
    %v7882 = vunpack.c.l.b16 %v7502
    %v7883 = vunpack.c.h.b16 %v7502
    %v7884 = vunpack.c.l.b16 %v7503
    %v7885 = vunpack.c.h.b16 %v7503
    %v7886 = vunpack.c.l.b16 %v7504
    %v7887 = vunpack.c.h.b16 %v7504
    %v7888 = vunpack.c.l.b16 %v7505
    %v7889 = vunpack.c.h.b16 %v7505
    %v7890 = vunpack.c.l.b16 %v7506
    %v7891 = vunpack.c.h.b16 %v7506
    %v7892 = vunpack.c.l.b16 %v7507
    %v7893 = vunpack.c.h.b16 %v7507
    %v7894 = vunpack.c.l.b16 %v7508
    %v7895 = vunpack.c.h.b16 %v7508
    %v7896 = vunpack.c.l.b16 %v7509
    %v7897 = vunpack.c.h.b16 %v7509
    %v7898 = vunpack.c.l.b16 %v7510
    %v7899 = vunpack.c.h.b16 %v7510
    %v7900 = vunpack.c.l.b16 %v7511
    %v7901 = vunpack.c.h.b16 %v7511
    %v7902 = vunpack.c.l.b16 %v7512
    %v7903 = vunpack.c.h.b16 %v7512
    %v7904 = vunpack.c.l.b16 %v7513
    %v7905 = vunpack.c.h.b16 %v7513
    %v7906 = vunpack.c.l.b16 %v7514
    %v7907 = vunpack.c.h.b16 %v7514
    %v7908 = vunpack.c.l.b16 %v7515
    %v7909 = vunpack.c.h.b16 %v7515
    %v7910 = vunpack.c.l.b16 %v7516
    %v7911 = vunpack.c.h.b16 %v7516
    %v7912 = vpack.c.b16 %v7660, %v7656
    %v7913 = vpack.c.b16 %v7661, %v7657
    %v7914 = vpack.c.b16 %v7662, %v7658
    %v7915 = vpack.c.b16 %v7663, %v7659
    %v7916 = vpack.c.b16 %v7668, %v7664
    %v7917 = vpack.c.b16 %v7669, %v7665
    %v7918 = vpack.c.b16 %v7670, %v7666
    %v7919 = vpack.c.b16 %v7671, %v7667
    %v7920 = vpack.c.b16 %v7676, %v7672
    %v7921 = vpack.c.b16 %v7677, %v7673
    %v7922 = vpack.c.b16 %v7678, %v7674
    %v7923 = vpack.c.b16 %v7679, %v7675
    %v7924 = vpack.c.b16 %v7684, %v7680
    %v7925 = vpack.c.b16 %v7685, %v7681
    %v7926 = vpack.c.b16 %v7686, %v7682
    %v7927 = vpack.c.b16 %v7687, %v7683
    %v7928 = vpack.c.b16 %v7692, %v7688
    %v7929 = vpack.c.b16 %v7693, %v7689
    %v7930 = vpack.c.b16 %v7694, %v7690
    %v7931 = vpack.c.b16 %v7695, %v7691
    %v7932 = vpack.c.b16 %v7700, %v7696
    %v7933 = vpack.c.b16 %v7701, %v7697
    %v7934 = vpack.c.b16 %v7702, %v7698
    %v7935 = vpack.c.b16 %v7703, %v7699
    %v7936 = vpack.c.b16 %v7708, %v7704
    %v7937 = vpack.c.b16 %v7709, %v7705
    %v7938 = vpack.c.b16 %v7710, %v7706
    %v7939 = vpack.c.b16 %v7711, %v7707
    %v7940 = vpack.c.b16 %v7716, %v7712
    %v7941 = vpack.c.b16 %v7717, %v7713
    %v7942 = vpack.c.b16 %v7718, %v7714
    %v7943 = vpack.c.b16 %v7719, %v7715
    %v7944 = vpack.c.b16 %v7724, %v7720
    %v7945 = vpack.c.b16 %v7725, %v7721
    %v7946 = vpack.c.b16 %v7726, %v7722
    %v7947 = vpack.c.b16 %v7727, %v7723
    %v7948 = vpack.c.b16 %v7732, %v7728
    %v7949 = vpack.c.b16 %v7733, %v7729
    %v7950 = vpack.c.b16 %v7734, %v7730
    %v7951 = vpack.c.b16 %v7735, %v7731
    %v7952 = vpack.c.b16 %v7740, %v7736
    %v7953 = vpack.c.b16 %v7741, %v7737
    %v7954 = vpack.c.b16 %v7742, %v7738
    %v7955 = vpack.c.b16 %v7743, %v7739
    %v7956 = vpack.c.b16 %v7748, %v7744
    %v7957 = vpack.c.b16 %v7749, %v7745
    %v7958 = vpack.c.b16 %v7750, %v7746
    %v7959 = vpack.c.b16 %v7751, %v7747
    %v7960 = vpack.c.b16 %v7756, %v7752
    %v7961 = vpack.c.b16 %v7757, %v7753
    %v7962 = vpack.c.b16 %v7758, %v7754
    %v7963 = vpack.c.b16 %v7759, %v7755
    %v7964 = vpack.c.b16 %v7764, %v7760
    %v7965 = vpack.c.b16 %v7765, %v7761
    %v7966 = vpack.c.b16 %v7766, %v7762
    %v7967 = vpack.c.b16 %v7767, %v7763
    %v7968 = vpack.c.b16 %v7772, %v7768
    %v7969 = vpack.c.b16 %v7773, %v7769
    %v7970 = vpack.c.b16 %v7774, %v7770
    %v7971 = vpack.c.b16 %v7775, %v7771
    %v7972 = vpack.c.b16 %v7780, %v7776
    %v7973 = vpack.c.b16 %v7781, %v7777
    %v7974 = vpack.c.b16 %v7782, %v7778
    %v7975 = vpack.c.b16 %v7783, %v7779
    %v7976 = vpack.c.b16 %v7788, %v7784
    %v7977 = vpack.c.b16 %v7789, %v7785
    %v7978 = vpack.c.b16 %v7790, %v7786
    %v7979 = vpack.c.b16 %v7791, %v7787
    %v7980 = vpack.c.b16 %v7796, %v7792
    %v7981 = vpack.c.b16 %v7797, %v7793
    %v7982 = vpack.c.b16 %v7798, %v7794
    %v7983 = vpack.c.b16 %v7799, %v7795
    %v7984 = vpack.c.b16 %v7804, %v7800
    %v7985 = vpack.c.b16 %v7805, %v7801
    %v7986 = vpack.c.b16 %v7806, %v7802
    %v7987 = vpack.c.b16 %v7807, %v7803
    %v7988 = vpack.c.b16 %v7812, %v7808
    %v7989 = vpack.c.b16 %v7813, %v7809
    %v7990 = vpack.c.b16 %v7814, %v7810
    %v7991 = vpack.c.b16 %v7815, %v7811
    %v7992 = vpack.c.b16 %v7820, %v7816
    %v7993 = vpack.c.b16 %v7821, %v7817
    %v7994 = vpack.c.b16 %v7822, %v7818
    %v7995 = vpack.c.b16 %v7823, %v7819
    %v7996 = vpack.c.b16 %v7828, %v7824
    %v7997 = vpack.c.b16 %v7829, %v7825
    %v7998 = vpack.c.b16 %v7830, %v7826
    %v7999 = vpack.c.b16 %v7831, %v7827
    %v8000 = vpack.c.b16 %v7836, %v7832
    %v8001 = vpack.c.b16 %v7837, %v7833
    %v8002 = vpack.c.b16 %v7838, %v7834
    %v8003 = vpack.c.b16 %v7839, %v7835
    %v8004 = vpack.c.b16 %v7844, %v7840
    %v8005 = vpack.c.b16 %v7845, %v7841
    %v8006 = vpack.c.b16 %v7846, %v7842
    %v8007 = vpack.c.b16 %v7847, %v7843
    %v8008 = vpack.c.b16 %v7852, %v7848
    %v8009 = vpack.c.b16 %v7853, %v7849
    %v8010 = vpack.c.b16 %v7854, %v7850
    %v8011 = vpack.c.b16 %v7855, %v7851
    %v8012 = vpack.c.b16 %v7860, %v7856
    %v8013 = vpack.c.b16 %v7861, %v7857
    %v8014 = vpack.c.b16 %v7862, %v7858
    %v8015 = vpack.c.b16 %v7863, %v7859
    %v8016 = vpack.c.b16 %v7868, %v7864
    %v8017 = vpack.c.b16 %v7869, %v7865
    %v8018 = vpack.c.b16 %v7870, %v7866
    %v8019 = vpack.c.b16 %v7871, %v7867
    %v8020 = vpack.c.b16 %v7876, %v7872
    %v8021 = vpack.c.b16 %v7877, %v7873
    %v8022 = vpack.c.b16 %v7878, %v7874
    %v8023 = vpack.c.b16 %v7879, %v7875
    %v8024 = vpack.c.b16 %v7884, %v7880
    %v8025 = vpack.c.b16 %v7885, %v7881
    %v8026 = vpack.c.b16 %v7886, %v7882
    %v8027 = vpack.c.b16 %v7887, %v7883
    %v8028 = vpack.c.b16 %v7892, %v7888
    %v8029 = vpack.c.b16 %v7893, %v7889
    %v8030 = vpack.c.b16 %v7894, %v7890
    %v8031 = vpack.c.b16 %v7895, %v7891
    %v8032 = vpack.c.b16 %v7900, %v7896
    %v8033 = vpack.c.b16 %v7901, %v7897
    %v8034 = vpack.c.b16 %v7902, %v7898
    %v8035 = vpack.c.b16 %v7903, %v7899
    %v8036 = vpack.c.b16 %v7908, %v7904
    %v8037 = vpack.c.b16 %v7909, %v7905
    %v8038 = vpack.c.b16 %v7910, %v7906
    %v8039 = vpack.c.b16 %v7911, %v7907
    %8168 = vmatpush.bf16.msra.mxu0 %v7940
    %8169 = vmatpush.bf16.msra.mxu0 %v7936
    %8170 = vmatpush.bf16.msra.mxu0 %v7932
    %8171 = vmatpush.bf16.msra.mxu0 %v7928
    %8172 = vmatpush.bf16.msra.mxu0 %v7924
    %8173 = vmatpush.bf16.msra.mxu0 %v7920
    %8174 = vmatpush.bf16.msra.mxu0 %v7916
    %8175 = vmatpush.bf16.msra.mxu0 %v7912
    %8176 = vmatmul.bf16.gmra.mxu0 %v7384
    %v8177 = vpop.f32.mrf.mxu0
    %v8178 = vadd.f32 %v7520, %v8177
    %v8179 = vpop.f32.mrf.mxu0
    %v8180 = vadd.f32 %v7520, %v8179
    %8181 = vdwg.mxu0
    %8182 = vmatpush.bf16.msra.mxu0 %v7972
    %8183 = vmatpush.bf16.msra.mxu0 %v7968
    %8184 = vmatpush.bf16.msra.mxu0 %v7964
    %8185 = vmatpush.bf16.msra.mxu0 %v7960
    %8186 = vmatpush.bf16.msra.mxu0 %v7956
    %8187 = vmatpush.bf16.msra.mxu0 %v7952
    %8188 = vmatpush.bf16.msra.mxu0 %v7948
    %8189 = vmatpush.bf16.msra.mxu0 %v7944
    %8190 = vmatmul.bf16.gmra.mxu0 %v7385
    %v8191 = vpop.f32.mrf.mxu0
    %v8192 = vadd.f32 %v8178, %v8191
    %v8193 = vpop.f32.mrf.mxu0
    %v8194 = vadd.f32 %v8180, %v8193
    %8195 = vdwg.mxu0
    %8196 = vmatpush.bf16.msra.mxu0 %v8004
    %8197 = vmatpush.bf16.msra.mxu0 %v8000
    %8198 = vmatpush.bf16.msra.mxu0 %v7996
    %8199 = vmatpush.bf16.msra.mxu0 %v7992
    %8200 = vmatpush.bf16.msra.mxu0 %v7988
    %8201 = vmatpush.bf16.msra.mxu0 %v7984
    %8202 = vmatpush.bf16.msra.mxu0 %v7980
    %8203 = vmatpush.bf16.msra.mxu0 %v7976
    %8204 = vmatmul.bf16.gmra.mxu0 %v7386
    %v8205 = vpop.f32.mrf.mxu0
    %v8206 = vadd.f32 %v8192, %v8205
    %v8207 = vpop.f32.mrf.mxu0
    %v8208 = vadd.f32 %v8194, %v8207
    %8209 = vdwg.mxu0
    %8210 = vmatpush.bf16.msra.mxu0 %v8036
    %8211 = vmatpush.bf16.msra.mxu0 %v8032
    %8212 = vmatpush.bf16.msra.mxu0 %v8028
    %8213 = vmatpush.bf16.msra.mxu0 %v8024
    %8214 = vmatpush.bf16.msra.mxu0 %v8020
    %8215 = vmatpush.bf16.msra.mxu0 %v8016
    %8216 = vmatpush.bf16.msra.mxu0 %v8012
    %8217 = vmatpush.bf16.msra.mxu0 %v8008
    %8218 = vmatmul.bf16.gmra.mxu0 %v7387
    %v8219 = vpop.f32.mrf.mxu0
    %v8220 = vadd.f32 %v8206, %v8219
    %v8221 = vpop.f32.mrf.mxu0
    %v8222 = vadd.f32 %v8208, %v8221
    %8223 = vdwg.mxu0
    %8224 = vmatpush.bf16.msra.mxu0 %v7941
    %8225 = vmatpush.bf16.msra.mxu0 %v7937
    %8226 = vmatpush.bf16.msra.mxu0 %v7933
    %8227 = vmatpush.bf16.msra.mxu0 %v7929
    %8228 = vmatpush.bf16.msra.mxu0 %v7925
    %8229 = vmatpush.bf16.msra.mxu0 %v7921
    %8230 = vmatpush.bf16.msra.mxu0 %v7917
    %8231 = vmatpush.bf16.msra.mxu0 %v7913
    %8232 = vmatmul.bf16.gmra.mxu0 %v7384
    %v8233 = vpop.f32.mrf.mxu0
    %v8234 = vadd.f32 %v7521, %v8233
    %v8235 = vpop.f32.mrf.mxu0
    %v8236 = vadd.f32 %v7521, %v8235
    %8237 = vdwg.mxu0
    %8238 = vmatpush.bf16.msra.mxu0 %v7973
    %8239 = vmatpush.bf16.msra.mxu0 %v7969
    %8240 = vmatpush.bf16.msra.mxu0 %v7965
    %8241 = vmatpush.bf16.msra.mxu0 %v7961
    %8242 = vmatpush.bf16.msra.mxu0 %v7957
    %8243 = vmatpush.bf16.msra.mxu0 %v7953
    %8244 = vmatpush.bf16.msra.mxu0 %v7949
    %8245 = vmatpush.bf16.msra.mxu0 %v7945
    %8246 = vmatmul.bf16.gmra.mxu0 %v7385
    %v8247 = vpop.f32.mrf.mxu0
    %v8248 = vadd.f32 %v8234, %v8247
    %v8249 = vpop.f32.mrf.mxu0
    %v8250 = vadd.f32 %v8236, %v8249
    %8251 = vdwg.mxu0
    %8252 = vmatpush.bf16.msra.mxu0 %v8005
    %8253 = vmatpush.bf16.msra.mxu0 %v8001
    %8254 = vmatpush.bf16.msra.mxu0 %v7997
    %8255 = vmatpush.bf16.msra.mxu0 %v7993
    %8256 = vmatpush.bf16.msra.mxu0 %v7989
    %8257 = vmatpush.bf16.msra.mxu0 %v7985
    %8258 = vmatpush.bf16.msra.mxu0 %v7981
    %8259 = vmatpush.bf16.msra.mxu0 %v7977
    %8260 = vmatmul.bf16.gmra.mxu0 %v7386
    %v8261 = vpop.f32.mrf.mxu0
    %v8262 = vadd.f32 %v8248, %v8261
    %v8263 = vpop.f32.mrf.mxu0
    %v8264 = vadd.f32 %v8250, %v8263
    %8265 = vdwg.mxu0
    %8266 = vmatpush.bf16.msra.mxu0 %v8037
    %8267 = vmatpush.bf16.msra.mxu0 %v8033
    %8268 = vmatpush.bf16.msra.mxu0 %v8029
    %8269 = vmatpush.bf16.msra.mxu0 %v8025
    %8270 = vmatpush.bf16.msra.mxu0 %v8021
    %8271 = vmatpush.bf16.msra.mxu0 %v8017
    %8272 = vmatpush.bf16.msra.mxu0 %v8013
    %8273 = vmatpush.bf16.msra.mxu0 %v8009
    %8274 = vmatmul.bf16.gmra.mxu0 %v7387
    %v8275 = vpop.f32.mrf.mxu0
    %v8276 = vadd.f32 %v8262, %v8275
    %v8277 = vpop.f32.mrf.mxu0
    %v8278 = vadd.f32 %v8264, %v8277
    %8279 = vdwg.mxu0
    %8280 = vmatpush.bf16.msra.mxu0 %v7942
    %8281 = vmatpush.bf16.msra.mxu0 %v7938
    %8282 = vmatpush.bf16.msra.mxu0 %v7934
    %8283 = vmatpush.bf16.msra.mxu0 %v7930
    %8284 = vmatpush.bf16.msra.mxu0 %v7926
    %8285 = vmatpush.bf16.msra.mxu0 %v7922
    %8286 = vmatpush.bf16.msra.mxu0 %v7918
    %8287 = vmatpush.bf16.msra.mxu0 %v7914
    %8288 = vmatmul.bf16.gmra.mxu0 %v7384
    %v8289 = vpop.f32.mrf.mxu0
    %v8290 = vadd.f32 %v7522, %v8289
    %v8291 = vpop.f32.mrf.mxu0
    %v8292 = vadd.f32 %v7522, %v8291
    %8293 = vdwg.mxu0
    %8294 = vmatpush.bf16.msra.mxu0 %v7974
    %8295 = vmatpush.bf16.msra.mxu0 %v7970
    %8296 = vmatpush.bf16.msra.mxu0 %v7966
    %8297 = vmatpush.bf16.msra.mxu0 %v7962
    %8298 = vmatpush.bf16.msra.mxu0 %v7958
    %8299 = vmatpush.bf16.msra.mxu0 %v7954
    %8300 = vmatpush.bf16.msra.mxu0 %v7950
    %8301 = vmatpush.bf16.msra.mxu0 %v7946
    %8302 = vmatmul.bf16.gmra.mxu0 %v7385
    %v8303 = vpop.f32.mrf.mxu0
    %v8304 = vadd.f32 %v8290, %v8303
    %v8305 = vpop.f32.mrf.mxu0
    %v8306 = vadd.f32 %v8292, %v8305
    %8307 = vdwg.mxu0
    %8308 = vmatpush.bf16.msra.mxu0 %v8006
    %8309 = vmatpush.bf16.msra.mxu0 %v8002
    %8310 = vmatpush.bf16.msra.mxu0 %v7998
    %8311 = vmatpush.bf16.msra.mxu0 %v7994
    %8312 = vmatpush.bf16.msra.mxu0 %v7990
    %8313 = vmatpush.bf16.msra.mxu0 %v7986
    %8314 = vmatpush.bf16.msra.mxu0 %v7982
    %8315 = vmatpush.bf16.msra.mxu0 %v7978
    %8316 = vmatmul.bf16.gmra.mxu0 %v7386
    %v8317 = vpop.f32.mrf.mxu0
    %v8318 = vadd.f32 %v8304, %v8317
    %v8319 = vpop.f32.mrf.mxu0
    %v8320 = vadd.f32 %v8306, %v8319
    %8321 = vdwg.mxu0
    %8322 = vmatpush.bf16.msra.mxu0 %v8038
    %8323 = vmatpush.bf16.msra.mxu0 %v8034
    %8324 = vmatpush.bf16.msra.mxu0 %v8030
    %8325 = vmatpush.bf16.msra.mxu0 %v8026
    %8326 = vmatpush.bf16.msra.mxu0 %v8022
    %8327 = vmatpush.bf16.msra.mxu0 %v8018
    %8328 = vmatpush.bf16.msra.mxu0 %v8014
    %8329 = vmatpush.bf16.msra.mxu0 %v8010
    %8330 = vmatmul.bf16.gmra.mxu0 %v7387
    %v8331 = vpop.f32.mrf.mxu0
    %v8332 = vadd.f32 %v8318, %v8331
    %v8333 = vpop.f32.mrf.mxu0
    %v8334 = vadd.f32 %v8320, %v8333
    %8335 = vdwg.mxu0
    %8336 = vmatpush.bf16.msra.mxu0 %v7943
    %8337 = vmatpush.bf16.msra.mxu0 %v7939
    %8338 = vmatpush.bf16.msra.mxu0 %v7935
    %8339 = vmatpush.bf16.msra.mxu0 %v7931
    %8340 = vmatpush.bf16.msra.mxu0 %v7927
    %8341 = vmatpush.bf16.msra.mxu0 %v7923
    %8342 = vmatpush.bf16.msra.mxu0 %v7919
    %8343 = vmatpush.bf16.msra.mxu0 %v7915
    %8344 = vmatmul.bf16.gmra.mxu0 %v7384
    %v8345 = vpop.f32.mrf.mxu0
    %v8346 = vadd.f32 %v7523, %v8345
    %v8347 = vpop.f32.mrf.mxu0
    %v8348 = vadd.f32 %v7523, %v8347
    %8349 = vdwg.mxu0
    %8350 = vmatpush.bf16.msra.mxu0 %v7975
    %8351 = vmatpush.bf16.msra.mxu0 %v7971
    %8352 = vmatpush.bf16.msra.mxu0 %v7967
    %8353 = vmatpush.bf16.msra.mxu0 %v7963
    %8354 = vmatpush.bf16.msra.mxu0 %v7959
    %8355 = vmatpush.bf16.msra.mxu0 %v7955
    %8356 = vmatpush.bf16.msra.mxu0 %v7951
    %8357 = vmatpush.bf16.msra.mxu0 %v7947
    %8358 = vmatmul.bf16.gmra.mxu0 %v7385
    %v8359 = vpop.f32.mrf.mxu0
    %v8360 = vadd.f32 %v8346, %v8359
    %v8361 = vpop.f32.mrf.mxu0
    %v8362 = vadd.f32 %v8348, %v8361
    %8363 = vdwg.mxu0
    %8364 = vmatpush.bf16.msra.mxu0 %v8007
    %8365 = vmatpush.bf16.msra.mxu0 %v8003
    %8366 = vmatpush.bf16.msra.mxu0 %v7999
    %8367 = vmatpush.bf16.msra.mxu0 %v7995
    %8368 = vmatpush.bf16.msra.mxu0 %v7991
    %8369 = vmatpush.bf16.msra.mxu0 %v7987
    %8370 = vmatpush.bf16.msra.mxu0 %v7983
    %8371 = vmatpush.bf16.msra.mxu0 %v7979
    %8372 = vmatmul.bf16.gmra.mxu0 %v7386
    %v8373 = vpop.f32.mrf.mxu0
    %v8374 = vadd.f32 %v8360, %v8373
    %v8375 = vpop.f32.mrf.mxu0
    %v8376 = vadd.f32 %v8362, %v8375
    %8377 = vdwg.mxu0
    %8378 = vmatpush.bf16.msra.mxu0 %v8039
    %8379 = vmatpush.bf16.msra.mxu0 %v8035
    %8380 = vmatpush.bf16.msra.mxu0 %v8031
    %8381 = vmatpush.bf16.msra.mxu0 %v8027
    %8382 = vmatpush.bf16.msra.mxu0 %v8023
    %8383 = vmatpush.bf16.msra.mxu0 %v8019
    %8384 = vmatpush.bf16.msra.mxu0 %v8015
    %8385 = vmatpush.bf16.msra.mxu0 %v8011
    %8386 = vmatmul.bf16.gmra.mxu0 %v7387
    %v8387 = vpop.f32.mrf.mxu0
    %v8388 = vadd.f32 %v8374, %v8387
    %v8389 = vpop.f32.mrf.mxu0
    %v8390 = vadd.f32 %v8376, %v8389
    %8391 = vdwg.mxu0
    %v8392 = vmax.f32 %v8220, 0.0
    %v8393 = vmax.f32 %v8276, 0.0
    %v8394 = vmax.f32 %v8332, 0.0
    %v8395 = vmax.f32 %v8388, 0.0
    %v8396 = vmax.f32 %v8222, 0.0
    %v8397 = vmax.f32 %v8278, 0.0
    %v8398 = vmax.f32 %v8334, 0.0
    %v8399 = vmax.f32 %v8390, 0.0
    %v8400 = vpack.c.bf16 %v8396, %v8392
    %v8401 = vpack.c.bf16 %v8397, %v8393
    %v8402 = vpack.c.bf16 %v8398, %v8394
    %v8403 = vpack.c.bf16 %v8399, %v8395
    %s8404 = scalar_lea.vmem [#allocation10], 2048
    %v8405 = vld [vmem:[%s8404] sm:$0xff]
    %v8406 = vld [vmem:[%s8404 + $0x8] sm:$0xff]
    %v8407 = vld [vmem:[%s8404 + $0x10] sm:$0xff]
    %v8408 = vld [vmem:[%s8404 + $0x18] sm:$0xff]
    %v8409 = vld [vmem:[%s8404 + $0x20] sm:$0xff]
    %v8410 = vld [vmem:[%s8404 + $0x28] sm:$0xff]
    %v8411 = vld [vmem:[%s8404 + $0x30] sm:$0xff]
    %v8412 = vld [vmem:[%s8404 + $0x38] sm:$0xff]
    %v8413 = vld [vmem:[%s8404 + $0x40] sm:$0xff]
    %v8414 = vld [vmem:[%s8404 + $0x48] sm:$0xff]
    %v8415 = vld [vmem:[%s8404 + $0x50] sm:$0xff]
    %v8416 = vld [vmem:[%s8404 + $0x58] sm:$0xff]
    %v8417 = vld [vmem:[%s8404 + $0x60] sm:$0xff]
    %v8418 = vld [vmem:[%s8404 + $0x68] sm:$0xff]
    %v8419 = vld [vmem:[%s8404 + $0x70] sm:$0xff]
    %v8420 = vld [vmem:[%s8404 + $0x78] sm:$0xff]
    %v8421 = vld [vmem:[%s8404 + $0x80] sm:$0xff]
    %v8422 = vld [vmem:[%s8404 + $0x88] sm:$0xff]
    %v8423 = vld [vmem:[%s8404 + $0x90] sm:$0xff]
    %v8424 = vld [vmem:[%s8404 + $0x98] sm:$0xff]
    %v8425 = vld [vmem:[%s8404 + $0xa0] sm:$0xff]
    %v8426 = vld [vmem:[%s8404 + $0xa8] sm:$0xff]
    %v8427 = vld [vmem:[%s8404 + $0xb0] sm:$0xff]
    %v8428 = vld [vmem:[%s8404 + $0xb8] sm:$0xff]
    %v8429 = vld [vmem:[%s8404 + $0xc0] sm:$0xff]
    %v8430 = vld [vmem:[%s8404 + $0xc8] sm:$0xff]
    %v8431 = vld [vmem:[%s8404 + $0xd0] sm:$0xff]
    %v8432 = vld [vmem:[%s8404 + $0xd8] sm:$0xff]
    %v8433 = vld [vmem:[%s8404 + $0xe0] sm:$0xff]
    %v8434 = vld [vmem:[%s8404 + $0xe8] sm:$0xff]
    %v8435 = vld [vmem:[%s8404 + $0xf0] sm:$0xff]
    %v8436 = vld [vmem:[%s8404 + $0xf8] sm:$0xff]
    %v8437 = vld [vmem:[%s8404 + $0x100] sm:$0xff]
    %v8438 = vld [vmem:[%s8404 + $0x108] sm:$0xff]
    %v8439 = vld [vmem:[%s8404 + $0x110] sm:$0xff]
    %v8440 = vld [vmem:[%s8404 + $0x118] sm:$0xff]
    %v8441 = vld [vmem:[%s8404 + $0x120] sm:$0xff]
    %v8442 = vld [vmem:[%s8404 + $0x128] sm:$0xff]
    %v8443 = vld [vmem:[%s8404 + $0x130] sm:$0xff]
    %v8444 = vld [vmem:[%s8404 + $0x138] sm:$0xff]
    %v8445 = vld [vmem:[%s8404 + $0x140] sm:$0xff]
    %v8446 = vld [vmem:[%s8404 + $0x148] sm:$0xff]
    %v8447 = vld [vmem:[%s8404 + $0x150] sm:$0xff]
    %v8448 = vld [vmem:[%s8404 + $0x158] sm:$0xff]
    %v8449 = vld [vmem:[%s8404 + $0x160] sm:$0xff]
    %v8450 = vld [vmem:[%s8404 + $0x168] sm:$0xff]
    %v8451 = vld [vmem:[%s8404 + $0x170] sm:$0xff]
    %v8452 = vld [vmem:[%s8404 + $0x178] sm:$0xff]
    %v8453 = vld [vmem:[%s8404 + $0x180] sm:$0xff]
    %v8454 = vld [vmem:[%s8404 + $0x188] sm:$0xff]
    %v8455 = vld [vmem:[%s8404 + $0x190] sm:$0xff]
    %v8456 = vld [vmem:[%s8404 + $0x198] sm:$0xff]
    %v8457 = vld [vmem:[%s8404 + $0x1a0] sm:$0xff]
    %v8458 = vld [vmem:[%s8404 + $0x1a8] sm:$0xff]
    %v8459 = vld [vmem:[%s8404 + $0x1b0] sm:$0xff]
    %v8460 = vld [vmem:[%s8404 + $0x1b8] sm:$0xff]
    %v8461 = vld [vmem:[%s8404 + $0x1c0] sm:$0xff]
    %v8462 = vld [vmem:[%s8404 + $0x1c8] sm:$0xff]
    %v8463 = vld [vmem:[%s8404 + $0x1d0] sm:$0xff]
    %v8464 = vld [vmem:[%s8404 + $0x1d8] sm:$0xff]
    %v8465 = vld [vmem:[%s8404 + $0x1e0] sm:$0xff]
    %v8466 = vld [vmem:[%s8404 + $0x1e8] sm:$0xff]
    %v8467 = vld [vmem:[%s8404 + $0x1f0] sm:$0xff]
    %v8468 = vld [vmem:[%s8404 + $0x1f8] sm:$0xff]
    %v8469 = vld [vmem:[%s8404 + $0x200] sm:$0xff]
    %v8470 = vld [vmem:[%s8404 + $0x208] sm:$0xff]
    %v8471 = vld [vmem:[%s8404 + $0x210] sm:$0xff]
    %v8472 = vld [vmem:[%s8404 + $0x218] sm:$0xff]
    %v8473 = vld [vmem:[%s8404 + $0x220] sm:$0xff]
    %v8474 = vld [vmem:[%s8404 + $0x228] sm:$0xff]
    %v8475 = vld [vmem:[%s8404 + $0x230] sm:$0xff]
    %v8476 = vld [vmem:[%s8404 + $0x238] sm:$0xff]
    %v8477 = vld [vmem:[%s8404 + $0x240] sm:$0xff]
    %v8478 = vld [vmem:[%s8404 + $0x248] sm:$0xff]
    %v8479 = vld [vmem:[%s8404 + $0x250] sm:$0xff]
    %v8480 = vld [vmem:[%s8404 + $0x258] sm:$0xff]
    %v8481 = vld [vmem:[%s8404 + $0x260] sm:$0xff]
    %v8482 = vld [vmem:[%s8404 + $0x268] sm:$0xff]
    %v8483 = vld [vmem:[%s8404 + $0x270] sm:$0xff]
    %v8484 = vld [vmem:[%s8404 + $0x278] sm:$0xff]
    %v8485 = vld [vmem:[%s8404 + $0x280] sm:$0xff]
    %v8486 = vld [vmem:[%s8404 + $0x288] sm:$0xff]
    %v8487 = vld [vmem:[%s8404 + $0x290] sm:$0xff]
    %v8488 = vld [vmem:[%s8404 + $0x298] sm:$0xff]
    %v8489 = vld [vmem:[%s8404 + $0x2a0] sm:$0xff]
    %v8490 = vld [vmem:[%s8404 + $0x2a8] sm:$0xff]
    %v8491 = vld [vmem:[%s8404 + $0x2b0] sm:$0xff]
    %v8492 = vld [vmem:[%s8404 + $0x2b8] sm:$0xff]
    %v8493 = vld [vmem:[%s8404 + $0x2c0] sm:$0xff]
    %v8494 = vld [vmem:[%s8404 + $0x2c8] sm:$0xff]
    %v8495 = vld [vmem:[%s8404 + $0x2d0] sm:$0xff]
    %v8496 = vld [vmem:[%s8404 + $0x2d8] sm:$0xff]
    %v8497 = vld [vmem:[%s8404 + $0x2e0] sm:$0xff]
    %v8498 = vld [vmem:[%s8404 + $0x2e8] sm:$0xff]
    %v8499 = vld [vmem:[%s8404 + $0x2f0] sm:$0xff]
    %v8500 = vld [vmem:[%s8404 + $0x2f8] sm:$0xff]
    %v8501 = vld [vmem:[%s8404 + $0x300] sm:$0xff]
    %v8502 = vld [vmem:[%s8404 + $0x308] sm:$0xff]
    %v8503 = vld [vmem:[%s8404 + $0x310] sm:$0xff]
    %v8504 = vld [vmem:[%s8404 + $0x318] sm:$0xff]
    %v8505 = vld [vmem:[%s8404 + $0x320] sm:$0xff]
    %v8506 = vld [vmem:[%s8404 + $0x328] sm:$0xff]
    %v8507 = vld [vmem:[%s8404 + $0x330] sm:$0xff]
    %v8508 = vld [vmem:[%s8404 + $0x338] sm:$0xff]
    %v8509 = vld [vmem:[%s8404 + $0x340] sm:$0xff]
    %v8510 = vld [vmem:[%s8404 + $0x348] sm:$0xff]
    %v8511 = vld [vmem:[%s8404 + $0x350] sm:$0xff]
    %v8512 = vld [vmem:[%s8404 + $0x358] sm:$0xff]
    %v8513 = vld [vmem:[%s8404 + $0x360] sm:$0xff]
    %v8514 = vld [vmem:[%s8404 + $0x368] sm:$0xff]
    %v8515 = vld [vmem:[%s8404 + $0x370] sm:$0xff]
    %v8516 = vld [vmem:[%s8404 + $0x378] sm:$0xff]
    %v8517 = vld [vmem:[%s8404 + $0x380] sm:$0xff]
    %v8518 = vld [vmem:[%s8404 + $0x388] sm:$0xff]
    %v8519 = vld [vmem:[%s8404 + $0x390] sm:$0xff]
    %v8520 = vld [vmem:[%s8404 + $0x398] sm:$0xff]
    %v8521 = vld [vmem:[%s8404 + $0x3a0] sm:$0xff]
    %v8522 = vld [vmem:[%s8404 + $0x3a8] sm:$0xff]
    %v8523 = vld [vmem:[%s8404 + $0x3b0] sm:$0xff]
    %v8524 = vld [vmem:[%s8404 + $0x3b8] sm:$0xff]
    %v8525 = vld [vmem:[%s8404 + $0x3c0] sm:$0xff]
    %v8526 = vld [vmem:[%s8404 + $0x3c8] sm:$0xff]
    %v8527 = vld [vmem:[%s8404 + $0x3d0] sm:$0xff]
    %v8528 = vld [vmem:[%s8404 + $0x3d8] sm:$0xff]
    %v8529 = vld [vmem:[%s8404 + $0x3e0] sm:$0xff]
    %v8530 = vld [vmem:[%s8404 + $0x3e8] sm:$0xff]
    %v8531 = vld [vmem:[%s8404 + $0x3f0] sm:$0xff]
    %v8532 = vld [vmem:[%s8404 + $0x3f8] sm:$0xff]
    %s8533 = scalar_lea.vmem [#allocation11], 8
    %v8534 = vld [vmem:[%s8533] sm:$0xf]
    %v8536 = vperm.slane %v8534, 0
    %v8537 = vperm.slane %v8534, 1
    %v8538 = vperm.slane %v8534, 2
    %v8539 = vperm.slane %v8534, 3
    %v8672 = vunpack.c.l.b16 %v8405
    %v8673 = vunpack.c.h.b16 %v8405
    %v8674 = vunpack.c.l.b16 %v8406
    %v8675 = vunpack.c.h.b16 %v8406
    %v8676 = vunpack.c.l.b16 %v8407
    %v8677 = vunpack.c.h.b16 %v8407
    %v8678 = vunpack.c.l.b16 %v8408
    %v8679 = vunpack.c.h.b16 %v8408
    %v8680 = vunpack.c.l.b16 %v8409
    %v8681 = vunpack.c.h.b16 %v8409
    %v8682 = vunpack.c.l.b16 %v8410
    %v8683 = vunpack.c.h.b16 %v8410
    %v8684 = vunpack.c.l.b16 %v8411
    %v8685 = vunpack.c.h.b16 %v8411
    %v8686 = vunpack.c.l.b16 %v8412
    %v8687 = vunpack.c.h.b16 %v8412
    %v8688 = vunpack.c.l.b16 %v8413
    %v8689 = vunpack.c.h.b16 %v8413
    %v8690 = vunpack.c.l.b16 %v8414
    %v8691 = vunpack.c.h.b16 %v8414
    %v8692 = vunpack.c.l.b16 %v8415
    %v8693 = vunpack.c.h.b16 %v8415
    %v8694 = vunpack.c.l.b16 %v8416
    %v8695 = vunpack.c.h.b16 %v8416
    %v8696 = vunpack.c.l.b16 %v8417
    %v8697 = vunpack.c.h.b16 %v8417
    %v8698 = vunpack.c.l.b16 %v8418
    %v8699 = vunpack.c.h.b16 %v8418
    %v8700 = vunpack.c.l.b16 %v8419
    %v8701 = vunpack.c.h.b16 %v8419
    %v8702 = vunpack.c.l.b16 %v8420
    %v8703 = vunpack.c.h.b16 %v8420
    %v8704 = vunpack.c.l.b16 %v8421
    %v8705 = vunpack.c.h.b16 %v8421
    %v8706 = vunpack.c.l.b16 %v8422
    %v8707 = vunpack.c.h.b16 %v8422
    %v8708 = vunpack.c.l.b16 %v8423
    %v8709 = vunpack.c.h.b16 %v8423
    %v8710 = vunpack.c.l.b16 %v8424
    %v8711 = vunpack.c.h.b16 %v8424
    %v8712 = vunpack.c.l.b16 %v8425
    %v8713 = vunpack.c.h.b16 %v8425
    %v8714 = vunpack.c.l.b16 %v8426
    %v8715 = vunpack.c.h.b16 %v8426
    %v8716 = vunpack.c.l.b16 %v8427
    %v8717 = vunpack.c.h.b16 %v8427
    %v8718 = vunpack.c.l.b16 %v8428
    %v8719 = vunpack.c.h.b16 %v8428
    %v8720 = vunpack.c.l.b16 %v8429
    %v8721 = vunpack.c.h.b16 %v8429
    %v8722 = vunpack.c.l.b16 %v8430
    %v8723 = vunpack.c.h.b16 %v8430
    %v8724 = vunpack.c.l.b16 %v8431
    %v8725 = vunpack.c.h.b16 %v8431
    %v8726 = vunpack.c.l.b16 %v8432
    %v8727 = vunpack.c.h.b16 %v8432
    %v8728 = vunpack.c.l.b16 %v8433
    %v8729 = vunpack.c.h.b16 %v8433
    %v8730 = vunpack.c.l.b16 %v8434
    %v8731 = vunpack.c.h.b16 %v8434
    %v8732 = vunpack.c.l.b16 %v8435
    %v8733 = vunpack.c.h.b16 %v8435
    %v8734 = vunpack.c.l.b16 %v8436
    %v8735 = vunpack.c.h.b16 %v8436
    %v8736 = vunpack.c.l.b16 %v8437
    %v8737 = vunpack.c.h.b16 %v8437
    %v8738 = vunpack.c.l.b16 %v8438
    %v8739 = vunpack.c.h.b16 %v8438
    %v8740 = vunpack.c.l.b16 %v8439
    %v8741 = vunpack.c.h.b16 %v8439
    %v8742 = vunpack.c.l.b16 %v8440
    %v8743 = vunpack.c.h.b16 %v8440
    %v8744 = vunpack.c.l.b16 %v8441
    %v8745 = vunpack.c.h.b16 %v8441
    %v8746 = vunpack.c.l.b16 %v8442
    %v8747 = vunpack.c.h.b16 %v8442
    %v8748 = vunpack.c.l.b16 %v8443
    %v8749 = vunpack.c.h.b16 %v8443
    %v8750 = vunpack.c.l.b16 %v8444
    %v8751 = vunpack.c.h.b16 %v8444
    %v8752 = vunpack.c.l.b16 %v8445
    %v8753 = vunpack.c.h.b16 %v8445
    %v8754 = vunpack.c.l.b16 %v8446
    %v8755 = vunpack.c.h.b16 %v8446
    %v8756 = vunpack.c.l.b16 %v8447
    %v8757 = vunpack.c.h.b16 %v8447
    %v8758 = vunpack.c.l.b16 %v8448
    %v8759 = vunpack.c.h.b16 %v8448
    %v8760 = vunpack.c.l.b16 %v8449
    %v8761 = vunpack.c.h.b16 %v8449
    %v8762 = vunpack.c.l.b16 %v8450
    %v8763 = vunpack.c.h.b16 %v8450
    %v8764 = vunpack.c.l.b16 %v8451
    %v8765 = vunpack.c.h.b16 %v8451
    %v8766 = vunpack.c.l.b16 %v8452
    %v8767 = vunpack.c.h.b16 %v8452
    %v8768 = vunpack.c.l.b16 %v8453
    %v8769 = vunpack.c.h.b16 %v8453
    %v8770 = vunpack.c.l.b16 %v8454
    %v8771 = vunpack.c.h.b16 %v8454
    %v8772 = vunpack.c.l.b16 %v8455
    %v8773 = vunpack.c.h.b16 %v8455
    %v8774 = vunpack.c.l.b16 %v8456
    %v8775 = vunpack.c.h.b16 %v8456
    %v8776 = vunpack.c.l.b16 %v8457
    %v8777 = vunpack.c.h.b16 %v8457
    %v8778 = vunpack.c.l.b16 %v8458
    %v8779 = vunpack.c.h.b16 %v8458
    %v8780 = vunpack.c.l.b16 %v8459
    %v8781 = vunpack.c.h.b16 %v8459
    %v8782 = vunpack.c.l.b16 %v8460
    %v8783 = vunpack.c.h.b16 %v8460
    %v8784 = vunpack.c.l.b16 %v8461
    %v8785 = vunpack.c.h.b16 %v8461
    %v8786 = vunpack.c.l.b16 %v8462
    %v8787 = vunpack.c.h.b16 %v8462
    %v8788 = vunpack.c.l.b16 %v8463
    %v8789 = vunpack.c.h.b16 %v8463
    %v8790 = vunpack.c.l.b16 %v8464
    %v8791 = vunpack.c.h.b16 %v8464
    %v8792 = vunpack.c.l.b16 %v8465
    %v8793 = vunpack.c.h.b16 %v8465
    %v8794 = vunpack.c.l.b16 %v8466
    %v8795 = vunpack.c.h.b16 %v8466
    %v8796 = vunpack.c.l.b16 %v8467
    %v8797 = vunpack.c.h.b16 %v8467
    %v8798 = vunpack.c.l.b16 %v8468
    %v8799 = vunpack.c.h.b16 %v8468
    %v8800 = vunpack.c.l.b16 %v8469
    %v8801 = vunpack.c.h.b16 %v8469
    %v8802 = vunpack.c.l.b16 %v8470
    %v8803 = vunpack.c.h.b16 %v8470
    %v8804 = vunpack.c.l.b16 %v8471
    %v8805 = vunpack.c.h.b16 %v8471
    %v8806 = vunpack.c.l.b16 %v8472
    %v8807 = vunpack.c.h.b16 %v8472
    %v8808 = vunpack.c.l.b16 %v8473
    %v8809 = vunpack.c.h.b16 %v8473
    %v8810 = vunpack.c.l.b16 %v8474
    %v8811 = vunpack.c.h.b16 %v8474
    %v8812 = vunpack.c.l.b16 %v8475
    %v8813 = vunpack.c.h.b16 %v8475
    %v8814 = vunpack.c.l.b16 %v8476
    %v8815 = vunpack.c.h.b16 %v8476
    %v8816 = vunpack.c.l.b16 %v8477
    %v8817 = vunpack.c.h.b16 %v8477
    %v8818 = vunpack.c.l.b16 %v8478
    %v8819 = vunpack.c.h.b16 %v8478
    %v8820 = vunpack.c.l.b16 %v8479
    %v8821 = vunpack.c.h.b16 %v8479
    %v8822 = vunpack.c.l.b16 %v8480
    %v8823 = vunpack.c.h.b16 %v8480
    %v8824 = vunpack.c.l.b16 %v8481
    %v8825 = vunpack.c.h.b16 %v8481
    %v8826 = vunpack.c.l.b16 %v8482
    %v8827 = vunpack.c.h.b16 %v8482
    %v8828 = vunpack.c.l.b16 %v8483
    %v8829 = vunpack.c.h.b16 %v8483
    %v8830 = vunpack.c.l.b16 %v8484
    %v8831 = vunpack.c.h.b16 %v8484
    %v8832 = vunpack.c.l.b16 %v8485
    %v8833 = vunpack.c.h.b16 %v8485
    %v8834 = vunpack.c.l.b16 %v8486
    %v8835 = vunpack.c.h.b16 %v8486
    %v8836 = vunpack.c.l.b16 %v8487
    %v8837 = vunpack.c.h.b16 %v8487
    %v8838 = vunpack.c.l.b16 %v8488
    %v8839 = vunpack.c.h.b16 %v8488
    %v8840 = vunpack.c.l.b16 %v8489
    %v8841 = vunpack.c.h.b16 %v8489
    %v8842 = vunpack.c.l.b16 %v8490
    %v8843 = vunpack.c.h.b16 %v8490
    %v8844 = vunpack.c.l.b16 %v8491
    %v8845 = vunpack.c.h.b16 %v8491
    %v8846 = vunpack.c.l.b16 %v8492
    %v8847 = vunpack.c.h.b16 %v8492
    %v8848 = vunpack.c.l.b16 %v8493
    %v8849 = vunpack.c.h.b16 %v8493
    %v8850 = vunpack.c.l.b16 %v8494
    %v8851 = vunpack.c.h.b16 %v8494
    %v8852 = vunpack.c.l.b16 %v8495
    %v8853 = vunpack.c.h.b16 %v8495
    %v8854 = vunpack.c.l.b16 %v8496
    %v8855 = vunpack.c.h.b16 %v8496
    %v8856 = vunpack.c.l.b16 %v8497
    %v8857 = vunpack.c.h.b16 %v8497
    %v8858 = vunpack.c.l.b16 %v8498
    %v8859 = vunpack.c.h.b16 %v8498
    %v8860 = vunpack.c.l.b16 %v8499
    %v8861 = vunpack.c.h.b16 %v8499
    %v8862 = vunpack.c.l.b16 %v8500
    %v8863 = vunpack.c.h.b16 %v8500
    %v8864 = vunpack.c.l.b16 %v8501
    %v8865 = vunpack.c.h.b16 %v8501
    %v8866 = vunpack.c.l.b16 %v8502
    %v8867 = vunpack.c.h.b16 %v8502
    %v8868 = vunpack.c.l.b16 %v8503
    %v8869 = vunpack.c.h.b16 %v8503
    %v8870 = vunpack.c.l.b16 %v8504
    %v8871 = vunpack.c.h.b16 %v8504
    %v8872 = vunpack.c.l.b16 %v8505
    %v8873 = vunpack.c.h.b16 %v8505
    %v8874 = vunpack.c.l.b16 %v8506
    %v8875 = vunpack.c.h.b16 %v8506
    %v8876 = vunpack.c.l.b16 %v8507
    %v8877 = vunpack.c.h.b16 %v8507
    %v8878 = vunpack.c.l.b16 %v8508
    %v8879 = vunpack.c.h.b16 %v8508
    %v8880 = vunpack.c.l.b16 %v8509
    %v8881 = vunpack.c.h.b16 %v8509
    %v8882 = vunpack.c.l.b16 %v8510
    %v8883 = vunpack.c.h.b16 %v8510
    %v8884 = vunpack.c.l.b16 %v8511
    %v8885 = vunpack.c.h.b16 %v8511
    %v8886 = vunpack.c.l.b16 %v8512
    %v8887 = vunpack.c.h.b16 %v8512
    %v8888 = vunpack.c.l.b16 %v8513
    %v8889 = vunpack.c.h.b16 %v8513
    %v8890 = vunpack.c.l.b16 %v8514
    %v8891 = vunpack.c.h.b16 %v8514
    %v8892 = vunpack.c.l.b16 %v8515
    %v8893 = vunpack.c.h.b16 %v8515
    %v8894 = vunpack.c.l.b16 %v8516
    %v8895 = vunpack.c.h.b16 %v8516
    %v8896 = vunpack.c.l.b16 %v8517
    %v8897 = vunpack.c.h.b16 %v8517
    %v8898 = vunpack.c.l.b16 %v8518
    %v8899 = vunpack.c.h.b16 %v8518
    %v8900 = vunpack.c.l.b16 %v8519
    %v8901 = vunpack.c.h.b16 %v8519
    %v8902 = vunpack.c.l.b16 %v8520
    %v8903 = vunpack.c.h.b16 %v8520
    %v8904 = vunpack.c.l.b16 %v8521
    %v8905 = vunpack.c.h.b16 %v8521
    %v8906 = vunpack.c.l.b16 %v8522
    %v8907 = vunpack.c.h.b16 %v8522
    %v8908 = vunpack.c.l.b16 %v8523
    %v8909 = vunpack.c.h.b16 %v8523
    %v8910 = vunpack.c.l.b16 %v8524
    %v8911 = vunpack.c.h.b16 %v8524
    %v8912 = vunpack.c.l.b16 %v8525
    %v8913 = vunpack.c.h.b16 %v8525
    %v8914 = vunpack.c.l.b16 %v8526
    %v8915 = vunpack.c.h.b16 %v8526
    %v8916 = vunpack.c.l.b16 %v8527
    %v8917 = vunpack.c.h.b16 %v8527
    %v8918 = vunpack.c.l.b16 %v8528
    %v8919 = vunpack.c.h.b16 %v8528
    %v8920 = vunpack.c.l.b16 %v8529
    %v8921 = vunpack.c.h.b16 %v8529
    %v8922 = vunpack.c.l.b16 %v8530
    %v8923 = vunpack.c.h.b16 %v8530
    %v8924 = vunpack.c.l.b16 %v8531
    %v8925 = vunpack.c.h.b16 %v8531
    %v8926 = vunpack.c.l.b16 %v8532
    %v8927 = vunpack.c.h.b16 %v8532
    %v8928 = vpack.c.b16 %v8676, %v8672
    %v8929 = vpack.c.b16 %v8677, %v8673
    %v8930 = vpack.c.b16 %v8678, %v8674
    %v8931 = vpack.c.b16 %v8679, %v8675
    %v8932 = vpack.c.b16 %v8684, %v8680
    %v8933 = vpack.c.b16 %v8685, %v8681
    %v8934 = vpack.c.b16 %v8686, %v8682
    %v8935 = vpack.c.b16 %v8687, %v8683
    %v8936 = vpack.c.b16 %v8692, %v8688
    %v8937 = vpack.c.b16 %v8693, %v8689
    %v8938 = vpack.c.b16 %v8694, %v8690
    %v8939 = vpack.c.b16 %v8695, %v8691
    %v8940 = vpack.c.b16 %v8700, %v8696
    %v8941 = vpack.c.b16 %v8701, %v8697
    %v8942 = vpack.c.b16 %v8702, %v8698
    %v8943 = vpack.c.b16 %v8703, %v8699
    %v8944 = vpack.c.b16 %v8708, %v8704
    %v8945 = vpack.c.b16 %v8709, %v8705
    %v8946 = vpack.c.b16 %v8710, %v8706
    %v8947 = vpack.c.b16 %v8711, %v8707
    %v8948 = vpack.c.b16 %v8716, %v8712
    %v8949 = vpack.c.b16 %v8717, %v8713
    %v8950 = vpack.c.b16 %v8718, %v8714
    %v8951 = vpack.c.b16 %v8719, %v8715
    %v8952 = vpack.c.b16 %v8724, %v8720
    %v8953 = vpack.c.b16 %v8725, %v8721
    %v8954 = vpack.c.b16 %v8726, %v8722
    %v8955 = vpack.c.b16 %v8727, %v8723
    %v8956 = vpack.c.b16 %v8732, %v8728
    %v8957 = vpack.c.b16 %v8733, %v8729
    %v8958 = vpack.c.b16 %v8734, %v8730
    %v8959 = vpack.c.b16 %v8735, %v8731
    %v8960 = vpack.c.b16 %v8740, %v8736
    %v8961 = vpack.c.b16 %v8741, %v8737
    %v8962 = vpack.c.b16 %v8742, %v8738
    %v8963 = vpack.c.b16 %v8743, %v8739
    %v8964 = vpack.c.b16 %v8748, %v8744
    %v8965 = vpack.c.b16 %v8749, %v8745
    %v8966 = vpack.c.b16 %v8750, %v8746
    %v8967 = vpack.c.b16 %v8751, %v8747
    %v8968 = vpack.c.b16 %v8756, %v8752
    %v8969 = vpack.c.b16 %v8757, %v8753
    %v8970 = vpack.c.b16 %v8758, %v8754
    %v8971 = vpack.c.b16 %v8759, %v8755
    %v8972 = vpack.c.b16 %v8764, %v8760
    %v8973 = vpack.c.b16 %v8765, %v8761
    %v8974 = vpack.c.b16 %v8766, %v8762
    %v8975 = vpack.c.b16 %v8767, %v8763
    %v8976 = vpack.c.b16 %v8772, %v8768
    %v8977 = vpack.c.b16 %v8773, %v8769
    %v8978 = vpack.c.b16 %v8774, %v8770
    %v8979 = vpack.c.b16 %v8775, %v8771
    %v8980 = vpack.c.b16 %v8780, %v8776
    %v8981 = vpack.c.b16 %v8781, %v8777
    %v8982 = vpack.c.b16 %v8782, %v8778
    %v8983 = vpack.c.b16 %v8783, %v8779
    %v8984 = vpack.c.b16 %v8788, %v8784
    %v8985 = vpack.c.b16 %v8789, %v8785
    %v8986 = vpack.c.b16 %v8790, %v8786
    %v8987 = vpack.c.b16 %v8791, %v8787
    %v8988 = vpack.c.b16 %v8796, %v8792
    %v8989 = vpack.c.b16 %v8797, %v8793
    %v8990 = vpack.c.b16 %v8798, %v8794
    %v8991 = vpack.c.b16 %v8799, %v8795
    %v8992 = vpack.c.b16 %v8804, %v8800
    %v8993 = vpack.c.b16 %v8805, %v8801
    %v8994 = vpack.c.b16 %v8806, %v8802
    %v8995 = vpack.c.b16 %v8807, %v8803
    %v8996 = vpack.c.b16 %v8812, %v8808
    %v8997 = vpack.c.b16 %v8813, %v8809
    %v8998 = vpack.c.b16 %v8814, %v8810
    %v8999 = vpack.c.b16 %v8815, %v8811
    %v9000 = vpack.c.b16 %v8820, %v8816
    %v9001 = vpack.c.b16 %v8821, %v8817
    %v9002 = vpack.c.b16 %v8822, %v8818
    %v9003 = vpack.c.b16 %v8823, %v8819
    %v9004 = vpack.c.b16 %v8828, %v8824
    %v9005 = vpack.c.b16 %v8829, %v8825
    %v9006 = vpack.c.b16 %v8830, %v8826
    %v9007 = vpack.c.b16 %v8831, %v8827
    %v9008 = vpack.c.b16 %v8836, %v8832
    %v9009 = vpack.c.b16 %v8837, %v8833
    %v9010 = vpack.c.b16 %v8838, %v8834
    %v9011 = vpack.c.b16 %v8839, %v8835
    %v9012 = vpack.c.b16 %v8844, %v8840
    %v9013 = vpack.c.b16 %v8845, %v8841
    %v9014 = vpack.c.b16 %v8846, %v8842
    %v9015 = vpack.c.b16 %v8847, %v8843
    %v9016 = vpack.c.b16 %v8852, %v8848
    %v9017 = vpack.c.b16 %v8853, %v8849
    %v9018 = vpack.c.b16 %v8854, %v8850
    %v9019 = vpack.c.b16 %v8855, %v8851
    %v9020 = vpack.c.b16 %v8860, %v8856
    %v9021 = vpack.c.b16 %v8861, %v8857
    %v9022 = vpack.c.b16 %v8862, %v8858
    %v9023 = vpack.c.b16 %v8863, %v8859
    %v9024 = vpack.c.b16 %v8868, %v8864
    %v9025 = vpack.c.b16 %v8869, %v8865
    %v9026 = vpack.c.b16 %v8870, %v8866
    %v9027 = vpack.c.b16 %v8871, %v8867
    %v9028 = vpack.c.b16 %v8876, %v8872
    %v9029 = vpack.c.b16 %v8877, %v8873
    %v9030 = vpack.c.b16 %v8878, %v8874
    %v9031 = vpack.c.b16 %v8879, %v8875
    %v9032 = vpack.c.b16 %v8884, %v8880
    %v9033 = vpack.c.b16 %v8885, %v8881
    %v9034 = vpack.c.b16 %v8886, %v8882
    %v9035 = vpack.c.b16 %v8887, %v8883
    %v9036 = vpack.c.b16 %v8892, %v8888
    %v9037 = vpack.c.b16 %v8893, %v8889
    %v9038 = vpack.c.b16 %v8894, %v8890
    %v9039 = vpack.c.b16 %v8895, %v8891
    %v9040 = vpack.c.b16 %v8900, %v8896
    %v9041 = vpack.c.b16 %v8901, %v8897
    %v9042 = vpack.c.b16 %v8902, %v8898
    %v9043 = vpack.c.b16 %v8903, %v8899
    %v9044 = vpack.c.b16 %v8908, %v8904
    %v9045 = vpack.c.b16 %v8909, %v8905
    %v9046 = vpack.c.b16 %v8910, %v8906
    %v9047 = vpack.c.b16 %v8911, %v8907
    %v9048 = vpack.c.b16 %v8916, %v8912
    %v9049 = vpack.c.b16 %v8917, %v8913
    %v9050 = vpack.c.b16 %v8918, %v8914
    %v9051 = vpack.c.b16 %v8919, %v8915
    %v9052 = vpack.c.b16 %v8924, %v8920
    %v9053 = vpack.c.b16 %v8925, %v8921
    %v9054 = vpack.c.b16 %v8926, %v8922
    %v9055 = vpack.c.b16 %v8927, %v8923
    %9184 = vmatpush.bf16.msra.mxu0 %v8956
    %9185 = vmatpush.bf16.msra.mxu0 %v8952
    %9186 = vmatpush.bf16.msra.mxu0 %v8948
    %9187 = vmatpush.bf16.msra.mxu0 %v8944
    %9188 = vmatpush.bf16.msra.mxu0 %v8940
    %9189 = vmatpush.bf16.msra.mxu0 %v8936
    %9190 = vmatpush.bf16.msra.mxu0 %v8932
    %9191 = vmatpush.bf16.msra.mxu0 %v8928
    %9192 = vmatmul.bf16.gmra.mxu0 %v8400
    %v9193 = vpop.f32.mrf.mxu0
    %v9194 = vadd.f32 %v8536, %v9193
    %v9195 = vpop.f32.mrf.mxu0
    %v9196 = vadd.f32 %v8536, %v9195
    %9197 = vdwg.mxu0
    %9198 = vmatpush.bf16.msra.mxu0 %v8988
    %9199 = vmatpush.bf16.msra.mxu0 %v8984
    %9200 = vmatpush.bf16.msra.mxu0 %v8980
    %9201 = vmatpush.bf16.msra.mxu0 %v8976
    %9202 = vmatpush.bf16.msra.mxu0 %v8972
    %9203 = vmatpush.bf16.msra.mxu0 %v8968
    %9204 = vmatpush.bf16.msra.mxu0 %v8964
    %9205 = vmatpush.bf16.msra.mxu0 %v8960
    %9206 = vmatmul.bf16.gmra.mxu0 %v8401
    %v9207 = vpop.f32.mrf.mxu0
    %v9208 = vadd.f32 %v9194, %v9207
    %v9209 = vpop.f32.mrf.mxu0
    %v9210 = vadd.f32 %v9196, %v9209
    %9211 = vdwg.mxu0
    %9212 = vmatpush.bf16.msra.mxu0 %v9020
    %9213 = vmatpush.bf16.msra.mxu0 %v9016
    %9214 = vmatpush.bf16.msra.mxu0 %v9012
    %9215 = vmatpush.bf16.msra.mxu0 %v9008
    %9216 = vmatpush.bf16.msra.mxu0 %v9004
    %9217 = vmatpush.bf16.msra.mxu0 %v9000
    %9218 = vmatpush.bf16.msra.mxu0 %v8996
    %9219 = vmatpush.bf16.msra.mxu0 %v8992
    %9220 = vmatmul.bf16.gmra.mxu0 %v8402
    %v9221 = vpop.f32.mrf.mxu0
    %v9222 = vadd.f32 %v9208, %v9221
    %v9223 = vpop.f32.mrf.mxu0
    %v9224 = vadd.f32 %v9210, %v9223
    %9225 = vdwg.mxu0
    %9226 = vmatpush.bf16.msra.mxu0 %v9052
    %9227 = vmatpush.bf16.msra.mxu0 %v9048
    %9228 = vmatpush.bf16.msra.mxu0 %v9044
    %9229 = vmatpush.bf16.msra.mxu0 %v9040
    %9230 = vmatpush.bf16.msra.mxu0 %v9036
    %9231 = vmatpush.bf16.msra.mxu0 %v9032
    %9232 = vmatpush.bf16.msra.mxu0 %v9028
    %9233 = vmatpush.bf16.msra.mxu0 %v9024
    %9234 = vmatmul.bf16.gmra.mxu0 %v8403
    %v9235 = vpop.f32.mrf.mxu0
    %v9236 = vadd.f32 %v9222, %v9235
    %v9237 = vpop.f32.mrf.mxu0
    %v9238 = vadd.f32 %v9224, %v9237
    %9239 = vdwg.mxu0
    %9240 = vmatpush.bf16.msra.mxu0 %v8957
    %9241 = vmatpush.bf16.msra.mxu0 %v8953
    %9242 = vmatpush.bf16.msra.mxu0 %v8949
    %9243 = vmatpush.bf16.msra.mxu0 %v8945
    %9244 = vmatpush.bf16.msra.mxu0 %v8941
    %9245 = vmatpush.bf16.msra.mxu0 %v8937
    %9246 = vmatpush.bf16.msra.mxu0 %v8933
    %9247 = vmatpush.bf16.msra.mxu0 %v8929
    %9248 = vmatmul.bf16.gmra.mxu0 %v8400
    %v9249 = vpop.f32.mrf.mxu0
    %v9250 = vadd.f32 %v8537, %v9249
    %v9251 = vpop.f32.mrf.mxu0
    %v9252 = vadd.f32 %v8537, %v9251
    %9253 = vdwg.mxu0
    %9254 = vmatpush.bf16.msra.mxu0 %v8989
    %9255 = vmatpush.bf16.msra.mxu0 %v8985
    %9256 = vmatpush.bf16.msra.mxu0 %v8981
    %9257 = vmatpush.bf16.msra.mxu0 %v8977
    %9258 = vmatpush.bf16.msra.mxu0 %v8973
    %9259 = vmatpush.bf16.msra.mxu0 %v8969
    %9260 = vmatpush.bf16.msra.mxu0 %v8965
    %9261 = vmatpush.bf16.msra.mxu0 %v8961
    %9262 = vmatmul.bf16.gmra.mxu0 %v8401
    %v9263 = vpop.f32.mrf.mxu0
    %v9264 = vadd.f32 %v9250, %v9263
    %v9265 = vpop.f32.mrf.mxu0
    %v9266 = vadd.f32 %v9252, %v9265
    %9267 = vdwg.mxu0
    %9268 = vmatpush.bf16.msra.mxu0 %v9021
    %9269 = vmatpush.bf16.msra.mxu0 %v9017
    %9270 = vmatpush.bf16.msra.mxu0 %v9013
    %9271 = vmatpush.bf16.msra.mxu0 %v9009
    %9272 = vmatpush.bf16.msra.mxu0 %v9005
    %9273 = vmatpush.bf16.msra.mxu0 %v9001
    %9274 = vmatpush.bf16.msra.mxu0 %v8997
    %9275 = vmatpush.bf16.msra.mxu0 %v8993
    %9276 = vmatmul.bf16.gmra.mxu0 %v8402
    %v9277 = vpop.f32.mrf.mxu0
    %v9278 = vadd.f32 %v9264, %v9277
    %v9279 = vpop.f32.mrf.mxu0
    %v9280 = vadd.f32 %v9266, %v9279
    %9281 = vdwg.mxu0
    %9282 = vmatpush.bf16.msra.mxu0 %v9053
    %9283 = vmatpush.bf16.msra.mxu0 %v9049
    %9284 = vmatpush.bf16.msra.mxu0 %v9045
    %9285 = vmatpush.bf16.msra.mxu0 %v9041
    %9286 = vmatpush.bf16.msra.mxu0 %v9037
    %9287 = vmatpush.bf16.msra.mxu0 %v9033
    %9288 = vmatpush.bf16.msra.mxu0 %v9029
    %9289 = vmatpush.bf16.msra.mxu0 %v9025
    %9290 = vmatmul.bf16.gmra.mxu0 %v8403
    %v9291 = vpop.f32.mrf.mxu0
    %v9292 = vadd.f32 %v9278, %v9291
    %v9293 = vpop.f32.mrf.mxu0
    %v9294 = vadd.f32 %v9280, %v9293
    %9295 = vdwg.mxu0
    %9296 = vmatpush.bf16.msra.mxu0 %v8958
    %9297 = vmatpush.bf16.msra.mxu0 %v8954
    %9298 = vmatpush.bf16.msra.mxu0 %v8950
    %9299 = vmatpush.bf16.msra.mxu0 %v8946
    %9300 = vmatpush.bf16.msra.mxu0 %v8942
    %9301 = vmatpush.bf16.msra.mxu0 %v8938
    %9302 = vmatpush.bf16.msra.mxu0 %v8934
    %9303 = vmatpush.bf16.msra.mxu0 %v8930
    %9304 = vmatmul.bf16.gmra.mxu0 %v8400
    %v9305 = vpop.f32.mrf.mxu0
    %v9306 = vadd.f32 %v8538, %v9305
    %v9307 = vpop.f32.mrf.mxu0
    %v9308 = vadd.f32 %v8538, %v9307
    %9309 = vdwg.mxu0
    %9310 = vmatpush.bf16.msra.mxu0 %v8990
    %9311 = vmatpush.bf16.msra.mxu0 %v8986
    %9312 = vmatpush.bf16.msra.mxu0 %v8982
    %9313 = vmatpush.bf16.msra.mxu0 %v8978
    %9314 = vmatpush.bf16.msra.mxu0 %v8974
    %9315 = vmatpush.bf16.msra.mxu0 %v8970
    %9316 = vmatpush.bf16.msra.mxu0 %v8966
    %9317 = vmatpush.bf16.msra.mxu0 %v8962
    %9318 = vmatmul.bf16.gmra.mxu0 %v8401
    %v9319 = vpop.f32.mrf.mxu0
    %v9320 = vadd.f32 %v9306, %v9319
    %v9321 = vpop.f32.mrf.mxu0
    %v9322 = vadd.f32 %v9308, %v9321
    %9323 = vdwg.mxu0
    %9324 = vmatpush.bf16.msra.mxu0 %v9022
    %9325 = vmatpush.bf16.msra.mxu0 %v9018
    %9326 = vmatpush.bf16.msra.mxu0 %v9014
    %9327 = vmatpush.bf16.msra.mxu0 %v9010
    %9328 = vmatpush.bf16.msra.mxu0 %v9006
    %9329 = vmatpush.bf16.msra.mxu0 %v9002
    %9330 = vmatpush.bf16.msra.mxu0 %v8998
    %9331 = vmatpush.bf16.msra.mxu0 %v8994
    %9332 = vmatmul.bf16.gmra.mxu0 %v8402
    %v9333 = vpop.f32.mrf.mxu0
    %v9334 = vadd.f32 %v9320, %v9333
    %v9335 = vpop.f32.mrf.mxu0
    %v9336 = vadd.f32 %v9322, %v9335
    %9337 = vdwg.mxu0
    %9338 = vmatpush.bf16.msra.mxu0 %v9054
    %9339 = vmatpush.bf16.msra.mxu0 %v9050
    %9340 = vmatpush.bf16.msra.mxu0 %v9046
    %9341 = vmatpush.bf16.msra.mxu0 %v9042
    %9342 = vmatpush.bf16.msra.mxu0 %v9038
    %9343 = vmatpush.bf16.msra.mxu0 %v9034
    %9344 = vmatpush.bf16.msra.mxu0 %v9030
    %9345 = vmatpush.bf16.msra.mxu0 %v9026
    %9346 = vmatmul.bf16.gmra.mxu0 %v8403
    %v9347 = vpop.f32.mrf.mxu0
    %v9348 = vadd.f32 %v9334, %v9347
    %v9349 = vpop.f32.mrf.mxu0
    %v9350 = vadd.f32 %v9336, %v9349
    %9351 = vdwg.mxu0
    %9352 = vmatpush.bf16.msra.mxu0 %v8959
    %9353 = vmatpush.bf16.msra.mxu0 %v8955
    %9354 = vmatpush.bf16.msra.mxu0 %v8951
    %9355 = vmatpush.bf16.msra.mxu0 %v8947
    %9356 = vmatpush.bf16.msra.mxu0 %v8943
    %9357 = vmatpush.bf16.msra.mxu0 %v8939
    %9358 = vmatpush.bf16.msra.mxu0 %v8935
    %9359 = vmatpush.bf16.msra.mxu0 %v8931
    %9360 = vmatmul.bf16.gmra.mxu0 %v8400
    %v9361 = vpop.f32.mrf.mxu0
    %v9362 = vadd.f32 %v8539, %v9361
    %v9363 = vpop.f32.mrf.mxu0
    %v9364 = vadd.f32 %v8539, %v9363
    %9365 = vdwg.mxu0
    %9366 = vmatpush.bf16.msra.mxu0 %v8991
    %9367 = vmatpush.bf16.msra.mxu0 %v8987
    %9368 = vmatpush.bf16.msra.mxu0 %v8983
    %9369 = vmatpush.bf16.msra.mxu0 %v8979
    %9370 = vmatpush.bf16.msra.mxu0 %v8975
    %9371 = vmatpush.bf16.msra.mxu0 %v8971
    %9372 = vmatpush.bf16.msra.mxu0 %v8967
    %9373 = vmatpush.bf16.msra.mxu0 %v8963
    %9374 = vmatmul.bf16.gmra.mxu0 %v8401
    %v9375 = vpop.f32.mrf.mxu0
    %v9376 = vadd.f32 %v9362, %v9375
    %v9377 = vpop.f32.mrf.mxu0
    %v9378 = vadd.f32 %v9364, %v9377
    %9379 = vdwg.mxu0
    %9380 = vmatpush.bf16.msra.mxu0 %v9023
    %9381 = vmatpush.bf16.msra.mxu0 %v9019
    %9382 = vmatpush.bf16.msra.mxu0 %v9015
    %9383 = vmatpush.bf16.msra.mxu0 %v9011
    %9384 = vmatpush.bf16.msra.mxu0 %v9007
    %9385 = vmatpush.bf16.msra.mxu0 %v9003
    %9386 = vmatpush.bf16.msra.mxu0 %v8999
    %9387 = vmatpush.bf16.msra.mxu0 %v8995
    %9388 = vmatmul.bf16.gmra.mxu0 %v8402
    %v9389 = vpop.f32.mrf.mxu0
    %v9390 = vadd.f32 %v9376, %v9389
    %v9391 = vpop.f32.mrf.mxu0
    %v9392 = vadd.f32 %v9378, %v9391
    %9393 = vdwg.mxu0
    %9394 = vmatpush.bf16.msra.mxu0 %v9055
    %9395 = vmatpush.bf16.msra.mxu0 %v9051
    %9396 = vmatpush.bf16.msra.mxu0 %v9047
    %9397 = vmatpush.bf16.msra.mxu0 %v9043
    %9398 = vmatpush.bf16.msra.mxu0 %v9039
    %9399 = vmatpush.bf16.msra.mxu0 %v9035
    %9400 = vmatpush.bf16.msra.mxu0 %v9031
    %9401 = vmatpush.bf16.msra.mxu0 %v9027
    %9402 = vmatmul.bf16.gmra.mxu0 %v8403
    %v9403 = vpop.f32.mrf.mxu0
    %v9404 = vadd.f32 %v9390, %v9403
    %v9405 = vpop.f32.mrf.mxu0
    %v9406 = vadd.f32 %v9392, %v9405
    %9407 = vdwg.mxu0
    %v9408 = vmax.f32 %v9236, 0.0
    %v9409 = vmax.f32 %v9292, 0.0
    %v9410 = vmax.f32 %v9348, 0.0
    %v9411 = vmax.f32 %v9404, 0.0
    %v9412 = vmax.f32 %v9238, 0.0
    %v9413 = vmax.f32 %v9294, 0.0
    %v9414 = vmax.f32 %v9350, 0.0
    %v9415 = vmax.f32 %v9406, 0.0
    %v9416 = vpack.c.bf16 %v9412, %v9408
    %v9417 = vpack.c.bf16 %v9413, %v9409
    %v9418 = vpack.c.bf16 %v9414, %v9410
    %v9419 = vpack.c.bf16 %v9415, %v9411
    %s9420 = scalar_lea.vmem [#allocation10], 3072
    %v9421 = vld [vmem:[%s9420] sm:$0xff]
    %v9422 = vld [vmem:[%s9420 + $0x8] sm:$0xff]
    %v9423 = vld [vmem:[%s9420 + $0x10] sm:$0xff]
    %v9424 = vld [vmem:[%s9420 + $0x18] sm:$0xff]
    %v9425 = vld [vmem:[%s9420 + $0x20] sm:$0xff]
    %v9426 = vld [vmem:[%s9420 + $0x28] sm:$0xff]
    %v9427 = vld [vmem:[%s9420 + $0x30] sm:$0xff]
    %v9428 = vld [vmem:[%s9420 + $0x38] sm:$0xff]
    %v9429 = vld [vmem:[%s9420 + $0x40] sm:$0xff]
    %v9430 = vld [vmem:[%s9420 + $0x48] sm:$0xff]
    %v9431 = vld [vmem:[%s9420 + $0x50] sm:$0xff]
    %v9432 = vld [vmem:[%s9420 + $0x58] sm:$0xff]
    %v9433 = vld [vmem:[%s9420 + $0x60] sm:$0xff]
    %v9434 = vld [vmem:[%s9420 + $0x68] sm:$0xff]
    %v9435 = vld [vmem:[%s9420 + $0x70] sm:$0xff]
    %v9436 = vld [vmem:[%s9420 + $0x78] sm:$0xff]
    %v9437 = vld [vmem:[%s9420 + $0x80] sm:$0xff]
    %v9438 = vld [vmem:[%s9420 + $0x88] sm:$0xff]
    %v9439 = vld [vmem:[%s9420 + $0x90] sm:$0xff]
    %v9440 = vld [vmem:[%s9420 + $0x98] sm:$0xff]
    %v9441 = vld [vmem:[%s9420 + $0xa0] sm:$0xff]
    %v9442 = vld [vmem:[%s9420 + $0xa8] sm:$0xff]
    %v9443 = vld [vmem:[%s9420 + $0xb0] sm:$0xff]
    %v9444 = vld [vmem:[%s9420 + $0xb8] sm:$0xff]
    %v9445 = vld [vmem:[%s9420 + $0xc0] sm:$0xff]
    %v9446 = vld [vmem:[%s9420 + $0xc8] sm:$0xff]
    %v9447 = vld [vmem:[%s9420 + $0xd0] sm:$0xff]
    %v9448 = vld [vmem:[%s9420 + $0xd8] sm:$0xff]
    %v9449 = vld [vmem:[%s9420 + $0xe0] sm:$0xff]
    %v9450 = vld [vmem:[%s9420 + $0xe8] sm:$0xff]
    %v9451 = vld [vmem:[%s9420 + $0xf0] sm:$0xff]
    %v9452 = vld [vmem:[%s9420 + $0xf8] sm:$0xff]
    %v9453 = vld [vmem:[%s9420 + $0x100] sm:$0xff]
    %v9454 = vld [vmem:[%s9420 + $0x108] sm:$0xff]
    %v9455 = vld [vmem:[%s9420 + $0x110] sm:$0xff]
    %v9456 = vld [vmem:[%s9420 + $0x118] sm:$0xff]
    %v9457 = vld [vmem:[%s9420 + $0x120] sm:$0xff]
    %v9458 = vld [vmem:[%s9420 + $0x128] sm:$0xff]
    %v9459 = vld [vmem:[%s9420 + $0x130] sm:$0xff]
    %v9460 = vld [vmem:[%s9420 + $0x138] sm:$0xff]
    %v9461 = vld [vmem:[%s9420 + $0x140] sm:$0xff]
    %v9462 = vld [vmem:[%s9420 + $0x148] sm:$0xff]
    %v9463 = vld [vmem:[%s9420 + $0x150] sm:$0xff]
    %v9464 = vld [vmem:[%s9420 + $0x158] sm:$0xff]
    %v9465 = vld [vmem:[%s9420 + $0x160] sm:$0xff]
    %v9466 = vld [vmem:[%s9420 + $0x168] sm:$0xff]
    %v9467 = vld [vmem:[%s9420 + $0x170] sm:$0xff]
    %v9468 = vld [vmem:[%s9420 + $0x178] sm:$0xff]
    %v9469 = vld [vmem:[%s9420 + $0x180] sm:$0xff]
    %v9470 = vld [vmem:[%s9420 + $0x188] sm:$0xff]
    %v9471 = vld [vmem:[%s9420 + $0x190] sm:$0xff]
    %v9472 = vld [vmem:[%s9420 + $0x198] sm:$0xff]
    %v9473 = vld [vmem:[%s9420 + $0x1a0] sm:$0xff]
    %v9474 = vld [vmem:[%s9420 + $0x1a8] sm:$0xff]
    %v9475 = vld [vmem:[%s9420 + $0x1b0] sm:$0xff]
    %v9476 = vld [vmem:[%s9420 + $0x1b8] sm:$0xff]
    %v9477 = vld [vmem:[%s9420 + $0x1c0] sm:$0xff]
    %v9478 = vld [vmem:[%s9420 + $0x1c8] sm:$0xff]
    %v9479 = vld [vmem:[%s9420 + $0x1d0] sm:$0xff]
    %v9480 = vld [vmem:[%s9420 + $0x1d8] sm:$0xff]
    %v9481 = vld [vmem:[%s9420 + $0x1e0] sm:$0xff]
    %v9482 = vld [vmem:[%s9420 + $0x1e8] sm:$0xff]
    %v9483 = vld [vmem:[%s9420 + $0x1f0] sm:$0xff]
    %v9484 = vld [vmem:[%s9420 + $0x1f8] sm:$0xff]
    %v9485 = vld [vmem:[%s9420 + $0x200] sm:$0xff]
    %v9486 = vld [vmem:[%s9420 + $0x208] sm:$0xff]
    %v9487 = vld [vmem:[%s9420 + $0x210] sm:$0xff]
    %v9488 = vld [vmem:[%s9420 + $0x218] sm:$0xff]
    %v9489 = vld [vmem:[%s9420 + $0x220] sm:$0xff]
    %v9490 = vld [vmem:[%s9420 + $0x228] sm:$0xff]
    %v9491 = vld [vmem:[%s9420 + $0x230] sm:$0xff]
    %v9492 = vld [vmem:[%s9420 + $0x238] sm:$0xff]
    %v9493 = vld [vmem:[%s9420 + $0x240] sm:$0xff]
    %v9494 = vld [vmem:[%s9420 + $0x248] sm:$0xff]
    %v9495 = vld [vmem:[%s9420 + $0x250] sm:$0xff]
    %v9496 = vld [vmem:[%s9420 + $0x258] sm:$0xff]
    %v9497 = vld [vmem:[%s9420 + $0x260] sm:$0xff]
    %v9498 = vld [vmem:[%s9420 + $0x268] sm:$0xff]
    %v9499 = vld [vmem:[%s9420 + $0x270] sm:$0xff]
    %v9500 = vld [vmem:[%s9420 + $0x278] sm:$0xff]
    %v9501 = vld [vmem:[%s9420 + $0x280] sm:$0xff]
    %v9502 = vld [vmem:[%s9420 + $0x288] sm:$0xff]
    %v9503 = vld [vmem:[%s9420 + $0x290] sm:$0xff]
    %v9504 = vld [vmem:[%s9420 + $0x298] sm:$0xff]
    %v9505 = vld [vmem:[%s9420 + $0x2a0] sm:$0xff]
    %v9506 = vld [vmem:[%s9420 + $0x2a8] sm:$0xff]
    %v9507 = vld [vmem:[%s9420 + $0x2b0] sm:$0xff]
    %v9508 = vld [vmem:[%s9420 + $0x2b8] sm:$0xff]
    %v9509 = vld [vmem:[%s9420 + $0x2c0] sm:$0xff]
    %v9510 = vld [vmem:[%s9420 + $0x2c8] sm:$0xff]
    %v9511 = vld [vmem:[%s9420 + $0x2d0] sm:$0xff]
    %v9512 = vld [vmem:[%s9420 + $0x2d8] sm:$0xff]
    %v9513 = vld [vmem:[%s9420 + $0x2e0] sm:$0xff]
    %v9514 = vld [vmem:[%s9420 + $0x2e8] sm:$0xff]
    %v9515 = vld [vmem:[%s9420 + $0x2f0] sm:$0xff]
    %v9516 = vld [vmem:[%s9420 + $0x2f8] sm:$0xff]
    %v9517 = vld [vmem:[%s9420 + $0x300] sm:$0xff]
    %v9518 = vld [vmem:[%s9420 + $0x308] sm:$0xff]
    %v9519 = vld [vmem:[%s9420 + $0x310] sm:$0xff]
    %v9520 = vld [vmem:[%s9420 + $0x318] sm:$0xff]
    %v9521 = vld [vmem:[%s9420 + $0x320] sm:$0xff]
    %v9522 = vld [vmem:[%s9420 + $0x328] sm:$0xff]
    %v9523 = vld [vmem:[%s9420 + $0x330] sm:$0xff]
    %v9524 = vld [vmem:[%s9420 + $0x338] sm:$0xff]
    %v9525 = vld [vmem:[%s9420 + $0x340] sm:$0xff]
    %v9526 = vld [vmem:[%s9420 + $0x348] sm:$0xff]
    %v9527 = vld [vmem:[%s9420 + $0x350] sm:$0xff]
    %v9528 = vld [vmem:[%s9420 + $0x358] sm:$0xff]
    %v9529 = vld [vmem:[%s9420 + $0x360] sm:$0xff]
    %v9530 = vld [vmem:[%s9420 + $0x368] sm:$0xff]
    %v9531 = vld [vmem:[%s9420 + $0x370] sm:$0xff]
    %v9532 = vld [vmem:[%s9420 + $0x378] sm:$0xff]
    %v9533 = vld [vmem:[%s9420 + $0x380] sm:$0xff]
    %v9534 = vld [vmem:[%s9420 + $0x388] sm:$0xff]
    %v9535 = vld [vmem:[%s9420 + $0x390] sm:$0xff]
    %v9536 = vld [vmem:[%s9420 + $0x398] sm:$0xff]
    %v9537 = vld [vmem:[%s9420 + $0x3a0] sm:$0xff]
    %v9538 = vld [vmem:[%s9420 + $0x3a8] sm:$0xff]
    %v9539 = vld [vmem:[%s9420 + $0x3b0] sm:$0xff]
    %v9540 = vld [vmem:[%s9420 + $0x3b8] sm:$0xff]
    %v9541 = vld [vmem:[%s9420 + $0x3c0] sm:$0xff]
    %v9542 = vld [vmem:[%s9420 + $0x3c8] sm:$0xff]
    %v9543 = vld [vmem:[%s9420 + $0x3d0] sm:$0xff]
    %v9544 = vld [vmem:[%s9420 + $0x3d8] sm:$0xff]
    %v9545 = vld [vmem:[%s9420 + $0x3e0] sm:$0xff]
    %v9546 = vld [vmem:[%s9420 + $0x3e8] sm:$0xff]
    %v9547 = vld [vmem:[%s9420 + $0x3f0] sm:$0xff]
    %v9548 = vld [vmem:[%s9420 + $0x3f8] sm:$0xff]
    %s9549 = scalar_lea.vmem [#allocation11], 12
    %v9550 = vld [vmem:[%s9549] sm:$0xf]
    %v9552 = vperm.slane %v9550, 0
    %v9553 = vperm.slane %v9550, 1
    %v9554 = vperm.slane %v9550, 2
    %v9555 = vperm.slane %v9550, 3
    %v9688 = vunpack.c.l.b16 %v9421
    %v9689 = vunpack.c.h.b16 %v9421
    %v9690 = vunpack.c.l.b16 %v9422
    %v9691 = vunpack.c.h.b16 %v9422
    %v9692 = vunpack.c.l.b16 %v9423
    %v9693 = vunpack.c.h.b16 %v9423
    %v9694 = vunpack.c.l.b16 %v9424
    %v9695 = vunpack.c.h.b16 %v9424
    %v9696 = vunpack.c.l.b16 %v9425
    %v9697 = vunpack.c.h.b16 %v9425
    %v9698 = vunpack.c.l.b16 %v9426
    %v9699 = vunpack.c.h.b16 %v9426
    %v9700 = vunpack.c.l.b16 %v9427
    %v9701 = vunpack.c.h.b16 %v9427
    %v9702 = vunpack.c.l.b16 %v9428
    %v9703 = vunpack.c.h.b16 %v9428
    %v9704 = vunpack.c.l.b16 %v9429
    %v9705 = vunpack.c.h.b16 %v9429
    %v9706 = vunpack.c.l.b16 %v9430
    %v9707 = vunpack.c.h.b16 %v9430
    %v9708 = vunpack.c.l.b16 %v9431
    %v9709 = vunpack.c.h.b16 %v9431
    %v9710 = vunpack.c.l.b16 %v9432
    %v9711 = vunpack.c.h.b16 %v9432
    %v9712 = vunpack.c.l.b16 %v9433
    %v9713 = vunpack.c.h.b16 %v9433
    %v9714 = vunpack.c.l.b16 %v9434
    %v9715 = vunpack.c.h.b16 %v9434
    %v9716 = vunpack.c.l.b16 %v9435
    %v9717 = vunpack.c.h.b16 %v9435
    %v9718 = vunpack.c.l.b16 %v9436
    %v9719 = vunpack.c.h.b16 %v9436
    %v9720 = vunpack.c.l.b16 %v9437
    %v9721 = vunpack.c.h.b16 %v9437
    %v9722 = vunpack.c.l.b16 %v9438
    %v9723 = vunpack.c.h.b16 %v9438
    %v9724 = vunpack.c.l.b16 %v9439
    %v9725 = vunpack.c.h.b16 %v9439
    %v9726 = vunpack.c.l.b16 %v9440
    %v9727 = vunpack.c.h.b16 %v9440
    %v9728 = vunpack.c.l.b16 %v9441
    %v9729 = vunpack.c.h.b16 %v9441
    %v9730 = vunpack.c.l.b16 %v9442
    %v9731 = vunpack.c.h.b16 %v9442
    %v9732 = vunpack.c.l.b16 %v9443
    %v9733 = vunpack.c.h.b16 %v9443
    %v9734 = vunpack.c.l.b16 %v9444
    %v9735 = vunpack.c.h.b16 %v9444
    %v9736 = vunpack.c.l.b16 %v9445
    %v9737 = vunpack.c.h.b16 %v9445
    %v9738 = vunpack.c.l.b16 %v9446
    %v9739 = vunpack.c.h.b16 %v9446
    %v9740 = vunpack.c.l.b16 %v9447
    %v9741 = vunpack.c.h.b16 %v9447
    %v9742 = vunpack.c.l.b16 %v9448
    %v9743 = vunpack.c.h.b16 %v9448
    %v9744 = vunpack.c.l.b16 %v9449
    %v9745 = vunpack.c.h.b16 %v9449
    %v9746 = vunpack.c.l.b16 %v9450
    %v9747 = vunpack.c.h.b16 %v9450
    %v9748 = vunpack.c.l.b16 %v9451
    %v9749 = vunpack.c.h.b16 %v9451
    %v9750 = vunpack.c.l.b16 %v9452
    %v9751 = vunpack.c.h.b16 %v9452
    %v9752 = vunpack.c.l.b16 %v9453
    %v9753 = vunpack.c.h.b16 %v9453
    %v9754 = vunpack.c.l.b16 %v9454
    %v9755 = vunpack.c.h.b16 %v9454
    %v9756 = vunpack.c.l.b16 %v9455
    %v9757 = vunpack.c.h.b16 %v9455
    %v9758 = vunpack.c.l.b16 %v9456
    %v9759 = vunpack.c.h.b16 %v9456
    %v9760 = vunpack.c.l.b16 %v9457
    %v9761 = vunpack.c.h.b16 %v9457
    %v9762 = vunpack.c.l.b16 %v9458
    %v9763 = vunpack.c.h.b16 %v9458
    %v9764 = vunpack.c.l.b16 %v9459
    %v9765 = vunpack.c.h.b16 %v9459
    %v9766 = vunpack.c.l.b16 %v9460
    %v9767 = vunpack.c.h.b16 %v9460
    %v9768 = vunpack.c.l.b16 %v9461
    %v9769 = vunpack.c.h.b16 %v9461
    %v9770 = vunpack.c.l.b16 %v9462
    %v9771 = vunpack.c.h.b16 %v9462
    %v9772 = vunpack.c.l.b16 %v9463
    %v9773 = vunpack.c.h.b16 %v9463
    %v9774 = vunpack.c.l.b16 %v9464
    %v9775 = vunpack.c.h.b16 %v9464
    %v9776 = vunpack.c.l.b16 %v9465
    %v9777 = vunpack.c.h.b16 %v9465
    %v9778 = vunpack.c.l.b16 %v9466
    %v9779 = vunpack.c.h.b16 %v9466
    %v9780 = vunpack.c.l.b16 %v9467
    %v9781 = vunpack.c.h.b16 %v9467
    %v9782 = vunpack.c.l.b16 %v9468
    %v9783 = vunpack.c.h.b16 %v9468
    %v9784 = vunpack.c.l.b16 %v9469
    %v9785 = vunpack.c.h.b16 %v9469
    %v9786 = vunpack.c.l.b16 %v9470
    %v9787 = vunpack.c.h.b16 %v9470
    %v9788 = vunpack.c.l.b16 %v9471
    %v9789 = vunpack.c.h.b16 %v9471
    %v9790 = vunpack.c.l.b16 %v9472
    %v9791 = vunpack.c.h.b16 %v9472
    %v9792 = vunpack.c.l.b16 %v9473
    %v9793 = vunpack.c.h.b16 %v9473
    %v9794 = vunpack.c.l.b16 %v9474
    %v9795 = vunpack.c.h.b16 %v9474
    %v9796 = vunpack.c.l.b16 %v9475
    %v9797 = vunpack.c.h.b16 %v9475
    %v9798 = vunpack.c.l.b16 %v9476
    %v9799 = vunpack.c.h.b16 %v9476
    %v9800 = vunpack.c.l.b16 %v9477
    %v9801 = vunpack.c.h.b16 %v9477
    %v9802 = vunpack.c.l.b16 %v9478
    %v9803 = vunpack.c.h.b16 %v9478
    %v9804 = vunpack.c.l.b16 %v9479
    %v9805 = vunpack.c.h.b16 %v9479
    %v9806 = vunpack.c.l.b16 %v9480
    %v9807 = vunpack.c.h.b16 %v9480
    %v9808 = vunpack.c.l.b16 %v9481
    %v9809 = vunpack.c.h.b16 %v9481
    %v9810 = vunpack.c.l.b16 %v9482
    %v9811 = vunpack.c.h.b16 %v9482
    %v9812 = vunpack.c.l.b16 %v9483
    %v9813 = vunpack.c.h.b16 %v9483
    %v9814 = vunpack.c.l.b16 %v9484
    %v9815 = vunpack.c.h.b16 %v9484
    %v9816 = vunpack.c.l.b16 %v9485
    %v9817 = vunpack.c.h.b16 %v9485
    %v9818 = vunpack.c.l.b16 %v9486
    %v9819 = vunpack.c.h.b16 %v9486
    %v9820 = vunpack.c.l.b16 %v9487
    %v9821 = vunpack.c.h.b16 %v9487
    %v9822 = vunpack.c.l.b16 %v9488
    %v9823 = vunpack.c.h.b16 %v9488
    %v9824 = vunpack.c.l.b16 %v9489
    %v9825 = vunpack.c.h.b16 %v9489
    %v9826 = vunpack.c.l.b16 %v9490
    %v9827 = vunpack.c.h.b16 %v9490
    %v9828 = vunpack.c.l.b16 %v9491
    %v9829 = vunpack.c.h.b16 %v9491
    %v9830 = vunpack.c.l.b16 %v9492
    %v9831 = vunpack.c.h.b16 %v9492
    %v9832 = vunpack.c.l.b16 %v9493
    %v9833 = vunpack.c.h.b16 %v9493
    %v9834 = vunpack.c.l.b16 %v9494
    %v9835 = vunpack.c.h.b16 %v9494
    %v9836 = vunpack.c.l.b16 %v9495
    %v9837 = vunpack.c.h.b16 %v9495
    %v9838 = vunpack.c.l.b16 %v9496
    %v9839 = vunpack.c.h.b16 %v9496
    %v9840 = vunpack.c.l.b16 %v9497
    %v9841 = vunpack.c.h.b16 %v9497
    %v9842 = vunpack.c.l.b16 %v9498
    %v9843 = vunpack.c.h.b16 %v9498
    %v9844 = vunpack.c.l.b16 %v9499
    %v9845 = vunpack.c.h.b16 %v9499
    %v9846 = vunpack.c.l.b16 %v9500
    %v9847 = vunpack.c.h.b16 %v9500
    %v9848 = vunpack.c.l.b16 %v9501
    %v9849 = vunpack.c.h.b16 %v9501
    %v9850 = vunpack.c.l.b16 %v9502
    %v9851 = vunpack.c.h.b16 %v9502
    %v9852 = vunpack.c.l.b16 %v9503
    %v9853 = vunpack.c.h.b16 %v9503
    %v9854 = vunpack.c.l.b16 %v9504
    %v9855 = vunpack.c.h.b16 %v9504
    %v9856 = vunpack.c.l.b16 %v9505
    %v9857 = vunpack.c.h.b16 %v9505
    %v9858 = vunpack.c.l.b16 %v9506
    %v9859 = vunpack.c.h.b16 %v9506
    %v9860 = vunpack.c.l.b16 %v9507
    %v9861 = vunpack.c.h.b16 %v9507
    %v9862 = vunpack.c.l.b16 %v9508
    %v9863 = vunpack.c.h.b16 %v9508
    %v9864 = vunpack.c.l.b16 %v9509
    %v9865 = vunpack.c.h.b16 %v9509
    %v9866 = vunpack.c.l.b16 %v9510
    %v9867 = vunpack.c.h.b16 %v9510
    %v9868 = vunpack.c.l.b16 %v9511
    %v9869 = vunpack.c.h.b16 %v9511
    %v9870 = vunpack.c.l.b16 %v9512
    %v9871 = vunpack.c.h.b16 %v9512
    %v9872 = vunpack.c.l.b16 %v9513
    %v9873 = vunpack.c.h.b16 %v9513
    %v9874 = vunpack.c.l.b16 %v9514
    %v9875 = vunpack.c.h.b16 %v9514
    %v9876 = vunpack.c.l.b16 %v9515
    %v9877 = vunpack.c.h.b16 %v9515
    %v9878 = vunpack.c.l.b16 %v9516
    %v9879 = vunpack.c.h.b16 %v9516
    %v9880 = vunpack.c.l.b16 %v9517
    %v9881 = vunpack.c.h.b16 %v9517
    %v9882 = vunpack.c.l.b16 %v9518
    %v9883 = vunpack.c.h.b16 %v9518
    %v9884 = vunpack.c.l.b16 %v9519
    %v9885 = vunpack.c.h.b16 %v9519
    %v9886 = vunpack.c.l.b16 %v9520
    %v9887 = vunpack.c.h.b16 %v9520
    %v9888 = vunpack.c.l.b16 %v9521
    %v9889 = vunpack.c.h.b16 %v9521
    %v9890 = vunpack.c.l.b16 %v9522
    %v9891 = vunpack.c.h.b16 %v9522
    %v9892 = vunpack.c.l.b16 %v9523
    %v9893 = vunpack.c.h.b16 %v9523
    %v9894 = vunpack.c.l.b16 %v9524
    %v9895 = vunpack.c.h.b16 %v9524
    %v9896 = vunpack.c.l.b16 %v9525
    %v9897 = vunpack.c.h.b16 %v9525
    %v9898 = vunpack.c.l.b16 %v9526
    %v9899 = vunpack.c.h.b16 %v9526
    %v9900 = vunpack.c.l.b16 %v9527
    %v9901 = vunpack.c.h.b16 %v9527
    %v9902 = vunpack.c.l.b16 %v9528
    %v9903 = vunpack.c.h.b16 %v9528
    %v9904 = vunpack.c.l.b16 %v9529
    %v9905 = vunpack.c.h.b16 %v9529
    %v9906 = vunpack.c.l.b16 %v9530
    %v9907 = vunpack.c.h.b16 %v9530
    %v9908 = vunpack.c.l.b16 %v9531
    %v9909 = vunpack.c.h.b16 %v9531
    %v9910 = vunpack.c.l.b16 %v9532
    %v9911 = vunpack.c.h.b16 %v9532
    %v9912 = vunpack.c.l.b16 %v9533
    %v9913 = vunpack.c.h.b16 %v9533
    %v9914 = vunpack.c.l.b16 %v9534
    %v9915 = vunpack.c.h.b16 %v9534
    %v9916 = vunpack.c.l.b16 %v9535
    %v9917 = vunpack.c.h.b16 %v9535
    %v9918 = vunpack.c.l.b16 %v9536
    %v9919 = vunpack.c.h.b16 %v9536
    %v9920 = vunpack.c.l.b16 %v9537
    %v9921 = vunpack.c.h.b16 %v9537
    %v9922 = vunpack.c.l.b16 %v9538
    %v9923 = vunpack.c.h.b16 %v9538
    %v9924 = vunpack.c.l.b16 %v9539
    %v9925 = vunpack.c.h.b16 %v9539
    %v9926 = vunpack.c.l.b16 %v9540
    %v9927 = vunpack.c.h.b16 %v9540
    %v9928 = vunpack.c.l.b16 %v9541
    %v9929 = vunpack.c.h.b16 %v9541
    %v9930 = vunpack.c.l.b16 %v9542
    %v9931 = vunpack.c.h.b16 %v9542
    %v9932 = vunpack.c.l.b16 %v9543
    %v9933 = vunpack.c.h.b16 %v9543
    %v9934 = vunpack.c.l.b16 %v9544
    %v9935 = vunpack.c.h.b16 %v9544
    %v9936 = vunpack.c.l.b16 %v9545
    %v9937 = vunpack.c.h.b16 %v9545
    %v9938 = vunpack.c.l.b16 %v9546
    %v9939 = vunpack.c.h.b16 %v9546
    %v9940 = vunpack.c.l.b16 %v9547
    %v9941 = vunpack.c.h.b16 %v9547
    %v9942 = vunpack.c.l.b16 %v9548
    %v9943 = vunpack.c.h.b16 %v9548
    %v9944 = vpack.c.b16 %v9692, %v9688
    %v9945 = vpack.c.b16 %v9693, %v9689
    %v9946 = vpack.c.b16 %v9694, %v9690
    %v9947 = vpack.c.b16 %v9695, %v9691
    %v9948 = vpack.c.b16 %v9700, %v9696
    %v9949 = vpack.c.b16 %v9701, %v9697
    %v9950 = vpack.c.b16 %v9702, %v9698
    %v9951 = vpack.c.b16 %v9703, %v9699
    %v9952 = vpack.c.b16 %v9708, %v9704
    %v9953 = vpack.c.b16 %v9709, %v9705
    %v9954 = vpack.c.b16 %v9710, %v9706
    %v9955 = vpack.c.b16 %v9711, %v9707
    %v9956 = vpack.c.b16 %v9716, %v9712
    %v9957 = vpack.c.b16 %v9717, %v9713
    %v9958 = vpack.c.b16 %v9718, %v9714
    %v9959 = vpack.c.b16 %v9719, %v9715
    %v9960 = vpack.c.b16 %v9724, %v9720
    %v9961 = vpack.c.b16 %v9725, %v9721
    %v9962 = vpack.c.b16 %v9726, %v9722
    %v9963 = vpack.c.b16 %v9727, %v9723
    %v9964 = vpack.c.b16 %v9732, %v9728
    %v9965 = vpack.c.b16 %v9733, %v9729
    %v9966 = vpack.c.b16 %v9734, %v9730
    %v9967 = vpack.c.b16 %v9735, %v9731
    %v9968 = vpack.c.b16 %v9740, %v9736
    %v9969 = vpack.c.b16 %v9741, %v9737
    %v9970 = vpack.c.b16 %v9742, %v9738
    %v9971 = vpack.c.b16 %v9743, %v9739
    %v9972 = vpack.c.b16 %v9748, %v9744
    %v9973 = vpack.c.b16 %v9749, %v9745
    %v9974 = vpack.c.b16 %v9750, %v9746
    %v9975 = vpack.c.b16 %v9751, %v9747
    %v9976 = vpack.c.b16 %v9756, %v9752
    %v9977 = vpack.c.b16 %v9757, %v9753
    %v9978 = vpack.c.b16 %v9758, %v9754
    %v9979 = vpack.c.b16 %v9759, %v9755
    %v9980 = vpack.c.b16 %v9764, %v9760
    %v9981 = vpack.c.b16 %v9765, %v9761
    %v9982 = vpack.c.b16 %v9766, %v9762
    %v9983 = vpack.c.b16 %v9767, %v9763
    %v9984 = vpack.c.b16 %v9772, %v9768
    %v9985 = vpack.c.b16 %v9773, %v9769
    %v9986 = vpack.c.b16 %v9774, %v9770
    %v9987 = vpack.c.b16 %v9775, %v9771
    %v9988 = vpack.c.b16 %v9780, %v9776
    %v9989 = vpack.c.b16 %v9781, %v9777
    %v9990 = vpack.c.b16 %v9782, %v9778
    %v9991 = vpack.c.b16 %v9783, %v9779
    %v9992 = vpack.c.b16 %v9788, %v9784
    %v9993 = vpack.c.b16 %v9789, %v9785
    %v9994 = vpack.c.b16 %v9790, %v9786
    %v9995 = vpack.c.b16 %v9791, %v9787
    %v9996 = vpack.c.b16 %v9796, %v9792
    %v9997 = vpack.c.b16 %v9797, %v9793
    %v9998 = vpack.c.b16 %v9798, %v9794
    %v9999 = vpack.c.b16 %v9799, %v9795
    %v10000 = vpack.c.b16 %v9804, %v9800
    %v10001 = vpack.c.b16 %v9805, %v9801
    %v10002 = vpack.c.b16 %v9806, %v9802
    %v10003 = vpack.c.b16 %v9807, %v9803
    %v10004 = vpack.c.b16 %v9812, %v9808
    %v10005 = vpack.c.b16 %v9813, %v9809
    %v10006 = vpack.c.b16 %v9814, %v9810
    %v10007 = vpack.c.b16 %v9815, %v9811
    %v10008 = vpack.c.b16 %v9820, %v9816
    %v10009 = vpack.c.b16 %v9821, %v9817
    %v10010 = vpack.c.b16 %v9822, %v9818
    %v10011 = vpack.c.b16 %v9823, %v9819
    %v10012 = vpack.c.b16 %v9828, %v9824
    %v10013 = vpack.c.b16 %v9829, %v9825
    %v10014 = vpack.c.b16 %v9830, %v9826
    %v10015 = vpack.c.b16 %v9831, %v9827
    %v10016 = vpack.c.b16 %v9836, %v9832
    %v10017 = vpack.c.b16 %v9837, %v9833
    %v10018 = vpack.c.b16 %v9838, %v9834
    %v10019 = vpack.c.b16 %v9839, %v9835
    %v10020 = vpack.c.b16 %v9844, %v9840
    %v10021 = vpack.c.b16 %v9845, %v9841
    %v10022 = vpack.c.b16 %v9846, %v9842
    %v10023 = vpack.c.b16 %v9847, %v9843
    %v10024 = vpack.c.b16 %v9852, %v9848
    %v10025 = vpack.c.b16 %v9853, %v9849
    %v10026 = vpack.c.b16 %v9854, %v9850
    %v10027 = vpack.c.b16 %v9855, %v9851
    %v10028 = vpack.c.b16 %v9860, %v9856
    %v10029 = vpack.c.b16 %v9861, %v9857
    %v10030 = vpack.c.b16 %v9862, %v9858
    %v10031 = vpack.c.b16 %v9863, %v9859
    %v10032 = vpack.c.b16 %v9868, %v9864
    %v10033 = vpack.c.b16 %v9869, %v9865
    %v10034 = vpack.c.b16 %v9870, %v9866
    %v10035 = vpack.c.b16 %v9871, %v9867
    %v10036 = vpack.c.b16 %v9876, %v9872
    %v10037 = vpack.c.b16 %v9877, %v9873
    %v10038 = vpack.c.b16 %v9878, %v9874
    %v10039 = vpack.c.b16 %v9879, %v9875
    %v10040 = vpack.c.b16 %v9884, %v9880
    %v10041 = vpack.c.b16 %v9885, %v9881
    %v10042 = vpack.c.b16 %v9886, %v9882
    %v10043 = vpack.c.b16 %v9887, %v9883
    %v10044 = vpack.c.b16 %v9892, %v9888
    %v10045 = vpack.c.b16 %v9893, %v9889
    %v10046 = vpack.c.b16 %v9894, %v9890
    %v10047 = vpack.c.b16 %v9895, %v9891
    %v10048 = vpack.c.b16 %v9900, %v9896
    %v10049 = vpack.c.b16 %v9901, %v9897
    %v10050 = vpack.c.b16 %v9902, %v9898
    %v10051 = vpack.c.b16 %v9903, %v9899
    %v10052 = vpack.c.b16 %v9908, %v9904
    %v10053 = vpack.c.b16 %v9909, %v9905
    %v10054 = vpack.c.b16 %v9910, %v9906
    %v10055 = vpack.c.b16 %v9911, %v9907
    %v10056 = vpack.c.b16 %v9916, %v9912
    %v10057 = vpack.c.b16 %v9917, %v9913
    %v10058 = vpack.c.b16 %v9918, %v9914
    %v10059 = vpack.c.b16 %v9919, %v9915
    %v10060 = vpack.c.b16 %v9924, %v9920
    %v10061 = vpack.c.b16 %v9925, %v9921
    %v10062 = vpack.c.b16 %v9926, %v9922
    %v10063 = vpack.c.b16 %v9927, %v9923
    %v10064 = vpack.c.b16 %v9932, %v9928
    %v10065 = vpack.c.b16 %v9933, %v9929
    %v10066 = vpack.c.b16 %v9934, %v9930
    %v10067 = vpack.c.b16 %v9935, %v9931
    %v10068 = vpack.c.b16 %v9940, %v9936
    %v10069 = vpack.c.b16 %v9941, %v9937
    %v10070 = vpack.c.b16 %v9942, %v9938
    %v10071 = vpack.c.b16 %v9943, %v9939
    %10200 = vmatpush.bf16.msra.mxu0 %v9972
    %10201 = vmatpush.bf16.msra.mxu0 %v9968
    %10202 = vmatpush.bf16.msra.mxu0 %v9964
    %10203 = vmatpush.bf16.msra.mxu0 %v9960
    %10204 = vmatpush.bf16.msra.mxu0 %v9956
    %10205 = vmatpush.bf16.msra.mxu0 %v9952
    %10206 = vmatpush.bf16.msra.mxu0 %v9948
    %10207 = vmatpush.bf16.msra.mxu0 %v9944
    %10208 = vmatmul.bf16.gmra.mxu0 %v9416
    %v10209 = vpop.f32.mrf.mxu0
    %v10210 = vadd.f32 %v9552, %v10209
    %v10211 = vpop.f32.mrf.mxu0
    %v10212 = vadd.f32 %v9552, %v10211
    %10213 = vdwg.mxu0
    %10214 = vmatpush.bf16.msra.mxu0 %v10004
    %10215 = vmatpush.bf16.msra.mxu0 %v10000
    %10216 = vmatpush.bf16.msra.mxu0 %v9996
    %10217 = vmatpush.bf16.msra.mxu0 %v9992
    %10218 = vmatpush.bf16.msra.mxu0 %v9988
    %10219 = vmatpush.bf16.msra.mxu0 %v9984
    %10220 = vmatpush.bf16.msra.mxu0 %v9980
    %10221 = vmatpush.bf16.msra.mxu0 %v9976
    %10222 = vmatmul.bf16.gmra.mxu0 %v9417
    %v10223 = vpop.f32.mrf.mxu0
    %v10224 = vadd.f32 %v10210, %v10223
    %v10225 = vpop.f32.mrf.mxu0
    %v10226 = vadd.f32 %v10212, %v10225
    %10227 = vdwg.mxu0
    %10228 = vmatpush.bf16.msra.mxu0 %v10036
    %10229 = vmatpush.bf16.msra.mxu0 %v10032
    %10230 = vmatpush.bf16.msra.mxu0 %v10028
    %10231 = vmatpush.bf16.msra.mxu0 %v10024
    %10232 = vmatpush.bf16.msra.mxu0 %v10020
    %10233 = vmatpush.bf16.msra.mxu0 %v10016
    %10234 = vmatpush.bf16.msra.mxu0 %v10012
    %10235 = vmatpush.bf16.msra.mxu0 %v10008
    %10236 = vmatmul.bf16.gmra.mxu0 %v9418
    %v10237 = vpop.f32.mrf.mxu0
    %v10238 = vadd.f32 %v10224, %v10237
    %v10239 = vpop.f32.mrf.mxu0
    %v10240 = vadd.f32 %v10226, %v10239
    %10241 = vdwg.mxu0
    %10242 = vmatpush.bf16.msra.mxu0 %v10068
    %10243 = vmatpush.bf16.msra.mxu0 %v10064
    %10244 = vmatpush.bf16.msra.mxu0 %v10060
    %10245 = vmatpush.bf16.msra.mxu0 %v10056
    %10246 = vmatpush.bf16.msra.mxu0 %v10052
    %10247 = vmatpush.bf16.msra.mxu0 %v10048
    %10248 = vmatpush.bf16.msra.mxu0 %v10044
    %10249 = vmatpush.bf16.msra.mxu0 %v10040
    %10250 = vmatmul.bf16.gmra.mxu0 %v9419
    %v10251 = vpop.f32.mrf.mxu0
    %v10252 = vadd.f32 %v10238, %v10251
    %v10253 = vpop.f32.mrf.mxu0
    %v10254 = vadd.f32 %v10240, %v10253
    %10255 = vdwg.mxu0
    %10256 = vmatpush.bf16.msra.mxu0 %v9973
    %10257 = vmatpush.bf16.msra.mxu0 %v9969
    %10258 = vmatpush.bf16.msra.mxu0 %v9965
    %10259 = vmatpush.bf16.msra.mxu0 %v9961
    %10260 = vmatpush.bf16.msra.mxu0 %v9957
    %10261 = vmatpush.bf16.msra.mxu0 %v9953
    %10262 = vmatpush.bf16.msra.mxu0 %v9949
    %10263 = vmatpush.bf16.msra.mxu0 %v9945
    %10264 = vmatmul.bf16.gmra.mxu0 %v9416
    %v10265 = vpop.f32.mrf.mxu0
    %v10266 = vadd.f32 %v9553, %v10265
    %v10267 = vpop.f32.mrf.mxu0
    %v10268 = vadd.f32 %v9553, %v10267
    %10269 = vdwg.mxu0
    %10270 = vmatpush.bf16.msra.mxu0 %v10005
    %10271 = vmatpush.bf16.msra.mxu0 %v10001
    %10272 = vmatpush.bf16.msra.mxu0 %v9997
    %10273 = vmatpush.bf16.msra.mxu0 %v9993
    %10274 = vmatpush.bf16.msra.mxu0 %v9989
    %10275 = vmatpush.bf16.msra.mxu0 %v9985
    %10276 = vmatpush.bf16.msra.mxu0 %v9981
    %10277 = vmatpush.bf16.msra.mxu0 %v9977
    %10278 = vmatmul.bf16.gmra.mxu0 %v9417
    %v10279 = vpop.f32.mrf.mxu0
    %v10280 = vadd.f32 %v10266, %v10279
    %v10281 = vpop.f32.mrf.mxu0
    %v10282 = vadd.f32 %v10268, %v10281
    %10283 = vdwg.mxu0
    %10284 = vmatpush.bf16.msra.mxu0 %v10037
    %10285 = vmatpush.bf16.msra.mxu0 %v10033
    %10286 = vmatpush.bf16.msra.mxu0 %v10029
    %10287 = vmatpush.bf16.msra.mxu0 %v10025
    %10288 = vmatpush.bf16.msra.mxu0 %v10021
    %10289 = vmatpush.bf16.msra.mxu0 %v10017
    %10290 = vmatpush.bf16.msra.mxu0 %v10013
    %10291 = vmatpush.bf16.msra.mxu0 %v10009
    %10292 = vmatmul.bf16.gmra.mxu0 %v9418
    %v10293 = vpop.f32.mrf.mxu0
    %v10294 = vadd.f32 %v10280, %v10293
    %v10295 = vpop.f32.mrf.mxu0
    %v10296 = vadd.f32 %v10282, %v10295
    %10297 = vdwg.mxu0
    %10298 = vmatpush.bf16.msra.mxu0 %v10069
    %10299 = vmatpush.bf16.msra.mxu0 %v10065
    %10300 = vmatpush.bf16.msra.mxu0 %v10061
    %10301 = vmatpush.bf16.msra.mxu0 %v10057
    %10302 = vmatpush.bf16.msra.mxu0 %v10053
    %10303 = vmatpush.bf16.msra.mxu0 %v10049
    %10304 = vmatpush.bf16.msra.mxu0 %v10045
    %10305 = vmatpush.bf16.msra.mxu0 %v10041
    %10306 = vmatmul.bf16.gmra.mxu0 %v9419
    %v10307 = vpop.f32.mrf.mxu0
    %v10308 = vadd.f32 %v10294, %v10307
    %v10309 = vpop.f32.mrf.mxu0
    %v10310 = vadd.f32 %v10296, %v10309
    %10311 = vdwg.mxu0
    %10312 = vmatpush.bf16.msra.mxu0 %v9974
    %10313 = vmatpush.bf16.msra.mxu0 %v9970
    %10314 = vmatpush.bf16.msra.mxu0 %v9966
    %10315 = vmatpush.bf16.msra.mxu0 %v9962
    %10316 = vmatpush.bf16.msra.mxu0 %v9958
    %10317 = vmatpush.bf16.msra.mxu0 %v9954
    %10318 = vmatpush.bf16.msra.mxu0 %v9950
    %10319 = vmatpush.bf16.msra.mxu0 %v9946
    %10320 = vmatmul.bf16.gmra.mxu0 %v9416
    %v10321 = vpop.f32.mrf.mxu0
    %v10322 = vadd.f32 %v9554, %v10321
    %v10323 = vpop.f32.mrf.mxu0
    %v10324 = vadd.f32 %v9554, %v10323
    %10325 = vdwg.mxu0
    %10326 = vmatpush.bf16.msra.mxu0 %v10006
    %10327 = vmatpush.bf16.msra.mxu0 %v10002
    %10328 = vmatpush.bf16.msra.mxu0 %v9998
    %10329 = vmatpush.bf16.msra.mxu0 %v9994
    %10330 = vmatpush.bf16.msra.mxu0 %v9990
    %10331 = vmatpush.bf16.msra.mxu0 %v9986
    %10332 = vmatpush.bf16.msra.mxu0 %v9982
    %10333 = vmatpush.bf16.msra.mxu0 %v9978
    %10334 = vmatmul.bf16.gmra.mxu0 %v9417
    %v10335 = vpop.f32.mrf.mxu0
    %v10336 = vadd.f32 %v10322, %v10335
    %v10337 = vpop.f32.mrf.mxu0
    %v10338 = vadd.f32 %v10324, %v10337
    %10339 = vdwg.mxu0
    %10340 = vmatpush.bf16.msra.mxu0 %v10038
    %10341 = vmatpush.bf16.msra.mxu0 %v10034
    %10342 = vmatpush.bf16.msra.mxu0 %v10030
    %10343 = vmatpush.bf16.msra.mxu0 %v10026
    %10344 = vmatpush.bf16.msra.mxu0 %v10022
    %10345 = vmatpush.bf16.msra.mxu0 %v10018
    %10346 = vmatpush.bf16.msra.mxu0 %v10014
    %10347 = vmatpush.bf16.msra.mxu0 %v10010
    %10348 = vmatmul.bf16.gmra.mxu0 %v9418
    %v10349 = vpop.f32.mrf.mxu0
    %v10350 = vadd.f32 %v10336, %v10349
    %v10351 = vpop.f32.mrf.mxu0
    %v10352 = vadd.f32 %v10338, %v10351
    %10353 = vdwg.mxu0
    %10354 = vmatpush.bf16.msra.mxu0 %v10070
    %10355 = vmatpush.bf16.msra.mxu0 %v10066
    %10356 = vmatpush.bf16.msra.mxu0 %v10062
    %10357 = vmatpush.bf16.msra.mxu0 %v10058
    %10358 = vmatpush.bf16.msra.mxu0 %v10054
    %10359 = vmatpush.bf16.msra.mxu0 %v10050
    %10360 = vmatpush.bf16.msra.mxu0 %v10046
    %10361 = vmatpush.bf16.msra.mxu0 %v10042
    %10362 = vmatmul.bf16.gmra.mxu0 %v9419
    %v10363 = vpop.f32.mrf.mxu0
    %v10364 = vadd.f32 %v10350, %v10363
    %v10365 = vpop.f32.mrf.mxu0
    %v10366 = vadd.f32 %v10352, %v10365
    %10367 = vdwg.mxu0
    %10368 = vmatpush.bf16.msra.mxu0 %v9975
    %10369 = vmatpush.bf16.msra.mxu0 %v9971
    %10370 = vmatpush.bf16.msra.mxu0 %v9967
    %10371 = vmatpush.bf16.msra.mxu0 %v9963
    %10372 = vmatpush.bf16.msra.mxu0 %v9959
    %10373 = vmatpush.bf16.msra.mxu0 %v9955
    %10374 = vmatpush.bf16.msra.mxu0 %v9951
    %10375 = vmatpush.bf16.msra.mxu0 %v9947
    %10376 = vmatmul.bf16.gmra.mxu0 %v9416
    %v10377 = vpop.f32.mrf.mxu0
    %v10378 = vadd.f32 %v9555, %v10377
    %v10379 = vpop.f32.mrf.mxu0
    %v10380 = vadd.f32 %v9555, %v10379
    %10381 = vdwg.mxu0
    %10382 = vmatpush.bf16.msra.mxu0 %v10007
    %10383 = vmatpush.bf16.msra.mxu0 %v10003
    %10384 = vmatpush.bf16.msra.mxu0 %v9999
    %10385 = vmatpush.bf16.msra.mxu0 %v9995
    %10386 = vmatpush.bf16.msra.mxu0 %v9991
    %10387 = vmatpush.bf16.msra.mxu0 %v9987
    %10388 = vmatpush.bf16.msra.mxu0 %v9983
    %10389 = vmatpush.bf16.msra.mxu0 %v9979
    %10390 = vmatmul.bf16.gmra.mxu0 %v9417
    %v10391 = vpop.f32.mrf.mxu0
    %v10392 = vadd.f32 %v10378, %v10391
    %v10393 = vpop.f32.mrf.mxu0
    %v10394 = vadd.f32 %v10380, %v10393
    %10395 = vdwg.mxu0
    %10396 = vmatpush.bf16.msra.mxu0 %v10039
    %10397 = vmatpush.bf16.msra.mxu0 %v10035
    %10398 = vmatpush.bf16.msra.mxu0 %v10031
    %10399 = vmatpush.bf16.msra.mxu0 %v10027
    %10400 = vmatpush.bf16.msra.mxu0 %v10023
    %10401 = vmatpush.bf16.msra.mxu0 %v10019
    %10402 = vmatpush.bf16.msra.mxu0 %v10015
    %10403 = vmatpush.bf16.msra.mxu0 %v10011
    %10404 = vmatmul.bf16.gmra.mxu0 %v9418
    %v10405 = vpop.f32.mrf.mxu0
    %v10406 = vadd.f32 %v10392, %v10405
    %v10407 = vpop.f32.mrf.mxu0
    %v10408 = vadd.f32 %v10394, %v10407
    %10409 = vdwg.mxu0
    %10410 = vmatpush.bf16.msra.mxu0 %v10071
    %10411 = vmatpush.bf16.msra.mxu0 %v10067
    %10412 = vmatpush.bf16.msra.mxu0 %v10063
    %10413 = vmatpush.bf16.msra.mxu0 %v10059
    %10414 = vmatpush.bf16.msra.mxu0 %v10055
    %10415 = vmatpush.bf16.msra.mxu0 %v10051
    %10416 = vmatpush.bf16.msra.mxu0 %v10047
    %10417 = vmatpush.bf16.msra.mxu0 %v10043
    %10418 = vmatmul.bf16.gmra.mxu0 %v9419
    %v10419 = vpop.f32.mrf.mxu0
    %v10420 = vadd.f32 %v10406, %v10419
    %v10421 = vpop.f32.mrf.mxu0
    %v10422 = vadd.f32 %v10408, %v10421
    %10423 = vdwg.mxu0
    %v10424 = vmax.f32 %v10252, 0.0
    %v10425 = vmax.f32 %v10308, 0.0
    %v10426 = vmax.f32 %v10364, 0.0
    %v10427 = vmax.f32 %v10420, 0.0
    %v10428 = vmax.f32 %v10254, 0.0
    %v10429 = vmax.f32 %v10310, 0.0
    %v10430 = vmax.f32 %v10366, 0.0
    %v10431 = vmax.f32 %v10422, 0.0
    %v10432 = vpack.c.bf16 %v10428, %v10424
    %v10433 = vpack.c.bf16 %v10429, %v10425
    %v10434 = vpack.c.bf16 %v10430, %v10426
    %v10435 = vpack.c.bf16 %v10431, %v10427
    %v10436 = vld [vmem:[#allocation13] sm:$0xf]
    %v10437 = vld [vmem:[#allocation13 + $0x4] sm:$0xf]
    %v10438 = vld [vmem:[#allocation13 + $0x8] sm:$0xf]
    %v10439 = vld [vmem:[#allocation13 + $0xc] sm:$0xf]
    %v10440 = vld [vmem:[#allocation13 + $0x10] sm:$0xf]
    %v10441 = vld [vmem:[#allocation13 + $0x14] sm:$0xf]
    %v10442 = vld [vmem:[#allocation13 + $0x18] sm:$0xf]
    %v10443 = vld [vmem:[#allocation13 + $0x1c] sm:$0xf]
    %v10444 = vld [vmem:[#allocation13 + $0x20] sm:$0xf]
    %v10445 = vld [vmem:[#allocation13 + $0x24] sm:$0xf]
    %v10446 = vld [vmem:[#allocation13 + $0x28] sm:$0xf]
    %v10447 = vld [vmem:[#allocation13 + $0x2c] sm:$0xf]
    %v10448 = vld [vmem:[#allocation13 + $0x30] sm:$0xf]
    %v10449 = vld [vmem:[#allocation13 + $0x34] sm:$0xf]
    %v10450 = vld [vmem:[#allocation13 + $0x38] sm:$0xf]
    %v10451 = vld [vmem:[#allocation13 + $0x3c] sm:$0xf]
    %v10452 = vld [vmem:[#allocation13 + $0x40] sm:$0xf]
    %v10453 = vld [vmem:[#allocation13 + $0x44] sm:$0xf]
    %v10454 = vld [vmem:[#allocation13 + $0x48] sm:$0xf]
    %v10455 = vld [vmem:[#allocation13 + $0x4c] sm:$0xf]
    %v10456 = vld [vmem:[#allocation13 + $0x50] sm:$0xf]
    %v10457 = vld [vmem:[#allocation13 + $0x54] sm:$0xf]
    %v10458 = vld [vmem:[#allocation13 + $0x58] sm:$0xf]
    %v10459 = vld [vmem:[#allocation13 + $0x5c] sm:$0xf]
    %v10460 = vld [vmem:[#allocation13 + $0x60] sm:$0xf]
    %v10461 = vld [vmem:[#allocation13 + $0x64] sm:$0xf]
    %v10462 = vld [vmem:[#allocation13 + $0x68] sm:$0xf]
    %v10463 = vld [vmem:[#allocation13 + $0x6c] sm:$0xf]
    %v10464 = vld [vmem:[#allocation13 + $0x70] sm:$0xf]
    %v10465 = vld [vmem:[#allocation13 + $0x74] sm:$0xf]
    %v10466 = vld [vmem:[#allocation13 + $0x78] sm:$0xf]
    %v10467 = vld [vmem:[#allocation13 + $0x7c] sm:$0xf]
    %v10468 = vld [vmem:[#allocation13 + $0x80] sm:$0xf]
    %v10469 = vld [vmem:[#allocation13 + $0x84] sm:$0xf]
    %v10470 = vld [vmem:[#allocation13 + $0x88] sm:$0xf]
    %v10471 = vld [vmem:[#allocation13 + $0x8c] sm:$0xf]
    %v10472 = vld [vmem:[#allocation13 + $0x90] sm:$0xf]
    %v10473 = vld [vmem:[#allocation13 + $0x94] sm:$0xf]
    %v10474 = vld [vmem:[#allocation13 + $0x98] sm:$0xf]
    %v10475 = vld [vmem:[#allocation13 + $0x9c] sm:$0xf]
    %v10476 = vld [vmem:[#allocation13 + $0xa0] sm:$0xf]
    %v10477 = vld [vmem:[#allocation13 + $0xa4] sm:$0xf]
    %v10478 = vld [vmem:[#allocation13 + $0xa8] sm:$0xf]
    %v10479 = vld [vmem:[#allocation13 + $0xac] sm:$0xf]
    %v10480 = vld [vmem:[#allocation13 + $0xb0] sm:$0xf]
    %v10481 = vld [vmem:[#allocation13 + $0xb4] sm:$0xf]
    %v10482 = vld [vmem:[#allocation13 + $0xb8] sm:$0xf]
    %v10483 = vld [vmem:[#allocation13 + $0xbc] sm:$0xf]
    %v10484 = vld [vmem:[#allocation13 + $0xc0] sm:$0xf]
    %v10485 = vld [vmem:[#allocation13 + $0xc4] sm:$0xf]
    %v10486 = vld [vmem:[#allocation13 + $0xc8] sm:$0xf]
    %v10487 = vld [vmem:[#allocation13 + $0xcc] sm:$0xf]
    %v10488 = vld [vmem:[#allocation13 + $0xd0] sm:$0xf]
    %v10489 = vld [vmem:[#allocation13 + $0xd4] sm:$0xf]
    %v10490 = vld [vmem:[#allocation13 + $0xd8] sm:$0xf]
    %v10491 = vld [vmem:[#allocation13 + $0xdc] sm:$0xf]
    %v10492 = vld [vmem:[#allocation13 + $0xe0] sm:$0xf]
    %v10493 = vld [vmem:[#allocation13 + $0xe4] sm:$0xf]
    %v10494 = vld [vmem:[#allocation13 + $0xe8] sm:$0xf]
    %v10495 = vld [vmem:[#allocation13 + $0xec] sm:$0xf]
    %v10496 = vld [vmem:[#allocation13 + $0xf0] sm:$0xf]
    %v10497 = vld [vmem:[#allocation13 + $0xf4] sm:$0xf]
    %v10498 = vld [vmem:[#allocation13 + $0xf8] sm:$0xf]
    %v10499 = vld [vmem:[#allocation13 + $0xfc] sm:$0xf]
    %v10500 = vld [vmem:[#allocation14] sm:$0x1]
    %v10502 = vperm.slane %v10500, 0
    %v10568 = vunpack.c.l.b16 %v10436
    %v10569 = vunpack.c.l.b16 %v10437
    %v10570 = vunpack.c.l.b16 %v10438
    %v10571 = vunpack.c.l.b16 %v10439
    %v10572 = vunpack.c.l.b16 %v10440
    %v10573 = vunpack.c.l.b16 %v10441
    %v10574 = vunpack.c.l.b16 %v10442
    %v10575 = vunpack.c.l.b16 %v10443
    %v10576 = vunpack.c.l.b16 %v10444
    %v10577 = vunpack.c.l.b16 %v10445
    %v10578 = vunpack.c.l.b16 %v10446
    %v10579 = vunpack.c.l.b16 %v10447
    %v10580 = vunpack.c.l.b16 %v10448
    %v10581 = vunpack.c.l.b16 %v10449
    %v10582 = vunpack.c.l.b16 %v10450
    %v10583 = vunpack.c.l.b16 %v10451
    %v10584 = vunpack.c.l.b16 %v10452
    %v10585 = vunpack.c.l.b16 %v10453
    %v10586 = vunpack.c.l.b16 %v10454
    %v10587 = vunpack.c.l.b16 %v10455
    %v10588 = vunpack.c.l.b16 %v10456
    %v10589 = vunpack.c.l.b16 %v10457
    %v10590 = vunpack.c.l.b16 %v10458
    %v10591 = vunpack.c.l.b16 %v10459
    %v10592 = vunpack.c.l.b16 %v10460
    %v10593 = vunpack.c.l.b16 %v10461
    %v10594 = vunpack.c.l.b16 %v10462
    %v10595 = vunpack.c.l.b16 %v10463
    %v10596 = vunpack.c.l.b16 %v10464
    %v10597 = vunpack.c.l.b16 %v10465
    %v10598 = vunpack.c.l.b16 %v10466
    %v10599 = vunpack.c.l.b16 %v10467
    %v10600 = vunpack.c.l.b16 %v10468
    %v10601 = vunpack.c.l.b16 %v10469
    %v10602 = vunpack.c.l.b16 %v10470
    %v10603 = vunpack.c.l.b16 %v10471
    %v10604 = vunpack.c.l.b16 %v10472
    %v10605 = vunpack.c.l.b16 %v10473
    %v10606 = vunpack.c.l.b16 %v10474
    %v10607 = vunpack.c.l.b16 %v10475
    %v10608 = vunpack.c.l.b16 %v10476
    %v10609 = vunpack.c.l.b16 %v10477
    %v10610 = vunpack.c.l.b16 %v10478
    %v10611 = vunpack.c.l.b16 %v10479
    %v10612 = vunpack.c.l.b16 %v10480
    %v10613 = vunpack.c.l.b16 %v10481
    %v10614 = vunpack.c.l.b16 %v10482
    %v10615 = vunpack.c.l.b16 %v10483
    %v10616 = vunpack.c.l.b16 %v10484
    %v10617 = vunpack.c.l.b16 %v10485
    %v10618 = vunpack.c.l.b16 %v10486
    %v10619 = vunpack.c.l.b16 %v10487
    %v10620 = vunpack.c.l.b16 %v10488
    %v10621 = vunpack.c.l.b16 %v10489
    %v10622 = vunpack.c.l.b16 %v10490
    %v10623 = vunpack.c.l.b16 %v10491
    %v10624 = vunpack.c.l.b16 %v10492
    %v10625 = vunpack.c.l.b16 %v10493
    %v10626 = vunpack.c.l.b16 %v10494
    %v10627 = vunpack.c.l.b16 %v10495
    %v10628 = vunpack.c.l.b16 %v10496
    %v10629 = vunpack.c.l.b16 %v10497
    %v10630 = vunpack.c.l.b16 %v10498
    %v10631 = vunpack.c.l.b16 %v10499
    %v10632 = vpack.c.b16 %v10569, %v10568
    %v10633 = vpack.c.b16 %v10571, %v10570
    %v10634 = vpack.c.b16 %v10573, %v10572
    %v10635 = vpack.c.b16 %v10575, %v10574
    %v10636 = vpack.c.b16 %v10577, %v10576
    %v10637 = vpack.c.b16 %v10579, %v10578
    %v10638 = vpack.c.b16 %v10581, %v10580
    %v10639 = vpack.c.b16 %v10583, %v10582
    %v10640 = vpack.c.b16 %v10585, %v10584
    %v10641 = vpack.c.b16 %v10587, %v10586
    %v10642 = vpack.c.b16 %v10589, %v10588
    %v10643 = vpack.c.b16 %v10591, %v10590
    %v10644 = vpack.c.b16 %v10593, %v10592
    %v10645 = vpack.c.b16 %v10595, %v10594
    %v10646 = vpack.c.b16 %v10597, %v10596
    %v10647 = vpack.c.b16 %v10599, %v10598
    %v10648 = vpack.c.b16 %v10601, %v10600
    %v10649 = vpack.c.b16 %v10603, %v10602
    %v10650 = vpack.c.b16 %v10605, %v10604
    %v10651 = vpack.c.b16 %v10607, %v10606
    %v10652 = vpack.c.b16 %v10609, %v10608
    %v10653 = vpack.c.b16 %v10611, %v10610
    %v10654 = vpack.c.b16 %v10613, %v10612
    %v10655 = vpack.c.b16 %v10615, %v10614
    %v10656 = vpack.c.b16 %v10617, %v10616
    %v10657 = vpack.c.b16 %v10619, %v10618
    %v10658 = vpack.c.b16 %v10621, %v10620
    %v10659 = vpack.c.b16 %v10623, %v10622
    %v10660 = vpack.c.b16 %v10625, %v10624
    %v10661 = vpack.c.b16 %v10627, %v10626
    %v10662 = vpack.c.b16 %v10629, %v10628
    %v10663 = vpack.c.b16 %v10631, %v10630
    %10696 = vmatpush.bf16.msra.mxu0 %v10639
    %10697 = vmatpush.bf16.msra.mxu0 %v10638
    %10698 = vmatpush.bf16.msra.mxu0 %v10637
    %10699 = vmatpush.bf16.msra.mxu0 %v10636
    %10700 = vmatpush.bf16.msra.mxu0 %v10635
    %10701 = vmatpush.bf16.msra.mxu0 %v10634
    %10702 = vmatpush.bf16.msra.mxu0 %v10633
    %10703 = vmatpush.bf16.msra.mxu0 %v10632
    %10704 = vmatmul.bf16.gmra.mxu0 %v10432
    %v10705 = vpop.f32.mrf.mxu0
    %v10706 = vadd.f32 %v10502, %v10705
    %v10707 = vpop.f32.mrf.mxu0
    %v10708 = vadd.f32 %v10502, %v10707
    %10709 = vdwg.mxu0
    %10710 = vmatpush.bf16.msra.mxu0 %v10647
    %10711 = vmatpush.bf16.msra.mxu0 %v10646
    %10712 = vmatpush.bf16.msra.mxu0 %v10645
    %10713 = vmatpush.bf16.msra.mxu0 %v10644
    %10714 = vmatpush.bf16.msra.mxu0 %v10643
    %10715 = vmatpush.bf16.msra.mxu0 %v10642
    %10716 = vmatpush.bf16.msra.mxu0 %v10641
    %10717 = vmatpush.bf16.msra.mxu0 %v10640
    %10718 = vmatmul.bf16.gmra.mxu0 %v10433
    %v10719 = vpop.f32.mrf.mxu0
    %v10720 = vadd.f32 %v10706, %v10719
    %v10721 = vpop.f32.mrf.mxu0
    %v10722 = vadd.f32 %v10708, %v10721
    %10723 = vdwg.mxu0
    %10724 = vmatpush.bf16.msra.mxu0 %v10655
    %10725 = vmatpush.bf16.msra.mxu0 %v10654
    %10726 = vmatpush.bf16.msra.mxu0 %v10653
    %10727 = vmatpush.bf16.msra.mxu0 %v10652
    %10728 = vmatpush.bf16.msra.mxu0 %v10651
    %10729 = vmatpush.bf16.msra.mxu0 %v10650
    %10730 = vmatpush.bf16.msra.mxu0 %v10649
    %10731 = vmatpush.bf16.msra.mxu0 %v10648
    %10732 = vmatmul.bf16.gmra.mxu0 %v10434
    %v10733 = vpop.f32.mrf.mxu0
    %v10734 = vadd.f32 %v10720, %v10733
    %v10735 = vpop.f32.mrf.mxu0
    %v10736 = vadd.f32 %v10722, %v10735
    %10737 = vdwg.mxu0
    %10738 = vmatpush.bf16.msra.mxu0 %v10663
    %10739 = vmatpush.bf16.msra.mxu0 %v10662
    %10740 = vmatpush.bf16.msra.mxu0 %v10661
    %10741 = vmatpush.bf16.msra.mxu0 %v10660
    %10742 = vmatpush.bf16.msra.mxu0 %v10659
    %10743 = vmatpush.bf16.msra.mxu0 %v10658
    %10744 = vmatpush.bf16.msra.mxu0 %v10657
    %10745 = vmatpush.bf16.msra.mxu0 %v10656
    %10746 = vmatmul.bf16.gmra.mxu0 %v10435
    %v10747 = vpop.f32.mrf.mxu0
    %v10748 = vadd.f32 %v10734, %v10747
    %v10749 = vpop.f32.mrf.mxu0
    %v10750 = vadd.f32 %v10736, %v10749
    %10751 = vdwg.mxu0
    %v10752 = vmax.f32 %v10748, 0.0
    %v10753 = vmax.f32 %v10750, 0.0
    %v10754 = vpack.c.bf16 %v10753, %v10752
    %v10755 = vld [vmem:[#allocation16] sm:$0xff]
    %v10756 = vld [vmem:[#allocation16 + $0x8] sm:$0xff]
    %v10757 = vld [vmem:[#allocation16 + $0x10] sm:$0xff]
    %v10758 = vld [vmem:[#allocation16 + $0x18] sm:$0xff]
    %v10759 = vld [vmem:[#allocation16 + $0x20] sm:$0xff]
    %v10760 = vld [vmem:[#allocation16 + $0x28] sm:$0xff]
    %v10761 = vld [vmem:[#allocation16 + $0x30] sm:$0xff]
    %v10762 = vld [vmem:[#allocation16 + $0x38] sm:$0xff]
    %v10763 = vld [vmem:[#allocation16 + $0x40] sm:$0xff]
    %v10764 = vld [vmem:[#allocation16 + $0x48] sm:$0xff]
    %v10765 = vld [vmem:[#allocation16 + $0x50] sm:$0xff]
    %v10766 = vld [vmem:[#allocation16 + $0x58] sm:$0xff]
    %v10767 = vld [vmem:[#allocation16 + $0x60] sm:$0xff]
    %v10768 = vld [vmem:[#allocation16 + $0x68] sm:$0xff]
    %v10769 = vld [vmem:[#allocation16 + $0x70] sm:$0xff]
    %v10770 = vld [vmem:[#allocation16 + $0x78] sm:$0xff]
    %v10771 = vld [vmem:[#allocation17] sm:$0x3]
    %v10773 = vperm.slane %v10771, 0
    %v10774 = vperm.slane %v10771, 1
    %v10793 = vunpack.c.l.b16 %v10755
    %v10794 = vunpack.c.h.b16 %v10755
    %v10795 = vunpack.c.l.b16 %v10756
    %v10796 = vunpack.c.h.b16 %v10756
    %v10797 = vunpack.c.l.b16 %v10757
    %v10798 = vunpack.c.h.b16 %v10757
    %v10799 = vunpack.c.l.b16 %v10758
    %v10800 = vunpack.c.h.b16 %v10758
    %v10801 = vunpack.c.l.b16 %v10759
    %v10802 = vunpack.c.h.b16 %v10759
    %v10803 = vunpack.c.l.b16 %v10760
    %v10804 = vunpack.c.h.b16 %v10760
    %v10805 = vunpack.c.l.b16 %v10761
    %v10806 = vunpack.c.h.b16 %v10761
    %v10807 = vunpack.c.l.b16 %v10762
    %v10808 = vunpack.c.h.b16 %v10762
    %v10809 = vunpack.c.l.b16 %v10763
    %v10810 = vunpack.c.h.b16 %v10763
    %v10811 = vunpack.c.l.b16 %v10764
    %v10812 = vunpack.c.h.b16 %v10764
    %v10813 = vunpack.c.l.b16 %v10765
    %v10814 = vunpack.c.h.b16 %v10765
    %v10815 = vunpack.c.l.b16 %v10766
    %v10816 = vunpack.c.h.b16 %v10766
    %v10817 = vunpack.c.l.b16 %v10767
    %v10818 = vunpack.c.h.b16 %v10767
    %v10819 = vunpack.c.l.b16 %v10768
    %v10820 = vunpack.c.h.b16 %v10768
    %v10821 = vunpack.c.l.b16 %v10769
    %v10822 = vunpack.c.h.b16 %v10769
    %v10823 = vunpack.c.l.b16 %v10770
    %v10824 = vunpack.c.h.b16 %v10770
    %v10825 = vpack.c.b16 %v10795, %v10793
    %v10826 = vpack.c.b16 %v10796, %v10794
    %v10827 = vpack.c.b16 %v10799, %v10797
    %v10828 = vpack.c.b16 %v10800, %v10798
    %v10829 = vpack.c.b16 %v10803, %v10801
    %v10830 = vpack.c.b16 %v10804, %v10802
    %v10831 = vpack.c.b16 %v10807, %v10805
    %v10832 = vpack.c.b16 %v10808, %v10806
    %v10833 = vpack.c.b16 %v10811, %v10809
    %v10834 = vpack.c.b16 %v10812, %v10810
    %v10835 = vpack.c.b16 %v10815, %v10813
    %v10836 = vpack.c.b16 %v10816, %v10814
    %v10837 = vpack.c.b16 %v10819, %v10817
    %v10838 = vpack.c.b16 %v10820, %v10818
    %v10839 = vpack.c.b16 %v10823, %v10821
    %v10840 = vpack.c.b16 %v10824, %v10822
    %10857 = vmatpush.bf16.msra.mxu0 %v10839
    %10858 = vmatpush.bf16.msra.mxu0 %v10837
    %10859 = vmatpush.bf16.msra.mxu0 %v10835
    %10860 = vmatpush.bf16.msra.mxu0 %v10833
    %10861 = vmatpush.bf16.msra.mxu0 %v10831
    %10862 = vmatpush.bf16.msra.mxu0 %v10829
    %10863 = vmatpush.bf16.msra.mxu0 %v10827
    %10864 = vmatpush.bf16.msra.mxu0 %v10825
    %10865 = vmatmul.bf16.gmra.mxu0 %v10754
    %v10866 = vpop.f32.mrf.mxu0
    %v10867 = vadd.f32 %v10773, %v10866
    %v10868 = vpop.f32.mrf.mxu0
    %v10869 = vadd.f32 %v10773, %v10868
    %10870 = vdwg.mxu0
    %10871 = vmatpush.bf16.msra.mxu0 %v10840
    %10872 = vmatpush.bf16.msra.mxu0 %v10838
    %10873 = vmatpush.bf16.msra.mxu0 %v10836
    %10874 = vmatpush.bf16.msra.mxu0 %v10834
    %10875 = vmatpush.bf16.msra.mxu0 %v10832
    %10876 = vmatpush.bf16.msra.mxu0 %v10830
    %10877 = vmatpush.bf16.msra.mxu0 %v10828
    %10878 = vmatpush.bf16.msra.mxu0 %v10826
    %10879 = vmatmul.bf16.gmra.mxu0 %v10754
    %v10880 = vpop.f32.mrf.mxu0
    %v10881 = vadd.f32 %v10774, %v10880
    %v10882 = vpop.f32.mrf.mxu0
    %v10883 = vadd.f32 %v10774, %v10882
    %10884 = vdwg.mxu0
    %v10885 = vmul.f32 %v10881, 0.5
    %v10886 = vmul.f32 %v10883, 0.5
    %v10887 = vmul.f32 %v10885, 1.442695
    %v10888 = vpow.pop %v10887
    %v10889 = vmul.f32 %v10886, 1.442695
    %v10890 = vpow.pop %v10889
    %v10891 = vld [vmem:[#allocation5] sm:$0xff]
    %v10892 = vld [vmem:[#allocation5 + $0x8] sm:$0xff]
    %v10893 = vmul.f32 %v10888, %v10891
    %v10894 = vmul.f32 %v10890, %v10892
    %v10895 = vadd.f32 %v10867, %v10893
    %v10896 = vadd.f32 %v10869, %v10894
    %v10897 = vld [vmem:[#allocation19] sm:$0xff]
    %v10898 = vld [vmem:[#allocation19 + $0x8] sm:$0xff]
    %v10899 = vld [vmem:[#allocation19 + $0x10] sm:$0xff]
    %v10900 = vld [vmem:[#allocation19 + $0x18] sm:$0xff]
    %v10901 = vld [vmem:[#allocation19 + $0x20] sm:$0xff]
    %v10902 = vld [vmem:[#allocation19 + $0x28] sm:$0xff]
    %v10903 = vld [vmem:[#allocation19 + $0x30] sm:$0xff]
    %v10904 = vld [vmem:[#allocation19 + $0x38] sm:$0xff]
    %v10905 = vld [vmem:[#allocation19 + $0x40] sm:$0xff]
    %v10906 = vld [vmem:[#allocation19 + $0x48] sm:$0xff]
    %v10907 = vld [vmem:[#allocation19 + $0x50] sm:$0xff]
    %v10908 = vld [vmem:[#allocation19 + $0x58] sm:$0xff]
    %v10909 = vld [vmem:[#allocation19 + $0x60] sm:$0xff]
    %v10910 = vld [vmem:[#allocation19 + $0x68] sm:$0xff]
    %v10911 = vld [vmem:[#allocation19 + $0x70] sm:$0xff]
    %v10912 = vld [vmem:[#allocation19 + $0x78] sm:$0xff]
    %v10913 = vld [vmem:[#allocation19 + $0x80] sm:$0xff]
    %v10914 = vld [vmem:[#allocation19 + $0x88] sm:$0xff]
    %v10915 = vld [vmem:[#allocation19 + $0x90] sm:$0xff]
    %v10916 = vld [vmem:[#allocation19 + $0x98] sm:$0xff]
    %v10917 = vld [vmem:[#allocation19 + $0xa0] sm:$0xff]
    %v10918 = vld [vmem:[#allocation19 + $0xa8] sm:$0xff]
    %v10919 = vld [vmem:[#allocation19 + $0xb0] sm:$0xff]
    %v10920 = vld [vmem:[#allocation19 + $0xb8] sm:$0xff]
    %v10921 = vld [vmem:[#allocation19 + $0xc0] sm:$0xff]
    %v10922 = vld [vmem:[#allocation19 + $0xc8] sm:$0xff]
    %v10923 = vld [vmem:[#allocation19 + $0xd0] sm:$0xff]
    %v10924 = vld [vmem:[#allocation19 + $0xd8] sm:$0xff]
    %v10925 = vld [vmem:[#allocation19 + $0xe0] sm:$0xff]
    %v10926 = vld [vmem:[#allocation19 + $0xe8] sm:$0xff]
    %v10927 = vld [vmem:[#allocation19 + $0xf0] sm:$0xff]
    %v10928 = vld [vmem:[#allocation19 + $0xf8] sm:$0xff]
    %v10929 = vld [vmem:[#allocation20] sm:$0xf]
    %v10930 = vpack.c.bf16 %v10896, %v10895
    %v10932 = vperm.slane %v10929, 0
    %v10933 = vperm.slane %v10929, 1
    %v10934 = vperm.slane %v10929, 2
    %v10935 = vperm.slane %v10929, 3
    %v10972 = vunpack.c.l.b16 %v10897
    %v10973 = vunpack.c.h.b16 %v10897
    %v10974 = vunpack.c.l.b16 %v10898
    %v10975 = vunpack.c.h.b16 %v10898
    %v10976 = vunpack.c.l.b16 %v10899
    %v10977 = vunpack.c.h.b16 %v10899
    %v10978 = vunpack.c.l.b16 %v10900
    %v10979 = vunpack.c.h.b16 %v10900
    %v10980 = vunpack.c.l.b16 %v10901
    %v10981 = vunpack.c.h.b16 %v10901
    %v10982 = vunpack.c.l.b16 %v10902
    %v10983 = vunpack.c.h.b16 %v10902
    %v10984 = vunpack.c.l.b16 %v10903
    %v10985 = vunpack.c.h.b16 %v10903
    %v10986 = vunpack.c.l.b16 %v10904
    %v10987 = vunpack.c.h.b16 %v10904
    %v10988 = vunpack.c.l.b16 %v10905
    %v10989 = vunpack.c.h.b16 %v10905
    %v10990 = vunpack.c.l.b16 %v10906
    %v10991 = vunpack.c.h.b16 %v10906
    %v10992 = vunpack.c.l.b16 %v10907
    %v10993 = vunpack.c.h.b16 %v10907
    %v10994 = vunpack.c.l.b16 %v10908
    %v10995 = vunpack.c.h.b16 %v10908
    %v10996 = vunpack.c.l.b16 %v10909
    %v10997 = vunpack.c.h.b16 %v10909
    %v10998 = vunpack.c.l.b16 %v10910
    %v10999 = vunpack.c.h.b16 %v10910
    %v11000 = vunpack.c.l.b16 %v10911
    %v11001 = vunpack.c.h.b16 %v10911
    %v11002 = vunpack.c.l.b16 %v10912
    %v11003 = vunpack.c.h.b16 %v10912
    %v11004 = vunpack.c.l.b16 %v10913
    %v11005 = vunpack.c.h.b16 %v10913
    %v11006 = vunpack.c.l.b16 %v10914
    %v11007 = vunpack.c.h.b16 %v10914
    %v11008 = vunpack.c.l.b16 %v10915
    %v11009 = vunpack.c.h.b16 %v10915
    %v11010 = vunpack.c.l.b16 %v10916
    %v11011 = vunpack.c.h.b16 %v10916
    %v11012 = vunpack.c.l.b16 %v10917
    %v11013 = vunpack.c.h.b16 %v10917
    %v11014 = vunpack.c.l.b16 %v10918
    %v11015 = vunpack.c.h.b16 %v10918
    %v11016 = vunpack.c.l.b16 %v10919
    %v11017 = vunpack.c.h.b16 %v10919
    %v11018 = vunpack.c.l.b16 %v10920
    %v11019 = vunpack.c.h.b16 %v10920
    %v11020 = vunpack.c.l.b16 %v10921
    %v11021 = vunpack.c.h.b16 %v10921
    %v11022 = vunpack.c.l.b16 %v10922
    %v11023 = vunpack.c.h.b16 %v10922
    %v11024 = vunpack.c.l.b16 %v10923
    %v11025 = vunpack.c.h.b16 %v10923
    %v11026 = vunpack.c.l.b16 %v10924
    %v11027 = vunpack.c.h.b16 %v10924
    %v11028 = vunpack.c.l.b16 %v10925
    %v11029 = vunpack.c.h.b16 %v10925
    %v11030 = vunpack.c.l.b16 %v10926
    %v11031 = vunpack.c.h.b16 %v10926
    %v11032 = vunpack.c.l.b16 %v10927
    %v11033 = vunpack.c.h.b16 %v10927
    %v11034 = vunpack.c.l.b16 %v10928
    %v11035 = vunpack.c.h.b16 %v10928
    %v11036 = vpack.c.b16 %v10976, %v10972
    %v11037 = vpack.c.b16 %v10977, %v10973
    %v11038 = vpack.c.b16 %v10978, %v10974
    %v11039 = vpack.c.b16 %v10979, %v10975
    %v11040 = vpack.c.b16 %v10984, %v10980
    %v11041 = vpack.c.b16 %v10985, %v10981
    %v11042 = vpack.c.b16 %v10986, %v10982
    %v11043 = vpack.c.b16 %v10987, %v10983
    %v11044 = vpack.c.b16 %v10992, %v10988
    %v11045 = vpack.c.b16 %v10993, %v10989
    %v11046 = vpack.c.b16 %v10994, %v10990
    %v11047 = vpack.c.b16 %v10995, %v10991
    %v11048 = vpack.c.b16 %v11000, %v10996
    %v11049 = vpack.c.b16 %v11001, %v10997
    %v11050 = vpack.c.b16 %v11002, %v10998
    %v11051 = vpack.c.b16 %v11003, %v10999
    %v11052 = vpack.c.b16 %v11008, %v11004
    %v11053 = vpack.c.b16 %v11009, %v11005
    %v11054 = vpack.c.b16 %v11010, %v11006
    %v11055 = vpack.c.b16 %v11011, %v11007
    %v11056 = vpack.c.b16 %v11016, %v11012
    %v11057 = vpack.c.b16 %v11017, %v11013
    %v11058 = vpack.c.b16 %v11018, %v11014
    %v11059 = vpack.c.b16 %v11019, %v11015
    %v11060 = vpack.c.b16 %v11024, %v11020
    %v11061 = vpack.c.b16 %v11025, %v11021
    %v11062 = vpack.c.b16 %v11026, %v11022
    %v11063 = vpack.c.b16 %v11027, %v11023
    %v11064 = vpack.c.b16 %v11032, %v11028
    %v11065 = vpack.c.b16 %v11033, %v11029
    %v11066 = vpack.c.b16 %v11034, %v11030
    %v11067 = vpack.c.b16 %v11035, %v11031
    %11100 = vmatpush.bf16.msra.mxu0 %v11064
    %11101 = vmatpush.bf16.msra.mxu0 %v11060
    %11102 = vmatpush.bf16.msra.mxu0 %v11056
    %11103 = vmatpush.bf16.msra.mxu0 %v11052
    %11104 = vmatpush.bf16.msra.mxu0 %v11048
    %11105 = vmatpush.bf16.msra.mxu0 %v11044
    %11106 = vmatpush.bf16.msra.mxu0 %v11040
    %11107 = vmatpush.bf16.msra.mxu0 %v11036
    %11108 = vmatmul.bf16.gmra.mxu0 %v10930
    %v11109 = vpop.f32.mrf.mxu0
    %v11110 = vadd.f32 %v10932, %v11109
    %v11111 = vpop.f32.mrf.mxu0
    %v11112 = vadd.f32 %v10932, %v11111
    %11113 = vdwg.mxu0
    %11114 = vmatpush.bf16.msra.mxu0 %v11065
    %11115 = vmatpush.bf16.msra.mxu0 %v11061
    %11116 = vmatpush.bf16.msra.mxu0 %v11057
    %11117 = vmatpush.bf16.msra.mxu0 %v11053
    %11118 = vmatpush.bf16.msra.mxu0 %v11049
    %11119 = vmatpush.bf16.msra.mxu0 %v11045
    %11120 = vmatpush.bf16.msra.mxu0 %v11041
    %11121 = vmatpush.bf16.msra.mxu0 %v11037
    %11122 = vmatmul.bf16.gmra.mxu0 %v10930
    %v11123 = vpop.f32.mrf.mxu0
    %v11124 = vadd.f32 %v10933, %v11123
    %v11125 = vpop.f32.mrf.mxu0
    %v11126 = vadd.f32 %v10933, %v11125
    %11127 = vdwg.mxu0
    %11128 = vmatpush.bf16.msra.mxu0 %v11066
    %11129 = vmatpush.bf16.msra.mxu0 %v11062
    %11130 = vmatpush.bf16.msra.mxu0 %v11058
    %11131 = vmatpush.bf16.msra.mxu0 %v11054
    %11132 = vmatpush.bf16.msra.mxu0 %v11050
    %11133 = vmatpush.bf16.msra.mxu0 %v11046
    %11134 = vmatpush.bf16.msra.mxu0 %v11042
    %11135 = vmatpush.bf16.msra.mxu0 %v11038
    %11136 = vmatmul.bf16.gmra.mxu0 %v10930
    %v11137 = vpop.f32.mrf.mxu0
    %v11138 = vadd.f32 %v10934, %v11137
    %v11139 = vpop.f32.mrf.mxu0
    %v11140 = vadd.f32 %v10934, %v11139
    %11141 = vdwg.mxu0
    %11142 = vmatpush.bf16.msra.mxu0 %v11067
    %11143 = vmatpush.bf16.msra.mxu0 %v11063
    %11144 = vmatpush.bf16.msra.mxu0 %v11059
    %11145 = vmatpush.bf16.msra.mxu0 %v11055
    %11146 = vmatpush.bf16.msra.mxu0 %v11051
    %11147 = vmatpush.bf16.msra.mxu0 %v11047
    %11148 = vmatpush.bf16.msra.mxu0 %v11043
    %11149 = vmatpush.bf16.msra.mxu0 %v11039
    %11150 = vmatmul.bf16.gmra.mxu0 %v10930
    %v11151 = vpop.f32.mrf.mxu0
    %v11152 = vadd.f32 %v10935, %v11151
    %v11153 = vpop.f32.mrf.mxu0
    %v11154 = vadd.f32 %v10935, %v11153
    %11155 = vdwg.mxu0
    %v11156 = vmax.f32 %v11110, 0.0
    %v11157 = vmax.f32 %v11124, 0.0
    %v11158 = vmax.f32 %v11138, 0.0
    %v11159 = vmax.f32 %v11152, 0.0
    %v11160 = vmax.f32 %v11112, 0.0
    %v11161 = vmax.f32 %v11126, 0.0
    %v11162 = vmax.f32 %v11140, 0.0
    %v11163 = vmax.f32 %v11154, 0.0
    %v11164 = vpack.c.bf16 %v11160, %v11156
    %v11165 = vpack.c.bf16 %v11161, %v11157
    %v11166 = vpack.c.bf16 %v11162, %v11158
    %v11167 = vpack.c.bf16 %v11163, %v11159
    %v11168 = vld [vmem:[#allocation22] sm:$0xf]
    %v11169 = vld [vmem:[#allocation22 + $0x4] sm:$0xf]
    %v11170 = vld [vmem:[#allocation22 + $0x8] sm:$0xf]
    %v11171 = vld [vmem:[#allocation22 + $0xc] sm:$0xf]
    %v11172 = vld [vmem:[#allocation22 + $0x10] sm:$0xf]
    %v11173 = vld [vmem:[#allocation22 + $0x14] sm:$0xf]
    %v11174 = vld [vmem:[#allocation22 + $0x18] sm:$0xf]
    %v11175 = vld [vmem:[#allocation22 + $0x1c] sm:$0xf]
    %v11176 = vld [vmem:[#allocation22 + $0x20] sm:$0xf]
    %v11177 = vld [vmem:[#allocation22 + $0x24] sm:$0xf]
    %v11178 = vld [vmem:[#allocation22 + $0x28] sm:$0xf]
    %v11179 = vld [vmem:[#allocation22 + $0x2c] sm:$0xf]
    %v11180 = vld [vmem:[#allocation22 + $0x30] sm:$0xf]
    %v11181 = vld [vmem:[#allocation22 + $0x34] sm:$0xf]
    %v11182 = vld [vmem:[#allocation22 + $0x38] sm:$0xf]
    %v11183 = vld [vmem:[#allocation22 + $0x3c] sm:$0xf]
    %v11184 = vld [vmem:[#allocation22 + $0x40] sm:$0xf]
    %v11185 = vld [vmem:[#allocation22 + $0x44] sm:$0xf]
    %v11186 = vld [vmem:[#allocation22 + $0x48] sm:$0xf]
    %v11187 = vld [vmem:[#allocation22 + $0x4c] sm:$0xf]
    %v11188 = vld [vmem:[#allocation22 + $0x50] sm:$0xf]
    %v11189 = vld [vmem:[#allocation22 + $0x54] sm:$0xf]
    %v11190 = vld [vmem:[#allocation22 + $0x58] sm:$0xf]
    %v11191 = vld [vmem:[#allocation22 + $0x5c] sm:$0xf]
    %v11192 = vld [vmem:[#allocation22 + $0x60] sm:$0xf]
    %v11193 = vld [vmem:[#allocation22 + $0x64] sm:$0xf]
    %v11194 = vld [vmem:[#allocation22 + $0x68] sm:$0xf]
    %v11195 = vld [vmem:[#allocation22 + $0x6c] sm:$0xf]
    %v11196 = vld [vmem:[#allocation22 + $0x70] sm:$0xf]
    %v11197 = vld [vmem:[#allocation22 + $0x74] sm:$0xf]
    %v11198 = vld [vmem:[#allocation22 + $0x78] sm:$0xf]
    %v11199 = vld [vmem:[#allocation22 + $0x7c] sm:$0xf]
    %v11200 = vld [vmem:[#allocation22 + $0x80] sm:$0xf]
    %v11201 = vld [vmem:[#allocation22 + $0x84] sm:$0xf]
    %v11202 = vld [vmem:[#allocation22 + $0x88] sm:$0xf]
    %v11203 = vld [vmem:[#allocation22 + $0x8c] sm:$0xf]
    %v11204 = vld [vmem:[#allocation22 + $0x90] sm:$0xf]
    %v11205 = vld [vmem:[#allocation22 + $0x94] sm:$0xf]
    %v11206 = vld [vmem:[#allocation22 + $0x98] sm:$0xf]
    %v11207 = vld [vmem:[#allocation22 + $0x9c] sm:$0xf]
    %v11208 = vld [vmem:[#allocation22 + $0xa0] sm:$0xf]
    %v11209 = vld [vmem:[#allocation22 + $0xa4] sm:$0xf]
    %v11210 = vld [vmem:[#allocation22 + $0xa8] sm:$0xf]
    %v11211 = vld [vmem:[#allocation22 + $0xac] sm:$0xf]
    %v11212 = vld [vmem:[#allocation22 + $0xb0] sm:$0xf]
    %v11213 = vld [vmem:[#allocation22 + $0xb4] sm:$0xf]
    %v11214 = vld [vmem:[#allocation22 + $0xb8] sm:$0xf]
    %v11215 = vld [vmem:[#allocation22 + $0xbc] sm:$0xf]
    %v11216 = vld [vmem:[#allocation22 + $0xc0] sm:$0xf]
    %v11217 = vld [vmem:[#allocation22 + $0xc4] sm:$0xf]
    %v11218 = vld [vmem:[#allocation22 + $0xc8] sm:$0xf]
    %v11219 = vld [vmem:[#allocation22 + $0xcc] sm:$0xf]
    %v11220 = vld [vmem:[#allocation22 + $0xd0] sm:$0xf]
    %v11221 = vld [vmem:[#allocation22 + $0xd4] sm:$0xf]
    %v11222 = vld [vmem:[#allocation22 + $0xd8] sm:$0xf]
    %v11223 = vld [vmem:[#allocation22 + $0xdc] sm:$0xf]
    %v11224 = vld [vmem:[#allocation22 + $0xe0] sm:$0xf]
    %v11225 = vld [vmem:[#allocation22 + $0xe4] sm:$0xf]
    %v11226 = vld [vmem:[#allocation22 + $0xe8] sm:$0xf]
    %v11227 = vld [vmem:[#allocation22 + $0xec] sm:$0xf]
    %v11228 = vld [vmem:[#allocation22 + $0xf0] sm:$0xf]
    %v11229 = vld [vmem:[#allocation22 + $0xf4] sm:$0xf]
    %v11230 = vld [vmem:[#allocation22 + $0xf8] sm:$0xf]
    %v11231 = vld [vmem:[#allocation22 + $0xfc] sm:$0xf]
    %v11232 = vld [vmem:[#allocation23] sm:$0x1]
    %v11234 = vperm.slane %v11232, 0
    %v11300 = vunpack.c.l.b16 %v11168
    %v11301 = vunpack.c.l.b16 %v11169
    %v11302 = vunpack.c.l.b16 %v11170
    %v11303 = vunpack.c.l.b16 %v11171
    %v11304 = vunpack.c.l.b16 %v11172
    %v11305 = vunpack.c.l.b16 %v11173
    %v11306 = vunpack.c.l.b16 %v11174
    %v11307 = vunpack.c.l.b16 %v11175
    %v11308 = vunpack.c.l.b16 %v11176
    %v11309 = vunpack.c.l.b16 %v11177
    %v11310 = vunpack.c.l.b16 %v11178
    %v11311 = vunpack.c.l.b16 %v11179
    %v11312 = vunpack.c.l.b16 %v11180
    %v11313 = vunpack.c.l.b16 %v11181
    %v11314 = vunpack.c.l.b16 %v11182
    %v11315 = vunpack.c.l.b16 %v11183
    %v11316 = vunpack.c.l.b16 %v11184
    %v11317 = vunpack.c.l.b16 %v11185
    %v11318 = vunpack.c.l.b16 %v11186
    %v11319 = vunpack.c.l.b16 %v11187
    %v11320 = vunpack.c.l.b16 %v11188
    %v11321 = vunpack.c.l.b16 %v11189
    %v11322 = vunpack.c.l.b16 %v11190
    %v11323 = vunpack.c.l.b16 %v11191
    %v11324 = vunpack.c.l.b16 %v11192
    %v11325 = vunpack.c.l.b16 %v11193
    %v11326 = vunpack.c.l.b16 %v11194
    %v11327 = vunpack.c.l.b16 %v11195
    %v11328 = vunpack.c.l.b16 %v11196
    %v11329 = vunpack.c.l.b16 %v11197
    %v11330 = vunpack.c.l.b16 %v11198
    %v11331 = vunpack.c.l.b16 %v11199
    %v11332 = vunpack.c.l.b16 %v11200
    %v11333 = vunpack.c.l.b16 %v11201
    %v11334 = vunpack.c.l.b16 %v11202
    %v11335 = vunpack.c.l.b16 %v11203
    %v11336 = vunpack.c.l.b16 %v11204
    %v11337 = vunpack.c.l.b16 %v11205
    %v11338 = vunpack.c.l.b16 %v11206
    %v11339 = vunpack.c.l.b16 %v11207
    %v11340 = vunpack.c.l.b16 %v11208
    %v11341 = vunpack.c.l.b16 %v11209
    %v11342 = vunpack.c.l.b16 %v11210
    %v11343 = vunpack.c.l.b16 %v11211
    %v11344 = vunpack.c.l.b16 %v11212
    %v11345 = vunpack.c.l.b16 %v11213
    %v11346 = vunpack.c.l.b16 %v11214
    %v11347 = vunpack.c.l.b16 %v11215
    %v11348 = vunpack.c.l.b16 %v11216
    %v11349 = vunpack.c.l.b16 %v11217
    %v11350 = vunpack.c.l.b16 %v11218
    %v11351 = vunpack.c.l.b16 %v11219
    %v11352 = vunpack.c.l.b16 %v11220
    %v11353 = vunpack.c.l.b16 %v11221
    %v11354 = vunpack.c.l.b16 %v11222
    %v11355 = vunpack.c.l.b16 %v11223
    %v11356 = vunpack.c.l.b16 %v11224
    %v11357 = vunpack.c.l.b16 %v11225
    %v11358 = vunpack.c.l.b16 %v11226
    %v11359 = vunpack.c.l.b16 %v11227
    %v11360 = vunpack.c.l.b16 %v11228
    %v11361 = vunpack.c.l.b16 %v11229
    %v11362 = vunpack.c.l.b16 %v11230
    %v11363 = vunpack.c.l.b16 %v11231
    %v11364 = vpack.c.b16 %v11301, %v11300
    %v11365 = vpack.c.b16 %v11303, %v11302
    %v11366 = vpack.c.b16 %v11305, %v11304
    %v11367 = vpack.c.b16 %v11307, %v11306
    %v11368 = vpack.c.b16 %v11309, %v11308
    %v11369 = vpack.c.b16 %v11311, %v11310
    %v11370 = vpack.c.b16 %v11313, %v11312
    %v11371 = vpack.c.b16 %v11315, %v11314
    %v11372 = vpack.c.b16 %v11317, %v11316
    %v11373 = vpack.c.b16 %v11319, %v11318
    %v11374 = vpack.c.b16 %v11321, %v11320
    %v11375 = vpack.c.b16 %v11323, %v11322
    %v11376 = vpack.c.b16 %v11325, %v11324
    %v11377 = vpack.c.b16 %v11327, %v11326
    %v11378 = vpack.c.b16 %v11329, %v11328
    %v11379 = vpack.c.b16 %v11331, %v11330
    %v11380 = vpack.c.b16 %v11333, %v11332
    %v11381 = vpack.c.b16 %v11335, %v11334
    %v11382 = vpack.c.b16 %v11337, %v11336
    %v11383 = vpack.c.b16 %v11339, %v11338
    %v11384 = vpack.c.b16 %v11341, %v11340
    %v11385 = vpack.c.b16 %v11343, %v11342
    %v11386 = vpack.c.b16 %v11345, %v11344
    %v11387 = vpack.c.b16 %v11347, %v11346
    %v11388 = vpack.c.b16 %v11349, %v11348
    %v11389 = vpack.c.b16 %v11351, %v11350
    %v11390 = vpack.c.b16 %v11353, %v11352
    %v11391 = vpack.c.b16 %v11355, %v11354
    %v11392 = vpack.c.b16 %v11357, %v11356
    %v11393 = vpack.c.b16 %v11359, %v11358
    %v11394 = vpack.c.b16 %v11361, %v11360
    %v11395 = vpack.c.b16 %v11363, %v11362
    %11428 = vmatpush.bf16.msra.mxu0 %v11371
    %11429 = vmatpush.bf16.msra.mxu0 %v11370
    %11430 = vmatpush.bf16.msra.mxu0 %v11369
    %11431 = vmatpush.bf16.msra.mxu0 %v11368
    %11432 = vmatpush.bf16.msra.mxu0 %v11367
    %11433 = vmatpush.bf16.msra.mxu0 %v11366
    %11434 = vmatpush.bf16.msra.mxu0 %v11365
    %11435 = vmatpush.bf16.msra.mxu0 %v11364
    %11436 = vmatmul.bf16.gmra.mxu0 %v11164
    %v11437 = vpop.f32.mrf.mxu0
    %v11438 = vadd.f32 %v11234, %v11437
    %v11439 = vpop.f32.mrf.mxu0
    %v11440 = vadd.f32 %v11234, %v11439
    %11441 = vdwg.mxu0
    %11442 = vmatpush.bf16.msra.mxu0 %v11379
    %11443 = vmatpush.bf16.msra.mxu0 %v11378
    %11444 = vmatpush.bf16.msra.mxu0 %v11377
    %11445 = vmatpush.bf16.msra.mxu0 %v11376
    %11446 = vmatpush.bf16.msra.mxu0 %v11375
    %11447 = vmatpush.bf16.msra.mxu0 %v11374
    %11448 = vmatpush.bf16.msra.mxu0 %v11373
    %11449 = vmatpush.bf16.msra.mxu0 %v11372
    %11450 = vmatmul.bf16.gmra.mxu0 %v11165
    %v11451 = vpop.f32.mrf.mxu0
    %v11452 = vadd.f32 %v11438, %v11451
    %v11453 = vpop.f32.mrf.mxu0
    %v11454 = vadd.f32 %v11440, %v11453
    %11455 = vdwg.mxu0
    %11456 = vmatpush.bf16.msra.mxu0 %v11387
    %11457 = vmatpush.bf16.msra.mxu0 %v11386
    %11458 = vmatpush.bf16.msra.mxu0 %v11385
    %11459 = vmatpush.bf16.msra.mxu0 %v11384
    %11460 = vmatpush.bf16.msra.mxu0 %v11383
    %11461 = vmatpush.bf16.msra.mxu0 %v11382
    %11462 = vmatpush.bf16.msra.mxu0 %v11381
    %11463 = vmatpush.bf16.msra.mxu0 %v11380
    %11464 = vmatmul.bf16.gmra.mxu0 %v11166
    %v11465 = vpop.f32.mrf.mxu0
    %v11466 = vadd.f32 %v11452, %v11465
    %v11467 = vpop.f32.mrf.mxu0
    %v11468 = vadd.f32 %v11454, %v11467
    %11469 = vdwg.mxu0
    %11470 = vmatpush.bf16.msra.mxu0 %v11395
    %11471 = vmatpush.bf16.msra.mxu0 %v11394
    %11472 = vmatpush.bf16.msra.mxu0 %v11393
    %11473 = vmatpush.bf16.msra.mxu0 %v11392
    %11474 = vmatpush.bf16.msra.mxu0 %v11391
    %11475 = vmatpush.bf16.msra.mxu0 %v11390
    %11476 = vmatpush.bf16.msra.mxu0 %v11389
    %11477 = vmatpush.bf16.msra.mxu0 %v11388
    %11478 = vmatmul.bf16.gmra.mxu0 %v11167
    %v11479 = vpop.f32.mrf.mxu0
    %v11480 = vadd.f32 %v11466, %v11479
    %v11481 = vpop.f32.mrf.mxu0
    %v11482 = vadd.f32 %v11468, %v11481
    %11483 = vdwg.mxu0
    %11484 = vst [vmem:[#allocation25] sm:$0xff] %v11480
    %11485 = vst [vmem:[#allocation25 + $0x8] sm:$0xff] %v11482
    // Predicated region
    $region114: #{tpu_custom_call.1} parent=1 // pred_check
      _
    $region115: #{tpu_custom_call.1} parent=1 // pred_check_branch
      %11487 = sbr.rel (0) target = $region117
    $region116: #{tpu_custom_call.1} parent=1 // pred_region
      %11489 = vsyncadd [#allocation4], 0
      %s11490 = sshll.u32 [#allocation25], 4
      %s11491 = int_to_ptr.vmem [resolvable:$true] %s11490
      %s11492 = sshll.u32 %s14, 4
      %s11493 = int_to_ptr.hbm [resolvable:$true] %s11492
      %11498 = dma.vmem_to_hbm [thread:$0]  %s11491, 256, %s11493, [#allocation4], 128, 128, 8
    $region117: #{tpu_custom_call.1} parent=1 // pred_fallthru
      _
    // Predicated region
    $region118: #{tpu_custom_call.1} parent=1 // pred_check
      _
    $region119: #{tpu_custom_call.1} parent=1 // pred_check_branch
      %11500 = sbr.rel (0) target = $region121
    $region120: #{tpu_custom_call.1} parent=1 // pred_region
      %11502 = dma.done [#allocation4], 256
    $region121: #{tpu_custom_call.1} parent=1 // pred_fallthru
      _
    %11503 = vsyncpa [#allocation3], 1
    %11504 = vsyncpa [#allocation6], 1
    %11505 = vsyncpa [#allocation9], 1
    %11506 = vsyncpa [#allocation12], 1
    %11507 = vsyncpa [#allocation15], 1
    %11508 = vsyncpa [#allocation18], 1
    %11509 = vsyncpa [#allocation21], 1
    %11510 = vsyncpa [#allocation24], 1
    %11511 = vsyncpa [#allocation4], 1

</llo_original>
